<compile_context>
chip_gen: v7x
topology: tpu7x:2x2x1
jax: 0.10.0
libtpu: 0.0.40
codegen_flags: <defaults>
</compile_context>

<pallas_src>
import functools
import math

import jax
import jax.numpy as jnp
from jax.experimental import pallas as pl
from jax.experimental.pallas import tpu as pltpu

NEG_INF = -1e9        # finite large-negative mask value (avoids NaN on fully masked rows)
LN_EPS = 1e-5
_PARALLEL = pltpu.CompilerParams(dimension_semantics=("parallel",))


# ---------------------------------------------------------------------------
# In-kernel helpers (traced inside the Pallas kernels)
# ---------------------------------------------------------------------------
def _bf16(v):
    return v.astype(jnp.bfloat16)


def _layernorm(y, w, b, eps=LN_EPS):
    mean = jnp.mean(y, axis=-1, keepdims=True)
    var = jnp.mean(jnp.square(y - mean), axis=-1, keepdims=True)
    return (y - mean) * jax.lax.rsqrt(var + eps) * w + b


def _softmax_rows(s):
    mx = jnp.max(s, axis=-1, keepdims=True)
    p = jnp.exp(s - mx)
    denom = jnp.sum(p, axis=-1, keepdims=True)
    return p * pl.reciprocal(denom, approx=True)


def _attend_heads(q, k, v, w_out, mask, num_heads, scale):
    """q:(Tq,E) k,v:(Tk,E) packed heads on lanes; w_out:(E,E) pre-transposed.

    Returns attn_output @ W_out^T, accumulated per head (no concat needed)."""
    Tq, E = q.shape
    Dh = E // num_heads
    acc = jnp.zeros((Tq, E), jnp.float32)
    for h in range(num_heads):                       # static unrolled loop
        lo, hi = h * Dh, (h + 1) * Dh
        qh, kh, vh = q[:, lo:hi], k[:, lo:hi], v[:, lo:hi]
        s = jax.lax.dot_general(qh, kh, (((1,), (1,)), ((), ())),
                                preferred_element_type=jnp.float32) * scale
        if mask is not None:
            s = s + mask
        p = _softmax_rows(s)
        oh = jnp.dot(p, vh, preferred_element_type=jnp.float32)        # (Tq, Dh)
        acc = acc + jnp.dot(_bf16(oh), _bf16(w_out[lo:hi, :]),
                            preferred_element_type=jnp.float32)        # (Tq, E)
    return acc


# ---------------------------------------------------------------------------
# Fused Pallas kernels (one per transformer sub-block)
# ---------------------------------------------------------------------------
def _mha_self_ln_kernel(*refs, num_heads, causal, has_kpm):
    if has_kpm:
        (x_ref, kpm_ref, win_ref, bin_ref, wout_ref, bout_ref,
         lnw_ref, lnb_ref, o_ref) = refs
    else:
        (x_ref, win_ref, bin_ref, wout_ref, bout_ref,
         lnw_ref, lnb_ref, o_ref) = refs
        kpm_ref = None

    x = x_ref[0].astype(jnp.float32)                   # (T, E)
    T, E = x.shape
    scale = 1.0 / math.sqrt(E // num_heads)

    # Fused QKV projection: one lane-dense (T, 3E) matmul on the MXU.
    qkv = jnp.dot(_bf16(x), _bf16(win_ref[...]),
                  preferred_element_type=jnp.float32) + bin_ref[...]   # (T, 3E)
    q, k, v = qkv[:, :E], qkv[:, E:2 * E], qkv[:, 2 * E:]

    mask = None
    if has_kpm:
        mask = kpm_ref[0]                              # (1, T) additive, broadcasts over rows
    if causal:
        row = jax.lax.broadcasted_iota(jnp.int32, (T, T), 0)
        col = jax.lax.broadcasted_iota(jnp.int32, (T, T), 1)
        cm = jnp.where(col > row, NEG_INF, 0.0).astype(jnp.float32)
        mask = cm if mask is None else mask + cm

    attn = _attend_heads(q, k, v, wout_ref[...], mask, num_heads, scale) + bout_ref[...]
    o_ref[0] = _layernorm(x + attn, lnw_ref[...], lnb_ref[...]).astype(o_ref.dtype)


def _mha_cross_ln_kernel(x_ref, mem_ref, win_ref, bin_ref, wout_ref, bout_ref,
                         lnw_ref, lnb_ref, o_ref, *, num_heads):
    x = x_ref[0].astype(jnp.float32)                   # (T, E)
    m = mem_ref[0].astype(jnp.float32)                 # (S, E)
    T, E = x.shape
    scale = 1.0 / math.sqrt(E // num_heads)

    w_in = win_ref[...]
    b_in = bin_ref[...]
    q = jnp.dot(_bf16(x), _bf16(w_in[:, :E]),
                preferred_element_type=jnp.float32) + b_in[:, :E]       # (T, E)
    kv = jnp.dot(_bf16(m), _bf16(w_in[:, E:]),
                 preferred_element_type=jnp.float32) + b_in[:, E:]      # (S, 2E)
    k, v = kv[:, :E], kv[:, E:]

    # NOTE: PyTorch nn.Transformer does not forward src_key_padding_mask as
    # memory_key_padding_mask, so cross-attention is unmasked (matches spec).
    attn = _attend_heads(q, k, v, wout_ref[...], None, num_heads, scale) + bout_ref[...]
    o_ref[0] = _layernorm(x + attn, lnw_ref[...], lnb_ref[...]).astype(o_ref.dtype)


def _ffn_ln_kernel(x_ref, w1_ref, b1_ref, w2_ref, b2_ref, lnw_ref, lnb_ref, o_ref):
    x = x_ref[0].astype(jnp.float32)                   # (T, E)
    h = jnp.dot(_bf16(x), _bf16(w1_ref[...]),
                preferred_element_type=jnp.float32) + b1_ref[...]       # (T, dff)
    h = jnp.maximum(h, 0.0)
    y = jnp.dot(_bf16(h), _bf16(w2_ref[...]),
                preferred_element_type=jnp.float32) + b2_ref[...]       # (T, E)
    o_ref[0] = _layernorm(x + y, lnw_ref[...], lnb_ref[...]).astype(o_ref.dtype)


def _ln_kernel(x_ref, w_ref, b_ref, o_ref):
    x = x_ref[0].astype(jnp.float32)
    o_ref[0] = _layernorm(x, w_ref[...], b_ref[...]).astype(o_ref.dtype)


def _ln_linear_kernel(x_ref, nw_ref, nb_ref, w_ref, b_ref, o_ref):
    x = x_ref[0].astype(jnp.float32)
    y = _layernorm(x, nw_ref[...], nb_ref[...])
    out = jnp.dot(_bf16(y), _bf16(w_ref[...]),
                  preferred_element_type=jnp.float32) + b_ref[...]
    o_ref[0] = out.astype(o_ref.dtype)


# ---------------------------------------------------------------------------
# pallas_call wrappers (grid over the batch dimension, "parallel")
# ---------------------------------------------------------------------------
def _row_spec(rows, cols):
    return pl.BlockSpec((1, rows, cols), lambda n: (n, 0, 0))


def _full_spec(shape):
    nd = len(shape)
    return pl.BlockSpec(tuple(shape), lambda n: (0,) * nd)


def mha_self_ln(x, p, lnw, lnb, *, num_heads, kpm=None, causal=False):
    N, T, E = x.shape
    weights = (p["win_t"], p["bin"], p["wout_t"], p["bout"], lnw, lnb)
    args = (x,) + ((kpm,) if kpm is not None else ()) + weights
    in_specs = [_row_spec(T, E)]
    if kpm is not None:
        in_specs.append(pl.BlockSpec((1, 1, kpm.shape[-1]), lambda n: (n, 0, 0)))
    in_specs += [_full_spec(w.shape) for w in weights]
    kernel = functools.partial(_mha_self_ln_kernel, num_heads=num_heads,
                               causal=causal, has_kpm=kpm is not None)
    return pl.pallas_call(
        kernel,
        out_shape=jax.ShapeDtypeStruct((N, T, E), x.dtype),
        grid=(N,),
        in_specs=in_specs,
        out_specs=_row_spec(T, E),
        compiler_params=_PARALLEL,
    )(*args)


def mha_cross_ln(x, mem, p, lnw, lnb, *, num_heads):
    N, T, E = x.shape
    S = mem.shape[1]
    weights = (p["win_t"], p["bin"], p["wout_t"], p["bout"], lnw, lnb)
    return pl.pallas_call(
        functools.partial(_mha_cross_ln_kernel, num_heads=num_heads),
        out_shape=jax.ShapeDtypeStruct((N, T, E), x.dtype),
        grid=(N,),
        in_specs=[_row_spec(T, E), _row_spec(S, E)] + [_full_spec(w.shape) for w in weights],
        out_specs=_row_spec(T, E),
        compiler_params=_PARALLEL,
    )(x, mem, *weights)


def ffn_ln(x, w1_t, b1, w2_t, b2, lnw, lnb):
    N, T, E = x.shape
    weights = (w1_t, b1, w2_t, b2, lnw, lnb)
    return pl.pallas_call(
        _ffn_ln_kernel,
        out_shape=jax.ShapeDtypeStruct((N, T, E), x.dtype),
        grid=(N,),
        in_specs=[_row_spec(T, E)] + [_full_spec(w.shape) for w in weights],
        out_specs=_row_spec(T, E),
        compiler_params=_PARALLEL,
    )(x, *weights)


def layer_norm3d(x, w, b):
    N, T, E = x.shape
    return pl.pallas_call(
        _ln_kernel,
        out_shape=jax.ShapeDtypeStruct((N, T, E), x.dtype),
        grid=(N,),
        in_specs=[_row_spec(T, E), _full_spec(w.shape), _full_spec(b.shape)],
        out_specs=_row_spec(T, E),
        compiler_params=_PARALLEL,
    )(x, w, b)


def ln_linear(x, nw, nb, w_t, b):
    N, T, E = x.shape
    Vp = w_t.shape[1]
    weights = (nw, nb, w_t, b)
    return pl.pallas_call(
        _ln_linear_kernel,
        out_shape=jax.ShapeDtypeStruct((N, T, Vp), x.dtype),
        grid=(N,),
        in_specs=[_row_spec(T, E)] + [_full_spec(w.shape) for w in weights],
        out_specs=pl.BlockSpec((1, T, Vp), lambda n: (n, 0, 0)),
        compiler_params=_PARALLEL,
    )(x, *weights)


# ---------------------------------------------------------------------------
# Forward pass (JAX glue: embedding gathers, mask construction, layout)
# ---------------------------------------------------------------------------
def translate_transformer_forward(params, x, trg, *, src_pad_idx, num_heads, trg_vocab):
    S, N = x.shape
    T = trg.shape[0]

    # Embedding lookups (gather glue), batch-first (N, seq, E) internal layout.
    src_words = params["src_emb"][x.T] + params["src_pos"][:S][None, :, :]   # (N,S,E)
    trg_words = params["trg_emb"][trg.T] + params["trg_pos"][:T][None, :, :] # (N,T,E)
    # dropout(p=0.1) -> identity (eval mode)

    # Additive key-padding mask row per batch element: (N, 1, S).
    kpm = jnp.where(x.T == src_pad_idx, NEG_INF, 0.0).astype(jnp.float32)[:, None, :]

    mem = src_words
    for p in params["enc"]:
        mem = mha_self_ln(mem, p["attn"], p["n1_w"], p["n1_b"],
                          num_heads=num_heads, kpm=kpm)
        mem = ffn_ln(mem, p["lin1_w_t"], p["lin1_b"], p["lin2_w_t"], p["lin2_b"],
                     p["n2_w"], p["n2_b"])
    mem = layer_norm3d(mem, params["enc_norm_w"], params["enc_norm_b"])

    out = trg_words
    for p in params["dec"]:
        out = mha_self_ln(out, p["self_attn"], p["n1_w"], p["n1_b"],
                          num_heads=num_heads, causal=True)
        out = mha_cross_ln(out, mem, p["cross_attn"], p["n2_w"], p["n2_b"],
                           num_heads=num_heads)
        out = ffn_ln(out, p["lin1_w_t"], p["lin1_b"], p["lin2_w_t"], p["lin2_b"],
                     p["n3_w"], p["n3_b"])

    # Final decoder LayerNorm fused with the (lane-dense, 128-padded) fc_out.
    logits_pad = ln_linear(out, params["dec_norm_w"], params["dec_norm_b"],
                           params["fc_w_t"], params["fc_b"])                 # (N,T,128)
    logits = jnp.transpose(logits_pad[:, :, :trg_vocab], (1, 0, 2))          # (T,N,V)
    return logits


# ---------------------------------------------------------------------------
# Deterministic parameter initialization (kernel-friendly layouts; shapes
# follow the PyTorch module, pre-transposed so the forward has no transposes)
# ---------------------------------------------------------------------------
def init_params(key, E, src_vocab, trg_vocab, num_heads, n_enc, n_dec, max_len, dff,
                lane=128):
    keys = iter(jax.random.split(key, 512))

    def nrm(shape, s=0.02):
        return (s * jax.random.normal(next(keys), shape)).astype(jnp.float32)

    ones = lambda: jnp.ones((1, E), jnp.float32)
    zeros = lambda: jnp.zeros((1, E), jnp.float32)

    def attn_params():
        # win_t = in_proj_weight.T  (E, 3E);  wout_t = out_proj.weight.T (E, E)
        return dict(win_t=nrm((E, 3 * E)), bin=nrm((1, 3 * E)),
                    wout_t=nrm((E, E)), bout=nrm((1, E)))

    def enc_layer():
        return dict(attn=attn_params(),
                    lin1_w_t=nrm((E, dff)), lin1_b=nrm((1, dff)),
                    lin2_w_t=nrm((dff, E)), lin2_b=nrm((1, E)),
                    n1_w=ones(), n1_b=zeros(), n2_w=ones(), n2_b=zeros())

    def dec_layer():
        return dict(self_attn=attn_params(), cross_attn=attn_params(),
                    lin1_w_t=nrm((E, dff)), lin1_b=nrm((1, dff)),
                    lin2_w_t=nrm((dff, E)), lin2_b=nrm((1, E)),
                    n1_w=ones(), n1_b=zeros(), n2_w=ones(), n2_b=zeros(),
                    n3_w=ones(), n3_b=zeros())

    # fc_out padded to a 128-lane output width (lane-dense stores); sliced in JAX.
    v_pad = ((trg_vocab + lane - 1) // lane) * lane
    fc_w_t = jnp.zeros((E, v_pad), jnp.float32).at[:, :trg_vocab].set(nrm((E, trg_vocab)))
    fc_b = jnp.zeros((1, v_pad), jnp.float32).at[:, :trg_vocab].set(nrm((1, trg_vocab)))

    return dict(
        src_emb=nrm((src_vocab, E), 1.0),
        trg_emb=nrm((trg_vocab, E), 1.0),
        src_pos=nrm((max_len, E), 1.0),
        trg_pos=nrm((max_len, E), 1.0),
        enc=[enc_layer() for _ in range(n_enc)],
        dec=[dec_layer() for _ in range(n_dec)],
        enc_norm_w=ones(), enc_norm_b=zeros(),
        dec_norm_w=ones(), dec_norm_b=zeros(),
        fc_w_t=fc_w_t, fc_b=fc_b,
    )


# ---------------------------------------------------------------------------
if __name__ == "__main__":
    embedding_size = 32
    num_heads = 4
    num_encoder_layers = 2
    num_decoder_layers = 2
    max_len = 16
    src_vocab_size = 50
    trg_vocab_size = 37
    dim_feedforward = 2048          # PyTorch nn.Transformer default
    src_pad_idx = 0
    S, T, N = 8, 8, 2               # src_seq_len, trg_seq_len, batch

    key = jax.random.PRNGKey(0)
    pkey, xkey, tkey = jax.random.split(key, 3)

    params = init_params(pkey, embedding_size, src_vocab_size, trg_vocab_size,
                         num_heads, num_encoder_layers, num_decoder_layers,
                         max_len, dim_feedforward)

    x = jax.random.randint(xkey, (S, N), 1, src_vocab_size, dtype=jnp.int32)
    x = x.at[-2:, 0].set(src_pad_idx)   # introduce some padding in batch column 0
    trg = jax.random.randint(tkey, (T, N), 1, trg_vocab_size, dtype=jnp.int32)

    fwd = jax.jit(functools.partial(translate_transformer_forward,
                                    src_pad_idx=src_pad_idx, num_heads=num_heads,
                                    trg_vocab=trg_vocab_size))
    out = fwd(params, x, trg)
    out = jax.block_until_ready(out)

    assert out.shape == (T, N, trg_vocab_size), out.shape
    assert bool(jnp.all(jnp.isfinite(out)))
    print("KERNEL_OK")
</pallas_src>

<mosaic_0001>
module attributes {stable_mosaic.version = 11 : i64} {
  func.func @_mha_self_ln_kernel(%arg0: i32, %arg1: memref<1x8x32xf32, #tpu.memory_space<vmem>>, %arg2: memref<1x1x8xf32, #tpu.memory_space<vmem>>, %arg3: memref<32x96xf32, #tpu.memory_space<vmem>>, %arg4: memref<1x96xf32, #tpu.memory_space<vmem>>, %arg5: memref<32x32xf32, #tpu.memory_space<vmem>>, %arg6: memref<1x32xf32, #tpu.memory_space<vmem>>, %arg7: memref<1x32xf32, #tpu.memory_space<vmem>>, %arg8: memref<1x32xf32, #tpu.memory_space<vmem>>, %arg9: memref<1x8x32xf32, #tpu.memory_space<vmem>>) attributes {dimension_semantics = [#tpu.dimension_semantics<parallel>], iteration_bounds = array<i64: 2>, scalar_prefetch = 0 : i64, scratch_operands = 0 : i64, tpu.core_type = #tpu.core_type<tc>, window_params = [{transform_indices = @transform_0, window_bounds = array<i64: 1, 8, 32>}, {transform_indices = @transform_1, window_bounds = array<i64: 1, 1, 8>}, {pipeline_mode = #tpu.pipeline_mode<synchronous>, transform_indices = @transform_2, window_bounds = array<i64: 32, 96>}, {pipeline_mode = #tpu.pipeline_mode<synchronous>, transform_indices = @transform_3, window_bounds = array<i64: 1, 96>}, {pipeline_mode = #tpu.pipeline_mode<synchronous>, transform_indices = @transform_4, window_bounds = array<i64: 32, 32>}, {pipeline_mode = #tpu.pipeline_mode<synchronous>, transform_indices = @transform_5, window_bounds = array<i64: 1, 32>}, {pipeline_mode = #tpu.pipeline_mode<synchronous>, transform_indices = @transform_6, window_bounds = array<i64: 1, 32>}, {pipeline_mode = #tpu.pipeline_mode<synchronous>, transform_indices = @transform_7, window_bounds = array<i64: 1, 32>}, {transform_indices = @transform_8, window_bounds = array<i64: 1, 8, 32>}]} {
    %c0 = arith.constant 0 : index
    %c0_0 = arith.constant 0 : index
    %c0_1 = arith.constant 0 : index
    %0 = vector.load %arg1[%c0, %c0_0, %c0_1] : memref<1x8x32xf32, #tpu.memory_space<vmem>>, vector<1x8x32xf32>
    %1 = vector.shape_cast %0 : vector<1x8x32xf32> to vector<8x32xf32>
    %2 = arith.truncf %1 : vector<8x32xf32> to vector<8x32xbf16>
    %c0_2 = arith.constant 0 : index
    %c0_3 = arith.constant 0 : index
    %3 = vector.load %arg3[%c0_2, %c0_3] : memref<32x96xf32, #tpu.memory_space<vmem>>, vector<32x96xf32>
    %4 = arith.truncf %3 : vector<32x96xf32> to vector<32x96xbf16>
    %cst = arith.constant dense<0.000000e+00> : vector<8x96xf32>
    %5 = tpu.matmul %2, %4, %cst {dimension_numbers = #tpu.dot_dimension_numbers<[1], [0], [0], [1], [0, 0, 1, 1], [], []>} : vector<8x32xbf16>, vector<32x96xbf16>, vector<8x96xf32> -> vector<8x96xf32>
    %c0_4 = arith.constant 0 : index
    %c0_5 = arith.constant 0 : index
    %6 = vector.load %arg4[%c0_4, %c0_5] : memref<1x96xf32, #tpu.memory_space<vmem>>, vector<1x96xf32>
    %7 = vector.broadcast %6 : vector<1x96xf32> to vector<8x96xf32>
    %8 = arith.addf %5, %7 : vector<8x96xf32>
    %9 = vector.extract_strided_slice %8 {offsets = [0, 0], sizes = [8, 32], strides = [1, 1]} : vector<8x96xf32> to vector<8x32xf32>
    %10 = vector.extract_strided_slice %8 {offsets = [0, 32], sizes = [8, 32], strides = [1, 1]} : vector<8x96xf32> to vector<8x32xf32>
    %11 = vector.extract_strided_slice %8 {offsets = [0, 64], sizes = [8, 32], strides = [1, 1]} : vector<8x96xf32> to vector<8x32xf32>
    %c0_6 = arith.constant 0 : index
    %c0_7 = arith.constant 0 : index
    %c0_8 = arith.constant 0 : index
    %12 = vector.load %arg2[%c0_6, %c0_7, %c0_8] : memref<1x1x8xf32, #tpu.memory_space<vmem>>, vector<1x1x8xf32>
    %13 = vector.shape_cast %12 : vector<1x1x8xf32> to vector<1x8xf32>
    %c0_9 = arith.constant 0 : index
    %c0_10 = arith.constant 0 : index
    %14 = vector.load %arg5[%c0_9, %c0_10] : memref<32x32xf32, #tpu.memory_space<vmem>>, vector<32x32xf32>
    %cst_11 = arith.constant 0.000000e+00 : f32
    %15 = vector.broadcast %cst_11 : f32 to vector<8x32xf32>
    %16 = vector.extract_strided_slice %9 {offsets = [0, 0], sizes = [8, 8], strides = [1, 1]} : vector<8x32xf32> to vector<8x8xf32>
    %17 = vector.extract_strided_slice %10 {offsets = [0, 0], sizes = [8, 8], strides = [1, 1]} : vector<8x32xf32> to vector<8x8xf32>
    %18 = vector.extract_strided_slice %11 {offsets = [0, 0], sizes = [8, 8], strides = [1, 1]} : vector<8x32xf32> to vector<8x8xf32>
    %cst_12 = arith.constant dense<0.000000e+00> : vector<8x8xf32>
    %19 = tpu.matmul %16, %17, %cst_12 {dimension_numbers = #tpu.dot_dimension_numbers<[1], [1], [0], [0], [0, 0, 1, 0], [], []>} : vector<8x8xf32>, vector<8x8xf32>, vector<8x8xf32> -> vector<8x8xf32>
    %cst_13 = arith.constant 0.353553385 : f32
    %20 = vector.broadcast %cst_13 : f32 to vector<8x8xf32>
    %21 = arith.mulf %19, %20 : vector<8x8xf32>
    %22 = vector.broadcast %13 : vector<1x8xf32> to vector<8x8xf32>
    %23 = arith.addf %21, %22 : vector<8x8xf32>
    %cst_14 = arith.constant dense<0xFF800000> : vector<8xf32>
    %24 = vector.multi_reduction <maximumf>, %23, %cst_14 [1] : vector<8x8xf32> to vector<8xf32>
    %25 = vector.shape_cast %24 : vector<8xf32> to vector<8x1xf32>
    %26 = vector.broadcast %25 : vector<8x1xf32> to vector<8x8xf32>
    %27 = arith.subf %23, %26 : vector<8x8xf32>
    %28 = math.exp %27 : vector<8x8xf32>
    %cst_15 = arith.constant dense<0.000000e+00> : vector<8xf32>
    %29 = vector.multi_reduction <add>, %28, %cst_15 [1] : vector<8x8xf32> to vector<8xf32>
    %30 = vector.shape_cast %29 : vector<8xf32> to vector<8x1xf32>
    %31 = tpu.reciprocal %30 {approx = true} : vector<8x1xf32> -> vector<8x1xf32>
    %32 = vector.broadcast %31 : vector<8x1xf32> to vector<8x8xf32>
    %33 = arith.mulf %28, %32 : vector<8x8xf32>
    %cst_16 = arith.constant dense<0.000000e+00> : vector<8x8xf32>
    %34 = tpu.matmul %33, %18, %cst_16 {dimension_numbers = #tpu.dot_dimension_numbers<[1], [0], [0], [1], [0, 0, 1, 1], [], []>} : vector<8x8xf32>, vector<8x8xf32>, vector<8x8xf32> -> vector<8x8xf32>
    %35 = arith.truncf %34 : vector<8x8xf32> to vector<8x8xbf16>
    %36 = vector.extract_strided_slice %14 {offsets = [0, 0], sizes = [8, 32], strides = [1, 1]} : vector<32x32xf32> to vector<8x32xf32>
    %37 = arith.truncf %36 : vector<8x32xf32> to vector<8x32xbf16>
    %cst_17 = arith.constant dense<0.000000e+00> : vector<8x32xf32>
    %38 = tpu.matmul %35, %37, %cst_17 {dimension_numbers = #tpu.dot_dimension_numbers<[1], [0], [0], [1], [0, 0, 1, 1], [], []>} : vector<8x8xbf16>, vector<8x32xbf16>, vector<8x32xf32> -> vector<8x32xf32>
    %39 = arith.addf %15, %38 : vector<8x32xf32>
    %40 = vector.extract_strided_slice %9 {offsets = [0, 8], sizes = [8, 8], strides = [1, 1]} : vector<8x32xf32> to vector<8x8xf32>
    %41 = vector.extract_strided_slice %10 {offsets = [0, 8], sizes = [8, 8], strides = [1, 1]} : vector<8x32xf32> to vector<8x8xf32>
    %42 = vector.extract_strided_slice %11 {offsets = [0, 8], sizes = [8, 8], strides = [1, 1]} : vector<8x32xf32> to vector<8x8xf32>
    %cst_18 = arith.constant dense<0.000000e+00> : vector<8x8xf32>
    %43 = tpu.matmul %40, %41, %cst_18 {dimension_numbers = #tpu.dot_dimension_numbers<[1], [1], [0], [0], [0, 0, 1, 0], [], []>} : vector<8x8xf32>, vector<8x8xf32>, vector<8x8xf32> -> vector<8x8xf32>
    %cst_19 = arith.constant 0.353553385 : f32
    %44 = vector.broadcast %cst_19 : f32 to vector<8x8xf32>
    %45 = arith.mulf %43, %44 : vector<8x8xf32>
    %46 = vector.broadcast %13 : vector<1x8xf32> to vector<8x8xf32>
    %47 = arith.addf %45, %46 : vector<8x8xf32>
    %cst_20 = arith.constant dense<0xFF800000> : vector<8xf32>
    %48 = vector.multi_reduction <maximumf>, %47, %cst_20 [1] : vector<8x8xf32> to vector<8xf32>
    %49 = vector.shape_cast %48 : vector<8xf32> to vector<8x1xf32>
    %50 = vector.broadcast %49 : vector<8x1xf32> to vector<8x8xf32>
    %51 = arith.subf %47, %50 : vector<8x8xf32>
    %52 = math.exp %51 : vector<8x8xf32>
    %cst_21 = arith.constant dense<0.000000e+00> : vector<8xf32>
    %53 = vector.multi_reduction <add>, %52, %cst_21 [1] : vector<8x8xf32> to vector<8xf32>
    %54 = vector.shape_cast %53 : vector<8xf32> to vector<8x1xf32>
    %55 = tpu.reciprocal %54 {approx = true} : vector<8x1xf32> -> vector<8x1xf32>
    %56 = vector.broadcast %55 : vector<8x1xf32> to vector<8x8xf32>
    %57 = arith.mulf %52, %56 : vector<8x8xf32>
    %cst_22 = arith.constant dense<0.000000e+00> : vector<8x8xf32>
    %58 = tpu.matmul %57, %42, %cst_22 {dimension_numbers = #tpu.dot_dimension_numbers<[1], [0], [0], [1], [0, 0, 1, 1], [], []>} : vector<8x8xf32>, vector<8x8xf32>, vector<8x8xf32> -> vector<8x8xf32>
    %59 = arith.truncf %58 : vector<8x8xf32> to vector<8x8xbf16>
    %60 = vector.extract_strided_slice %14 {offsets = [8, 0], sizes = [8, 32], strides = [1, 1]} : vector<32x32xf32> to vector<8x32xf32>
    %61 = arith.truncf %60 : vector<8x32xf32> to vector<8x32xbf16>
    %cst_23 = arith.constant dense<0.000000e+00> : vector<8x32xf32>
    %62 = tpu.matmul %59, %61, %cst_23 {dimension_numbers = #tpu.dot_dimension_numbers<[1], [0], [0], [1], [0, 0, 1, 1], [], []>} : vector<8x8xbf16>, vector<8x32xbf16>, vector<8x32xf32> -> vector<8x32xf32>
    %63 = arith.addf %39, %62 : vector<8x32xf32>
    %64 = vector.extract_strided_slice %9 {offsets = [0, 16], sizes = [8, 8], strides = [1, 1]} : vector<8x32xf32> to vector<8x8xf32>
    %65 = vector.extract_strided_slice %10 {offsets = [0, 16], sizes = [8, 8], strides = [1, 1]} : vector<8x32xf32> to vector<8x8xf32>
    %66 = vector.extract_strided_slice %11 {offsets = [0, 16], sizes = [8, 8], strides = [1, 1]} : vector<8x32xf32> to vector<8x8xf32>
    %cst_24 = arith.constant dense<0.000000e+00> : vector<8x8xf32>
    %67 = tpu.matmul %64, %65, %cst_24 {dimension_numbers = #tpu.dot_dimension_numbers<[1], [1], [0], [0], [0, 0, 1, 0], [], []>} : vector<8x8xf32>, vector<8x8xf32>, vector<8x8xf32> -> vector<8x8xf32>
    %cst_25 = arith.constant 0.353553385 : f32
    %68 = vector.broadcast %cst_25 : f32 to vector<8x8xf32>
    %69 = arith.mulf %67, %68 : vector<8x8xf32>
    %70 = vector.broadcast %13 : vector<1x8xf32> to vector<8x8xf32>
    %71 = arith.addf %69, %70 : vector<8x8xf32>
    %cst_26 = arith.constant dense<0xFF800000> : vector<8xf32>
    %72 = vector.multi_reduction <maximumf>, %71, %cst_26 [1] : vector<8x8xf32> to vector<8xf32>
    %73 = vector.shape_cast %72 : vector<8xf32> to vector<8x1xf32>
    %74 = vector.broadcast %73 : vector<8x1xf32> to vector<8x8xf32>
    %75 = arith.subf %71, %74 : vector<8x8xf32>
    %76 = math.exp %75 : vector<8x8xf32>
    %cst_27 = arith.constant dense<0.000000e+00> : vector<8xf32>
    %77 = vector.multi_reduction <add>, %76, %cst_27 [1] : vector<8x8xf32> to vector<8xf32>
    %78 = vector.shape_cast %77 : vector<8xf32> to vector<8x1xf32>
    %79 = tpu.reciprocal %78 {approx = true} : vector<8x1xf32> -> vector<8x1xf32>
    %80 = vector.broadcast %79 : vector<8x1xf32> to vector<8x8xf32>
    %81 = arith.mulf %76, %80 : vector<8x8xf32>
    %cst_28 = arith.constant dense<0.000000e+00> : vector<8x8xf32>
    %82 = tpu.matmul %81, %66, %cst_28 {dimension_numbers = #tpu.dot_dimension_numbers<[1], [0], [0], [1], [0, 0, 1, 1], [], []>} : vector<8x8xf32>, vector<8x8xf32>, vector<8x8xf32> -> vector<8x8xf32>
    %83 = arith.truncf %82 : vector<8x8xf32> to vector<8x8xbf16>
    %84 = vector.extract_strided_slice %14 {offsets = [16, 0], sizes = [8, 32], strides = [1, 1]} : vector<32x32xf32> to vector<8x32xf32>
    %85 = arith.truncf %84 : vector<8x32xf32> to vector<8x32xbf16>
    %cst_29 = arith.constant dense<0.000000e+00> : vector<8x32xf32>
    %86 = tpu.matmul %83, %85, %cst_29 {dimension_numbers = #tpu.dot_dimension_numbers<[1], [0], [0], [1], [0, 0, 1, 1], [], []>} : vector<8x8xbf16>, vector<8x32xbf16>, vector<8x32xf32> -> vector<8x32xf32>
    %87 = arith.addf %63, %86 : vector<8x32xf32>
    %88 = vector.extract_strided_slice %9 {offsets = [0, 24], sizes = [8, 8], strides = [1, 1]} : vector<8x32xf32> to vector<8x8xf32>
    %89 = vector.extract_strided_slice %10 {offsets = [0, 24], sizes = [8, 8], strides = [1, 1]} : vector<8x32xf32> to vector<8x8xf32>
    %90 = vector.extract_strided_slice %11 {offsets = [0, 24], sizes = [8, 8], strides = [1, 1]} : vector<8x32xf32> to vector<8x8xf32>
    %cst_30 = arith.constant dense<0.000000e+00> : vector<8x8xf32>
    %91 = tpu.matmul %88, %89, %cst_30 {dimension_numbers = #tpu.dot_dimension_numbers<[1], [1], [0], [0], [0, 0, 1, 0], [], []>} : vector<8x8xf32>, vector<8x8xf32>, vector<8x8xf32> -> vector<8x8xf32>
    %cst_31 = arith.constant 0.353553385 : f32
    %92 = vector.broadcast %cst_31 : f32 to vector<8x8xf32>
    %93 = arith.mulf %91, %92 : vector<8x8xf32>
    %94 = vector.broadcast %13 : vector<1x8xf32> to vector<8x8xf32>
    %95 = arith.addf %93, %94 : vector<8x8xf32>
    %cst_32 = arith.constant dense<0xFF800000> : vector<8xf32>
    %96 = vector.multi_reduction <maximumf>, %95, %cst_32 [1] : vector<8x8xf32> to vector<8xf32>
    %97 = vector.shape_cast %96 : vector<8xf32> to vector<8x1xf32>
    %98 = vector.broadcast %97 : vector<8x1xf32> to vector<8x8xf32>
    %99 = arith.subf %95, %98 : vector<8x8xf32>
    %100 = math.exp %99 : vector<8x8xf32>
    %cst_33 = arith.constant dense<0.000000e+00> : vector<8xf32>
    %101 = vector.multi_reduction <add>, %100, %cst_33 [1] : vector<8x8xf32> to vector<8xf32>
    %102 = vector.shape_cast %101 : vector<8xf32> to vector<8x1xf32>
    %103 = tpu.reciprocal %102 {approx = true} : vector<8x1xf32> -> vector<8x1xf32>
    %104 = vector.broadcast %103 : vector<8x1xf32> to vector<8x8xf32>
    %105 = arith.mulf %100, %104 : vector<8x8xf32>
    %cst_34 = arith.constant dense<0.000000e+00> : vector<8x8xf32>
    %106 = tpu.matmul %105, %90, %cst_34 {dimension_numbers = #tpu.dot_dimension_numbers<[1], [0], [0], [1], [0, 0, 1, 1], [], []>} : vector<8x8xf32>, vector<8x8xf32>, vector<8x8xf32> -> vector<8x8xf32>
    %107 = arith.truncf %106 : vector<8x8xf32> to vector<8x8xbf16>
    %108 = vector.extract_strided_slice %14 {offsets = [24, 0], sizes = [8, 32], strides = [1, 1]} : vector<32x32xf32> to vector<8x32xf32>
    %109 = arith.truncf %108 : vector<8x32xf32> to vector<8x32xbf16>
    %cst_35 = arith.constant dense<0.000000e+00> : vector<8x32xf32>
    %110 = tpu.matmul %107, %109, %cst_35 {dimension_numbers = #tpu.dot_dimension_numbers<[1], [0], [0], [1], [0, 0, 1, 1], [], []>} : vector<8x8xbf16>, vector<8x32xbf16>, vector<8x32xf32> -> vector<8x32xf32>
    %111 = arith.addf %87, %110 : vector<8x32xf32>
    %c0_36 = arith.constant 0 : index
    %c0_37 = arith.constant 0 : index
    %112 = vector.load %arg6[%c0_36, %c0_37] : memref<1x32xf32, #tpu.memory_space<vmem>>, vector<1x32xf32>
    %113 = vector.broadcast %112 : vector<1x32xf32> to vector<8x32xf32>
    %114 = arith.addf %111, %113 : vector<8x32xf32>
    %115 = arith.addf %1, %114 : vector<8x32xf32>
    %c0_38 = arith.constant 0 : index
    %c0_39 = arith.constant 0 : index
    %116 = vector.load %arg7[%c0_38, %c0_39] : memref<1x32xf32, #tpu.memory_space<vmem>>, vector<1x32xf32>
    %c0_40 = arith.constant 0 : index
    %c0_41 = arith.constant 0 : index
    %117 = vector.load %arg8[%c0_40, %c0_41] : memref<1x32xf32, #tpu.memory_space<vmem>>, vector<1x32xf32>
    %cst_42 = arith.constant dense<0.000000e+00> : vector<8xf32>
    %118 = vector.multi_reduction <add>, %115, %cst_42 [1] : vector<8x32xf32> to vector<8xf32>
    %119 = vector.shape_cast %118 : vector<8xf32> to vector<8x1xf32>
    %cst_43 = arith.constant 3.200000e+01 : f32
    %120 = vector.broadcast %cst_43 : f32 to vector<8x1xf32>
    %121 = arith.divf %119, %120 : vector<8x1xf32>
    %122 = vector.broadcast %121 : vector<8x1xf32> to vector<8x32xf32>
    %123 = arith.subf %115, %122 : vector<8x32xf32>
    %124 = arith.mulf %123, %123 : vector<8x32xf32>
    %cst_44 = arith.constant dense<0.000000e+00> : vector<8xf32>
    %125 = vector.multi_reduction <add>, %124, %cst_44 [1] : vector<8x32xf32> to vector<8xf32>
    %126 = vector.shape_cast %125 : vector<8xf32> to vector<8x1xf32>
    %cst_45 = arith.constant 3.200000e+01 : f32
    %127 = vector.broadcast %cst_45 : f32 to vector<8x1xf32>
    %128 = arith.divf %126, %127 : vector<8x1xf32>
    %129 = vector.broadcast %121 : vector<8x1xf32> to vector<8x32xf32>
    %130 = arith.subf %115, %129 : vector<8x32xf32>
    %cst_46 = arith.constant 9.99999974E-6 : f32
    %131 = vector.broadcast %cst_46 : f32 to vector<8x1xf32>
    %132 = arith.addf %128, %131 : vector<8x1xf32>
    %133 = math.rsqrt %132 : vector<8x1xf32>
    %134 = vector.broadcast %133 : vector<8x1xf32> to vector<8x32xf32>
    %135 = arith.mulf %130, %134 : vector<8x32xf32>
    %136 = vector.broadcast %116 : vector<1x32xf32> to vector<8x32xf32>
    %137 = arith.mulf %135, %136 : vector<8x32xf32>
    %138 = vector.broadcast %117 : vector<1x32xf32> to vector<8x32xf32>
    %139 = arith.addf %137, %138 : vector<8x32xf32>
    %c0_47 = arith.constant 0 : index
    %c0_48 = arith.constant 0 : index
    %c0_49 = arith.constant 0 : index
    %140 = vector.load %arg9[%c0_47, %c0_48, %c0_49] : memref<1x8x32xf32, #tpu.memory_space<vmem>>, vector<1x8x32xf32>
    %141 = vector.shape_cast %140 : vector<1x8x32xf32> to vector<8x32xf32>
    %142 = vector.shape_cast %139 : vector<8x32xf32> to vector<1x8x32xf32>
    tpu.vector_store %arg9[%c0_47, %c0_48, %c0_49], %142 {strides = array<i32>} : memref<1x8x32xf32, #tpu.memory_space<vmem>>, vector<1x8x32xf32>,
    return
  }
  func.func @transform_0(%arg0: i32) -> (i32, i32, i32) {
    %c0_i32 = arith.constant 0 : i32
    %c0_i32_0 = arith.constant 0 : i32
    %c0_i32_1 = arith.constant 0 : i32
    return %arg0, %c0_i32, %c0_i32_0 : i32, i32, i32
  }
  func.func @transform_1(%arg0: i32) -> (i32, i32, i32) {
    %c0_i32 = arith.constant 0 : i32
    %c0_i32_0 = arith.constant 0 : i32
    %c0_i32_1 = arith.constant 0 : i32
    return %arg0, %c0_i32, %c0_i32_0 : i32, i32, i32
  }
  func.func @transform_2(%arg0: i32) -> (i32, i32) {
    %c0_i32 = arith.constant 0 : i32
    %c0_i32_0 = arith.constant 0 : i32
    %c0_i32_1 = arith.constant 0 : i32
    return %c0_i32, %c0_i32_0 : i32, i32
  }
  func.func @transform_3(%arg0: i32) -> (i32, i32) {
    %c0_i32 = arith.constant 0 : i32
    %c0_i32_0 = arith.constant 0 : i32
    %c0_i32_1 = arith.constant 0 : i32
    return %c0_i32, %c0_i32_0 : i32, i32
  }
  func.func @transform_4(%arg0: i32) -> (i32, i32) {
    %c0_i32 = arith.constant 0 : i32
    %c0_i32_0 = arith.constant 0 : i32
    %c0_i32_1 = arith.constant 0 : i32
    return %c0_i32, %c0_i32_0 : i32, i32
  }
  func.func @transform_5(%arg0: i32) -> (i32, i32) {
    %c0_i32 = arith.constant 0 : i32
    %c0_i32_0 = arith.constant 0 : i32
    %c0_i32_1 = arith.constant 0 : i32
    return %c0_i32, %c0_i32_0 : i32, i32
  }
  func.func @transform_6(%arg0: i32) -> (i32, i32) {
    %c0_i32 = arith.constant 0 : i32
    %c0_i32_0 = arith.constant 0 : i32
    %c0_i32_1 = arith.constant 0 : i32
    return %c0_i32, %c0_i32_0 : i32, i32
  }
  func.func @transform_7(%arg0: i32) -> (i32, i32) {
    %c0_i32 = arith.constant 0 : i32
    %c0_i32_0 = arith.constant 0 : i32
    %c0_i32_1 = arith.constant 0 : i32
    return %c0_i32, %c0_i32_0 : i32, i32
  }
  func.func @transform_8(%arg0: i32) -> (i32, i32, i32) {
    %c0_i32 = arith.constant 0 : i32
    %c0_i32_0 = arith.constant 0 : i32
    %c0_i32_1 = arith.constant 0 : i32
    return %arg0, %c0_i32, %c0_i32_0 : i32, i32, i32
  }
}

module attributes {stable_mosaic.version = 11 : i64} {
  func.func @_mha_self_ln_kernel(%arg0: i32, %arg1: memref<1x8x32xf32, #tpu.memory_space<vmem>>, %arg2: memref<1x1x8xf32, #tpu.memory_space<vmem>>, %arg3: memref<32x96xf32, #tpu.memory_space<vmem>>, %arg4: memref<1x96xf32, #tpu.memory_space<vmem>>, %arg5: memref<32x32xf32, #tpu.memory_space<vmem>>, %arg6: memref<1x32xf32, #tpu.memory_space<vmem>>, %arg7: memref<1x32xf32, #tpu.memory_space<vmem>>, %arg8: memref<1x32xf32, #tpu.memory_space<vmem>>, %arg9: memref<1x8x32xf32, #tpu.memory_space<vmem>>) attributes {dimension_semantics = [#tpu.dimension_semantics<parallel>], iteration_bounds = array<i64: 2>, scalar_prefetch = 0 : i64, scratch_operands = 0 : i64, tpu.core_type = #tpu.core_type<tc>, window_params = [{transform_indices = @transform_0, window_bounds = array<i64: 1, 8, 32>}, {transform_indices = @transform_1, window_bounds = array<i64: 1, 1, 8>}, {pipeline_mode = #tpu.pipeline_mode<synchronous>, transform_indices = @transform_2, window_bounds = array<i64: 32, 96>}, {pipeline_mode = #tpu.pipeline_mode<synchronous>, transform_indices = @transform_3, window_bounds = array<i64: 1, 96>}, {pipeline_mode = #tpu.pipeline_mode<synchronous>, transform_indices = @transform_4, window_bounds = array<i64: 32, 32>}, {pipeline_mode = #tpu.pipeline_mode<synchronous>, transform_indices = @transform_5, window_bounds = array<i64: 1, 32>}, {pipeline_mode = #tpu.pipeline_mode<synchronous>, transform_indices = @transform_6, window_bounds = array<i64: 1, 32>}, {pipeline_mode = #tpu.pipeline_mode<synchronous>, transform_indices = @transform_7, window_bounds = array<i64: 1, 32>}, {transform_indices = @transform_8, window_bounds = array<i64: 1, 8, 32>}]} {
    %c0 = arith.constant 0 : index
    %c0_0 = arith.constant 0 : index
    %c0_1 = arith.constant 0 : index
    %0 = vector.load %arg1[%c0, %c0_0, %c0_1] : memref<1x8x32xf32, #tpu.memory_space<vmem>>, vector<1x8x32xf32>
    %1 = vector.shape_cast %0 : vector<1x8x32xf32> to vector<8x32xf32>
    %2 = arith.truncf %1 : vector<8x32xf32> to vector<8x32xbf16>
    %c0_2 = arith.constant 0 : index
    %c0_3 = arith.constant 0 : index
    %3 = vector.load %arg3[%c0_2, %c0_3] : memref<32x96xf32, #tpu.memory_space<vmem>>, vector<32x96xf32>
    %4 = arith.truncf %3 : vector<32x96xf32> to vector<32x96xbf16>
    %cst = arith.constant dense<0.000000e+00> : vector<8x96xf32>
    %5 = tpu.matmul %2, %4, %cst {dimension_numbers = #tpu.dot_dimension_numbers<[1], [0], [0], [1], [0, 0, 1, 1], [], []>} : vector<8x32xbf16>, vector<32x96xbf16>, vector<8x96xf32> -> vector<8x96xf32>
    %c0_4 = arith.constant 0 : index
    %c0_5 = arith.constant 0 : index
    %6 = vector.load %arg4[%c0_4, %c0_5] : memref<1x96xf32, #tpu.memory_space<vmem>>, vector<1x96xf32>
    %7 = vector.broadcast %6 : vector<1x96xf32> to vector<8x96xf32>
    %8 = arith.addf %5, %7 : vector<8x96xf32>
    %9 = vector.extract_strided_slice %8 {offsets = [0, 0], sizes = [8, 32], strides = [1, 1]} : vector<8x96xf32> to vector<8x32xf32>
    %10 = vector.extract_strided_slice %8 {offsets = [0, 32], sizes = [8, 32], strides = [1, 1]} : vector<8x96xf32> to vector<8x32xf32>
    %11 = vector.extract_strided_slice %8 {offsets = [0, 64], sizes = [8, 32], strides = [1, 1]} : vector<8x96xf32> to vector<8x32xf32>
    %c0_6 = arith.constant 0 : index
    %c0_7 = arith.constant 0 : index
    %c0_8 = arith.constant 0 : index
    %12 = vector.load %arg2[%c0_6, %c0_7, %c0_8] : memref<1x1x8xf32, #tpu.memory_space<vmem>>, vector<1x1x8xf32>
    %13 = vector.shape_cast %12 : vector<1x1x8xf32> to vector<1x8xf32>
    %c0_9 = arith.constant 0 : index
    %c0_10 = arith.constant 0 : index
    %14 = vector.load %arg5[%c0_9, %c0_10] : memref<32x32xf32, #tpu.memory_space<vmem>>, vector<32x32xf32>
    %cst_11 = arith.constant 0.000000e+00 : f32
    %15 = vector.broadcast %cst_11 : f32 to vector<8x32xf32>
    %16 = vector.extract_strided_slice %9 {offsets = [0, 0], sizes = [8, 8], strides = [1, 1]} : vector<8x32xf32> to vector<8x8xf32>
    %17 = vector.extract_strided_slice %10 {offsets = [0, 0], sizes = [8, 8], strides = [1, 1]} : vector<8x32xf32> to vector<8x8xf32>
    %18 = vector.extract_strided_slice %11 {offsets = [0, 0], sizes = [8, 8], strides = [1, 1]} : vector<8x32xf32> to vector<8x8xf32>
    %cst_12 = arith.constant dense<0.000000e+00> : vector<8x8xf32>
    %19 = tpu.matmul %16, %17, %cst_12 {dimension_numbers = #tpu.dot_dimension_numbers<[1], [1], [0], [0], [0, 0, 1, 0], [], []>} : vector<8x8xf32>, vector<8x8xf32>, vector<8x8xf32> -> vector<8x8xf32>
    %cst_13 = arith.constant 0.353553385 : f32
    %20 = vector.broadcast %cst_13 : f32 to vector<8x8xf32>
    %21 = arith.mulf %19, %20 : vector<8x8xf32>
    %22 = vector.broadcast %13 : vector<1x8xf32> to vector<8x8xf32>
    %23 = arith.addf %21, %22 : vector<8x8xf32>
    %cst_14 = arith.constant dense<0xFF800000> : vector<8xf32>
    %24 = vector.multi_reduction <maximumf>, %23, %cst_14 [1] : vector<8x8xf32> to vector<8xf32>
    %25 = vector.shape_cast %24 : vector<8xf32> to vector<8x1xf32>
    %26 = vector.broadcast %25 : vector<8x1xf32> to vector<8x8xf32>
    %27 = arith.subf %23, %26 : vector<8x8xf32>
    %28 = math.exp %27 : vector<8x8xf32>
    %cst_15 = arith.constant dense<0.000000e+00> : vector<8xf32>
    %29 = vector.multi_reduction <add>, %28, %cst_15 [1] : vector<8x8xf32> to vector<8xf32>
    %30 = vector.shape_cast %29 : vector<8xf32> to vector<8x1xf32>
    %31 = tpu.reciprocal %30 {approx = true} : vector<8x1xf32> -> vector<8x1xf32>
    %32 = vector.broadcast %31 : vector<8x1xf32> to vector<8x8xf32>
    %33 = arith.mulf %28, %32 : vector<8x8xf32>
    %cst_16 = arith.constant dense<0.000000e+00> : vector<8x8xf32>
    %34 = tpu.matmul %33, %18, %cst_16 {dimension_numbers = #tpu.dot_dimension_numbers<[1], [0], [0], [1], [0, 0, 1, 1], [], []>} : vector<8x8xf32>, vector<8x8xf32>, vector<8x8xf32> -> vector<8x8xf32>
    %35 = arith.truncf %34 : vector<8x8xf32> to vector<8x8xbf16>
    %36 = vector.extract_strided_slice %14 {offsets = [0, 0], sizes = [8, 32], strides = [1, 1]} : vector<32x32xf32> to vector<8x32xf32>
    %37 = arith.truncf %36 : vector<8x32xf32> to vector<8x32xbf16>
    %cst_17 = arith.constant dense<0.000000e+00> : vector<8x32xf32>
    %38 = tpu.matmul %35, %37, %cst_17 {dimension_numbers = #tpu.dot_dimension_numbers<[1], [0], [0], [1], [0, 0, 1, 1], [], []>} : vector<8x8xbf16>, vector<8x32xbf16>, vector<8x32xf32> -> vector<8x32xf32>
    %39 = arith.addf %15, %38 : vector<8x32xf32>
    %40 = vector.extract_strided_slice %9 {offsets = [0, 8], sizes = [8, 8], strides = [1, 1]} : vector<8x32xf32> to vector<8x8xf32>
    %41 = vector.extract_strided_slice %10 {offsets = [0, 8], sizes = [8, 8], strides = [1, 1]} : vector<8x32xf32> to vector<8x8xf32>
    %42 = vector.extract_strided_slice %11 {offsets = [0, 8], sizes = [8, 8], strides = [1, 1]} : vector<8x32xf32> to vector<8x8xf32>
    %cst_18 = arith.constant dense<0.000000e+00> : vector<8x8xf32>
    %43 = tpu.matmul %40, %41, %cst_18 {dimension_numbers = #tpu.dot_dimension_numbers<[1], [1], [0], [0], [0, 0, 1, 0], [], []>} : vector<8x8xf32>, vector<8x8xf32>, vector<8x8xf32> -> vector<8x8xf32>
    %cst_19 = arith.constant 0.353553385 : f32
    %44 = vector.broadcast %cst_19 : f32 to vector<8x8xf32>
    %45 = arith.mulf %43, %44 : vector<8x8xf32>
    %46 = vector.broadcast %13 : vector<1x8xf32> to vector<8x8xf32>
    %47 = arith.addf %45, %46 : vector<8x8xf32>
    %cst_20 = arith.constant dense<0xFF800000> : vector<8xf32>
    %48 = vector.multi_reduction <maximumf>, %47, %cst_20 [1] : vector<8x8xf32> to vector<8xf32>
    %49 = vector.shape_cast %48 : vector<8xf32> to vector<8x1xf32>
    %50 = vector.broadcast %49 : vector<8x1xf32> to vector<8x8xf32>
    %51 = arith.subf %47, %50 : vector<8x8xf32>
    %52 = math.exp %51 : vector<8x8xf32>
    %cst_21 = arith.constant dense<0.000000e+00> : vector<8xf32>
    %53 = vector.multi_reduction <add>, %52, %cst_21 [1] : vector<8x8xf32> to vector<8xf32>
    %54 = vector.shape_cast %53 : vector<8xf32> to vector<8x1xf32>
    %55 = tpu.reciprocal %54 {approx = true} : vector<8x1xf32> -> vector<8x1xf32>
    %56 = vector.broadcast %55 : vector<8x1xf32> to vector<8x8xf32>
    %57 = arith.mulf %52, %56 : vector<8x8xf32>
    %cst_22 = arith.constant dense<0.000000e+00> : vector<8x8xf32>
    %58 = tpu.matmul %57, %42, %cst_22 {dimension_numbers = #tpu.dot_dimension_numbers<[1], [0], [0], [1], [0, 0, 1, 1], [], []>} : vector<8x8xf32>, vector<8x8xf32>, vector<8x8xf32> -> vector<8x8xf32>
    %59 = arith.truncf %58 : vector<8x8xf32> to vector<8x8xbf16>
    %60 = vector.extract_strided_slice %14 {offsets = [8, 0], sizes = [8, 32], strides = [1, 1]} : vector<32x32xf32> to vector<8x32xf32>
    %61 = arith.truncf %60 : vector<8x32xf32> to vector<8x32xbf16>
    %cst_23 = arith.constant dense<0.000000e+00> : vector<8x32xf32>
    %62 = tpu.matmul %59, %61, %cst_23 {dimension_numbers = #tpu.dot_dimension_numbers<[1], [0], [0], [1], [0, 0, 1, 1], [], []>} : vector<8x8xbf16>, vector<8x32xbf16>, vector<8x32xf32> -> vector<8x32xf32>
    %63 = arith.addf %39, %62 : vector<8x32xf32>
    %64 = vector.extract_strided_slice %9 {offsets = [0, 16], sizes = [8, 8], strides = [1, 1]} : vector<8x32xf32> to vector<8x8xf32>
    %65 = vector.extract_strided_slice %10 {offsets = [0, 16], sizes = [8, 8], strides = [1, 1]} : vector<8x32xf32> to vector<8x8xf32>
    %66 = vector.extract_strided_slice %11 {offsets = [0, 16], sizes = [8, 8], strides = [1, 1]} : vector<8x32xf32> to vector<8x8xf32>
    %cst_24 = arith.constant dense<0.000000e+00> : vector<8x8xf32>
    %67 = tpu.matmul %64, %65, %cst_24 {dimension_numbers = #tpu.dot_dimension_numbers<[1], [1], [0], [0], [0, 0, 1, 0], [], []>} : vector<8x8xf32>, vector<8x8xf32>, vector<8x8xf32> -> vector<8x8xf32>
    %cst_25 = arith.constant 0.353553385 : f32
    %68 = vector.broadcast %cst_25 : f32 to vector<8x8xf32>
    %69 = arith.mulf %67, %68 : vector<8x8xf32>
    %70 = vector.broadcast %13 : vector<1x8xf32> to vector<8x8xf32>
    %71 = arith.addf %69, %70 : vector<8x8xf32>
    %cst_26 = arith.constant dense<0xFF800000> : vector<8xf32>
    %72 = vector.multi_reduction <maximumf>, %71, %cst_26 [1] : vector<8x8xf32> to vector<8xf32>
    %73 = vector.shape_cast %72 : vector<8xf32> to vector<8x1xf32>
    %74 = vector.broadcast %73 : vector<8x1xf32> to vector<8x8xf32>
    %75 = arith.subf %71, %74 : vector<8x8xf32>
    %76 = math.exp %75 : vector<8x8xf32>
    %cst_27 = arith.constant dense<0.000000e+00> : vector<8xf32>
    %77 = vector.multi_reduction <add>, %76, %cst_27 [1] : vector<8x8xf32> to vector<8xf32>
    %78 = vector.shape_cast %77 : vector<8xf32> to vector<8x1xf32>
    %79 = tpu.reciprocal %78 {approx = true} : vector<8x1xf32> -> vector<8x1xf32>
    %80 = vector.broadcast %79 : vector<8x1xf32> to vector<8x8xf32>
    %81 = arith.mulf %76, %80 : vector<8x8xf32>
    %cst_28 = arith.constant dense<0.000000e+00> : vector<8x8xf32>
    %82 = tpu.matmul %81, %66, %cst_28 {dimension_numbers = #tpu.dot_dimension_numbers<[1], [0], [0], [1], [0, 0, 1, 1], [], []>} : vector<8x8xf32>, vector<8x8xf32>, vector<8x8xf32> -> vector<8x8xf32>
    %83 = arith.truncf %82 : vector<8x8xf32> to vector<8x8xbf16>
    %84 = vector.extract_strided_slice %14 {offsets = [16, 0], sizes = [8, 32], strides = [1, 1]} : vector<32x32xf32> to vector<8x32xf32>
    %85 = arith.truncf %84 : vector<8x32xf32> to vector<8x32xbf16>
    %cst_29 = arith.constant dense<0.000000e+00> : vector<8x32xf32>
    %86 = tpu.matmul %83, %85, %cst_29 {dimension_numbers = #tpu.dot_dimension_numbers<[1], [0], [0], [1], [0, 0, 1, 1], [], []>} : vector<8x8xbf16>, vector<8x32xbf16>, vector<8x32xf32> -> vector<8x32xf32>
    %87 = arith.addf %63, %86 : vector<8x32xf32>
    %88 = vector.extract_strided_slice %9 {offsets = [0, 24], sizes = [8, 8], strides = [1, 1]} : vector<8x32xf32> to vector<8x8xf32>
    %89 = vector.extract_strided_slice %10 {offsets = [0, 24], sizes = [8, 8], strides = [1, 1]} : vector<8x32xf32> to vector<8x8xf32>
    %90 = vector.extract_strided_slice %11 {offsets = [0, 24], sizes = [8, 8], strides = [1, 1]} : vector<8x32xf32> to vector<8x8xf32>
    %cst_30 = arith.constant dense<0.000000e+00> : vector<8x8xf32>
    %91 = tpu.matmul %88, %89, %cst_30 {dimension_numbers = #tpu.dot_dimension_numbers<[1], [1], [0], [0], [0, 0, 1, 0], [], []>} : vector<8x8xf32>, vector<8x8xf32>, vector<8x8xf32> -> vector<8x8xf32>
    %cst_31 = arith.constant 0.353553385 : f32
    %92 = vector.broadcast %cst_31 : f32 to vector<8x8xf32>
    %93 = arith.mulf %91, %92 : vector<8x8xf32>
    %94 = vector.broadcast %13 : vector<1x8xf32> to vector<8x8xf32>
    %95 = arith.addf %93, %94 : vector<8x8xf32>
    %cst_32 = arith.constant dense<0xFF800000> : vector<8xf32>
    %96 = vector.multi_reduction <maximumf>, %95, %cst_32 [1] : vector<8x8xf32> to vector<8xf32>
    %97 = vector.shape_cast %96 : vector<8xf32> to vector<8x1xf32>
    %98 = vector.broadcast %97 : vector<8x1xf32> to vector<8x8xf32>
    %99 = arith.subf %95, %98 : vector<8x8xf32>
    %100 = math.exp %99 : vector<8x8xf32>
    %cst_33 = arith.constant dense<0.000000e+00> : vector<8xf32>
    %101 = vector.multi_reduction <add>, %100, %cst_33 [1] : vector<8x8xf32> to vector<8xf32>
    %102 = vector.shape_cast %101 : vector<8xf32> to vector<8x1xf32>
    %103 = tpu.reciprocal %102 {approx = true} : vector<8x1xf32> -> vector<8x1xf32>
    %104 = vector.broadcast %103 : vector<8x1xf32> to vector<8x8xf32>
    %105 = arith.mulf %100, %104 : vector<8x8xf32>
    %cst_34 = arith.constant dense<0.000000e+00> : vector<8x8xf32>
    %106 = tpu.matmul %105, %90, %cst_34 {dimension_numbers = #tpu.dot_dimension_numbers<[1], [0], [0], [1], [0, 0, 1, 1], [], []>} : vector<8x8xf32>, vector<8x8xf32>, vector<8x8xf32> -> vector<8x8xf32>
    %107 = arith.truncf %106 : vector<8x8xf32> to vector<8x8xbf16>
    %108 = vector.extract_strided_slice %14 {offsets = [24, 0], sizes = [8, 32], strides = [1, 1]} : vector<32x32xf32> to vector<8x32xf32>
    %109 = arith.truncf %108 : vector<8x32xf32> to vector<8x32xbf16>
    %cst_35 = arith.constant dense<0.000000e+00> : vector<8x32xf32>
    %110 = tpu.matmul %107, %109, %cst_35 {dimension_numbers = #tpu.dot_dimension_numbers<[1], [0], [0], [1], [0, 0, 1, 1], [], []>} : vector<8x8xbf16>, vector<8x32xbf16>, vector<8x32xf32> -> vector<8x32xf32>
    %111 = arith.addf %87, %110 : vector<8x32xf32>
    %c0_36 = arith.constant 0 : index
    %c0_37 = arith.constant 0 : index
    %112 = vector.load %arg6[%c0_36, %c0_37] : memref<1x32xf32, #tpu.memory_space<vmem>>, vector<1x32xf32>
    %113 = vector.broadcast %112 : vector<1x32xf32> to vector<8x32xf32>
    %114 = arith.addf %111, %113 : vector<8x32xf32>
    %115 = arith.addf %1, %114 : vector<8x32xf32>
    %c0_38 = arith.constant 0 : index
    %c0_39 = arith.constant 0 : index
    %116 = vector.load %arg7[%c0_38, %c0_39] : memref<1x32xf32, #tpu.memory_space<vmem>>, vector<1x32xf32>
    %c0_40 = arith.constant 0 : index
    %c0_41 = arith.constant 0 : index
    %117 = vector.load %arg8[%c0_40, %c0_41] : memref<1x32xf32, #tpu.memory_space<vmem>>, vector<1x32xf32>
    %cst_42 = arith.constant dense<0.000000e+00> : vector<8xf32>
    %118 = vector.multi_reduction <add>, %115, %cst_42 [1] : vector<8x32xf32> to vector<8xf32>
    %119 = vector.shape_cast %118 : vector<8xf32> to vector<8x1xf32>
    %cst_43 = arith.constant 3.200000e+01 : f32
    %120 = vector.broadcast %cst_43 : f32 to vector<8x1xf32>
    %121 = arith.divf %119, %120 : vector<8x1xf32>
    %122 = vector.broadcast %121 : vector<8x1xf32> to vector<8x32xf32>
    %123 = arith.subf %115, %122 : vector<8x32xf32>
    %124 = arith.mulf %123, %123 : vector<8x32xf32>
    %cst_44 = arith.constant dense<0.000000e+00> : vector<8xf32>
    %125 = vector.multi_reduction <add>, %124, %cst_44 [1] : vector<8x32xf32> to vector<8xf32>
    %126 = vector.shape_cast %125 : vector<8xf32> to vector<8x1xf32>
    %cst_45 = arith.constant 3.200000e+01 : f32
    %127 = vector.broadcast %cst_45 : f32 to vector<8x1xf32>
    %128 = arith.divf %126, %127 : vector<8x1xf32>
    %129 = vector.broadcast %121 : vector<8x1xf32> to vector<8x32xf32>
    %130 = arith.subf %115, %129 : vector<8x32xf32>
    %cst_46 = arith.constant 9.99999974E-6 : f32
    %131 = vector.broadcast %cst_46 : f32 to vector<8x1xf32>
    %132 = arith.addf %128, %131 : vector<8x1xf32>
    %133 = math.rsqrt %132 : vector<8x1xf32>
    %134 = vector.broadcast %133 : vector<8x1xf32> to vector<8x32xf32>
    %135 = arith.mulf %130, %134 : vector<8x32xf32>
    %136 = vector.broadcast %116 : vector<1x32xf32> to vector<8x32xf32>
    %137 = arith.mulf %135, %136 : vector<8x32xf32>
    %138 = vector.broadcast %117 : vector<1x32xf32> to vector<8x32xf32>
    %139 = arith.addf %137, %138 : vector<8x32xf32>
    %c0_47 = arith.constant 0 : index
    %c0_48 = arith.constant 0 : index
    %c0_49 = arith.constant 0 : index
    %140 = vector.load %arg9[%c0_47, %c0_48, %c0_49] : memref<1x8x32xf32, #tpu.memory_space<vmem>>, vector<1x8x32xf32>
    %141 = vector.shape_cast %140 : vector<1x8x32xf32> to vector<8x32xf32>
    %142 = vector.shape_cast %139 : vector<8x32xf32> to vector<1x8x32xf32>
    tpu.vector_store %arg9[%c0_47, %c0_48, %c0_49], %142 {strides = array<i32>} : memref<1x8x32xf32, #tpu.memory_space<vmem>>, vector<1x8x32xf32>,
    return
  }
  func.func @transform_0(%arg0: i32) -> (i32, i32, i32) {
    %c0_i32 = arith.constant 0 : i32
    %c0_i32_0 = arith.constant 0 : i32
    %c0_i32_1 = arith.constant 0 : i32
    return %arg0, %c0_i32, %c0_i32_0 : i32, i32, i32
  }
  func.func @transform_1(%arg0: i32) -> (i32, i32, i32) {
    %c0_i32 = arith.constant 0 : i32
    %c0_i32_0 = arith.constant 0 : i32
    %c0_i32_1 = arith.constant 0 : i32
    return %arg0, %c0_i32, %c0_i32_0 : i32, i32, i32
  }
  func.func @transform_2(%arg0: i32) -> (i32, i32) {
    %c0_i32 = arith.constant 0 : i32
    %c0_i32_0 = arith.constant 0 : i32
    %c0_i32_1 = arith.constant 0 : i32
    return %c0_i32, %c0_i32_0 : i32, i32
  }
  func.func @transform_3(%arg0: i32) -> (i32, i32) {
    %c0_i32 = arith.constant 0 : i32
    %c0_i32_0 = arith.constant 0 : i32
    %c0_i32_1 = arith.constant 0 : i32
    return %c0_i32, %c0_i32_0 : i32, i32
  }
  func.func @transform_4(%arg0: i32) -> (i32, i32) {
    %c0_i32 = arith.constant 0 : i32
    %c0_i32_0 = arith.constant 0 : i32
    %c0_i32_1 = arith.constant 0 : i32
    return %c0_i32, %c0_i32_0 : i32, i32
  }
  func.func @transform_5(%arg0: i32) -> (i32, i32) {
    %c0_i32 = arith.constant 0 : i32
    %c0_i32_0 = arith.constant 0 : i32
    %c0_i32_1 = arith.constant 0 : i32
    return %c0_i32, %c0_i32_0 : i32, i32
  }
  func.func @transform_6(%arg0: i32) -> (i32, i32) {
    %c0_i32 = arith.constant 0 : i32
    %c0_i32_0 = arith.constant 0 : i32
    %c0_i32_1 = arith.constant 0 : i32
    return %c0_i32, %c0_i32_0 : i32, i32
  }
  func.func @transform_7(%arg0: i32) -> (i32, i32) {
    %c0_i32 = arith.constant 0 : i32
    %c0_i32_0 = arith.constant 0 : i32
    %c0_i32_1 = arith.constant 0 : i32
    return %c0_i32, %c0_i32_0 : i32, i32
  }
  func.func @transform_8(%arg0: i32) -> (i32, i32, i32) {
    %c0_i32 = arith.constant 0 : i32
    %c0_i32_0 = arith.constant 0 : i32
    %c0_i32_1 = arith.constant 0 : i32
    return %arg0, %c0_i32, %c0_i32_0 : i32, i32, i32
  }
}

module attributes {stable_mosaic.version = 11 : i64} {
  func.func @_ffn_ln_kernel(%arg0: i32, %arg1: memref<1x8x32xf32, #tpu.memory_space<vmem>>, %arg2: memref<32x2048xf32, #tpu.memory_space<vmem>>, %arg3: memref<1x2048xf32, #tpu.memory_space<vmem>>, %arg4: memref<2048x32xf32, #tpu.memory_space<vmem>>, %arg5: memref<1x32xf32, #tpu.memory_space<vmem>>, %arg6: memref<1x32xf32, #tpu.memory_space<vmem>>, %arg7: memref<1x32xf32, #tpu.memory_space<vmem>>, %arg8: memref<1x8x32xf32, #tpu.memory_space<vmem>>) attributes {dimension_semantics = [#tpu.dimension_semantics<parallel>], iteration_bounds = array<i64: 2>, scalar_prefetch = 0 : i64, scratch_operands = 0 : i64, tpu.core_type = #tpu.core_type<tc>, window_params = [{transform_indices = @transform_0, window_bounds = array<i64: 1, 8, 32>}, {pipeline_mode = #tpu.pipeline_mode<synchronous>, transform_indices = @transform_1, window_bounds = array<i64: 32, 2048>}, {pipeline_mode = #tpu.pipeline_mode<synchronous>, transform_indices = @transform_2, window_bounds = array<i64: 1, 2048>}, {pipeline_mode = #tpu.pipeline_mode<synchronous>, transform_indices = @transform_3, window_bounds = array<i64: 2048, 32>}, {pipeline_mode = #tpu.pipeline_mode<synchronous>, transform_indices = @transform_4, window_bounds = array<i64: 1, 32>}, {pipeline_mode = #tpu.pipeline_mode<synchronous>, transform_indices = @transform_5, window_bounds = array<i64: 1, 32>}, {pipeline_mode = #tpu.pipeline_mode<synchronous>, transform_indices = @transform_6, window_bounds = array<i64: 1, 32>}, {transform_indices = @transform_7, window_bounds = array<i64: 1, 8, 32>}]} {
    %c0 = arith.constant 0 : index
    %c0_0 = arith.constant 0 : index
    %c0_1 = arith.constant 0 : index
    %0 = vector.load %arg1[%c0, %c0_0, %c0_1] : memref<1x8x32xf32, #tpu.memory_space<vmem>>, vector<1x8x32xf32>
    %1 = vector.shape_cast %0 : vector<1x8x32xf32> to vector<8x32xf32>
    %2 = arith.truncf %1 : vector<8x32xf32> to vector<8x32xbf16>
    %c0_2 = arith.constant 0 : index
    %c0_3 = arith.constant 0 : index
    %3 = vector.load %arg2[%c0_2, %c0_3] : memref<32x2048xf32, #tpu.memory_space<vmem>>, vector<32x2048xf32>
    %4 = arith.truncf %3 : vector<32x2048xf32> to vector<32x2048xbf16>
    %cst = arith.constant dense<0.000000e+00> : vector<8x2048xf32>
    %5 = tpu.matmul %2, %4, %cst {dimension_numbers = #tpu.dot_dimension_numbers<[1], [0], [0], [1], [0, 0, 1, 1], [], []>} : vector<8x32xbf16>, vector<32x2048xbf16>, vector<8x2048xf32> -> vector<8x2048xf32>
    %c0_4 = arith.constant 0 : index
    %c0_5 = arith.constant 0 : index
    %6 = vector.load %arg3[%c0_4, %c0_5] : memref<1x2048xf32, #tpu.memory_space<vmem>>, vector<1x2048xf32>
    %7 = vector.broadcast %6 : vector<1x2048xf32> to vector<8x2048xf32>
    %8 = arith.addf %5, %7 : vector<8x2048xf32>
    %cst_6 = arith.constant 0.000000e+00 : f32
    %9 = vector.broadcast %cst_6 : f32 to vector<8x2048xf32>
    %10 = arith.maximumf %8, %9 : vector<8x2048xf32>
    %11 = arith.truncf %10 : vector<8x2048xf32> to vector<8x2048xbf16>
    %c0_7 = arith.constant 0 : index
    %c0_8 = arith.constant 0 : index
    %12 = vector.load %arg4[%c0_7, %c0_8] : memref<2048x32xf32, #tpu.memory_space<vmem>>, vector<2048x32xf32>
    %13 = arith.truncf %12 : vector<2048x32xf32> to vector<2048x32xbf16>
    %cst_9 = arith.constant dense<0.000000e+00> : vector<8x32xf32>
    %14 = tpu.matmul %11, %13, %cst_9 {dimension_numbers = #tpu.dot_dimension_numbers<[1], [0], [0], [1], [0, 0, 1, 1], [], []>} : vector<8x2048xbf16>, vector<2048x32xbf16>, vector<8x32xf32> -> vector<8x32xf32>
    %c0_10 = arith.constant 0 : index
    %c0_11 = arith.constant 0 : index
    %15 = vector.load %arg5[%c0_10, %c0_11] : memref<1x32xf32, #tpu.memory_space<vmem>>, vector<1x32xf32>
    %16 = vector.broadcast %15 : vector<1x32xf32> to vector<8x32xf32>
    %17 = arith.addf %14, %16 : vector<8x32xf32>
    %18 = arith.addf %1, %17 : vector<8x32xf32>
    %c0_12 = arith.constant 0 : index
    %c0_13 = arith.constant 0 : index
    %19 = vector.load %arg6[%c0_12, %c0_13] : memref<1x32xf32, #tpu.memory_space<vmem>>, vector<1x32xf32>
    %c0_14 = arith.constant 0 : index
    %c0_15 = arith.constant 0 : index
    %20 = vector.load %arg7[%c0_14, %c0_15] : memref<1x32xf32, #tpu.memory_space<vmem>>, vector<1x32xf32>
    %cst_16 = arith.constant dense<0.000000e+00> : vector<8xf32>
    %21 = vector.multi_reduction <add>, %18, %cst_16 [1] : vector<8x32xf32> to vector<8xf32>
    %22 = vector.shape_cast %21 : vector<8xf32> to vector<8x1xf32>
    %cst_17 = arith.constant 3.200000e+01 : f32
    %23 = vector.broadcast %cst_17 : f32 to vector<8x1xf32>
    %24 = arith.divf %22, %23 : vector<8x1xf32>
    %25 = vector.broadcast %24 : vector<8x1xf32> to vector<8x32xf32>
    %26 = arith.subf %18, %25 : vector<8x32xf32>
    %27 = arith.mulf %26, %26 : vector<8x32xf32>
    %cst_18 = arith.constant dense<0.000000e+00> : vector<8xf32>
    %28 = vector.multi_reduction <add>, %27, %cst_18 [1] : vector<8x32xf32> to vector<8xf32>
    %29 = vector.shape_cast %28 : vector<8xf32> to vector<8x1xf32>
    %cst_19 = arith.constant 3.200000e+01 : f32
    %30 = vector.broadcast %cst_19 : f32 to vector<8x1xf32>
    %31 = arith.divf %29, %30 : vector<8x1xf32>
    %32 = vector.broadcast %24 : vector<8x1xf32> to vector<8x32xf32>
    %33 = arith.subf %18, %32 : vector<8x32xf32>
    %cst_20 = arith.constant 9.99999974E-6 : f32
    %34 = vector.broadcast %cst_20 : f32 to vector<8x1xf32>
    %35 = arith.addf %31, %34 : vector<8x1xf32>
    %36 = math.rsqrt %35 : vector<8x1xf32>
    %37 = vector.broadcast %36 : vector<8x1xf32> to vector<8x32xf32>
    %38 = arith.mulf %33, %37 : vector<8x32xf32>
    %39 = vector.broadcast %19 : vector<1x32xf32> to vector<8x32xf32>
    %40 = arith.mulf %38, %39 : vector<8x32xf32>
    %41 = vector.broadcast %20 : vector<1x32xf32> to vector<8x32xf32>
    %42 = arith.addf %40, %41 : vector<8x32xf32>
    %c0_21 = arith.constant 0 : index
    %c0_22 = arith.constant 0 : index
    %c0_23 = arith.constant 0 : index
    %43 = vector.load %arg8[%c0_21, %c0_22, %c0_23] : memref<1x8x32xf32, #tpu.memory_space<vmem>>, vector<1x8x32xf32>
    %44 = vector.shape_cast %43 : vector<1x8x32xf32> to vector<8x32xf32>
    %45 = vector.shape_cast %42 : vector<8x32xf32> to vector<1x8x32xf32>
    tpu.vector_store %arg8[%c0_21, %c0_22, %c0_23], %45 {strides = array<i32>} : memref<1x8x32xf32, #tpu.memory_space<vmem>>, vector<1x8x32xf32>,
    return
  }
  func.func @transform_0(%arg0: i32) -> (i32, i32, i32) {
    %c0_i32 = arith.constant 0 : i32
    %c0_i32_0 = arith.constant 0 : i32
    %c0_i32_1 = arith.constant 0 : i32
    return %arg0, %c0_i32, %c0_i32_0 : i32, i32, i32
  }
  func.func @transform_1(%arg0: i32) -> (i32, i32) {
    %c0_i32 = arith.constant 0 : i32
    %c0_i32_0 = arith.constant 0 : i32
    %c0_i32_1 = arith.constant 0 : i32
    return %c0_i32, %c0_i32_0 : i32, i32
  }
  func.func @transform_2(%arg0: i32) -> (i32, i32) {
    %c0_i32 = arith.constant 0 : i32
    %c0_i32_0 = arith.constant 0 : i32
    %c0_i32_1 = arith.constant 0 : i32
    return %c0_i32, %c0_i32_0 : i32, i32
  }
  func.func @transform_3(%arg0: i32) -> (i32, i32) {
    %c0_i32 = arith.constant 0 : i32
    %c0_i32_0 = arith.constant 0 : i32
    %c0_i32_1 = arith.constant 0 : i32
    return %c0_i32, %c0_i32_0 : i32, i32
  }
  func.func @transform_4(%arg0: i32) -> (i32, i32) {
    %c0_i32 = arith.constant 0 : i32
    %c0_i32_0 = arith.constant 0 : i32
    %c0_i32_1 = arith.constant 0 : i32
    return %c0_i32, %c0_i32_0 : i32, i32
  }
  func.func @transform_5(%arg0: i32) -> (i32, i32) {
    %c0_i32 = arith.constant 0 : i32
    %c0_i32_0 = arith.constant 0 : i32
    %c0_i32_1 = arith.constant 0 : i32
    return %c0_i32, %c0_i32_0 : i32, i32
  }
  func.func @transform_6(%arg0: i32) -> (i32, i32) {
    %c0_i32 = arith.constant 0 : i32
    %c0_i32_0 = arith.constant 0 : i32
    %c0_i32_1 = arith.constant 0 : i32
    return %c0_i32, %c0_i32_0 : i32, i32
  }
  func.func @transform_7(%arg0: i32) -> (i32, i32, i32) {
    %c0_i32 = arith.constant 0 : i32
    %c0_i32_0 = arith.constant 0 : i32
    %c0_i32_1 = arith.constant 0 : i32
    return %arg0, %c0_i32, %c0_i32_0 : i32, i32, i32
  }
}

module attributes {stable_mosaic.version = 11 : i64} {
  func.func @_ln_kernel(%arg0: i32, %arg1: memref<1x8x32xf32, #tpu.memory_space<vmem>>, %arg2: memref<1x32xf32, #tpu.memory_space<vmem>>, %arg3: memref<1x32xf32, #tpu.memory_space<vmem>>, %arg4: memref<1x8x32xf32, #tpu.memory_space<vmem>>) attributes {dimension_semantics = [#tpu.dimension_semantics<parallel>], iteration_bounds = array<i64: 2>, scalar_prefetch = 0 : i64, scratch_operands = 0 : i64, tpu.core_type = #tpu.core_type<tc>, window_params = [{transform_indices = @transform_0, window_bounds = array<i64: 1, 8, 32>}, {pipeline_mode = #tpu.pipeline_mode<synchronous>, transform_indices = @transform_1, window_bounds = array<i64: 1, 32>}, {pipeline_mode = #tpu.pipeline_mode<synchronous>, transform_indices = @transform_2, window_bounds = array<i64: 1, 32>}, {transform_indices = @transform_3, window_bounds = array<i64: 1, 8, 32>}]} {
    %c0 = arith.constant 0 : index
    %c0_0 = arith.constant 0 : index
    %c0_1 = arith.constant 0 : index
    %0 = vector.load %arg1[%c0, %c0_0, %c0_1] : memref<1x8x32xf32, #tpu.memory_space<vmem>>, vector<1x8x32xf32>
    %1 = vector.shape_cast %0 : vector<1x8x32xf32> to vector<8x32xf32>
    %c0_2 = arith.constant 0 : index
    %c0_3 = arith.constant 0 : index
    %2 = vector.load %arg2[%c0_2, %c0_3] : memref<1x32xf32, #tpu.memory_space<vmem>>, vector<1x32xf32>
    %c0_4 = arith.constant 0 : index
    %c0_5 = arith.constant 0 : index
    %3 = vector.load %arg3[%c0_4, %c0_5] : memref<1x32xf32, #tpu.memory_space<vmem>>, vector<1x32xf32>
    %cst = arith.constant dense<0.000000e+00> : vector<8xf32>
    %4 = vector.multi_reduction <add>, %1, %cst [1] : vector<8x32xf32> to vector<8xf32>
    %5 = vector.shape_cast %4 : vector<8xf32> to vector<8x1xf32>
    %cst_6 = arith.constant 3.200000e+01 : f32
    %6 = vector.broadcast %cst_6 : f32 to vector<8x1xf32>
    %7 = arith.divf %5, %6 : vector<8x1xf32>
    %8 = vector.broadcast %7 : vector<8x1xf32> to vector<8x32xf32>
    %9 = arith.subf %1, %8 : vector<8x32xf32>
    %10 = arith.mulf %9, %9 : vector<8x32xf32>
    %cst_7 = arith.constant dense<0.000000e+00> : vector<8xf32>
    %11 = vector.multi_reduction <add>, %10, %cst_7 [1] : vector<8x32xf32> to vector<8xf32>
    %12 = vector.shape_cast %11 : vector<8xf32> to vector<8x1xf32>
    %cst_8 = arith.constant 3.200000e+01 : f32
    %13 = vector.broadcast %cst_8 : f32 to vector<8x1xf32>
    %14 = arith.divf %12, %13 : vector<8x1xf32>
    %15 = vector.broadcast %7 : vector<8x1xf32> to vector<8x32xf32>
    %16 = arith.subf %1, %15 : vector<8x32xf32>
    %cst_9 = arith.constant 9.99999974E-6 : f32
    %17 = vector.broadcast %cst_9 : f32 to vector<8x1xf32>
    %18 = arith.addf %14, %17 : vector<8x1xf32>
    %19 = math.rsqrt %18 : vector<8x1xf32>
    %20 = vector.broadcast %19 : vector<8x1xf32> to vector<8x32xf32>
    %21 = arith.mulf %16, %20 : vector<8x32xf32>
    %22 = vector.broadcast %2 : vector<1x32xf32> to vector<8x32xf32>
    %23 = arith.mulf %21, %22 : vector<8x32xf32>
    %24 = vector.broadcast %3 : vector<1x32xf32> to vector<8x32xf32>
    %25 = arith.addf %23, %24 : vector<8x32xf32>
    %c0_10 = arith.constant 0 : index
    %c0_11 = arith.constant 0 : index
    %c0_12 = arith.constant 0 : index
    %26 = vector.load %arg4[%c0_10, %c0_11, %c0_12] : memref<1x8x32xf32, #tpu.memory_space<vmem>>, vector<1x8x32xf32>
    %27 = vector.shape_cast %26 : vector<1x8x32xf32> to vector<8x32xf32>
    %28 = vector.shape_cast %25 : vector<8x32xf32> to vector<1x8x32xf32>
    tpu.vector_store %arg4[%c0_10, %c0_11, %c0_12], %28 {strides = array<i32>} : memref<1x8x32xf32, #tpu.memory_space<vmem>>, vector<1x8x32xf32>,
    return
  }
  func.func @transform_0(%arg0: i32) -> (i32, i32, i32) {
    %c0_i32 = arith.constant 0 : i32
    %c0_i32_0 = arith.constant 0 : i32
    %c0_i32_1 = arith.constant 0 : i32
    return %arg0, %c0_i32, %c0_i32_0 : i32, i32, i32
  }
  func.func @transform_1(%arg0: i32) -> (i32, i32) {
    %c0_i32 = arith.constant 0 : i32
    %c0_i32_0 = arith.constant 0 : i32
    %c0_i32_1 = arith.constant 0 : i32
    return %c0_i32, %c0_i32_0 : i32, i32
  }
  func.func @transform_2(%arg0: i32) -> (i32, i32) {
    %c0_i32 = arith.constant 0 : i32
    %c0_i32_0 = arith.constant 0 : i32
    %c0_i32_1 = arith.constant 0 : i32
    return %c0_i32, %c0_i32_0 : i32, i32
  }
  func.func @transform_3(%arg0: i32) -> (i32, i32, i32) {
    %c0_i32 = arith.constant 0 : i32
    %c0_i32_0 = arith.constant 0 : i32
    %c0_i32_1 = arith.constant 0 : i32
    return %arg0, %c0_i32, %c0_i32_0 : i32, i32, i32
  }
}

module attributes {stable_mosaic.version = 11 : i64} {
  func.func @_mha_self_ln_kernel(%arg0: i32, %arg1: memref<1x8x32xf32, #tpu.memory_space<vmem>>, %arg2: memref<32x96xf32, #tpu.memory_space<vmem>>, %arg3: memref<1x96xf32, #tpu.memory_space<vmem>>, %arg4: memref<32x32xf32, #tpu.memory_space<vmem>>, %arg5: memref<1x32xf32, #tpu.memory_space<vmem>>, %arg6: memref<1x32xf32, #tpu.memory_space<vmem>>, %arg7: memref<1x32xf32, #tpu.memory_space<vmem>>, %arg8: memref<1x8x32xf32, #tpu.memory_space<vmem>>) attributes {dimension_semantics = [#tpu.dimension_semantics<parallel>], iteration_bounds = array<i64: 2>, scalar_prefetch = 0 : i64, scratch_operands = 0 : i64, tpu.core_type = #tpu.core_type<tc>, window_params = [{transform_indices = @transform_0, window_bounds = array<i64: 1, 8, 32>}, {pipeline_mode = #tpu.pipeline_mode<synchronous>, transform_indices = @transform_1, window_bounds = array<i64: 32, 96>}, {pipeline_mode = #tpu.pipeline_mode<synchronous>, transform_indices = @transform_2, window_bounds = array<i64: 1, 96>}, {pipeline_mode = #tpu.pipeline_mode<synchronous>, transform_indices = @transform_3, window_bounds = array<i64: 32, 32>}, {pipeline_mode = #tpu.pipeline_mode<synchronous>, transform_indices = @transform_4, window_bounds = array<i64: 1, 32>}, {pipeline_mode = #tpu.pipeline_mode<synchronous>, transform_indices = @transform_5, window_bounds = array<i64: 1, 32>}, {pipeline_mode = #tpu.pipeline_mode<synchronous>, transform_indices = @transform_6, window_bounds = array<i64: 1, 32>}, {transform_indices = @transform_7, window_bounds = array<i64: 1, 8, 32>}]} {
    %c0 = arith.constant 0 : index
    %c0_0 = arith.constant 0 : index
    %c0_1 = arith.constant 0 : index
    %0 = vector.load %arg1[%c0, %c0_0, %c0_1] : memref<1x8x32xf32, #tpu.memory_space<vmem>>, vector<1x8x32xf32>
    %1 = vector.shape_cast %0 : vector<1x8x32xf32> to vector<8x32xf32>
    %2 = arith.truncf %1 : vector<8x32xf32> to vector<8x32xbf16>
    %c0_2 = arith.constant 0 : index
    %c0_3 = arith.constant 0 : index
    %3 = vector.load %arg2[%c0_2, %c0_3] : memref<32x96xf32, #tpu.memory_space<vmem>>, vector<32x96xf32>
    %4 = arith.truncf %3 : vector<32x96xf32> to vector<32x96xbf16>
    %cst = arith.constant dense<0.000000e+00> : vector<8x96xf32>
    %5 = tpu.matmul %2, %4, %cst {dimension_numbers = #tpu.dot_dimension_numbers<[1], [0], [0], [1], [0, 0, 1, 1], [], []>} : vector<8x32xbf16>, vector<32x96xbf16>, vector<8x96xf32> -> vector<8x96xf32>
    %c0_4 = arith.constant 0 : index
    %c0_5 = arith.constant 0 : index
    %6 = vector.load %arg3[%c0_4, %c0_5] : memref<1x96xf32, #tpu.memory_space<vmem>>, vector<1x96xf32>
    %7 = vector.broadcast %6 : vector<1x96xf32> to vector<8x96xf32>
    %8 = arith.addf %5, %7 : vector<8x96xf32>
    %9 = vector.extract_strided_slice %8 {offsets = [0, 0], sizes = [8, 32], strides = [1, 1]} : vector<8x96xf32> to vector<8x32xf32>
    %10 = vector.extract_strided_slice %8 {offsets = [0, 32], sizes = [8, 32], strides = [1, 1]} : vector<8x96xf32> to vector<8x32xf32>
    %11 = vector.extract_strided_slice %8 {offsets = [0, 64], sizes = [8, 32], strides = [1, 1]} : vector<8x96xf32> to vector<8x32xf32>
    %12 = tpu.iota {dimensions = array<i32: 0>} : vector<8x8xi32>
    %13 = tpu.iota {dimensions = array<i32: 1>} : vector<8x8xi32>
    %14 = arith.cmpi sgt, %13, %12 : vector<8x8xi32>
    %cst_6 = arith.constant -1.000000e+09 : f32
    %cst_7 = arith.constant 0.000000e+00 : f32
    %15 = vector.broadcast %cst_6 : f32 to vector<8x8xf32>
    %16 = vector.broadcast %cst_7 : f32 to vector<8x8xf32>
    %17 = arith.select %14, %15, %16 : vector<8x8xi1>, vector<8x8xf32>
    %c0_8 = arith.constant 0 : index
    %c0_9 = arith.constant 0 : index
    %18 = vector.load %arg4[%c0_8, %c0_9] : memref<32x32xf32, #tpu.memory_space<vmem>>, vector<32x32xf32>
    %cst_10 = arith.constant 0.000000e+00 : f32
    %19 = vector.broadcast %cst_10 : f32 to vector<8x32xf32>
    %20 = vector.extract_strided_slice %9 {offsets = [0, 0], sizes = [8, 8], strides = [1, 1]} : vector<8x32xf32> to vector<8x8xf32>
    %21 = vector.extract_strided_slice %10 {offsets = [0, 0], sizes = [8, 8], strides = [1, 1]} : vector<8x32xf32> to vector<8x8xf32>
    %22 = vector.extract_strided_slice %11 {offsets = [0, 0], sizes = [8, 8], strides = [1, 1]} : vector<8x32xf32> to vector<8x8xf32>
    %cst_11 = arith.constant dense<0.000000e+00> : vector<8x8xf32>
    %23 = tpu.matmul %20, %21, %cst_11 {dimension_numbers = #tpu.dot_dimension_numbers<[1], [1], [0], [0], [0, 0, 1, 0], [], []>} : vector<8x8xf32>, vector<8x8xf32>, vector<8x8xf32> -> vector<8x8xf32>
    %cst_12 = arith.constant 0.353553385 : f32
    %24 = vector.broadcast %cst_12 : f32 to vector<8x8xf32>
    %25 = arith.mulf %23, %24 : vector<8x8xf32>
    %26 = arith.addf %25, %17 : vector<8x8xf32>
    %cst_13 = arith.constant dense<0xFF800000> : vector<8xf32>
    %27 = vector.multi_reduction <maximumf>, %26, %cst_13 [1] : vector<8x8xf32> to vector<8xf32>
    %28 = vector.shape_cast %27 : vector<8xf32> to vector<8x1xf32>
    %29 = vector.broadcast %28 : vector<8x1xf32> to vector<8x8xf32>
    %30 = arith.subf %26, %29 : vector<8x8xf32>
    %31 = math.exp %30 : vector<8x8xf32>
    %cst_14 = arith.constant dense<0.000000e+00> : vector<8xf32>
    %32 = vector.multi_reduction <add>, %31, %cst_14 [1] : vector<8x8xf32> to vector<8xf32>
    %33 = vector.shape_cast %32 : vector<8xf32> to vector<8x1xf32>
    %34 = tpu.reciprocal %33 {approx = true} : vector<8x1xf32> -> vector<8x1xf32>
    %35 = vector.broadcast %34 : vector<8x1xf32> to vector<8x8xf32>
    %36 = arith.mulf %31, %35 : vector<8x8xf32>
    %cst_15 = arith.constant dense<0.000000e+00> : vector<8x8xf32>
    %37 = tpu.matmul %36, %22, %cst_15 {dimension_numbers = #tpu.dot_dimension_numbers<[1], [0], [0], [1], [0, 0, 1, 1], [], []>} : vector<8x8xf32>, vector<8x8xf32>, vector<8x8xf32> -> vector<8x8xf32>
    %38 = arith.truncf %37 : vector<8x8xf32> to vector<8x8xbf16>
    %39 = vector.extract_strided_slice %18 {offsets = [0, 0], sizes = [8, 32], strides = [1, 1]} : vector<32x32xf32> to vector<8x32xf32>
    %40 = arith.truncf %39 : vector<8x32xf32> to vector<8x32xbf16>
    %cst_16 = arith.constant dense<0.000000e+00> : vector<8x32xf32>
    %41 = tpu.matmul %38, %40, %cst_16 {dimension_numbers = #tpu.dot_dimension_numbers<[1], [0], [0], [1], [0, 0, 1, 1], [], []>} : vector<8x8xbf16>, vector<8x32xbf16>, vector<8x32xf32> -> vector<8x32xf32>
    %42 = arith.addf %19, %41 : vector<8x32xf32>
    %43 = vector.extract_strided_slice %9 {offsets = [0, 8], sizes = [8, 8], strides = [1, 1]} : vector<8x32xf32> to vector<8x8xf32>
    %44 = vector.extract_strided_slice %10 {offsets = [0, 8], sizes = [8, 8], strides = [1, 1]} : vector<8x32xf32> to vector<8x8xf32>
    %45 = vector.extract_strided_slice %11 {offsets = [0, 8], sizes = [8, 8], strides = [1, 1]} : vector<8x32xf32> to vector<8x8xf32>
    %cst_17 = arith.constant dense<0.000000e+00> : vector<8x8xf32>
    %46 = tpu.matmul %43, %44, %cst_17 {dimension_numbers = #tpu.dot_dimension_numbers<[1], [1], [0], [0], [0, 0, 1, 0], [], []>} : vector<8x8xf32>, vector<8x8xf32>, vector<8x8xf32> -> vector<8x8xf32>
    %cst_18 = arith.constant 0.353553385 : f32
    %47 = vector.broadcast %cst_18 : f32 to vector<8x8xf32>
    %48 = arith.mulf %46, %47 : vector<8x8xf32>
    %49 = arith.addf %48, %17 : vector<8x8xf32>
    %cst_19 = arith.constant dense<0xFF800000> : vector<8xf32>
    %50 = vector.multi_reduction <maximumf>, %49, %cst_19 [1] : vector<8x8xf32> to vector<8xf32>
    %51 = vector.shape_cast %50 : vector<8xf32> to vector<8x1xf32>
    %52 = vector.broadcast %51 : vector<8x1xf32> to vector<8x8xf32>
    %53 = arith.subf %49, %52 : vector<8x8xf32>
    %54 = math.exp %53 : vector<8x8xf32>
    %cst_20 = arith.constant dense<0.000000e+00> : vector<8xf32>
    %55 = vector.multi_reduction <add>, %54, %cst_20 [1] : vector<8x8xf32> to vector<8xf32>
    %56 = vector.shape_cast %55 : vector<8xf32> to vector<8x1xf32>
    %57 = tpu.reciprocal %56 {approx = true} : vector<8x1xf32> -> vector<8x1xf32>
    %58 = vector.broadcast %57 : vector<8x1xf32> to vector<8x8xf32>
    %59 = arith.mulf %54, %58 : vector<8x8xf32>
    %cst_21 = arith.constant dense<0.000000e+00> : vector<8x8xf32>
    %60 = tpu.matmul %59, %45, %cst_21 {dimension_numbers = #tpu.dot_dimension_numbers<[1], [0], [0], [1], [0, 0, 1, 1], [], []>} : vector<8x8xf32>, vector<8x8xf32>, vector<8x8xf32> -> vector<8x8xf32>
    %61 = arith.truncf %60 : vector<8x8xf32> to vector<8x8xbf16>
    %62 = vector.extract_strided_slice %18 {offsets = [8, 0], sizes = [8, 32], strides = [1, 1]} : vector<32x32xf32> to vector<8x32xf32>
    %63 = arith.truncf %62 : vector<8x32xf32> to vector<8x32xbf16>
    %cst_22 = arith.constant dense<0.000000e+00> : vector<8x32xf32>
    %64 = tpu.matmul %61, %63, %cst_22 {dimension_numbers = #tpu.dot_dimension_numbers<[1], [0], [0], [1], [0, 0, 1, 1], [], []>} : vector<8x8xbf16>, vector<8x32xbf16>, vector<8x32xf32> -> vector<8x32xf32>
    %65 = arith.addf %42, %64 : vector<8x32xf32>
    %66 = vector.extract_strided_slice %9 {offsets = [0, 16], sizes = [8, 8], strides = [1, 1]} : vector<8x32xf32> to vector<8x8xf32>
    %67 = vector.extract_strided_slice %10 {offsets = [0, 16], sizes = [8, 8], strides = [1, 1]} : vector<8x32xf32> to vector<8x8xf32>
    %68 = vector.extract_strided_slice %11 {offsets = [0, 16], sizes = [8, 8], strides = [1, 1]} : vector<8x32xf32> to vector<8x8xf32>
    %cst_23 = arith.constant dense<0.000000e+00> : vector<8x8xf32>
    %69 = tpu.matmul %66, %67, %cst_23 {dimension_numbers = #tpu.dot_dimension_numbers<[1], [1], [0], [0], [0, 0, 1, 0], [], []>} : vector<8x8xf32>, vector<8x8xf32>, vector<8x8xf32> -> vector<8x8xf32>
    %cst_24 = arith.constant 0.353553385 : f32
    %70 = vector.broadcast %cst_24 : f32 to vector<8x8xf32>
    %71 = arith.mulf %69, %70 : vector<8x8xf32>
    %72 = arith.addf %71, %17 : vector<8x8xf32>
    %cst_25 = arith.constant dense<0xFF800000> : vector<8xf32>
    %73 = vector.multi_reduction <maximumf>, %72, %cst_25 [1] : vector<8x8xf32> to vector<8xf32>
    %74 = vector.shape_cast %73 : vector<8xf32> to vector<8x1xf32>
    %75 = vector.broadcast %74 : vector<8x1xf32> to vector<8x8xf32>
    %76 = arith.subf %72, %75 : vector<8x8xf32>
    %77 = math.exp %76 : vector<8x8xf32>
    %cst_26 = arith.constant dense<0.000000e+00> : vector<8xf32>
    %78 = vector.multi_reduction <add>, %77, %cst_26 [1] : vector<8x8xf32> to vector<8xf32>
    %79 = vector.shape_cast %78 : vector<8xf32> to vector<8x1xf32>
    %80 = tpu.reciprocal %79 {approx = true} : vector<8x1xf32> -> vector<8x1xf32>
    %81 = vector.broadcast %80 : vector<8x1xf32> to vector<8x8xf32>
    %82 = arith.mulf %77, %81 : vector<8x8xf32>
    %cst_27 = arith.constant dense<0.000000e+00> : vector<8x8xf32>
    %83 = tpu.matmul %82, %68, %cst_27 {dimension_numbers = #tpu.dot_dimension_numbers<[1], [0], [0], [1], [0, 0, 1, 1], [], []>} : vector<8x8xf32>, vector<8x8xf32>, vector<8x8xf32> -> vector<8x8xf32>
    %84 = arith.truncf %83 : vector<8x8xf32> to vector<8x8xbf16>
    %85 = vector.extract_strided_slice %18 {offsets = [16, 0], sizes = [8, 32], strides = [1, 1]} : vector<32x32xf32> to vector<8x32xf32>
    %86 = arith.truncf %85 : vector<8x32xf32> to vector<8x32xbf16>
    %cst_28 = arith.constant dense<0.000000e+00> : vector<8x32xf32>
    %87 = tpu.matmul %84, %86, %cst_28 {dimension_numbers = #tpu.dot_dimension_numbers<[1], [0], [0], [1], [0, 0, 1, 1], [], []>} : vector<8x8xbf16>, vector<8x32xbf16>, vector<8x32xf32> -> vector<8x32xf32>
    %88 = arith.addf %65, %87 : vector<8x32xf32>
    %89 = vector.extract_strided_slice %9 {offsets = [0, 24], sizes = [8, 8], strides = [1, 1]} : vector<8x32xf32> to vector<8x8xf32>
    %90 = vector.extract_strided_slice %10 {offsets = [0, 24], sizes = [8, 8], strides = [1, 1]} : vector<8x32xf32> to vector<8x8xf32>
    %91 = vector.extract_strided_slice %11 {offsets = [0, 24], sizes = [8, 8], strides = [1, 1]} : vector<8x32xf32> to vector<8x8xf32>
    %cst_29 = arith.constant dense<0.000000e+00> : vector<8x8xf32>
    %92 = tpu.matmul %89, %90, %cst_29 {dimension_numbers = #tpu.dot_dimension_numbers<[1], [1], [0], [0], [0, 0, 1, 0], [], []>} : vector<8x8xf32>, vector<8x8xf32>, vector<8x8xf32> -> vector<8x8xf32>
    %cst_30 = arith.constant 0.353553385 : f32
    %93 = vector.broadcast %cst_30 : f32 to vector<8x8xf32>
    %94 = arith.mulf %92, %93 : vector<8x8xf32>
    %95 = arith.addf %94, %17 : vector<8x8xf32>
    %cst_31 = arith.constant dense<0xFF800000> : vector<8xf32>
    %96 = vector.multi_reduction <maximumf>, %95, %cst_31 [1] : vector<8x8xf32> to vector<8xf32>
    %97 = vector.shape_cast %96 : vector<8xf32> to vector<8x1xf32>
    %98 = vector.broadcast %97 : vector<8x1xf32> to vector<8x8xf32>
    %99 = arith.subf %95, %98 : vector<8x8xf32>
    %100 = math.exp %99 : vector<8x8xf32>
    %cst_32 = arith.constant dense<0.000000e+00> : vector<8xf32>
    %101 = vector.multi_reduction <add>, %100, %cst_32 [1] : vector<8x8xf32> to vector<8xf32>
    %102 = vector.shape_cast %101 : vector<8xf32> to vector<8x1xf32>
    %103 = tpu.reciprocal %102 {approx = true} : vector<8x1xf32> -> vector<8x1xf32>
    %104 = vector.broadcast %103 : vector<8x1xf32> to vector<8x8xf32>
    %105 = arith.mulf %100, %104 : vector<8x8xf32>
    %cst_33 = arith.constant dense<0.000000e+00> : vector<8x8xf32>
    %106 = tpu.matmul %105, %91, %cst_33 {dimension_numbers = #tpu.dot_dimension_numbers<[1], [0], [0], [1], [0, 0, 1, 1], [], []>} : vector<8x8xf32>, vector<8x8xf32>, vector<8x8xf32> -> vector<8x8xf32>
    %107 = arith.truncf %106 : vector<8x8xf32> to vector<8x8xbf16>
    %108 = vector.extract_strided_slice %18 {offsets = [24, 0], sizes = [8, 32], strides = [1, 1]} : vector<32x32xf32> to vector<8x32xf32>
    %109 = arith.truncf %108 : vector<8x32xf32> to vector<8x32xbf16>
    %cst_34 = arith.constant dense<0.000000e+00> : vector<8x32xf32>
    %110 = tpu.matmul %107, %109, %cst_34 {dimension_numbers = #tpu.dot_dimension_numbers<[1], [0], [0], [1], [0, 0, 1, 1], [], []>} : vector<8x8xbf16>, vector<8x32xbf16>, vector<8x32xf32> -> vector<8x32xf32>
    %111 = arith.addf %88, %110 : vector<8x32xf32>
    %c0_35 = arith.constant 0 : index
    %c0_36 = arith.constant 0 : index
    %112 = vector.load %arg5[%c0_35, %c0_36] : memref<1x32xf32, #tpu.memory_space<vmem>>, vector<1x32xf32>
    %113 = vector.broadcast %112 : vector<1x32xf32> to vector<8x32xf32>
    %114 = arith.addf %111, %113 : vector<8x32xf32>
    %115 = arith.addf %1, %114 : vector<8x32xf32>
    %c0_37 = arith.constant 0 : index
    %c0_38 = arith.constant 0 : index
    %116 = vector.load %arg6[%c0_37, %c0_38] : memref<1x32xf32, #tpu.memory_space<vmem>>, vector<1x32xf32>
    %c0_39 = arith.constant 0 : index
    %c0_40 = arith.constant 0 : index
    %117 = vector.load %arg7[%c0_39, %c0_40] : memref<1x32xf32, #tpu.memory_space<vmem>>, vector<1x32xf32>
    %cst_41 = arith.constant dense<0.000000e+00> : vector<8xf32>
    %118 = vector.multi_reduction <add>, %115, %cst_41 [1] : vector<8x32xf32> to vector<8xf32>
    %119 = vector.shape_cast %118 : vector<8xf32> to vector<8x1xf32>
    %cst_42 = arith.constant 3.200000e+01 : f32
    %120 = vector.broadcast %cst_42 : f32 to vector<8x1xf32>
    %121 = arith.divf %119, %120 : vector<8x1xf32>
    %122 = vector.broadcast %121 : vector<8x1xf32> to vector<8x32xf32>
    %123 = arith.subf %115, %122 : vector<8x32xf32>
    %124 = arith.mulf %123, %123 : vector<8x32xf32>
    %cst_43 = arith.constant dense<0.000000e+00> : vector<8xf32>
    %125 = vector.multi_reduction <add>, %124, %cst_43 [1] : vector<8x32xf32> to vector<8xf32>
    %126 = vector.shape_cast %125 : vector<8xf32> to vector<8x1xf32>
    %cst_44 = arith.constant 3.200000e+01 : f32
    %127 = vector.broadcast %cst_44 : f32 to vector<8x1xf32>
    %128 = arith.divf %126, %127 : vector<8x1xf32>
    %129 = vector.broadcast %121 : vector<8x1xf32> to vector<8x32xf32>
    %130 = arith.subf %115, %129 : vector<8x32xf32>
    %cst_45 = arith.constant 9.99999974E-6 : f32
    %131 = vector.broadcast %cst_45 : f32 to vector<8x1xf32>
    %132 = arith.addf %128, %131 : vector<8x1xf32>
    %133 = math.rsqrt %132 : vector<8x1xf32>
    %134 = vector.broadcast %133 : vector<8x1xf32> to vector<8x32xf32>
    %135 = arith.mulf %130, %134 : vector<8x32xf32>
    %136 = vector.broadcast %116 : vector<1x32xf32> to vector<8x32xf32>
    %137 = arith.mulf %135, %136 : vector<8x32xf32>
    %138 = vector.broadcast %117 : vector<1x32xf32> to vector<8x32xf32>
    %139 = arith.addf %137, %138 : vector<8x32xf32>
    %c0_46 = arith.constant 0 : index
    %c0_47 = arith.constant 0 : index
    %c0_48 = arith.constant 0 : index
    %140 = vector.load %arg8[%c0_46, %c0_47, %c0_48] : memref<1x8x32xf32, #tpu.memory_space<vmem>>, vector<1x8x32xf32>
    %141 = vector.shape_cast %140 : vector<1x8x32xf32> to vector<8x32xf32>
    %142 = vector.shape_cast %139 : vector<8x32xf32> to vector<1x8x32xf32>
    tpu.vector_store %arg8[%c0_46, %c0_47, %c0_48], %142 {strides = array<i32>} : memref<1x8x32xf32, #tpu.memory_space<vmem>>, vector<1x8x32xf32>,
    return
  }
  func.func @transform_0(%arg0: i32) -> (i32, i32, i32) {
    %c0_i32 = arith.constant 0 : i32
    %c0_i32_0 = arith.constant 0 : i32
    %c0_i32_1 = arith.constant 0 : i32
    return %arg0, %c0_i32, %c0_i32_0 : i32, i32, i32
  }
  func.func @transform_1(%arg0: i32) -> (i32, i32) {
    %c0_i32 = arith.constant 0 : i32
    %c0_i32_0 = arith.constant 0 : i32
    %c0_i32_1 = arith.constant 0 : i32
    return %c0_i32, %c0_i32_0 : i32, i32
  }
  func.func @transform_2(%arg0: i32) -> (i32, i32) {
    %c0_i32 = arith.constant 0 : i32
    %c0_i32_0 = arith.constant 0 : i32
    %c0_i32_1 = arith.constant 0 : i32
    return %c0_i32, %c0_i32_0 : i32, i32
  }
  func.func @transform_3(%arg0: i32) -> (i32, i32) {
    %c0_i32 = arith.constant 0 : i32
    %c0_i32_0 = arith.constant 0 : i32
    %c0_i32_1 = arith.constant 0 : i32
    return %c0_i32, %c0_i32_0 : i32, i32
  }
  func.func @transform_4(%arg0: i32) -> (i32, i32) {
    %c0_i32 = arith.constant 0 : i32
    %c0_i32_0 = arith.constant 0 : i32
    %c0_i32_1 = arith.constant 0 : i32
    return %c0_i32, %c0_i32_0 : i32, i32
  }
  func.func @transform_5(%arg0: i32) -> (i32, i32) {
    %c0_i32 = arith.constant 0 : i32
    %c0_i32_0 = arith.constant 0 : i32
    %c0_i32_1 = arith.constant 0 : i32
    return %c0_i32, %c0_i32_0 : i32, i32
  }
  func.func @transform_6(%arg0: i32) -> (i32, i32) {
    %c0_i32 = arith.constant 0 : i32
    %c0_i32_0 = arith.constant 0 : i32
    %c0_i32_1 = arith.constant 0 : i32
    return %c0_i32, %c0_i32_0 : i32, i32
  }
  func.func @transform_7(%arg0: i32) -> (i32, i32, i32) {
    %c0_i32 = arith.constant 0 : i32
    %c0_i32_0 = arith.constant 0 : i32
    %c0_i32_1 = arith.constant 0 : i32
    return %arg0, %c0_i32, %c0_i32_0 : i32, i32, i32
  }
}

module attributes {stable_mosaic.version = 11 : i64} {
  func.func @_ln_linear_kernel(%arg0: i32, %arg1: memref<1x8x32xf32, #tpu.memory_space<vmem>>, %arg2: memref<1x32xf32, #tpu.memory_space<vmem>>, %arg3: memref<1x32xf32, #tpu.memory_space<vmem>>, %arg4: memref<32x128xf32, #tpu.memory_space<vmem>>, %arg5: memref<1x128xf32, #tpu.memory_space<vmem>>, %arg6: memref<1x8x128xf32, #tpu.memory_space<vmem>>) attributes {dimension_semantics = [#tpu.dimension_semantics<parallel>], iteration_bounds = array<i64: 2>, scalar_prefetch = 0 : i64, scratch_operands = 0 : i64, tpu.core_type = #tpu.core_type<tc>, window_params = [{transform_indices = @transform_0, window_bounds = array<i64: 1, 8, 32>}, {pipeline_mode = #tpu.pipeline_mode<synchronous>, transform_indices = @transform_1, window_bounds = array<i64: 1, 32>}, {pipeline_mode = #tpu.pipeline_mode<synchronous>, transform_indices = @transform_2, window_bounds = array<i64: 1, 32>}, {pipeline_mode = #tpu.pipeline_mode<synchronous>, transform_indices = @transform_3, window_bounds = array<i64: 32, 128>}, {pipeline_mode = #tpu.pipeline_mode<synchronous>, transform_indices = @transform_4, window_bounds = array<i64: 1, 128>}, {transform_indices = @transform_5, window_bounds = array<i64: 1, 8, 128>}]} {
    %c0 = arith.constant 0 : index
    %c0_0 = arith.constant 0 : index
    %c0_1 = arith.constant 0 : index
    %0 = vector.load %arg1[%c0, %c0_0, %c0_1] : memref<1x8x32xf32, #tpu.memory_space<vmem>>, vector<1x8x32xf32>
    %1 = vector.shape_cast %0 : vector<1x8x32xf32> to vector<8x32xf32>
    %c0_2 = arith.constant 0 : index
    %c0_3 = arith.constant 0 : index
    %2 = vector.load %arg2[%c0_2, %c0_3] : memref<1x32xf32, #tpu.memory_space<vmem>>, vector<1x32xf32>
    %c0_4 = arith.constant 0 : index
    %c0_5 = arith.constant 0 : index
    %3 = vector.load %arg3[%c0_4, %c0_5] : memref<1x32xf32, #tpu.memory_space<vmem>>, vector<1x32xf32>
    %cst = arith.constant dense<0.000000e+00> : vector<8xf32>
    %4 = vector.multi_reduction <add>, %1, %cst [1] : vector<8x32xf32> to vector<8xf32>
    %5 = vector.shape_cast %4 : vector<8xf32> to vector<8x1xf32>
    %cst_6 = arith.constant 3.200000e+01 : f32
    %6 = vector.broadcast %cst_6 : f32 to vector<8x1xf32>
    %7 = arith.divf %5, %6 : vector<8x1xf32>
    %8 = vector.broadcast %7 : vector<8x1xf32> to vector<8x32xf32>
    %9 = arith.subf %1, %8 : vector<8x32xf32>
    %10 = arith.mulf %9, %9 : vector<8x32xf32>
    %cst_7 = arith.constant dense<0.000000e+00> : vector<8xf32>
    %11 = vector.multi_reduction <add>, %10, %cst_7 [1] : vector<8x32xf32> to vector<8xf32>
    %12 = vector.shape_cast %11 : vector<8xf32> to vector<8x1xf32>
    %cst_8 = arith.constant 3.200000e+01 : f32
    %13 = vector.broadcast %cst_8 : f32 to vector<8x1xf32>
    %14 = arith.divf %12, %13 : vector<8x1xf32>
    %15 = vector.broadcast %7 : vector<8x1xf32> to vector<8x32xf32>
    %16 = arith.subf %1, %15 : vector<8x32xf32>
    %cst_9 = arith.constant 9.99999974E-6 : f32
    %17 = vector.broadcast %cst_9 : f32 to vector<8x1xf32>
    %18 = arith.addf %14, %17 : vector<8x1xf32>
    %19 = math.rsqrt %18 : vector<8x1xf32>
    %20 = vector.broadcast %19 : vector<8x1xf32> to vector<8x32xf32>
    %21 = arith.mulf %16, %20 : vector<8x32xf32>
    %22 = vector.broadcast %2 : vector<1x32xf32> to vector<8x32xf32>
    %23 = arith.mulf %21, %22 : vector<8x32xf32>
    %24 = vector.broadcast %3 : vector<1x32xf32> to vector<8x32xf32>
    %25 = arith.addf %23, %24 : vector<8x32xf32>
    %26 = arith.truncf %25 : vector<8x32xf32> to vector<8x32xbf16>
    %c0_10 = arith.constant 0 : index
    %c0_11 = arith.constant 0 : index
    %27 = vector.load %arg4[%c0_10, %c0_11] : memref<32x128xf32, #tpu.memory_space<vmem>>, vector<32x128xf32>
    %28 = arith.truncf %27 : vector<32x128xf32> to vector<32x128xbf16>
    %cst_12 = arith.constant dense<0.000000e+00> : vector<8x128xf32>
    %29 = tpu.matmul %26, %28, %cst_12 {dimension_numbers = #tpu.dot_dimension_numbers<[1], [0], [0], [1], [0, 0, 1, 1], [], []>} : vector<8x32xbf16>, vector<32x128xbf16>, vector<8x128xf32> -> vector<8x128xf32>
    %c0_13 = arith.constant 0 : index
    %c0_14 = arith.constant 0 : index
    %30 = vector.load %arg5[%c0_13, %c0_14] : memref<1x128xf32, #tpu.memory_space<vmem>>, vector<1x128xf32>
    %31 = vector.broadcast %30 : vector<1x128xf32> to vector<8x128xf32>
    %32 = arith.addf %29, %31 : vector<8x128xf32>
    %c0_15 = arith.constant 0 : index
    %c0_16 = arith.constant 0 : index
    %c0_17 = arith.constant 0 : index
    %33 = vector.load %arg6[%c0_15, %c0_16, %c0_17] : memref<1x8x128xf32, #tpu.memory_space<vmem>>, vector<1x8x128xf32>
    %34 = vector.shape_cast %33 : vector<1x8x128xf32> to vector<8x128xf32>
    %35 = vector.shape_cast %32 : vector<8x128xf32> to vector<1x8x128xf32>
    tpu.vector_store %arg6[%c0_15, %c0_16, %c0_17], %35 {strides = array<i32>} : memref<1x8x128xf32, #tpu.memory_space<vmem>>, vector<1x8x128xf32>,
    return
  }
  func.func @transform_0(%arg0: i32) -> (i32, i32, i32) {
    %c0_i32 = arith.constant 0 : i32
    %c0_i32_0 = arith.constant 0 : i32
    %c0_i32_1 = arith.constant 0 : i32
    return %arg0, %c0_i32, %c0_i32_0 : i32, i32, i32
  }
  func.func @transform_1(%arg0: i32) -> (i32, i32) {
    %c0_i32 = arith.constant 0 : i32
    %c0_i32_0 = arith.constant 0 : i32
    %c0_i32_1 = arith.constant 0 : i32
    return %c0_i32, %c0_i32_0 : i32, i32
  }
  func.func @transform_2(%arg0: i32) -> (i32, i32) {
    %c0_i32 = arith.constant 0 : i32
    %c0_i32_0 = arith.constant 0 : i32
    %c0_i32_1 = arith.constant 0 : i32
    return %c0_i32, %c0_i32_0 : i32, i32
  }
  func.func @transform_3(%arg0: i32) -> (i32, i32) {
    %c0_i32 = arith.constant 0 : i32
    %c0_i32_0 = arith.constant 0 : i32
    %c0_i32_1 = arith.constant 0 : i32
    return %c0_i32, %c0_i32_0 : i32, i32
  }
  func.func @transform_4(%arg0: i32) -> (i32, i32) {
    %c0_i32 = arith.constant 0 : i32
    %c0_i32_0 = arith.constant 0 : i32
    %c0_i32_1 = arith.constant 0 : i32
    return %c0_i32, %c0_i32_0 : i32, i32
  }
  func.func @transform_5(%arg0: i32) -> (i32, i32, i32) {
    %c0_i32 = arith.constant 0 : i32
    %c0_i32_0 = arith.constant 0 : i32
    %c0_i32_1 = arith.constant 0 : i32
    return %arg0, %c0_i32, %c0_i32_0 : i32, i32, i32
  }
}

module attributes {stable_mosaic.version = 11 : i64} {
  func.func @_mha_cross_ln_kernel(%arg0: i32, %arg1: memref<1x8x32xf32, #tpu.memory_space<vmem>>, %arg2: memref<1x8x32xf32, #tpu.memory_space<vmem>>, %arg3: memref<32x96xf32, #tpu.memory_space<vmem>>, %arg4: memref<1x96xf32, #tpu.memory_space<vmem>>, %arg5: memref<32x32xf32, #tpu.memory_space<vmem>>, %arg6: memref<1x32xf32, #tpu.memory_space<vmem>>, %arg7: memref<1x32xf32, #tpu.memory_space<vmem>>, %arg8: memref<1x32xf32, #tpu.memory_space<vmem>>, %arg9: memref<1x8x32xf32, #tpu.memory_space<vmem>>) attributes {dimension_semantics = [#tpu.dimension_semantics<parallel>], iteration_bounds = array<i64: 2>, scalar_prefetch = 0 : i64, scratch_operands = 0 : i64, tpu.core_type = #tpu.core_type<tc>, window_params = [{transform_indices = @transform_0, window_bounds = array<i64: 1, 8, 32>}, {transform_indices = @transform_1, window_bounds = array<i64: 1, 8, 32>}, {pipeline_mode = #tpu.pipeline_mode<synchronous>, transform_indices = @transform_2, window_bounds = array<i64: 32, 96>}, {pipeline_mode = #tpu.pipeline_mode<synchronous>, transform_indices = @transform_3, window_bounds = array<i64: 1, 96>}, {pipeline_mode = #tpu.pipeline_mode<synchronous>, transform_indices = @transform_4, window_bounds = array<i64: 32, 32>}, {pipeline_mode = #tpu.pipeline_mode<synchronous>, transform_indices = @transform_5, window_bounds = array<i64: 1, 32>}, {pipeline_mode = #tpu.pipeline_mode<synchronous>, transform_indices = @transform_6, window_bounds = array<i64: 1, 32>}, {pipeline_mode = #tpu.pipeline_mode<synchronous>, transform_indices = @transform_7, window_bounds = array<i64: 1, 32>}, {transform_indices = @transform_8, window_bounds = array<i64: 1, 8, 32>}]} {
    %c0 = arith.constant 0 : index
    %c0_0 = arith.constant 0 : index
    %c0_1 = arith.constant 0 : index
    %0 = vector.load %arg1[%c0, %c0_0, %c0_1] : memref<1x8x32xf32, #tpu.memory_space<vmem>>, vector<1x8x32xf32>
    %1 = vector.shape_cast %0 : vector<1x8x32xf32> to vector<8x32xf32>
    %c0_2 = arith.constant 0 : index
    %c0_3 = arith.constant 0 : index
    %c0_4 = arith.constant 0 : index
    %2 = vector.load %arg2[%c0_2, %c0_3, %c0_4] : memref<1x8x32xf32, #tpu.memory_space<vmem>>, vector<1x8x32xf32>
    %3 = vector.shape_cast %2 : vector<1x8x32xf32> to vector<8x32xf32>
    %c0_5 = arith.constant 0 : index
    %c0_6 = arith.constant 0 : index
    %4 = vector.load %arg3[%c0_5, %c0_6] : memref<32x96xf32, #tpu.memory_space<vmem>>, vector<32x96xf32>
    %c0_7 = arith.constant 0 : index
    %c0_8 = arith.constant 0 : index
    %5 = vector.load %arg4[%c0_7, %c0_8] : memref<1x96xf32, #tpu.memory_space<vmem>>, vector<1x96xf32>
    %6 = arith.truncf %1 : vector<8x32xf32> to vector<8x32xbf16>
    %7 = vector.extract_strided_slice %4 {offsets = [0, 0], sizes = [32, 32], strides = [1, 1]} : vector<32x96xf32> to vector<32x32xf32>
    %8 = arith.truncf %7 : vector<32x32xf32> to vector<32x32xbf16>
    %cst = arith.constant dense<0.000000e+00> : vector<8x32xf32>
    %9 = tpu.matmul %6, %8, %cst {dimension_numbers = #tpu.dot_dimension_numbers<[1], [0], [0], [1], [0, 0, 1, 1], [], []>} : vector<8x32xbf16>, vector<32x32xbf16>, vector<8x32xf32> -> vector<8x32xf32>
    %10 = vector.extract_strided_slice %5 {offsets = [0, 0], sizes = [1, 32], strides = [1, 1]} : vector<1x96xf32> to vector<1x32xf32>
    %11 = vector.broadcast %10 : vector<1x32xf32> to vector<8x32xf32>
    %12 = arith.addf %9, %11 : vector<8x32xf32>
    %13 = arith.truncf %3 : vector<8x32xf32> to vector<8x32xbf16>
    %14 = vector.extract_strided_slice %4 {offsets = [0, 32], sizes = [32, 64], strides = [1, 1]} : vector<32x96xf32> to vector<32x64xf32>
    %15 = arith.truncf %14 : vector<32x64xf32> to vector<32x64xbf16>
    %cst_9 = arith.constant dense<0.000000e+00> : vector<8x64xf32>
    %16 = tpu.matmul %13, %15, %cst_9 {dimension_numbers = #tpu.dot_dimension_numbers<[1], [0], [0], [1], [0, 0, 1, 1], [], []>} : vector<8x32xbf16>, vector<32x64xbf16>, vector<8x64xf32> -> vector<8x64xf32>
    %17 = vector.extract_strided_slice %5 {offsets = [0, 32], sizes = [1, 64], strides = [1, 1]} : vector<1x96xf32> to vector<1x64xf32>
    %18 = vector.broadcast %17 : vector<1x64xf32> to vector<8x64xf32>
    %19 = arith.addf %16, %18 : vector<8x64xf32>
    %20 = vector.extract_strided_slice %19 {offsets = [0, 0], sizes = [8, 32], strides = [1, 1]} : vector<8x64xf32> to vector<8x32xf32>
    %21 = vector.extract_strided_slice %19 {offsets = [0, 32], sizes = [8, 32], strides = [1, 1]} : vector<8x64xf32> to vector<8x32xf32>
    %c0_10 = arith.constant 0 : index
    %c0_11 = arith.constant 0 : index
    %22 = vector.load %arg5[%c0_10, %c0_11] : memref<32x32xf32, #tpu.memory_space<vmem>>, vector<32x32xf32>
    %cst_12 = arith.constant 0.000000e+00 : f32
    %23 = vector.broadcast %cst_12 : f32 to vector<8x32xf32>
    %24 = vector.extract_strided_slice %12 {offsets = [0, 0], sizes = [8, 8], strides = [1, 1]} : vector<8x32xf32> to vector<8x8xf32>
    %25 = vector.extract_strided_slice %20 {offsets = [0, 0], sizes = [8, 8], strides = [1, 1]} : vector<8x32xf32> to vector<8x8xf32>
    %26 = vector.extract_strided_slice %21 {offsets = [0, 0], sizes = [8, 8], strides = [1, 1]} : vector<8x32xf32> to vector<8x8xf32>
    %cst_13 = arith.constant dense<0.000000e+00> : vector<8x8xf32>
    %27 = tpu.matmul %24, %25, %cst_13 {dimension_numbers = #tpu.dot_dimension_numbers<[1], [1], [0], [0], [0, 0, 1, 0], [], []>} : vector<8x8xf32>, vector<8x8xf32>, vector<8x8xf32> -> vector<8x8xf32>
    %cst_14 = arith.constant 0.353553385 : f32
    %28 = vector.broadcast %cst_14 : f32 to vector<8x8xf32>
    %29 = arith.mulf %27, %28 : vector<8x8xf32>
    %cst_15 = arith.constant dense<0xFF800000> : vector<8xf32>
    %30 = vector.multi_reduction <maximumf>, %29, %cst_15 [1] : vector<8x8xf32> to vector<8xf32>
    %31 = vector.shape_cast %30 : vector<8xf32> to vector<8x1xf32>
    %32 = vector.broadcast %31 : vector<8x1xf32> to vector<8x8xf32>
    %33 = arith.subf %29, %32 : vector<8x8xf32>
    %34 = math.exp %33 : vector<8x8xf32>
    %cst_16 = arith.constant dense<0.000000e+00> : vector<8xf32>
    %35 = vector.multi_reduction <add>, %34, %cst_16 [1] : vector<8x8xf32> to vector<8xf32>
    %36 = vector.shape_cast %35 : vector<8xf32> to vector<8x1xf32>
    %37 = tpu.reciprocal %36 {approx = true} : vector<8x1xf32> -> vector<8x1xf32>
    %38 = vector.broadcast %37 : vector<8x1xf32> to vector<8x8xf32>
    %39 = arith.mulf %34, %38 : vector<8x8xf32>
    %cst_17 = arith.constant dense<0.000000e+00> : vector<8x8xf32>
    %40 = tpu.matmul %39, %26, %cst_17 {dimension_numbers = #tpu.dot_dimension_numbers<[1], [0], [0], [1], [0, 0, 1, 1], [], []>} : vector<8x8xf32>, vector<8x8xf32>, vector<8x8xf32> -> vector<8x8xf32>
    %41 = arith.truncf %40 : vector<8x8xf32> to vector<8x8xbf16>
    %42 = vector.extract_strided_slice %22 {offsets = [0, 0], sizes = [8, 32], strides = [1, 1]} : vector<32x32xf32> to vector<8x32xf32>
    %43 = arith.truncf %42 : vector<8x32xf32> to vector<8x32xbf16>
    %cst_18 = arith.constant dense<0.000000e+00> : vector<8x32xf32>
    %44 = tpu.matmul %41, %43, %cst_18 {dimension_numbers = #tpu.dot_dimension_numbers<[1], [0], [0], [1], [0, 0, 1, 1], [], []>} : vector<8x8xbf16>, vector<8x32xbf16>, vector<8x32xf32> -> vector<8x32xf32>
    %45 = arith.addf %23, %44 : vector<8x32xf32>
    %46 = vector.extract_strided_slice %12 {offsets = [0, 8], sizes = [8, 8], strides = [1, 1]} : vector<8x32xf32> to vector<8x8xf32>
    %47 = vector.extract_strided_slice %20 {offsets = [0, 8], sizes = [8, 8], strides = [1, 1]} : vector<8x32xf32> to vector<8x8xf32>
    %48 = vector.extract_strided_slice %21 {offsets = [0, 8], sizes = [8, 8], strides = [1, 1]} : vector<8x32xf32> to vector<8x8xf32>
    %cst_19 = arith.constant dense<0.000000e+00> : vector<8x8xf32>
    %49 = tpu.matmul %46, %47, %cst_19 {dimension_numbers = #tpu.dot_dimension_numbers<[1], [1], [0], [0], [0, 0, 1, 0], [], []>} : vector<8x8xf32>, vector<8x8xf32>, vector<8x8xf32> -> vector<8x8xf32>
    %cst_20 = arith.constant 0.353553385 : f32
    %50 = vector.broadcast %cst_20 : f32 to vector<8x8xf32>
    %51 = arith.mulf %49, %50 : vector<8x8xf32>
    %cst_21 = arith.constant dense<0xFF800000> : vector<8xf32>
    %52 = vector.multi_reduction <maximumf>, %51, %cst_21 [1] : vector<8x8xf32> to vector<8xf32>
    %53 = vector.shape_cast %52 : vector<8xf32> to vector<8x1xf32>
    %54 = vector.broadcast %53 : vector<8x1xf32> to vector<8x8xf32>
    %55 = arith.subf %51, %54 : vector<8x8xf32>
    %56 = math.exp %55 : vector<8x8xf32>
    %cst_22 = arith.constant dense<0.000000e+00> : vector<8xf32>
    %57 = vector.multi_reduction <add>, %56, %cst_22 [1] : vector<8x8xf32> to vector<8xf32>
    %58 = vector.shape_cast %57 : vector<8xf32> to vector<8x1xf32>
    %59 = tpu.reciprocal %58 {approx = true} : vector<8x1xf32> -> vector<8x1xf32>
    %60 = vector.broadcast %59 : vector<8x1xf32> to vector<8x8xf32>
    %61 = arith.mulf %56, %60 : vector<8x8xf32>
    %cst_23 = arith.constant dense<0.000000e+00> : vector<8x8xf32>
    %62 = tpu.matmul %61, %48, %cst_23 {dimension_numbers = #tpu.dot_dimension_numbers<[1], [0], [0], [1], [0, 0, 1, 1], [], []>} : vector<8x8xf32>, vector<8x8xf32>, vector<8x8xf32> -> vector<8x8xf32>
    %63 = arith.truncf %62 : vector<8x8xf32> to vector<8x8xbf16>
    %64 = vector.extract_strided_slice %22 {offsets = [8, 0], sizes = [8, 32], strides = [1, 1]} : vector<32x32xf32> to vector<8x32xf32>
    %65 = arith.truncf %64 : vector<8x32xf32> to vector<8x32xbf16>
    %cst_24 = arith.constant dense<0.000000e+00> : vector<8x32xf32>
    %66 = tpu.matmul %63, %65, %cst_24 {dimension_numbers = #tpu.dot_dimension_numbers<[1], [0], [0], [1], [0, 0, 1, 1], [], []>} : vector<8x8xbf16>, vector<8x32xbf16>, vector<8x32xf32> -> vector<8x32xf32>
    %67 = arith.addf %45, %66 : vector<8x32xf32>
    %68 = vector.extract_strided_slice %12 {offsets = [0, 16], sizes = [8, 8], strides = [1, 1]} : vector<8x32xf32> to vector<8x8xf32>
    %69 = vector.extract_strided_slice %20 {offsets = [0, 16], sizes = [8, 8], strides = [1, 1]} : vector<8x32xf32> to vector<8x8xf32>
    %70 = vector.extract_strided_slice %21 {offsets = [0, 16], sizes = [8, 8], strides = [1, 1]} : vector<8x32xf32> to vector<8x8xf32>
    %cst_25 = arith.constant dense<0.000000e+00> : vector<8x8xf32>
    %71 = tpu.matmul %68, %69, %cst_25 {dimension_numbers = #tpu.dot_dimension_numbers<[1], [1], [0], [0], [0, 0, 1, 0], [], []>} : vector<8x8xf32>, vector<8x8xf32>, vector<8x8xf32> -> vector<8x8xf32>
    %cst_26 = arith.constant 0.353553385 : f32
    %72 = vector.broadcast %cst_26 : f32 to vector<8x8xf32>
    %73 = arith.mulf %71, %72 : vector<8x8xf32>
    %cst_27 = arith.constant dense<0xFF800000> : vector<8xf32>
    %74 = vector.multi_reduction <maximumf>, %73, %cst_27 [1] : vector<8x8xf32> to vector<8xf32>
    %75 = vector.shape_cast %74 : vector<8xf32> to vector<8x1xf32>
    %76 = vector.broadcast %75 : vector<8x1xf32> to vector<8x8xf32>
    %77 = arith.subf %73, %76 : vector<8x8xf32>
    %78 = math.exp %77 : vector<8x8xf32>
    %cst_28 = arith.constant dense<0.000000e+00> : vector<8xf32>
    %79 = vector.multi_reduction <add>, %78, %cst_28 [1] : vector<8x8xf32> to vector<8xf32>
    %80 = vector.shape_cast %79 : vector<8xf32> to vector<8x1xf32>
    %81 = tpu.reciprocal %80 {approx = true} : vector<8x1xf32> -> vector<8x1xf32>
    %82 = vector.broadcast %81 : vector<8x1xf32> to vector<8x8xf32>
    %83 = arith.mulf %78, %82 : vector<8x8xf32>
    %cst_29 = arith.constant dense<0.000000e+00> : vector<8x8xf32>
    %84 = tpu.matmul %83, %70, %cst_29 {dimension_numbers = #tpu.dot_dimension_numbers<[1], [0], [0], [1], [0, 0, 1, 1], [], []>} : vector<8x8xf32>, vector<8x8xf32>, vector<8x8xf32> -> vector<8x8xf32>
    %85 = arith.truncf %84 : vector<8x8xf32> to vector<8x8xbf16>
    %86 = vector.extract_strided_slice %22 {offsets = [16, 0], sizes = [8, 32], strides = [1, 1]} : vector<32x32xf32> to vector<8x32xf32>
    %87 = arith.truncf %86 : vector<8x32xf32> to vector<8x32xbf16>
    %cst_30 = arith.constant dense<0.000000e+00> : vector<8x32xf32>
    %88 = tpu.matmul %85, %87, %cst_30 {dimension_numbers = #tpu.dot_dimension_numbers<[1], [0], [0], [1], [0, 0, 1, 1], [], []>} : vector<8x8xbf16>, vector<8x32xbf16>, vector<8x32xf32> -> vector<8x32xf32>
    %89 = arith.addf %67, %88 : vector<8x32xf32>
    %90 = vector.extract_strided_slice %12 {offsets = [0, 24], sizes = [8, 8], strides = [1, 1]} : vector<8x32xf32> to vector<8x8xf32>
    %91 = vector.extract_strided_slice %20 {offsets = [0, 24], sizes = [8, 8], strides = [1, 1]} : vector<8x32xf32> to vector<8x8xf32>
    %92 = vector.extract_strided_slice %21 {offsets = [0, 24], sizes = [8, 8], strides = [1, 1]} : vector<8x32xf32> to vector<8x8xf32>
    %cst_31 = arith.constant dense<0.000000e+00> : vector<8x8xf32>
    %93 = tpu.matmul %90, %91, %cst_31 {dimension_numbers = #tpu.dot_dimension_numbers<[1], [1], [0], [0], [0, 0, 1, 0], [], []>} : vector<8x8xf32>, vector<8x8xf32>, vector<8x8xf32> -> vector<8x8xf32>
    %cst_32 = arith.constant 0.353553385 : f32
    %94 = vector.broadcast %cst_32 : f32 to vector<8x8xf32>
    %95 = arith.mulf %93, %94 : vector<8x8xf32>
    %cst_33 = arith.constant dense<0xFF800000> : vector<8xf32>
    %96 = vector.multi_reduction <maximumf>, %95, %cst_33 [1] : vector<8x8xf32> to vector<8xf32>
    %97 = vector.shape_cast %96 : vector<8xf32> to vector<8x1xf32>
    %98 = vector.broadcast %97 : vector<8x1xf32> to vector<8x8xf32>
    %99 = arith.subf %95, %98 : vector<8x8xf32>
    %100 = math.exp %99 : vector<8x8xf32>
    %cst_34 = arith.constant dense<0.000000e+00> : vector<8xf32>
    %101 = vector.multi_reduction <add>, %100, %cst_34 [1] : vector<8x8xf32> to vector<8xf32>
    %102 = vector.shape_cast %101 : vector<8xf32> to vector<8x1xf32>
    %103 = tpu.reciprocal %102 {approx = true} : vector<8x1xf32> -> vector<8x1xf32>
    %104 = vector.broadcast %103 : vector<8x1xf32> to vector<8x8xf32>
    %105 = arith.mulf %100, %104 : vector<8x8xf32>
    %cst_35 = arith.constant dense<0.000000e+00> : vector<8x8xf32>
    %106 = tpu.matmul %105, %92, %cst_35 {dimension_numbers = #tpu.dot_dimension_numbers<[1], [0], [0], [1], [0, 0, 1, 1], [], []>} : vector<8x8xf32>, vector<8x8xf32>, vector<8x8xf32> -> vector<8x8xf32>
    %107 = arith.truncf %106 : vector<8x8xf32> to vector<8x8xbf16>
    %108 = vector.extract_strided_slice %22 {offsets = [24, 0], sizes = [8, 32], strides = [1, 1]} : vector<32x32xf32> to vector<8x32xf32>
    %109 = arith.truncf %108 : vector<8x32xf32> to vector<8x32xbf16>
    %cst_36 = arith.constant dense<0.000000e+00> : vector<8x32xf32>
    %110 = tpu.matmul %107, %109, %cst_36 {dimension_numbers = #tpu.dot_dimension_numbers<[1], [0], [0], [1], [0, 0, 1, 1], [], []>} : vector<8x8xbf16>, vector<8x32xbf16>, vector<8x32xf32> -> vector<8x32xf32>
    %111 = arith.addf %89, %110 : vector<8x32xf32>
    %c0_37 = arith.constant 0 : index
    %c0_38 = arith.constant 0 : index
    %112 = vector.load %arg6[%c0_37, %c0_38] : memref<1x32xf32, #tpu.memory_space<vmem>>, vector<1x32xf32>
    %113 = vector.broadcast %112 : vector<1x32xf32> to vector<8x32xf32>
    %114 = arith.addf %111, %113 : vector<8x32xf32>
    %115 = arith.addf %1, %114 : vector<8x32xf32>
    %c0_39 = arith.constant 0 : index
    %c0_40 = arith.constant 0 : index
    %116 = vector.load %arg7[%c0_39, %c0_40] : memref<1x32xf32, #tpu.memory_space<vmem>>, vector<1x32xf32>
    %c0_41 = arith.constant 0 : index
    %c0_42 = arith.constant 0 : index
    %117 = vector.load %arg8[%c0_41, %c0_42] : memref<1x32xf32, #tpu.memory_space<vmem>>, vector<1x32xf32>
    %cst_43 = arith.constant dense<0.000000e+00> : vector<8xf32>
    %118 = vector.multi_reduction <add>, %115, %cst_43 [1] : vector<8x32xf32> to vector<8xf32>
    %119 = vector.shape_cast %118 : vector<8xf32> to vector<8x1xf32>
    %cst_44 = arith.constant 3.200000e+01 : f32
    %120 = vector.broadcast %cst_44 : f32 to vector<8x1xf32>
    %121 = arith.divf %119, %120 : vector<8x1xf32>
    %122 = vector.broadcast %121 : vector<8x1xf32> to vector<8x32xf32>
    %123 = arith.subf %115, %122 : vector<8x32xf32>
    %124 = arith.mulf %123, %123 : vector<8x32xf32>
    %cst_45 = arith.constant dense<0.000000e+00> : vector<8xf32>
    %125 = vector.multi_reduction <add>, %124, %cst_45 [1] : vector<8x32xf32> to vector<8xf32>
    %126 = vector.shape_cast %125 : vector<8xf32> to vector<8x1xf32>
    %cst_46 = arith.constant 3.200000e+01 : f32
    %127 = vector.broadcast %cst_46 : f32 to vector<8x1xf32>
    %128 = arith.divf %126, %127 : vector<8x1xf32>
    %129 = vector.broadcast %121 : vector<8x1xf32> to vector<8x32xf32>
    %130 = arith.subf %115, %129 : vector<8x32xf32>
    %cst_47 = arith.constant 9.99999974E-6 : f32
    %131 = vector.broadcast %cst_47 : f32 to vector<8x1xf32>
    %132 = arith.addf %128, %131 : vector<8x1xf32>
    %133 = math.rsqrt %132 : vector<8x1xf32>
    %134 = vector.broadcast %133 : vector<8x1xf32> to vector<8x32xf32>
    %135 = arith.mulf %130, %134 : vector<8x32xf32>
    %136 = vector.broadcast %116 : vector<1x32xf32> to vector<8x32xf32>
    %137 = arith.mulf %135, %136 : vector<8x32xf32>
    %138 = vector.broadcast %117 : vector<1x32xf32> to vector<8x32xf32>
    %139 = arith.addf %137, %138 : vector<8x32xf32>
    %c0_48 = arith.constant 0 : index
    %c0_49 = arith.constant 0 : index
    %c0_50 = arith.constant 0 : index
    %140 = vector.load %arg9[%c0_48, %c0_49, %c0_50] : memref<1x8x32xf32, #tpu.memory_space<vmem>>, vector<1x8x32xf32>
    %141 = vector.shape_cast %140 : vector<1x8x32xf32> to vector<8x32xf32>
    %142 = vector.shape_cast %139 : vector<8x32xf32> to vector<1x8x32xf32>
    tpu.vector_store %arg9[%c0_48, %c0_49, %c0_50], %142 {strides = array<i32>} : memref<1x8x32xf32, #tpu.memory_space<vmem>>, vector<1x8x32xf32>,
    return
  }
  func.func @transform_0(%arg0: i32) -> (i32, i32, i32) {
    %c0_i32 = arith.constant 0 : i32
    %c0_i32_0 = arith.constant 0 : i32
    %c0_i32_1 = arith.constant 0 : i32
    return %arg0, %c0_i32, %c0_i32_0 : i32, i32, i32
  }
  func.func @transform_1(%arg0: i32) -> (i32, i32, i32) {
    %c0_i32 = arith.constant 0 : i32
    %c0_i32_0 = arith.constant 0 : i32
    %c0_i32_1 = arith.constant 0 : i32
    return %arg0, %c0_i32, %c0_i32_0 : i32, i32, i32
  }
  func.func @transform_2(%arg0: i32) -> (i32, i32) {
    %c0_i32 = arith.constant 0 : i32
    %c0_i32_0 = arith.constant 0 : i32
    %c0_i32_1 = arith.constant 0 : i32
    return %c0_i32, %c0_i32_0 : i32, i32
  }
  func.func @transform_3(%arg0: i32) -> (i32, i32) {
    %c0_i32 = arith.constant 0 : i32
    %c0_i32_0 = arith.constant 0 : i32
    %c0_i32_1 = arith.constant 0 : i32
    return %c0_i32, %c0_i32_0 : i32, i32
  }
  func.func @transform_4(%arg0: i32) -> (i32, i32) {
    %c0_i32 = arith.constant 0 : i32
    %c0_i32_0 = arith.constant 0 : i32
    %c0_i32_1 = arith.constant 0 : i32
    return %c0_i32, %c0_i32_0 : i32, i32
  }
  func.func @transform_5(%arg0: i32) -> (i32, i32) {
    %c0_i32 = arith.constant 0 : i32
    %c0_i32_0 = arith.constant 0 : i32
    %c0_i32_1 = arith.constant 0 : i32
    return %c0_i32, %c0_i32_0 : i32, i32
  }
  func.func @transform_6(%arg0: i32) -> (i32, i32) {
    %c0_i32 = arith.constant 0 : i32
    %c0_i32_0 = arith.constant 0 : i32
    %c0_i32_1 = arith.constant 0 : i32
    return %c0_i32, %c0_i32_0 : i32, i32
  }
  func.func @transform_7(%arg0: i32) -> (i32, i32) {
    %c0_i32 = arith.constant 0 : i32
    %c0_i32_0 = arith.constant 0 : i32
    %c0_i32_1 = arith.constant 0 : i32
    return %c0_i32, %c0_i32_0 : i32, i32
  }
  func.func @transform_8(%arg0: i32) -> (i32, i32, i32) {
    %c0_i32 = arith.constant 0 : i32
    %c0_i32_0 = arith.constant 0 : i32
    %c0_i32_1 = arith.constant 0 : i32
    return %arg0, %c0_i32, %c0_i32_0 : i32, i32, i32
  }
}

</mosaic_0001>

<llo_original>
// kernel: translate_transformer_forward.14
$region0: #{translate_transformer_forward.14}
  #allocation0 [shape = 'u32[]', space=smem, size = 0x4, offset = 0x4, fixed_abs, tag = 'smem constant byte address 0x4 - core index']
  #allocation1 [shape = 'u32[144,128]{1,0:T(1,128)}', space=vmem, size = 0x12000, scoped, tag = 'internal scratch']
  %s0 = inlined_call_operand.vmem [shape: f32[2,8,32], index: 0, kind: input, shape index: {}]
  %s1 = inlined_call_operand.vmem [shape: f32[2,1,8], index: 1, kind: input, shape index: {}]
  %s2 = inlined_call_operand.vmem [shape: f32[32,96], index: 2, kind: input, shape index: {}]
  %s3 = inlined_call_operand.vmem [shape: f32[1,96], index: 3, kind: input, shape index: {}]
  %s4 = inlined_call_operand.vmem [shape: f32[32,32], index: 4, kind: input, shape index: {}]
  %s5 = inlined_call_operand.vmem [shape: f32[1,32], index: 5, kind: input, shape index: {}]
  %s6 = inlined_call_operand.vmem [shape: f32[1,32], index: 6, kind: input, shape index: {}]
  %s7 = inlined_call_operand.vmem [shape: f32[1,32], index: 7, kind: input, shape index: {}]
  %s8 = inlined_call_operand.vmem [shape: f32[2,8,32], index: 8, kind: output, shape index: {}]
  %s9 = sld [smem:[#allocation0]]
  $region65: #{translate_transformer_forward.14} parent=0
    _
  %s11 = ssub.s32 1, %s9
  %s12 = scalar_select 0, %s11, %s9
  loop: start=0, step=1, limit=4
  $region2: #{translate_transformer_forward.14} parent=0 // loop_pre_header
    _
  $region3: #{translate_transformer_forward.14} parent=0 // loop_header
    %s14 = sphi 0, %s18
    %p15 = scmp.ge.s32.totalorder %s14, 4
    %s24 = sphi 0, %s26
    %s27 = sphi 0, %s24
    %s28 = sphi 0, %s27
    %s44 = sphi 0, %s28
    %s50 = sphi 0, %s52
    %s53 = sphi 0, %s50
    %s54 = sphi 0, %s53
    %s70 = sphi 0, %s54
    %s74 = sphi 0, %s74
    %s76 = sphi 0, %s74
    %s77 = sphi 0, %s76
    %s91 = sphi 0, %s77
    %s95 = sphi 0, %s95
    %s97 = sphi 0, %s95
    %s98 = sphi 0, %s97
    %s112 = sphi 0, %s98
    %s116 = sphi 0, %s116
    %s118 = sphi 0, %s116
    %s119 = sphi 0, %s118
    %s133 = sphi 0, %s119
    %s137 = sphi 0, %s137
    %s139 = sphi 0, %s137
    %s140 = sphi 0, %s139
    %s154 = sphi 0, %s140
    %s158 = sphi 0, %s158
    %s160 = sphi 0, %s158
    %s161 = sphi 0, %s160
    %s175 = sphi 0, %s161
    %s179 = sphi 0, %s179
    %s181 = sphi 0, %s179
    %s182 = sphi 0, %s181
    %s196 = sphi 0, %s182
    %s202 = sphi 0, %s204
    %s205 = sphi 0, %s202
    %s206 = sphi 0, %s205
    %s222 = sphi 0, %s206
  $region4: #{translate_transformer_forward.14} parent=0 // loop_header_branch
    %17 = sbr.rel (%p15) target = $region8
  $region5: #{translate_transformer_forward.14} parent=0 // loop_body
    %s19 = ssub.s32 %s14, 1
    %s20 = ssub.s32 %s14, 2
    %s21 = sadd.s32 %s14, 1
    %s22 = ssub.s32 %s14, %s21
    %p23 = scmp.eq.s32.totalorder %s22, 0
    %s25 = sadd.s32 %s24, 1
    %s26 = scalar_select %p23, %s24, %s25
    %p29 = pneg %p23
    %p30 = scmp.eq.s32.totalorder %s14, 1
    %p31 = por %p29, %p30
    %p32 = scmp.ne.s32.totalorder %s24, %s27
    %p33 = scmp.eq.s32.totalorder %s14, 0
    %p34 = por %p32, %p33
    %p35 = scmp.ne.s32.totalorder %s24, %s27
    %p36 = scmp.eq.s32.totalorder %s19, 1
    %p37 = por %p35, %p36
    %p38 = scmp.ne.s32.totalorder %s27, %s28
    %p39 = scmp.eq.s32.totalorder %s19, 0
    %p40 = por %p38, %p39
    %p41 = scmp.ne.s32.totalorder %s27, %s28
    %p42 = scmp.eq.s32.totalorder %s20, 1
    %p43 = por %p41, %p42
    %p45 = scmp.ne.s32.totalorder %s28, %s44
    %p46 = scmp.eq.s32.totalorder %s20, 0
    %p47 = por %p45, %p46
    %s48 = ssub.s32 %s14, %s21
    %p49 = scmp.eq.s32.totalorder %s48, 0
    %s51 = sadd.s32 %s50, 1
    %s52 = scalar_select %p49, %s50, %s51
    %p55 = pneg %p49
    %p56 = scmp.eq.s32.totalorder %s14, 1
    %p57 = por %p55, %p56
    %p58 = scmp.ne.s32.totalorder %s50, %s53
    %p59 = scmp.eq.s32.totalorder %s14, 0
    %p60 = por %p58, %p59
    %p61 = scmp.ne.s32.totalorder %s50, %s53
    %p62 = scmp.eq.s32.totalorder %s19, 1
    %p63 = por %p61, %p62
    %p64 = scmp.ne.s32.totalorder %s53, %s54
    %p65 = scmp.eq.s32.totalorder %s19, 0
    %p66 = por %p64, %p65
    %p67 = scmp.ne.s32.totalorder %s53, %s54
    %p68 = scmp.eq.s32.totalorder %s20, 1
    %p69 = por %p67, %p68
    %p71 = scmp.ne.s32.totalorder %s54, %s70
    %p72 = scmp.eq.s32.totalorder %s20, 0
    %p73 = por %p71, %p72
    %s75 = sadd.s32 %s74, 1
    %p78 = scmp.eq.s32.totalorder %s14, 1
    %p79 = scmp.ne.s32.totalorder %s74, %s76
    %p80 = scmp.eq.s32.totalorder %s14, 0
    %p81 = por %p79, %p80
    %p82 = scmp.ne.s32.totalorder %s74, %s76
    %p83 = scmp.eq.s32.totalorder %s19, 1
    %p84 = por %p82, %p83
    %p85 = scmp.ne.s32.totalorder %s76, %s77
    %p86 = scmp.eq.s32.totalorder %s19, 0
    %p87 = por %p85, %p86
    %p88 = scmp.ne.s32.totalorder %s76, %s77
    %p89 = scmp.eq.s32.totalorder %s20, 1
    %p90 = por %p88, %p89
    %p92 = scmp.ne.s32.totalorder %s77, %s91
    %p93 = scmp.eq.s32.totalorder %s20, 0
    %p94 = por %p92, %p93
    %s96 = sadd.s32 %s95, 1
    %p99 = scmp.eq.s32.totalorder %s14, 1
    %p100 = scmp.ne.s32.totalorder %s95, %s97
    %p101 = scmp.eq.s32.totalorder %s14, 0
    %p102 = por %p100, %p101
    %p103 = scmp.ne.s32.totalorder %s95, %s97
    %p104 = scmp.eq.s32.totalorder %s19, 1
    %p105 = por %p103, %p104
    %p106 = scmp.ne.s32.totalorder %s97, %s98
    %p107 = scmp.eq.s32.totalorder %s19, 0
    %p108 = por %p106, %p107
    %p109 = scmp.ne.s32.totalorder %s97, %s98
    %p110 = scmp.eq.s32.totalorder %s20, 1
    %p111 = por %p109, %p110
    %p113 = scmp.ne.s32.totalorder %s98, %s112
    %p114 = scmp.eq.s32.totalorder %s20, 0
    %p115 = por %p113, %p114
    %s117 = sadd.s32 %s116, 1
    %p120 = scmp.eq.s32.totalorder %s14, 1
    %p121 = scmp.ne.s32.totalorder %s116, %s118
    %p122 = scmp.eq.s32.totalorder %s14, 0
    %p123 = por %p121, %p122
    %p124 = scmp.ne.s32.totalorder %s116, %s118
    %p125 = scmp.eq.s32.totalorder %s19, 1
    %p126 = por %p124, %p125
    %p127 = scmp.ne.s32.totalorder %s118, %s119
    %p128 = scmp.eq.s32.totalorder %s19, 0
    %p129 = por %p127, %p128
    %p130 = scmp.ne.s32.totalorder %s118, %s119
    %p131 = scmp.eq.s32.totalorder %s20, 1
    %p132 = por %p130, %p131
    %p134 = scmp.ne.s32.totalorder %s119, %s133
    %p135 = scmp.eq.s32.totalorder %s20, 0
    %p136 = por %p134, %p135
    %s138 = sadd.s32 %s137, 1
    %p141 = scmp.eq.s32.totalorder %s14, 1
    %p142 = scmp.ne.s32.totalorder %s137, %s139
    %p143 = scmp.eq.s32.totalorder %s14, 0
    %p144 = por %p142, %p143
    %p145 = scmp.ne.s32.totalorder %s137, %s139
    %p146 = scmp.eq.s32.totalorder %s19, 1
    %p147 = por %p145, %p146
    %p148 = scmp.ne.s32.totalorder %s139, %s140
    %p149 = scmp.eq.s32.totalorder %s19, 0
    %p150 = por %p148, %p149
    %p151 = scmp.ne.s32.totalorder %s139, %s140
    %p152 = scmp.eq.s32.totalorder %s20, 1
    %p153 = por %p151, %p152
    %p155 = scmp.ne.s32.totalorder %s140, %s154
    %p156 = scmp.eq.s32.totalorder %s20, 0
    %p157 = por %p155, %p156
    %s159 = sadd.s32 %s158, 1
    %p162 = scmp.eq.s32.totalorder %s14, 1
    %p163 = scmp.ne.s32.totalorder %s158, %s160
    %p164 = scmp.eq.s32.totalorder %s14, 0
    %p165 = por %p163, %p164
    %p166 = scmp.ne.s32.totalorder %s158, %s160
    %p167 = scmp.eq.s32.totalorder %s19, 1
    %p168 = por %p166, %p167
    %p169 = scmp.ne.s32.totalorder %s160, %s161
    %p170 = scmp.eq.s32.totalorder %s19, 0
    %p171 = por %p169, %p170
    %p172 = scmp.ne.s32.totalorder %s160, %s161
    %p173 = scmp.eq.s32.totalorder %s20, 1
    %p174 = por %p172, %p173
    %p176 = scmp.ne.s32.totalorder %s161, %s175
    %p177 = scmp.eq.s32.totalorder %s20, 0
    %p178 = por %p176, %p177
    %s180 = sadd.s32 %s179, 1
    %p183 = scmp.eq.s32.totalorder %s14, 1
    %p184 = scmp.ne.s32.totalorder %s179, %s181
    %p185 = scmp.eq.s32.totalorder %s14, 0
    %p186 = por %p184, %p185
    %p187 = scmp.ne.s32.totalorder %s179, %s181
    %p188 = scmp.eq.s32.totalorder %s19, 1
    %p189 = por %p187, %p188
    %p190 = scmp.ne.s32.totalorder %s181, %s182
    %p191 = scmp.eq.s32.totalorder %s19, 0
    %p192 = por %p190, %p191
    %p193 = scmp.ne.s32.totalorder %s181, %s182
    %p194 = scmp.eq.s32.totalorder %s20, 1
    %p195 = por %p193, %p194
    %p197 = scmp.ne.s32.totalorder %s182, %s196
    %p198 = scmp.eq.s32.totalorder %s20, 0
    %p199 = por %p197, %p198
    %s200 = ssub.s32 %s14, %s21
    %p201 = scmp.eq.s32.totalorder %s200, 0
    %s203 = sadd.s32 %s202, 1
    %s204 = scalar_select %p201, %s202, %s203
    %p207 = pneg %p201
    %p208 = scmp.eq.s32.totalorder %s14, 1
    %p209 = por %p207, %p208
    %p210 = scmp.ne.s32.totalorder %s202, %s205
    %p211 = scmp.eq.s32.totalorder %s14, 0
    %p212 = por %p210, %p211
    %p213 = scmp.ne.s32.totalorder %s202, %s205
    %p214 = scmp.eq.s32.totalorder %s19, 1
    %p215 = por %p213, %p214
    %p216 = scmp.ne.s32.totalorder %s205, %s206
    %p217 = scmp.eq.s32.totalorder %s19, 0
    %p218 = por %p216, %p217
    %p219 = scmp.ne.s32.totalorder %s205, %s206
    %p220 = scmp.eq.s32.totalorder %s20, 1
    %p221 = por %p219, %p220
    %p223 = scmp.ne.s32.totalorder %s206, %s222
    %p224 = scmp.eq.s32.totalorder %s20, 0
    %p225 = por %p223, %p224
    %p226 = scmp.le.s32.totalorder 1, %s14
    %p227 = scmp.lt.s32.totalorder %s14, 3
    %p228 = pnand %p226, %p227
    %p229 = pneg %p228
    // Predicated region
    $region9: #{translate_transformer_forward.14} parent=5 // pred_check
      _
    $region10: #{translate_transformer_forward.14} parent=5 // pred_check_branch
      %231 = sbr.rel (%p228) target = $region12
    $region11: #{translate_transformer_forward.14} parent=5 // pred_region
      %s232 = ssub.s32 %s14, 1
      // Predicated region
      $region13: #{translate_transformer_forward.14} parent=11 // pred_check
        %p233 = pneg %p87
      $region14: #{translate_transformer_forward.14} parent=11 // pred_check_branch
        %235 = sbr.rel (%p233) target = $region16
      $region15: #{translate_transformer_forward.14} parent=11 // pred_region
        _
      $region16: #{translate_transformer_forward.14} parent=11 // pred_fallthru
        _
      // Predicated region
      $region17: #{translate_transformer_forward.14} parent=11 // pred_check
        %p236 = pneg %p108
      $region18: #{translate_transformer_forward.14} parent=11 // pred_check_branch
        %238 = sbr.rel (%p236) target = $region20
      $region19: #{translate_transformer_forward.14} parent=11 // pred_region
        _
      $region20: #{translate_transformer_forward.14} parent=11 // pred_fallthru
        _
      // Predicated region
      $region21: #{translate_transformer_forward.14} parent=11 // pred_check
        %p239 = pneg %p129
      $region22: #{translate_transformer_forward.14} parent=11 // pred_check_branch
        %241 = sbr.rel (%p239) target = $region24
      $region23: #{translate_transformer_forward.14} parent=11 // pred_region
        _
      $region24: #{translate_transformer_forward.14} parent=11 // pred_fallthru
        _
      // Predicated region
      $region25: #{translate_transformer_forward.14} parent=11 // pred_check
        %p242 = pneg %p150
      $region26: #{translate_transformer_forward.14} parent=11 // pred_check_branch
        %244 = sbr.rel (%p242) target = $region28
      $region27: #{translate_transformer_forward.14} parent=11 // pred_region
        _
      $region28: #{translate_transformer_forward.14} parent=11 // pred_fallthru
        _
      // Predicated region
      $region29: #{translate_transformer_forward.14} parent=11 // pred_check
        %p245 = pneg %p171
      $region30: #{translate_transformer_forward.14} parent=11 // pred_check_branch
        %247 = sbr.rel (%p245) target = $region32
      $region31: #{translate_transformer_forward.14} parent=11 // pred_region
        _
      $region32: #{translate_transformer_forward.14} parent=11 // pred_fallthru
        _
      // Predicated region
      $region33: #{translate_transformer_forward.14} parent=11 // pred_check
        %p248 = pneg %p192
      $region34: #{translate_transformer_forward.14} parent=11 // pred_check_branch
        %250 = sbr.rel (%p248) target = $region36
      $region35: #{translate_transformer_forward.14} parent=11 // pred_region
        _
      $region36: #{translate_transformer_forward.14} parent=11 // pred_fallthru
        _
    $region12: #{translate_transformer_forward.14} parent=5 // pred_fallthru
      _
    %p251 = scmp.lt.s32.totalorder %s14, 2
    // Predicated region
    $region37: #{translate_transformer_forward.14} parent=5 // pred_check
      %p252 = pneg %p251
    $region38: #{translate_transformer_forward.14} parent=5 // pred_check_branch
      %254 = sbr.rel (%p252) target = $region40
    $region39: #{translate_transformer_forward.14} parent=5 // pred_region
      // Predicated region
      $region41: #{translate_transformer_forward.14} parent=39 // pred_check
        %p255 = pneg %p34
      $region42: #{translate_transformer_forward.14} parent=39 // pred_check_branch
        %257 = sbr.rel (%p255) target = $region44
      $region43: #{translate_transformer_forward.14} parent=39 // pred_region
        %p258 = scmp.lt.s32.totalorder %s14, 1
        %s259 = scalar_select %p258, %s14, 1
        %s260 = smul.addr %s259, 8
        %s261 = scalar_lea.vmem %s0, %s260
      $region44: #{translate_transformer_forward.14} parent=39 // pred_fallthru
        _
      // Predicated region
      $region45: #{translate_transformer_forward.14} parent=39 // pred_check
        %p262 = pneg %p60
      $region46: #{translate_transformer_forward.14} parent=39 // pred_check_branch
        %264 = sbr.rel (%p262) target = $region48
      $region47: #{translate_transformer_forward.14} parent=39 // pred_region
        %p265 = scmp.lt.s32.totalorder %s14, 1
        %s266 = scalar_select %p265, %s14, 1
        %s267 = scalar_lea.vmem %s1, %s266
      $region48: #{translate_transformer_forward.14} parent=39 // pred_fallthru
        _
    $region40: #{translate_transformer_forward.14} parent=5 // pred_fallthru
      _
    %p268 = scmp.le.s32.totalorder 1, %s14
    %p269 = scmp.lt.s32.totalorder %s14, 3
    %p270 = pnand %p268, %p269
    %p271 = pneg %p270
    // Predicated region
    $region49: #{translate_transformer_forward.14} parent=5 // pred_check
      _
    $region50: #{translate_transformer_forward.14} parent=5 // pred_check_branch
      %273 = sbr.rel (%p270) target = $region52
    $region51: #{translate_transformer_forward.14} parent=5 // pred_region
      %s274 = ssub.s32 %s14, 1
      %p275 = scmp.lt.s32.totalorder %s19, 1
      %s276 = scalar_select %p275, %s19, 1
      %s277 = smul.addr %s276, 8
      %s278 = scalar_lea.vmem %s0, %s277
      %p279 = pneg %p40
      %p280 = pneg %p37
      %p281 = scmp.lt.s32.totalorder %s19, 1
      %s282 = scalar_select %p281, %s19, 1
      %s283 = scalar_lea.vmem %s1, %s282
      %p284 = pneg %p66
      %p285 = pneg %p63
      %p286 = pneg %p87
      %p287 = pneg %p84
      %p288 = pneg %p108
      %p289 = pneg %p105
      %p290 = pneg %p129
      %p291 = pneg %p126
      %p292 = pneg %p150
      %p293 = pneg %p147
      %p294 = pneg %p171
      %p295 = pneg %p168
      %p296 = pneg %p192
      %p297 = pneg %p189
      %p298 = pneg %p218
      %p299 = pneg %p215
      %p300 = scmp.lt.s32.totalorder %s19, 1
      %s301 = scalar_select %p300, %s19, 1
      %s302 = smul.addr %s301, 8
      %s303 = scalar_lea.vmem %s8, %s302
      %p304 = scmp.lt.s32.totalorder %s19, 1
      %s305 = scalar_select %p304, %s19, 1
      %s306 = smul.addr %s305, 8
      %s307 = scalar_lea.vmem %s0, %s306
      %p308 = scmp.lt.s32.totalorder %s19, 1
      %s309 = scalar_select %p308, %s19, 1
      %s310 = scalar_lea.vmem %s1, %s309
      %p311 = scmp.lt.s32.totalorder %s19, 1
      %s312 = scalar_select %p311, %s19, 1
      %s313 = smul.addr %s312, 8
      %s314 = scalar_lea.vmem %s8, %s313
      %v316 = vld [vmem:[%s307] sm:$0xff]
      %v317 = vpack.c.bf16 %v316, %v316
      %v318 = vld [vmem:[%s2] sm:$0xff]
      %v319 = vld [vmem:[%s2 + $0x8] sm:$0xff]
      %v320 = vld [vmem:[%s2 + $0x10] sm:$0xff]
      %v321 = vld [vmem:[%s2 + $0x18] sm:$0xff]
      %v322 = vpack.c.bf16 %v319, %v318
      %v323 = vpack.c.bf16 %v321, %v320
      %v324 = vld [vmem:[%s3] sm:$0x1]
      %v326 = vlaneseq
      %v327 = vshrl.u32 %v326, 7
      %v328 = vsub.s32 0, %v327
      %v329 = vrot.slane %v324, %v328
      %vm331 = vcmask 261120
      %v333 = vsel %vm331, %v317, 0
      %335 = vmatprep.subr.bf16.mxu0 0
      %336 = vmatpush1.bf16.msra.mxu0 %v322
      %337 = vmatprep.subr.bf16.mxu0 0
      %338 = vmatpush1.bf16.msra.mxu0 %v323
      %339 = vmatprep.subr.bf16.mxu0 0
      %340 = vmatpush1.bf16.msra.mxu0 0
      %341 = vmatprep.subr.bf16.mxu0 0
      %342 = vmatpush1.bf16.msra.mxu0 0
      %343 = vmatprep.subr.bf16.mxu0 0
      %344 = vmatpush1.bf16.msra.mxu0 0
      %345 = vmatprep.subr.bf16.mxu0 0
      %346 = vmatpush1.bf16.msra.mxu0 0
      %347 = vmatprep.subr.bf16.mxu0 0
      %348 = vmatpush1.bf16.msra.mxu0 0
      %349 = vmatprep.subr.bf16.mxu0 0
      %350 = vmatpush1.bf16.msra.mxu0 0
      %351 = vmatprep.subr.bf16.mxu0 0
      %352 = vmatpush1.bf16.msra.mxu0 0
      %353 = vmatprep.subr.bf16.mxu0 0
      %354 = vmatpush1.bf16.msra.mxu0 0
      %355 = vmatprep.subr.bf16.mxu0 0
      %356 = vmatpush1.bf16.msra.mxu0 0
      %357 = vmatprep.subr.bf16.mxu0 0
      %358 = vmatpush1.bf16.msra.mxu0 0
      %359 = vmatprep.subr.bf16.mxu0 0
      %360 = vmatpush1.bf16.msra.mxu0 0
      %361 = vmatprep.subr.bf16.mxu0 0
      %362 = vmatpush1.bf16.msra.mxu0 0
      %363 = vmatprep.subr.bf16.mxu0 0
      %364 = vmatpush1.bf16.msra.mxu0 0
      %365 = vmatprep.subr.bf16.mxu0 0
      %366 = vmatpush1.bf16.msra.mxu0 0
      %367 = vmatprep.mubr.bf16.mxu0 0
      %368 = vmatmul.mubr.bf16.gmra.mrb[0].mxu0 %v333
      %v369 = vpop.f32.mrb[0].mxu0
      %v370 = vadd.f32 %v329, %v369
      %v371 = vpop.f32.mrb[0].mxu0
      %v372 = vpop.f32.mrb[0].mxu0
      %v373 = vpop.f32.mrb[0].mxu0
      %374 = vdwg.mxu0
      %v375 = vld [vmem:[%s310] sm:$0x1]
      %v376 = vld [vmem:[%s4] sm:$0xff]
      %v377 = vld [vmem:[%s4 + $0x8] sm:$0xff]
      %v378 = vld [vmem:[%s4 + $0x10] sm:$0xff]
      %v379 = vld [vmem:[%s4 + $0x18] sm:$0xff]
      %381 = vrot.lane.b32.xlu0 %v370, 96
      %v382 = vpop.permute.xlu0 %381
      %vm383 = vcmask 64512
      %v384 = vsel %vm383, %v370, 0
      %v386 = vsel %vm383, %v382, 0
      %388 = vmatprep.subr.mxu0 0.0
      %389 = vmatpush1.xpose.msra.mxu0 %v386
      %390 = vmatprep.subr.mxu0 0.0
      %391 = vmatpush1.xpose.msra.mxu0 0.0
      %392 = vmatprep.subr.mxu0 0.0
      %393 = vmatpush1.xpose.msra.mxu0 0.0
      %394 = vmatprep.subr.mxu0 0.0
      %395 = vmatpush1.xpose.msra.mxu0 0.0
      %396 = vmatprep.subr.mxu0 0.0
      %397 = vmatpush1.xpose.msra.mxu0 0.0
      %398 = vmatprep.subr.mxu0 0.0
      %399 = vmatpush1.xpose.msra.mxu0 0.0
      %400 = vmatprep.subr.mxu0 0.0
      %401 = vmatpush1.xpose.msra.mxu0 0.0
      %402 = vmatprep.subr.mxu0 0.0
      %403 = vmatpush1.xpose.msra.mxu0 0.0
      %404 = vmatprep.subr.mxu0 0.0
      %405 = vmatpush1.xpose.msra.mxu0 0.0
      %406 = vmatprep.subr.mxu0 0.0
      %407 = vmatpush1.xpose.msra.mxu0 0.0
      %408 = vmatprep.subr.mxu0 0.0
      %409 = vmatpush1.xpose.msra.mxu0 0.0
      %410 = vmatprep.subr.mxu0 0.0
      %411 = vmatpush1.xpose.msra.mxu0 0.0
      %412 = vmatprep.subr.mxu0 0.0
      %413 = vmatpush1.xpose.msra.mxu0 0.0
      %414 = vmatprep.subr.mxu0 0.0
      %415 = vmatpush1.xpose.msra.mxu0 0.0
      %416 = vmatprep.subr.mxu0 0.0
      %417 = vmatpush1.xpose.msra.mxu0 0.0
      %418 = vmatprep.subr.mxu0 0.0
      %419 = vmatpush1.xpose.msra.mxu0 0.0
      %420 = vmatprep.subr.mxu0 0.0
      %421 = vmatpush1.xpose.msra.mxu0 0.0
      %422 = vmatprep.subr.mxu0 0.0
      %423 = vmatpush1.xpose.msra.mxu0 0.0
      %424 = vmatprep.subr.mxu0 0.0
      %425 = vmatpush1.xpose.msra.mxu0 0.0
      %426 = vmatprep.subr.mxu0 0.0
      %427 = vmatpush1.xpose.msra.mxu0 0.0
      %428 = vmatprep.subr.mxu0 0.0
      %429 = vmatpush1.xpose.msra.mxu0 0.0
      %430 = vmatprep.subr.mxu0 0.0
      %431 = vmatpush1.xpose.msra.mxu0 0.0
      %432 = vmatprep.subr.mxu0 0.0
      %433 = vmatpush1.xpose.msra.mxu0 0.0
      %434 = vmatprep.subr.mxu0 0.0
      %435 = vmatpush1.xpose.msra.mxu0 0.0
      %436 = vmatprep.subr.mxu0 0.0
      %437 = vmatpush1.xpose.msra.mxu0 0.0
      %438 = vmatprep.subr.mxu0 0.0
      %439 = vmatpush1.xpose.msra.mxu0 0.0
      %440 = vmatprep.subr.mxu0 0.0
      %441 = vmatpush1.xpose.msra.mxu0 0.0
      %442 = vmatprep.subr.mxu0 0.0
      %443 = vmatpush1.xpose.msra.mxu0 0.0
      %444 = vmatprep.subr.mxu0 0.0
      %445 = vmatpush1.xpose.msra.mxu0 0.0
      %446 = vmatprep.subr.mxu0 0.0
      %447 = vmatpush1.xpose.msra.mxu0 0.0
      %448 = vmatprep.subr.mxu0 0.0
      %449 = vmatpush1.xpose.msra.mxu0 0.0
      %450 = vmatprep.subr.mxu0 0.0
      %451 = vmatpush1.xpose.msra.mxu0 0.0
      %452 = vmatprep.mubr.f32.mxu0 0.0
      %453 = vmatmul.mubr.f32.gmra.mrb[0].mxu0 %v384
      %v454 = vpop.f32.mrb[0].mxu0
      %v455 = vadd.f32 0.0, %v454
      %v456 = vpop.f32.mrb[0].mxu0
      %457 = vdwg.mxu0
      %v458 = vmul.f32 %v455, 0.35355338
      %v460 = vlaneseq
      %v461 = vshrl.u32 %v460, 7
      %v462 = vsub.s32 0, %v461
      %v463 = vrot.slane %v375, %v462
      %v465 = vadd.f32 %v458, %v463
      %v466 = vsel %vm383, %v465, -inf
      %467 = vmax.xlane.f32.xlu0 %v466
      %v468 = vpop.xlane.xlu0 %467
      %v469 = vsub.f32 %v465, %v468
      %v470 = vmul.f32 %v469, 1.442695
      %v471 = vpow.pop %v470
      %v472 = vsel %vm383, %v471, 0.0
      %473 = vadd.xlane.f32.xlu0 %v472
      %v474 = vpop.xlane.xlu0 %473
      %v475 = vrcp.pop %v474
      %v476 = vmul.f32 %v471, %v475
      %477 = vrot.lane.b32.xlu0 %v370, 64
      %v478 = vpop.permute.xlu0 %477
      %v481 = vsel %vm383, %v476, 0
      %483 = vmatprep.subr.mxu0 0.0
      %484 = vmatpush1.msra.mxu0 %v478
      %485 = vmatprep.subr.mxu0 0.0
      %486 = vmatpush1.msra.mxu0 0.0
      %487 = vmatprep.subr.mxu0 0.0
      %488 = vmatpush1.msra.mxu0 0.0
      %489 = vmatprep.subr.mxu0 0.0
      %490 = vmatpush1.msra.mxu0 0.0
      %491 = vmatprep.subr.mxu0 0.0
      %492 = vmatpush1.msra.mxu0 0.0
      %493 = vmatprep.subr.mxu0 0.0
      %494 = vmatpush1.msra.mxu0 0.0
      %495 = vmatprep.subr.mxu0 0.0
      %496 = vmatpush1.msra.mxu0 0.0
      %497 = vmatprep.subr.mxu0 0.0
      %498 = vmatpush1.msra.mxu0 0.0
      %499 = vmatprep.subr.mxu0 0.0
      %500 = vmatpush1.msra.mxu0 0.0
      %501 = vmatprep.subr.mxu0 0.0
      %502 = vmatpush1.msra.mxu0 0.0
      %503 = vmatprep.subr.mxu0 0.0
      %504 = vmatpush1.msra.mxu0 0.0
      %505 = vmatprep.subr.mxu0 0.0
      %506 = vmatpush1.msra.mxu0 0.0
      %507 = vmatprep.subr.mxu0 0.0
      %508 = vmatpush1.msra.mxu0 0.0
      %509 = vmatprep.subr.mxu0 0.0
      %510 = vmatpush1.msra.mxu0 0.0
      %511 = vmatprep.subr.mxu0 0.0
      %512 = vmatpush1.msra.mxu0 0.0
      %513 = vmatprep.subr.mxu0 0.0
      %514 = vmatpush1.msra.mxu0 0.0
      %515 = vmatprep.subr.mxu0 0.0
      %516 = vmatpush1.msra.mxu0 0.0
      %517 = vmatprep.subr.mxu0 0.0
      %518 = vmatpush1.msra.mxu0 0.0
      %519 = vmatprep.subr.mxu0 0.0
      %520 = vmatpush1.msra.mxu0 0.0
      %521 = vmatprep.subr.mxu0 0.0
      %522 = vmatpush1.msra.mxu0 0.0
      %523 = vmatprep.subr.mxu0 0.0
      %524 = vmatpush1.msra.mxu0 0.0
      %525 = vmatprep.subr.mxu0 0.0
      %526 = vmatpush1.msra.mxu0 0.0
      %527 = vmatprep.subr.mxu0 0.0
      %528 = vmatpush1.msra.mxu0 0.0
      %529 = vmatprep.subr.mxu0 0.0
      %530 = vmatpush1.msra.mxu0 0.0
      %531 = vmatprep.subr.mxu0 0.0
      %532 = vmatpush1.msra.mxu0 0.0
      %533 = vmatprep.subr.mxu0 0.0
      %534 = vmatpush1.msra.mxu0 0.0
      %535 = vmatprep.subr.mxu0 0.0
      %536 = vmatpush1.msra.mxu0 0.0
      %537 = vmatprep.subr.mxu0 0.0
      %538 = vmatpush1.msra.mxu0 0.0
      %539 = vmatprep.subr.mxu0 0.0
      %540 = vmatpush1.msra.mxu0 0.0
      %541 = vmatprep.subr.mxu0 0.0
      %542 = vmatpush1.msra.mxu0 0.0
      %543 = vmatprep.subr.mxu0 0.0
      %544 = vmatpush1.msra.mxu0 0.0
      %545 = vmatprep.subr.mxu0 0.0
      %546 = vmatpush1.msra.mxu0 0.0
      %547 = vmatprep.mubr.f32.mxu0 0.0
      %548 = vmatmul.mubr.f32.gmra.mrb[0].mxu0 %v481
      %v549 = vpop.f32.mrb[0].mxu0
      %v550 = vadd.f32 0.0, %v549
      %v551 = vpop.f32.mrb[0].mxu0
      %552 = vdwg.mxu0
      %v553 = vpack.c.bf16 %v550, %v550
      %v554 = vpack.c.bf16 %v376, %v376
      %555 = vrot.lane.b32.xlu0 %v370, 120
      %v556 = vpop.permute.xlu0 %555
      %557 = vrot.lane.b32.xlu0 %v370, 88
      %v558 = vpop.permute.xlu0 %557
      %v559 = vsel %vm383, %v556, 0
      %v561 = vsel %vm383, %v558, 0
      %563 = vmatprep.subr.mxu0 0.0
      %564 = vmatpush1.xpose.msra.mxu0 %v561
      %565 = vmatprep.subr.mxu0 0.0
      %566 = vmatpush1.xpose.msra.mxu0 0.0
      %567 = vmatprep.subr.mxu0 0.0
      %568 = vmatpush1.xpose.msra.mxu0 0.0
      %569 = vmatprep.subr.mxu0 0.0
      %570 = vmatpush1.xpose.msra.mxu0 0.0
      %571 = vmatprep.subr.mxu0 0.0
      %572 = vmatpush1.xpose.msra.mxu0 0.0
      %573 = vmatprep.subr.mxu0 0.0
      %574 = vmatpush1.xpose.msra.mxu0 0.0
      %575 = vmatprep.subr.mxu0 0.0
      %576 = vmatpush1.xpose.msra.mxu0 0.0
      %577 = vmatprep.subr.mxu0 0.0
      %578 = vmatpush1.xpose.msra.mxu0 0.0
      %579 = vmatprep.subr.mxu0 0.0
      %580 = vmatpush1.xpose.msra.mxu0 0.0
      %581 = vmatprep.subr.mxu0 0.0
      %582 = vmatpush1.xpose.msra.mxu0 0.0
      %583 = vmatprep.subr.mxu0 0.0
      %584 = vmatpush1.xpose.msra.mxu0 0.0
      %585 = vmatprep.subr.mxu0 0.0
      %586 = vmatpush1.xpose.msra.mxu0 0.0
      %587 = vmatprep.subr.mxu0 0.0
      %588 = vmatpush1.xpose.msra.mxu0 0.0
      %589 = vmatprep.subr.mxu0 0.0
      %590 = vmatpush1.xpose.msra.mxu0 0.0
      %591 = vmatprep.subr.mxu0 0.0
      %592 = vmatpush1.xpose.msra.mxu0 0.0
      %593 = vmatprep.subr.mxu0 0.0
      %594 = vmatpush1.xpose.msra.mxu0 0.0
      %595 = vmatprep.subr.mxu0 0.0
      %596 = vmatpush1.xpose.msra.mxu0 0.0
      %597 = vmatprep.subr.mxu0 0.0
      %598 = vmatpush1.xpose.msra.mxu0 0.0
      %599 = vmatprep.subr.mxu0 0.0
      %600 = vmatpush1.xpose.msra.mxu0 0.0
      %601 = vmatprep.subr.mxu0 0.0
      %602 = vmatpush1.xpose.msra.mxu0 0.0
      %603 = vmatprep.subr.mxu0 0.0
      %604 = vmatpush1.xpose.msra.mxu0 0.0
      %605 = vmatprep.subr.mxu0 0.0
      %606 = vmatpush1.xpose.msra.mxu0 0.0
      %607 = vmatprep.subr.mxu0 0.0
      %608 = vmatpush1.xpose.msra.mxu0 0.0
      %609 = vmatprep.subr.mxu0 0.0
      %610 = vmatpush1.xpose.msra.mxu0 0.0
      %611 = vmatprep.subr.mxu0 0.0
      %612 = vmatpush1.xpose.msra.mxu0 0.0
      %613 = vmatprep.subr.mxu0 0.0
      %614 = vmatpush1.xpose.msra.mxu0 0.0
      %615 = vmatprep.subr.mxu0 0.0
      %616 = vmatpush1.xpose.msra.mxu0 0.0
      %617 = vmatprep.subr.mxu0 0.0
      %618 = vmatpush1.xpose.msra.mxu0 0.0
      %619 = vmatprep.subr.mxu0 0.0
      %620 = vmatpush1.xpose.msra.mxu0 0.0
      %621 = vmatprep.subr.mxu0 0.0
      %622 = vmatpush1.xpose.msra.mxu0 0.0
      %623 = vmatprep.subr.mxu0 0.0
      %624 = vmatpush1.xpose.msra.mxu0 0.0
      %625 = vmatprep.subr.mxu0 0.0
      %626 = vmatpush1.xpose.msra.mxu0 0.0
      %627 = vmatprep.mubr.f32.mxu0 0.0
      %628 = vmatmul.mubr.f32.gmra.mrb[0].mxu0 %v559
      %v629 = vpop.f32.mrb[0].mxu0
      %v630 = vadd.f32 0.0, %v629
      %v631 = vpop.f32.mrb[0].mxu0
      %632 = vdwg.mxu0
      %v633 = vmul.f32 %v630, 0.35355338
      %v634 = vadd.f32 %v633, %v463
      %v635 = vsel %vm383, %v634, -inf
      %636 = vmax.xlane.f32.xlu0 %v635
      %v637 = vpop.xlane.xlu0 %636
      %v638 = vsub.f32 %v634, %v637
      %v639 = vmul.f32 %v638, 1.442695
      %v640 = vpow.pop %v639
      %v641 = vsel %vm383, %v640, 0.0
      %642 = vadd.xlane.f32.xlu0 %v641
      %v643 = vpop.xlane.xlu0 %642
      %v644 = vrcp.pop %v643
      %v645 = vmul.f32 %v640, %v644
      %646 = vrot.lane.b32.xlu0 %v370, 56
      %v647 = vpop.permute.xlu0 %646
      %v650 = vsel %vm383, %v645, 0
      %652 = vmatprep.subr.mxu0 0.0
      %653 = vmatpush1.msra.mxu0 %v647
      %654 = vmatprep.subr.mxu0 0.0
      %655 = vmatpush1.msra.mxu0 0.0
      %656 = vmatprep.subr.mxu0 0.0
      %657 = vmatpush1.msra.mxu0 0.0
      %658 = vmatprep.subr.mxu0 0.0
      %659 = vmatpush1.msra.mxu0 0.0
      %660 = vmatprep.subr.mxu0 0.0
      %661 = vmatpush1.msra.mxu0 0.0
      %662 = vmatprep.subr.mxu0 0.0
      %663 = vmatpush1.msra.mxu0 0.0
      %664 = vmatprep.subr.mxu0 0.0
      %665 = vmatpush1.msra.mxu0 0.0
      %666 = vmatprep.subr.mxu0 0.0
      %667 = vmatpush1.msra.mxu0 0.0
      %668 = vmatprep.subr.mxu0 0.0
      %669 = vmatpush1.msra.mxu0 0.0
      %670 = vmatprep.subr.mxu0 0.0
      %671 = vmatpush1.msra.mxu0 0.0
      %672 = vmatprep.subr.mxu0 0.0
      %673 = vmatpush1.msra.mxu0 0.0
      %674 = vmatprep.subr.mxu0 0.0
      %675 = vmatpush1.msra.mxu0 0.0
      %676 = vmatprep.subr.mxu0 0.0
      %677 = vmatpush1.msra.mxu0 0.0
      %678 = vmatprep.subr.mxu0 0.0
      %679 = vmatpush1.msra.mxu0 0.0
      %680 = vmatprep.subr.mxu0 0.0
      %681 = vmatpush1.msra.mxu0 0.0
      %682 = vmatprep.subr.mxu0 0.0
      %683 = vmatpush1.msra.mxu0 0.0
      %684 = vmatprep.subr.mxu0 0.0
      %685 = vmatpush1.msra.mxu0 0.0
      %686 = vmatprep.subr.mxu0 0.0
      %687 = vmatpush1.msra.mxu0 0.0
      %688 = vmatprep.subr.mxu0 0.0
      %689 = vmatpush1.msra.mxu0 0.0
      %690 = vmatprep.subr.mxu0 0.0
      %691 = vmatpush1.msra.mxu0 0.0
      %692 = vmatprep.subr.mxu0 0.0
      %693 = vmatpush1.msra.mxu0 0.0
      %694 = vmatprep.subr.mxu0 0.0
      %695 = vmatpush1.msra.mxu0 0.0
      %696 = vmatprep.subr.mxu0 0.0
      %697 = vmatpush1.msra.mxu0 0.0
      %698 = vmatprep.subr.mxu0 0.0
      %699 = vmatpush1.msra.mxu0 0.0
      %700 = vmatprep.subr.mxu0 0.0
      %701 = vmatpush1.msra.mxu0 0.0
      %702 = vmatprep.subr.mxu0 0.0
      %703 = vmatpush1.msra.mxu0 0.0
      %704 = vmatprep.subr.mxu0 0.0
      %705 = vmatpush1.msra.mxu0 0.0
      %706 = vmatprep.subr.mxu0 0.0
      %707 = vmatpush1.msra.mxu0 0.0
      %708 = vmatprep.subr.mxu0 0.0
      %709 = vmatpush1.msra.mxu0 0.0
      %710 = vmatprep.subr.mxu0 0.0
      %711 = vmatpush1.msra.mxu0 0.0
      %712 = vmatprep.subr.mxu0 0.0
      %713 = vmatpush1.msra.mxu0 0.0
      %714 = vmatprep.subr.mxu0 0.0
      %715 = vmatpush1.msra.mxu0 0.0
      %716 = vmatprep.mubr.f32.mxu0 0.0
      %717 = vmatmul.mubr.f32.gmra.mrb[0].mxu0 %v650
      %v718 = vpop.f32.mrb[0].mxu0
      %v719 = vadd.f32 0.0, %v718
      %v720 = vpop.f32.mrb[0].mxu0
      %721 = vdwg.mxu0
      %v722 = vpack.c.bf16 %v719, %v719
      %v723 = vpack.c.bf16 %v377, %v377
      %v725 = vsel %vm383, %v722, 0
      %vm727 = vcmask 1043456
      %v729 = vsel %vm727, %v723, 0
      %731 = vmatprep.subr.bf16.mxu0 0
      %732 = vmatpush1.bf16.msra.mxu0 %v729
      %733 = vmatprep.subr.bf16.mxu0 0
      %734 = vmatpush1.bf16.msra.mxu0 0
      %735 = vmatprep.subr.bf16.mxu0 0
      %736 = vmatpush1.bf16.msra.mxu0 0
      %737 = vmatprep.subr.bf16.mxu0 0
      %738 = vmatpush1.bf16.msra.mxu0 0
      %739 = vmatprep.subr.bf16.mxu0 0
      %740 = vmatpush1.bf16.msra.mxu0 0
      %741 = vmatprep.subr.bf16.mxu0 0
      %742 = vmatpush1.bf16.msra.mxu0 0
      %743 = vmatprep.subr.bf16.mxu0 0
      %744 = vmatpush1.bf16.msra.mxu0 0
      %745 = vmatprep.subr.bf16.mxu0 0
      %746 = vmatpush1.bf16.msra.mxu0 0
      %747 = vmatprep.subr.bf16.mxu0 0
      %748 = vmatpush1.bf16.msra.mxu0 0
      %749 = vmatprep.subr.bf16.mxu0 0
      %750 = vmatpush1.bf16.msra.mxu0 0
      %751 = vmatprep.subr.bf16.mxu0 0
      %752 = vmatpush1.bf16.msra.mxu0 0
      %753 = vmatprep.subr.bf16.mxu0 0
      %754 = vmatpush1.bf16.msra.mxu0 0
      %755 = vmatprep.subr.bf16.mxu0 0
      %756 = vmatpush1.bf16.msra.mxu0 0
      %757 = vmatprep.subr.bf16.mxu0 0
      %758 = vmatpush1.bf16.msra.mxu0 0
      %759 = vmatprep.subr.bf16.mxu0 0
      %760 = vmatpush1.bf16.msra.mxu0 0
      %761 = vmatprep.subr.bf16.mxu0 0
      %762 = vmatpush1.bf16.msra.mxu0 0
      %763 = vmatprep.mubr.bf16.mxu0 0
      %764 = vmatmul.mubr.bf16.gmra.mrb[0].mxu0 %v725
      %v765 = vpop.f32.mrb[0].mxu0
      %v766 = vadd.f32 0.0, %v765
      %v767 = vpop.f32.mrb[0].mxu0
      %v768 = vpop.f32.mrb[0].mxu0
      %v769 = vpop.f32.mrb[0].mxu0
      %770 = vdwg.mxu0
      %v772 = vsel %vm383, %v553, 0
      %v775 = vsel %vm727, %v554, 0
      %777 = vmatprep.subr.bf16.mxu0 0
      %778 = vmatpush1.bf16.msra.mxu0 %v775
      %779 = vmatprep.subr.bf16.mxu0 0
      %780 = vmatpush1.bf16.msra.mxu0 0
      %781 = vmatprep.subr.bf16.mxu0 0
      %782 = vmatpush1.bf16.msra.mxu0 0
      %783 = vmatprep.subr.bf16.mxu0 0
      %784 = vmatpush1.bf16.msra.mxu0 0
      %785 = vmatprep.subr.bf16.mxu0 0
      %786 = vmatpush1.bf16.msra.mxu0 0
      %787 = vmatprep.subr.bf16.mxu0 0
      %788 = vmatpush1.bf16.msra.mxu0 0
      %789 = vmatprep.subr.bf16.mxu0 0
      %790 = vmatpush1.bf16.msra.mxu0 0
      %791 = vmatprep.subr.bf16.mxu0 0
      %792 = vmatpush1.bf16.msra.mxu0 0
      %793 = vmatprep.subr.bf16.mxu0 0
      %794 = vmatpush1.bf16.msra.mxu0 0
      %795 = vmatprep.subr.bf16.mxu0 0
      %796 = vmatpush1.bf16.msra.mxu0 0
      %797 = vmatprep.subr.bf16.mxu0 0
      %798 = vmatpush1.bf16.msra.mxu0 0
      %799 = vmatprep.subr.bf16.mxu0 0
      %800 = vmatpush1.bf16.msra.mxu0 0
      %801 = vmatprep.subr.bf16.mxu0 0
      %802 = vmatpush1.bf16.msra.mxu0 0
      %803 = vmatprep.subr.bf16.mxu0 0
      %804 = vmatpush1.bf16.msra.mxu0 0
      %805 = vmatprep.subr.bf16.mxu0 0
      %806 = vmatpush1.bf16.msra.mxu0 0
      %807 = vmatprep.subr.bf16.mxu0 0
      %808 = vmatpush1.bf16.msra.mxu0 0
      %809 = vmatprep.mubr.bf16.mxu0 0
      %810 = vmatmul.mubr.bf16.gmra.mrb[0].mxu0 %v772
      %v811 = vpop.f32.mrb[0].mxu0
      %v812 = vadd.f32 %v766, %v811
      %v813 = vpop.f32.mrb[0].mxu0
      %v814 = vpop.f32.mrb[0].mxu0
      %v815 = vpop.f32.mrb[0].mxu0
      %816 = vdwg.mxu0
      %817 = vrot.lane.b32.xlu0 %v370, 112
      %v818 = vpop.permute.xlu0 %817
      %819 = vrot.lane.b32.xlu0 %v370, 80
      %v820 = vpop.permute.xlu0 %819
      %v821 = vsel %vm383, %v818, 0
      %v823 = vsel %vm383, %v820, 0
      %825 = vmatprep.subr.mxu0 0.0
      %826 = vmatpush1.xpose.msra.mxu0 %v823
      %827 = vmatprep.subr.mxu0 0.0
      %828 = vmatpush1.xpose.msra.mxu0 0.0
      %829 = vmatprep.subr.mxu0 0.0
      %830 = vmatpush1.xpose.msra.mxu0 0.0
      %831 = vmatprep.subr.mxu0 0.0
      %832 = vmatpush1.xpose.msra.mxu0 0.0
      %833 = vmatprep.subr.mxu0 0.0
      %834 = vmatpush1.xpose.msra.mxu0 0.0
      %835 = vmatprep.subr.mxu0 0.0
      %836 = vmatpush1.xpose.msra.mxu0 0.0
      %837 = vmatprep.subr.mxu0 0.0
      %838 = vmatpush1.xpose.msra.mxu0 0.0
      %839 = vmatprep.subr.mxu0 0.0
      %840 = vmatpush1.xpose.msra.mxu0 0.0
      %841 = vmatprep.subr.mxu0 0.0
      %842 = vmatpush1.xpose.msra.mxu0 0.0
      %843 = vmatprep.subr.mxu0 0.0
      %844 = vmatpush1.xpose.msra.mxu0 0.0
      %845 = vmatprep.subr.mxu0 0.0
      %846 = vmatpush1.xpose.msra.mxu0 0.0
      %847 = vmatprep.subr.mxu0 0.0
      %848 = vmatpush1.xpose.msra.mxu0 0.0
      %849 = vmatprep.subr.mxu0 0.0
      %850 = vmatpush1.xpose.msra.mxu0 0.0
      %851 = vmatprep.subr.mxu0 0.0
      %852 = vmatpush1.xpose.msra.mxu0 0.0
      %853 = vmatprep.subr.mxu0 0.0
      %854 = vmatpush1.xpose.msra.mxu0 0.0
      %855 = vmatprep.subr.mxu0 0.0
      %856 = vmatpush1.xpose.msra.mxu0 0.0
      %857 = vmatprep.subr.mxu0 0.0
      %858 = vmatpush1.xpose.msra.mxu0 0.0
      %859 = vmatprep.subr.mxu0 0.0
      %860 = vmatpush1.xpose.msra.mxu0 0.0
      %861 = vmatprep.subr.mxu0 0.0
      %862 = vmatpush1.xpose.msra.mxu0 0.0
      %863 = vmatprep.subr.mxu0 0.0
      %864 = vmatpush1.xpose.msra.mxu0 0.0
      %865 = vmatprep.subr.mxu0 0.0
      %866 = vmatpush1.xpose.msra.mxu0 0.0
      %867 = vmatprep.subr.mxu0 0.0
      %868 = vmatpush1.xpose.msra.mxu0 0.0
      %869 = vmatprep.subr.mxu0 0.0
      %870 = vmatpush1.xpose.msra.mxu0 0.0
      %871 = vmatprep.subr.mxu0 0.0
      %872 = vmatpush1.xpose.msra.mxu0 0.0
      %873 = vmatprep.subr.mxu0 0.0
      %874 = vmatpush1.xpose.msra.mxu0 0.0
      %875 = vmatprep.subr.mxu0 0.0
      %876 = vmatpush1.xpose.msra.mxu0 0.0
      %877 = vmatprep.subr.mxu0 0.0
      %878 = vmatpush1.xpose.msra.mxu0 0.0
      %879 = vmatprep.subr.mxu0 0.0
      %880 = vmatpush1.xpose.msra.mxu0 0.0
      %881 = vmatprep.subr.mxu0 0.0
      %882 = vmatpush1.xpose.msra.mxu0 0.0
      %883 = vmatprep.subr.mxu0 0.0
      %884 = vmatpush1.xpose.msra.mxu0 0.0
      %885 = vmatprep.subr.mxu0 0.0
      %886 = vmatpush1.xpose.msra.mxu0 0.0
      %887 = vmatprep.subr.mxu0 0.0
      %888 = vmatpush1.xpose.msra.mxu0 0.0
      %889 = vmatprep.mubr.f32.mxu0 0.0
      %890 = vmatmul.mubr.f32.gmra.mrb[0].mxu0 %v821
      %v891 = vpop.f32.mrb[0].mxu0
      %v892 = vadd.f32 0.0, %v891
      %v893 = vpop.f32.mrb[0].mxu0
      %894 = vdwg.mxu0
      %v895 = vmul.f32 %v892, 0.35355338
      %v896 = vadd.f32 %v895, %v463
      %v897 = vsel %vm383, %v896, -inf
      %898 = vmax.xlane.f32.xlu0 %v897
      %v899 = vpop.xlane.xlu0 %898
      %v900 = vsub.f32 %v896, %v899
      %v901 = vmul.f32 %v900, 1.442695
      %v902 = vpow.pop %v901
      %v903 = vsel %vm383, %v902, 0.0
      %904 = vadd.xlane.f32.xlu0 %v903
      %v905 = vpop.xlane.xlu0 %904
      %v906 = vrcp.pop %v905
      %v907 = vmul.f32 %v902, %v906
      %908 = vrot.lane.b32.xlu0 %v370, 48
      %v909 = vpop.permute.xlu0 %908
      %v912 = vsel %vm383, %v907, 0
      %914 = vmatprep.subr.mxu0 0.0
      %915 = vmatpush1.msra.mxu0 %v909
      %916 = vmatprep.subr.mxu0 0.0
      %917 = vmatpush1.msra.mxu0 0.0
      %918 = vmatprep.subr.mxu0 0.0
      %919 = vmatpush1.msra.mxu0 0.0
      %920 = vmatprep.subr.mxu0 0.0
      %921 = vmatpush1.msra.mxu0 0.0
      %922 = vmatprep.subr.mxu0 0.0
      %923 = vmatpush1.msra.mxu0 0.0
      %924 = vmatprep.subr.mxu0 0.0
      %925 = vmatpush1.msra.mxu0 0.0
      %926 = vmatprep.subr.mxu0 0.0
      %927 = vmatpush1.msra.mxu0 0.0
      %928 = vmatprep.subr.mxu0 0.0
      %929 = vmatpush1.msra.mxu0 0.0
      %930 = vmatprep.subr.mxu0 0.0
      %931 = vmatpush1.msra.mxu0 0.0
      %932 = vmatprep.subr.mxu0 0.0
      %933 = vmatpush1.msra.mxu0 0.0
      %934 = vmatprep.subr.mxu0 0.0
      %935 = vmatpush1.msra.mxu0 0.0
      %936 = vmatprep.subr.mxu0 0.0
      %937 = vmatpush1.msra.mxu0 0.0
      %938 = vmatprep.subr.mxu0 0.0
      %939 = vmatpush1.msra.mxu0 0.0
      %940 = vmatprep.subr.mxu0 0.0
      %941 = vmatpush1.msra.mxu0 0.0
      %942 = vmatprep.subr.mxu0 0.0
      %943 = vmatpush1.msra.mxu0 0.0
      %944 = vmatprep.subr.mxu0 0.0
      %945 = vmatpush1.msra.mxu0 0.0
      %946 = vmatprep.subr.mxu0 0.0
      %947 = vmatpush1.msra.mxu0 0.0
      %948 = vmatprep.subr.mxu0 0.0
      %949 = vmatpush1.msra.mxu0 0.0
      %950 = vmatprep.subr.mxu0 0.0
      %951 = vmatpush1.msra.mxu0 0.0
      %952 = vmatprep.subr.mxu0 0.0
      %953 = vmatpush1.msra.mxu0 0.0
      %954 = vmatprep.subr.mxu0 0.0
      %955 = vmatpush1.msra.mxu0 0.0
      %956 = vmatprep.subr.mxu0 0.0
      %957 = vmatpush1.msra.mxu0 0.0
      %958 = vmatprep.subr.mxu0 0.0
      %959 = vmatpush1.msra.mxu0 0.0
      %960 = vmatprep.subr.mxu0 0.0
      %961 = vmatpush1.msra.mxu0 0.0
      %962 = vmatprep.subr.mxu0 0.0
      %963 = vmatpush1.msra.mxu0 0.0
      %964 = vmatprep.subr.mxu0 0.0
      %965 = vmatpush1.msra.mxu0 0.0
      %966 = vmatprep.subr.mxu0 0.0
      %967 = vmatpush1.msra.mxu0 0.0
      %968 = vmatprep.subr.mxu0 0.0
      %969 = vmatpush1.msra.mxu0 0.0
      %970 = vmatprep.subr.mxu0 0.0
      %971 = vmatpush1.msra.mxu0 0.0
      %972 = vmatprep.subr.mxu0 0.0
      %973 = vmatpush1.msra.mxu0 0.0
      %974 = vmatprep.subr.mxu0 0.0
      %975 = vmatpush1.msra.mxu0 0.0
      %976 = vmatprep.subr.mxu0 0.0
      %977 = vmatpush1.msra.mxu0 0.0
      %978 = vmatprep.mubr.f32.mxu0 0.0
      %979 = vmatmul.mubr.f32.gmra.mrb[0].mxu0 %v912
      %v980 = vpop.f32.mrb[0].mxu0
      %v981 = vadd.f32 0.0, %v980
      %v982 = vpop.f32.mrb[0].mxu0
      %983 = vdwg.mxu0
      %v984 = vpack.c.bf16 %v981, %v981
      %v985 = vpack.c.bf16 %v378, %v378
      %v987 = vsel %vm383, %v984, 0
      %v990 = vsel %vm727, %v985, 0
      %992 = vmatprep.subr.bf16.mxu0 0
      %993 = vmatpush1.bf16.msra.mxu0 %v990
      %994 = vmatprep.subr.bf16.mxu0 0
      %995 = vmatpush1.bf16.msra.mxu0 0
      %996 = vmatprep.subr.bf16.mxu0 0
      %997 = vmatpush1.bf16.msra.mxu0 0
      %998 = vmatprep.subr.bf16.mxu0 0
      %999 = vmatpush1.bf16.msra.mxu0 0
      %1000 = vmatprep.subr.bf16.mxu0 0
      %1001 = vmatpush1.bf16.msra.mxu0 0
      %1002 = vmatprep.subr.bf16.mxu0 0
      %1003 = vmatpush1.bf16.msra.mxu0 0
      %1004 = vmatprep.subr.bf16.mxu0 0
      %1005 = vmatpush1.bf16.msra.mxu0 0
      %1006 = vmatprep.subr.bf16.mxu0 0
      %1007 = vmatpush1.bf16.msra.mxu0 0
      %1008 = vmatprep.subr.bf16.mxu0 0
      %1009 = vmatpush1.bf16.msra.mxu0 0
      %1010 = vmatprep.subr.bf16.mxu0 0
      %1011 = vmatpush1.bf16.msra.mxu0 0
      %1012 = vmatprep.subr.bf16.mxu0 0
      %1013 = vmatpush1.bf16.msra.mxu0 0
      %1014 = vmatprep.subr.bf16.mxu0 0
      %1015 = vmatpush1.bf16.msra.mxu0 0
      %1016 = vmatprep.subr.bf16.mxu0 0
      %1017 = vmatpush1.bf16.msra.mxu0 0
      %1018 = vmatprep.subr.bf16.mxu0 0
      %1019 = vmatpush1.bf16.msra.mxu0 0
      %1020 = vmatprep.subr.bf16.mxu0 0
      %1021 = vmatpush1.bf16.msra.mxu0 0
      %1022 = vmatprep.subr.bf16.mxu0 0
      %1023 = vmatpush1.bf16.msra.mxu0 0
      %1024 = vmatprep.mubr.bf16.mxu0 0
      %1025 = vmatmul.mubr.bf16.gmra.mrb[0].mxu0 %v987
      %v1026 = vpop.f32.mrb[0].mxu0
      %v1027 = vadd.f32 0.0, %v1026
      %v1028 = vpop.f32.mrb[0].mxu0
      %v1029 = vpop.f32.mrb[0].mxu0
      %v1030 = vpop.f32.mrb[0].mxu0
      %1031 = vdwg.mxu0
      %v1032 = vadd.f32 %v812, %v1027
      %1033 = vrot.lane.b32.xlu0 %v370, 104
      %v1034 = vpop.permute.xlu0 %1033
      %1035 = vrot.lane.b32.xlu0 %v370, 72
      %v1036 = vpop.permute.xlu0 %1035
      %v1037 = vsel %vm383, %v1034, 0
      %v1039 = vsel %vm383, %v1036, 0
      %1041 = vmatprep.subr.mxu0 0.0
      %1042 = vmatpush1.xpose.msra.mxu0 %v1039
      %1043 = vmatprep.subr.mxu0 0.0
      %1044 = vmatpush1.xpose.msra.mxu0 0.0
      %1045 = vmatprep.subr.mxu0 0.0
      %1046 = vmatpush1.xpose.msra.mxu0 0.0
      %1047 = vmatprep.subr.mxu0 0.0
      %1048 = vmatpush1.xpose.msra.mxu0 0.0
      %1049 = vmatprep.subr.mxu0 0.0
      %1050 = vmatpush1.xpose.msra.mxu0 0.0
      %1051 = vmatprep.subr.mxu0 0.0
      %1052 = vmatpush1.xpose.msra.mxu0 0.0
      %1053 = vmatprep.subr.mxu0 0.0
      %1054 = vmatpush1.xpose.msra.mxu0 0.0
      %1055 = vmatprep.subr.mxu0 0.0
      %1056 = vmatpush1.xpose.msra.mxu0 0.0
      %1057 = vmatprep.subr.mxu0 0.0
      %1058 = vmatpush1.xpose.msra.mxu0 0.0
      %1059 = vmatprep.subr.mxu0 0.0
      %1060 = vmatpush1.xpose.msra.mxu0 0.0
      %1061 = vmatprep.subr.mxu0 0.0
      %1062 = vmatpush1.xpose.msra.mxu0 0.0
      %1063 = vmatprep.subr.mxu0 0.0
      %1064 = vmatpush1.xpose.msra.mxu0 0.0
      %1065 = vmatprep.subr.mxu0 0.0
      %1066 = vmatpush1.xpose.msra.mxu0 0.0
      %1067 = vmatprep.subr.mxu0 0.0
      %1068 = vmatpush1.xpose.msra.mxu0 0.0
      %1069 = vmatprep.subr.mxu0 0.0
      %1070 = vmatpush1.xpose.msra.mxu0 0.0
      %1071 = vmatprep.subr.mxu0 0.0
      %1072 = vmatpush1.xpose.msra.mxu0 0.0
      %1073 = vmatprep.subr.mxu0 0.0
      %1074 = vmatpush1.xpose.msra.mxu0 0.0
      %1075 = vmatprep.subr.mxu0 0.0
      %1076 = vmatpush1.xpose.msra.mxu0 0.0
      %1077 = vmatprep.subr.mxu0 0.0
      %1078 = vmatpush1.xpose.msra.mxu0 0.0
      %1079 = vmatprep.subr.mxu0 0.0
      %1080 = vmatpush1.xpose.msra.mxu0 0.0
      %1081 = vmatprep.subr.mxu0 0.0
      %1082 = vmatpush1.xpose.msra.mxu0 0.0
      %1083 = vmatprep.subr.mxu0 0.0
      %1084 = vmatpush1.xpose.msra.mxu0 0.0
      %1085 = vmatprep.subr.mxu0 0.0
      %1086 = vmatpush1.xpose.msra.mxu0 0.0
      %1087 = vmatprep.subr.mxu0 0.0
      %1088 = vmatpush1.xpose.msra.mxu0 0.0
      %1089 = vmatprep.subr.mxu0 0.0
      %1090 = vmatpush1.xpose.msra.mxu0 0.0
      %1091 = vmatprep.subr.mxu0 0.0
      %1092 = vmatpush1.xpose.msra.mxu0 0.0
      %1093 = vmatprep.subr.mxu0 0.0
      %1094 = vmatpush1.xpose.msra.mxu0 0.0
      %1095 = vmatprep.subr.mxu0 0.0
      %1096 = vmatpush1.xpose.msra.mxu0 0.0
      %1097 = vmatprep.subr.mxu0 0.0
      %1098 = vmatpush1.xpose.msra.mxu0 0.0
      %1099 = vmatprep.subr.mxu0 0.0
      %1100 = vmatpush1.xpose.msra.mxu0 0.0
      %1101 = vmatprep.subr.mxu0 0.0
      %1102 = vmatpush1.xpose.msra.mxu0 0.0
      %1103 = vmatprep.subr.mxu0 0.0
      %1104 = vmatpush1.xpose.msra.mxu0 0.0
      %1105 = vmatprep.mubr.f32.mxu0 0.0
      %1106 = vmatmul.mubr.f32.gmra.mrb[0].mxu0 %v1037
      %v1107 = vpop.f32.mrb[0].mxu0
      %v1108 = vadd.f32 0.0, %v1107
      %v1109 = vpop.f32.mrb[0].mxu0
      %1110 = vdwg.mxu0
      %v1111 = vmul.f32 %v1108, 0.35355338
      %v1112 = vadd.f32 %v1111, %v463
      %v1113 = vsel %vm383, %v1112, -inf
      %1114 = vmax.xlane.f32.xlu0 %v1113
      %v1115 = vpop.xlane.xlu0 %1114
      %v1116 = vsub.f32 %v1112, %v1115
      %v1117 = vmul.f32 %v1116, 1.442695
      %v1118 = vpow.pop %v1117
      %v1119 = vsel %vm383, %v1118, 0.0
      %1120 = vadd.xlane.f32.xlu0 %v1119
      %v1121 = vpop.xlane.xlu0 %1120
      %v1122 = vrcp.pop %v1121
      %v1123 = vmul.f32 %v1118, %v1122
      %1124 = vrot.lane.b32.xlu0 %v370, 40
      %v1125 = vpop.permute.xlu0 %1124
      %v1128 = vsel %vm383, %v1123, 0
      %1130 = vmatprep.subr.mxu0 0.0
      %1131 = vmatpush1.msra.mxu0 %v1125
      %1132 = vmatprep.subr.mxu0 0.0
      %1133 = vmatpush1.msra.mxu0 0.0
      %1134 = vmatprep.subr.mxu0 0.0
      %1135 = vmatpush1.msra.mxu0 0.0
      %1136 = vmatprep.subr.mxu0 0.0
      %1137 = vmatpush1.msra.mxu0 0.0
      %1138 = vmatprep.subr.mxu0 0.0
      %1139 = vmatpush1.msra.mxu0 0.0
      %1140 = vmatprep.subr.mxu0 0.0
      %1141 = vmatpush1.msra.mxu0 0.0
      %1142 = vmatprep.subr.mxu0 0.0
      %1143 = vmatpush1.msra.mxu0 0.0
      %1144 = vmatprep.subr.mxu0 0.0
      %1145 = vmatpush1.msra.mxu0 0.0
      %1146 = vmatprep.subr.mxu0 0.0
      %1147 = vmatpush1.msra.mxu0 0.0
      %1148 = vmatprep.subr.mxu0 0.0
      %1149 = vmatpush1.msra.mxu0 0.0
      %1150 = vmatprep.subr.mxu0 0.0
      %1151 = vmatpush1.msra.mxu0 0.0
      %1152 = vmatprep.subr.mxu0 0.0
      %1153 = vmatpush1.msra.mxu0 0.0
      %1154 = vmatprep.subr.mxu0 0.0
      %1155 = vmatpush1.msra.mxu0 0.0
      %1156 = vmatprep.subr.mxu0 0.0
      %1157 = vmatpush1.msra.mxu0 0.0
      %1158 = vmatprep.subr.mxu0 0.0
      %1159 = vmatpush1.msra.mxu0 0.0
      %1160 = vmatprep.subr.mxu0 0.0
      %1161 = vmatpush1.msra.mxu0 0.0
      %1162 = vmatprep.subr.mxu0 0.0
      %1163 = vmatpush1.msra.mxu0 0.0
      %1164 = vmatprep.subr.mxu0 0.0
      %1165 = vmatpush1.msra.mxu0 0.0
      %1166 = vmatprep.subr.mxu0 0.0
      %1167 = vmatpush1.msra.mxu0 0.0
      %1168 = vmatprep.subr.mxu0 0.0
      %1169 = vmatpush1.msra.mxu0 0.0
      %1170 = vmatprep.subr.mxu0 0.0
      %1171 = vmatpush1.msra.mxu0 0.0
      %1172 = vmatprep.subr.mxu0 0.0
      %1173 = vmatpush1.msra.mxu0 0.0
      %1174 = vmatprep.subr.mxu0 0.0
      %1175 = vmatpush1.msra.mxu0 0.0
      %1176 = vmatprep.subr.mxu0 0.0
      %1177 = vmatpush1.msra.mxu0 0.0
      %1178 = vmatprep.subr.mxu0 0.0
      %1179 = vmatpush1.msra.mxu0 0.0
      %1180 = vmatprep.subr.mxu0 0.0
      %1181 = vmatpush1.msra.mxu0 0.0
      %1182 = vmatprep.subr.mxu0 0.0
      %1183 = vmatpush1.msra.mxu0 0.0
      %1184 = vmatprep.subr.mxu0 0.0
      %1185 = vmatpush1.msra.mxu0 0.0
      %1186 = vmatprep.subr.mxu0 0.0
      %1187 = vmatpush1.msra.mxu0 0.0
      %1188 = vmatprep.subr.mxu0 0.0
      %1189 = vmatpush1.msra.mxu0 0.0
      %1190 = vmatprep.subr.mxu0 0.0
      %1191 = vmatpush1.msra.mxu0 0.0
      %1192 = vmatprep.subr.mxu0 0.0
      %1193 = vmatpush1.msra.mxu0 0.0
      %1194 = vmatprep.mubr.f32.mxu0 0.0
      %1195 = vmatmul.mubr.f32.gmra.mrb[0].mxu0 %v1128
      %v1196 = vpop.f32.mrb[0].mxu0
      %v1197 = vadd.f32 0.0, %v1196
      %v1198 = vpop.f32.mrb[0].mxu0
      %1199 = vdwg.mxu0
      %v1200 = vpack.c.bf16 %v1197, %v1197
      %v1201 = vpack.c.bf16 %v379, %v379
      %v1203 = vsel %vm383, %v1200, 0
      %v1206 = vsel %vm727, %v1201, 0
      %1208 = vmatprep.subr.bf16.mxu0 0
      %1209 = vmatpush1.bf16.msra.mxu0 %v1206
      %1210 = vmatprep.subr.bf16.mxu0 0
      %1211 = vmatpush1.bf16.msra.mxu0 0
      %1212 = vmatprep.subr.bf16.mxu0 0
      %1213 = vmatpush1.bf16.msra.mxu0 0
      %1214 = vmatprep.subr.bf16.mxu0 0
      %1215 = vmatpush1.bf16.msra.mxu0 0
      %1216 = vmatprep.subr.bf16.mxu0 0
      %1217 = vmatpush1.bf16.msra.mxu0 0
      %1218 = vmatprep.subr.bf16.mxu0 0
      %1219 = vmatpush1.bf16.msra.mxu0 0
      %1220 = vmatprep.subr.bf16.mxu0 0
      %1221 = vmatpush1.bf16.msra.mxu0 0
      %1222 = vmatprep.subr.bf16.mxu0 0
      %1223 = vmatpush1.bf16.msra.mxu0 0
      %1224 = vmatprep.subr.bf16.mxu0 0
      %1225 = vmatpush1.bf16.msra.mxu0 0
      %1226 = vmatprep.subr.bf16.mxu0 0
      %1227 = vmatpush1.bf16.msra.mxu0 0
      %1228 = vmatprep.subr.bf16.mxu0 0
      %1229 = vmatpush1.bf16.msra.mxu0 0
      %1230 = vmatprep.subr.bf16.mxu0 0
      %1231 = vmatpush1.bf16.msra.mxu0 0
      %1232 = vmatprep.subr.bf16.mxu0 0
      %1233 = vmatpush1.bf16.msra.mxu0 0
      %1234 = vmatprep.subr.bf16.mxu0 0
      %1235 = vmatpush1.bf16.msra.mxu0 0
      %1236 = vmatprep.subr.bf16.mxu0 0
      %1237 = vmatpush1.bf16.msra.mxu0 0
      %1238 = vmatprep.subr.bf16.mxu0 0
      %1239 = vmatpush1.bf16.msra.mxu0 0
      %1240 = vmatprep.mubr.bf16.mxu0 0
      %1241 = vmatmul.mubr.bf16.gmra.mrb[0].mxu0 %v1203
      %v1242 = vpop.f32.mrb[0].mxu0
      %v1243 = vadd.f32 0.0, %v1242
      %v1244 = vpop.f32.mrb[0].mxu0
      %v1245 = vpop.f32.mrb[0].mxu0
      %v1246 = vpop.f32.mrb[0].mxu0
      %1247 = vdwg.mxu0
      %v1248 = vadd.f32 %v1032, %v1243
      %v1249 = vld [vmem:[%s5] sm:$0x1]
      %v1251 = vlaneseq
      %v1252 = vshrl.u32 %v1251, 7
      %v1253 = vsub.s32 0, %v1252
      %v1254 = vrot.slane %v1249, %v1253
      %v1256 = vadd.f32 %v1248, %v1254
      %v1257 = vadd.f32 %v316, %v1256
      %v1258 = vld [vmem:[%s6] sm:$0x1]
      %v1259 = vld [vmem:[%s7] sm:$0x1]
      %v1260 = vsel %vm331, %v1257, 0.0
      %1261 = vadd.xlane.f32.xlu0 %v1260
      %v1262 = vpop.xlane.xlu0 %1261
      %v1263 = vrcp.pop 32.0
      %v1264 = vmul.f32 %v1262, %v1263
      %v1265 = vsub.f32 %v1257, %v1264
      %v1266 = vmul.f32 %v1265, %v1265
      %v1267 = vsel %vm331, %v1266, 0.0
      %1268 = vadd.xlane.f32.xlu0 %v1267
      %v1269 = vpop.xlane.xlu0 %1268
      %v1270 = vmul.f32 %v1269, %v1263
      %v1271 = vadd.f32 %v1270, 1e-05
      %v1272 = vrsqrt.pop %v1271
      %v1273 = vmul.f32 %v1265, %v1272
      %v1275 = vlaneseq
      %v1276 = vshrl.u32 %v1275, 7
      %v1277 = vsub.s32 0, %v1276
      %v1278 = vrot.slane %v1258, %v1277
      %v1280 = vmul.f32 %v1273, %v1278
      %v1282 = vlaneseq
      %v1283 = vshrl.u32 %v1282, 7
      %v1284 = vsub.s32 0, %v1283
      %v1285 = vrot.slane %v1259, %v1284
      %v1287 = vadd.f32 %v1280, %v1285
      %1288 = vst.msk [vmem:[%s314] sm:$0xff] %vm331, %v1287
      %p1289 = scmp.lt.s32.totalorder %s19, 1
      %s1290 = scalar_select %p1289, %s19, 1
      %s1291 = smul.addr %s1290, 8
      %s1292 = scalar_lea.vmem %s8, %s1291
      // Predicated region
      $region53: #{translate_transformer_forward.14} parent=51 // pred_check
        %p1293 = pneg %p215
      $region54: #{translate_transformer_forward.14} parent=51 // pred_check_branch
        %1295 = sbr.rel (%p1293) target = $region56
      $region55: #{translate_transformer_forward.14} parent=51 // pred_region
        _
      $region56: #{translate_transformer_forward.14} parent=51 // pred_fallthru
        _
    $region52: #{translate_transformer_forward.14} parent=5 // pred_fallthru
      _
    %p1296 = scmp.le.s32.totalorder 2, %s14
    // Predicated region
    $region57: #{translate_transformer_forward.14} parent=5 // pred_check
      %p1297 = pneg %p1296
    $region58: #{translate_transformer_forward.14} parent=5 // pred_check_branch
      %1299 = sbr.rel (%p1297) target = $region60
    $region59: #{translate_transformer_forward.14} parent=5 // pred_region
      %s1300 = ssub.s32 %s14, 2
      // Predicated region
      $region61: #{translate_transformer_forward.14} parent=59 // pred_check
        %p1301 = pneg %p221
      $region62: #{translate_transformer_forward.14} parent=59 // pred_check_branch
        %1303 = sbr.rel (%p1301) target = $region64
      $region63: #{translate_transformer_forward.14} parent=59 // pred_region
        %p1304 = scmp.lt.s32.totalorder %s20, 1
        %s1305 = scalar_select %p1304, %s20, 1
        %s1306 = smul.addr %s1305, 8
        %s1307 = scalar_lea.vmem %s8, %s1306
      $region64: #{translate_transformer_forward.14} parent=59 // pred_fallthru
        _
    $region60: #{translate_transformer_forward.14} parent=5 // pred_fallthru
      _
  $region6: #{translate_transformer_forward.14} parent=0 // loop_footer
    %s18 = sadd.s32 1, %s14
  $region7: #{translate_transformer_forward.14} parent=0 // loop_footer_branch
    %13 = sbr.rel target = $region3
  $region8: #{translate_transformer_forward.14} parent=0 // loop_exit
    _

// kernel: translate_transformer_forward.12
$region0: #{translate_transformer_forward.12}
  #allocation0 [shape = 'u32[]', space=smem, size = 0x4, offset = 0x4, fixed_abs, tag = 'smem constant byte address 0x4 - core index']
  #allocation1 [shape = 'u32[144,128]{1,0:T(1,128)}', space=vmem, size = 0x12000, scoped, tag = 'internal scratch']
  %s0 = inlined_call_operand.vmem [shape: f32[2,8,32], index: 0, kind: input, shape index: {}]
  %s1 = inlined_call_operand.vmem [shape: f32[2,1,8], index: 1, kind: input, shape index: {}]
  %s2 = inlined_call_operand.vmem [shape: f32[32,96], index: 2, kind: input, shape index: {}]
  %s3 = inlined_call_operand.vmem [shape: f32[1,96], index: 3, kind: input, shape index: {}]
  %s4 = inlined_call_operand.hbm [shape: f32[32,32], index: 4, kind: input, shape index: {}]
  %s5 = inlined_call_operand.vmem [shape: f32[1,32], index: 5, kind: input, shape index: {}]
  %s6 = inlined_call_operand.hbm [shape: f32[1,32], index: 6, kind: input, shape index: {}]
  %s7 = inlined_call_operand.hbm [shape: f32[1,32], index: 7, kind: input, shape index: {}]
  %s8 = inlined_call_operand.vmem [shape: f32[2,8,32], index: 8, kind: output, shape index: {}]
  %s9 = sld [smem:[#allocation0]]
  $region77: #{translate_transformer_forward.12} parent=0
    _
  %s11 = ssub.s32 1, %s9
  %s12 = scalar_select 0, %s11, %s9
  $region1: #{translate_transformer_forward.12} parent=0
    #allocation2 [shape = 'u8[16384]{0}', space=vmem, size = 0x4000, scoped, tag = 'input window, operand 4, single buffered']
    #allocation3 [shape = 's32[2]{0}', space=sflag, size = 0x8, scoped, tag = 'scoped memory for translate_transformer_forward.12']
    #allocation4 [shape = 'u8[512]{0}', space=vmem, size = 0x400, scoped, tag = 'input window, operand 6, single buffered']
    #allocation5 [shape = 's32[1]{0}', space=sflag, size = 0x4, scoped, tag = 'scoped memory for translate_transformer_forward.12']
    #allocation6 [shape = 'u8[512]{0}', space=vmem, size = 0x400, scoped, tag = 'input window, operand 7, single buffered']
    %13 = vsyncpa [#allocation3], 0
    %14 = vsyncpa [#allocation5], 0
    loop: start=0, step=1, limit=4
    $region2: #{translate_transformer_forward.12} parent=1 // loop_pre_header
      _
    $region3: #{translate_transformer_forward.12} parent=1 // loop_header
      %s16 = sphi 0, %s20
      %p17 = scmp.ge.s32.totalorder %s16, 4
      %s26 = sphi 0, %s28
      %s29 = sphi 0, %s26
      %s30 = sphi 0, %s29
      %s46 = sphi 0, %s30
      %s52 = sphi 0, %s54
      %s55 = sphi 0, %s52
      %s56 = sphi 0, %s55
      %s72 = sphi 0, %s56
      %s76 = sphi 0, %s76
      %s78 = sphi 0, %s76
      %s79 = sphi 0, %s78
      %s93 = sphi 0, %s79
      %s97 = sphi 0, %s97
      %s99 = sphi 0, %s97
      %s100 = sphi 0, %s99
      %s114 = sphi 0, %s100
      %s118 = sphi 0, %s118
      %s120 = sphi 0, %s118
      %s121 = sphi 0, %s120
      %s135 = sphi 0, %s121
      %s139 = sphi 0, %s139
      %s141 = sphi 0, %s139
      %s142 = sphi 0, %s141
      %s156 = sphi 0, %s142
      %s160 = sphi 0, %s160
      %s162 = sphi 0, %s160
      %s163 = sphi 0, %s162
      %s177 = sphi 0, %s163
      %s181 = sphi 0, %s181
      %s183 = sphi 0, %s181
      %s184 = sphi 0, %s183
      %s198 = sphi 0, %s184
      %s204 = sphi 0, %s206
      %s207 = sphi 0, %s204
      %s208 = sphi 0, %s207
      %s224 = sphi 0, %s208
    $region4: #{translate_transformer_forward.12} parent=1 // loop_header_branch
      %19 = sbr.rel (%p17) target = $region8
    $region5: #{translate_transformer_forward.12} parent=1 // loop_body
      %s21 = ssub.s32 %s16, 1
      %s22 = ssub.s32 %s16, 2
      %s23 = sadd.s32 %s16, 1
      %s24 = ssub.s32 %s16, %s23
      %p25 = scmp.eq.s32.totalorder %s24, 0
      %s27 = sadd.s32 %s26, 1
      %s28 = scalar_select %p25, %s26, %s27
      %p31 = pneg %p25
      %p32 = scmp.eq.s32.totalorder %s16, 1
      %p33 = por %p31, %p32
      %p34 = scmp.ne.s32.totalorder %s26, %s29
      %p35 = scmp.eq.s32.totalorder %s16, 0
      %p36 = por %p34, %p35
      %p37 = scmp.ne.s32.totalorder %s26, %s29
      %p38 = scmp.eq.s32.totalorder %s21, 1
      %p39 = por %p37, %p38
      %p40 = scmp.ne.s32.totalorder %s29, %s30
      %p41 = scmp.eq.s32.totalorder %s21, 0
      %p42 = por %p40, %p41
      %p43 = scmp.ne.s32.totalorder %s29, %s30
      %p44 = scmp.eq.s32.totalorder %s22, 1
      %p45 = por %p43, %p44
      %p47 = scmp.ne.s32.totalorder %s30, %s46
      %p48 = scmp.eq.s32.totalorder %s22, 0
      %p49 = por %p47, %p48
      %s50 = ssub.s32 %s16, %s23
      %p51 = scmp.eq.s32.totalorder %s50, 0
      %s53 = sadd.s32 %s52, 1
      %s54 = scalar_select %p51, %s52, %s53
      %p57 = pneg %p51
      %p58 = scmp.eq.s32.totalorder %s16, 1
      %p59 = por %p57, %p58
      %p60 = scmp.ne.s32.totalorder %s52, %s55
      %p61 = scmp.eq.s32.totalorder %s16, 0
      %p62 = por %p60, %p61
      %p63 = scmp.ne.s32.totalorder %s52, %s55
      %p64 = scmp.eq.s32.totalorder %s21, 1
      %p65 = por %p63, %p64
      %p66 = scmp.ne.s32.totalorder %s55, %s56
      %p67 = scmp.eq.s32.totalorder %s21, 0
      %p68 = por %p66, %p67
      %p69 = scmp.ne.s32.totalorder %s55, %s56
      %p70 = scmp.eq.s32.totalorder %s22, 1
      %p71 = por %p69, %p70
      %p73 = scmp.ne.s32.totalorder %s56, %s72
      %p74 = scmp.eq.s32.totalorder %s22, 0
      %p75 = por %p73, %p74
      %s77 = sadd.s32 %s76, 1
      %p80 = scmp.eq.s32.totalorder %s16, 1
      %p81 = scmp.ne.s32.totalorder %s76, %s78
      %p82 = scmp.eq.s32.totalorder %s16, 0
      %p83 = por %p81, %p82
      %p84 = scmp.ne.s32.totalorder %s76, %s78
      %p85 = scmp.eq.s32.totalorder %s21, 1
      %p86 = por %p84, %p85
      %p87 = scmp.ne.s32.totalorder %s78, %s79
      %p88 = scmp.eq.s32.totalorder %s21, 0
      %p89 = por %p87, %p88
      %p90 = scmp.ne.s32.totalorder %s78, %s79
      %p91 = scmp.eq.s32.totalorder %s22, 1
      %p92 = por %p90, %p91
      %p94 = scmp.ne.s32.totalorder %s79, %s93
      %p95 = scmp.eq.s32.totalorder %s22, 0
      %p96 = por %p94, %p95
      %s98 = sadd.s32 %s97, 1
      %p101 = scmp.eq.s32.totalorder %s16, 1
      %p102 = scmp.ne.s32.totalorder %s97, %s99
      %p103 = scmp.eq.s32.totalorder %s16, 0
      %p104 = por %p102, %p103
      %p105 = scmp.ne.s32.totalorder %s97, %s99
      %p106 = scmp.eq.s32.totalorder %s21, 1
      %p107 = por %p105, %p106
      %p108 = scmp.ne.s32.totalorder %s99, %s100
      %p109 = scmp.eq.s32.totalorder %s21, 0
      %p110 = por %p108, %p109
      %p111 = scmp.ne.s32.totalorder %s99, %s100
      %p112 = scmp.eq.s32.totalorder %s22, 1
      %p113 = por %p111, %p112
      %p115 = scmp.ne.s32.totalorder %s100, %s114
      %p116 = scmp.eq.s32.totalorder %s22, 0
      %p117 = por %p115, %p116
      %s119 = sadd.s32 %s118, 1
      %p122 = scmp.eq.s32.totalorder %s16, 1
      %p123 = scmp.ne.s32.totalorder %s118, %s120
      %p124 = scmp.eq.s32.totalorder %s16, 0
      %p125 = por %p123, %p124
      %p126 = scmp.ne.s32.totalorder %s118, %s120
      %p127 = scmp.eq.s32.totalorder %s21, 1
      %p128 = por %p126, %p127
      %p129 = scmp.ne.s32.totalorder %s120, %s121
      %p130 = scmp.eq.s32.totalorder %s21, 0
      %p131 = por %p129, %p130
      %p132 = scmp.ne.s32.totalorder %s120, %s121
      %p133 = scmp.eq.s32.totalorder %s22, 1
      %p134 = por %p132, %p133
      %p136 = scmp.ne.s32.totalorder %s121, %s135
      %p137 = scmp.eq.s32.totalorder %s22, 0
      %p138 = por %p136, %p137
      %s140 = sadd.s32 %s139, 1
      %p143 = scmp.eq.s32.totalorder %s16, 1
      %p144 = scmp.ne.s32.totalorder %s139, %s141
      %p145 = scmp.eq.s32.totalorder %s16, 0
      %p146 = por %p144, %p145
      %p147 = scmp.ne.s32.totalorder %s139, %s141
      %p148 = scmp.eq.s32.totalorder %s21, 1
      %p149 = por %p147, %p148
      %p150 = scmp.ne.s32.totalorder %s141, %s142
      %p151 = scmp.eq.s32.totalorder %s21, 0
      %p152 = por %p150, %p151
      %p153 = scmp.ne.s32.totalorder %s141, %s142
      %p154 = scmp.eq.s32.totalorder %s22, 1
      %p155 = por %p153, %p154
      %p157 = scmp.ne.s32.totalorder %s142, %s156
      %p158 = scmp.eq.s32.totalorder %s22, 0
      %p159 = por %p157, %p158
      %s161 = sadd.s32 %s160, 1
      %p164 = scmp.eq.s32.totalorder %s16, 1
      %p165 = scmp.ne.s32.totalorder %s160, %s162
      %p166 = scmp.eq.s32.totalorder %s16, 0
      %p167 = por %p165, %p166
      %p168 = scmp.ne.s32.totalorder %s160, %s162
      %p169 = scmp.eq.s32.totalorder %s21, 1
      %p170 = por %p168, %p169
      %p171 = scmp.ne.s32.totalorder %s162, %s163
      %p172 = scmp.eq.s32.totalorder %s21, 0
      %p173 = por %p171, %p172
      %p174 = scmp.ne.s32.totalorder %s162, %s163
      %p175 = scmp.eq.s32.totalorder %s22, 1
      %p176 = por %p174, %p175
      %p178 = scmp.ne.s32.totalorder %s163, %s177
      %p179 = scmp.eq.s32.totalorder %s22, 0
      %p180 = por %p178, %p179
      %s182 = sadd.s32 %s181, 1
      %p185 = scmp.eq.s32.totalorder %s16, 1
      %p186 = scmp.ne.s32.totalorder %s181, %s183
      %p187 = scmp.eq.s32.totalorder %s16, 0
      %p188 = por %p186, %p187
      %p189 = scmp.ne.s32.totalorder %s181, %s183
      %p190 = scmp.eq.s32.totalorder %s21, 1
      %p191 = por %p189, %p190
      %p192 = scmp.ne.s32.totalorder %s183, %s184
      %p193 = scmp.eq.s32.totalorder %s21, 0
      %p194 = por %p192, %p193
      %p195 = scmp.ne.s32.totalorder %s183, %s184
      %p196 = scmp.eq.s32.totalorder %s22, 1
      %p197 = por %p195, %p196
      %p199 = scmp.ne.s32.totalorder %s184, %s198
      %p200 = scmp.eq.s32.totalorder %s22, 0
      %p201 = por %p199, %p200
      %s202 = ssub.s32 %s16, %s23
      %p203 = scmp.eq.s32.totalorder %s202, 0
      %s205 = sadd.s32 %s204, 1
      %s206 = scalar_select %p203, %s204, %s205
      %p209 = pneg %p203
      %p210 = scmp.eq.s32.totalorder %s16, 1
      %p211 = por %p209, %p210
      %p212 = scmp.ne.s32.totalorder %s204, %s207
      %p213 = scmp.eq.s32.totalorder %s16, 0
      %p214 = por %p212, %p213
      %p215 = scmp.ne.s32.totalorder %s204, %s207
      %p216 = scmp.eq.s32.totalorder %s21, 1
      %p217 = por %p215, %p216
      %p218 = scmp.ne.s32.totalorder %s207, %s208
      %p219 = scmp.eq.s32.totalorder %s21, 0
      %p220 = por %p218, %p219
      %p221 = scmp.ne.s32.totalorder %s207, %s208
      %p222 = scmp.eq.s32.totalorder %s22, 1
      %p223 = por %p221, %p222
      %p225 = scmp.ne.s32.totalorder %s208, %s224
      %p226 = scmp.eq.s32.totalorder %s22, 0
      %p227 = por %p225, %p226
      %p228 = scmp.le.s32.totalorder 1, %s16
      %p229 = scmp.lt.s32.totalorder %s16, 3
      %p230 = pnand %p228, %p229
      %p231 = pneg %p230
      // Predicated region
      $region9: #{translate_transformer_forward.12} parent=5 // pred_check
        _
      $region10: #{translate_transformer_forward.12} parent=5 // pred_check_branch
        %233 = sbr.rel (%p230) target = $region12
      $region11: #{translate_transformer_forward.12} parent=5 // pred_region
        %s234 = ssub.s32 %s16, 1
        // Predicated region
        $region13: #{translate_transformer_forward.12} parent=11 // pred_check
          %p235 = pneg %p89
        $region14: #{translate_transformer_forward.12} parent=11 // pred_check_branch
          %237 = sbr.rel (%p235) target = $region16
        $region15: #{translate_transformer_forward.12} parent=11 // pred_region
          _
        $region16: #{translate_transformer_forward.12} parent=11 // pred_fallthru
          _
        // Predicated region
        $region17: #{translate_transformer_forward.12} parent=11 // pred_check
          %p238 = pneg %p110
        $region18: #{translate_transformer_forward.12} parent=11 // pred_check_branch
          %240 = sbr.rel (%p238) target = $region20
        $region19: #{translate_transformer_forward.12} parent=11 // pred_region
          _
        $region20: #{translate_transformer_forward.12} parent=11 // pred_fallthru
          _
        // Predicated region
        $region21: #{translate_transformer_forward.12} parent=11 // pred_check
          %p241 = pneg %p131
        $region22: #{translate_transformer_forward.12} parent=11 // pred_check_branch
          %243 = sbr.rel (%p241) target = $region24
        $region23: #{translate_transformer_forward.12} parent=11 // pred_region
          %s245 = ssub.s32 512, 512
          %246 = vsyncadd [#allocation3], %s245
          %s247 = sshll.u32 [#allocation2], 4
          %s248 = int_to_ptr.vmem [resolvable:$true] %s247
          %253 = dma.hbm_to_vmem [thread:$0]  %s4, 512, %s248, [#allocation3], 128, 128, 8
        $region24: #{translate_transformer_forward.12} parent=11 // pred_fallthru
          _
        // Predicated region
        $region25: #{translate_transformer_forward.12} parent=11 // pred_check
          %p254 = pneg %p152
        $region26: #{translate_transformer_forward.12} parent=11 // pred_check_branch
          %256 = sbr.rel (%p254) target = $region28
        $region27: #{translate_transformer_forward.12} parent=11 // pred_region
          _
        $region28: #{translate_transformer_forward.12} parent=11 // pred_fallthru
          _
        // Predicated region
        $region29: #{translate_transformer_forward.12} parent=11 // pred_check
          %p257 = pneg %p173
        $region30: #{translate_transformer_forward.12} parent=11 // pred_check_branch
          %259 = sbr.rel (%p257) target = $region32
        $region31: #{translate_transformer_forward.12} parent=11 // pred_region
          %s261 = ssub.s32 16, 16
          %262 = vsyncadd [#allocation5], %s261
          %s264 = sshll.u32 [#allocation4], 4
          %s265 = int_to_ptr.vmem [resolvable:$true] %s264
          %267 = dma.hbm_to_vmem [thread:$0]  %s6, 16, %s265, [#allocation5]
        $region32: #{translate_transformer_forward.12} parent=11 // pred_fallthru
          _
        // Predicated region
        $region33: #{translate_transformer_forward.12} parent=11 // pred_check
          %p268 = pneg %p194
        $region34: #{translate_transformer_forward.12} parent=11 // pred_check_branch
          %270 = sbr.rel (%p268) target = $region36
        $region35: #{translate_transformer_forward.12} parent=11 // pred_region
          %s272 = ssub.s32 16, 16
          %273 = vsyncadd [#allocation5], %s272
          %s275 = sshll.u32 [#allocation6], 4
          %s276 = int_to_ptr.vmem [resolvable:$true] %s275
          %278 = dma.hbm_to_vmem [thread:$0]  %s7, 16, %s276, [#allocation5]
        $region36: #{translate_transformer_forward.12} parent=11 // pred_fallthru
          _
      $region12: #{translate_transformer_forward.12} parent=5 // pred_fallthru
        _
      %p279 = scmp.lt.s32.totalorder %s16, 2
      // Predicated region
      $region37: #{translate_transformer_forward.12} parent=5 // pred_check
        %p280 = pneg %p279
      $region38: #{translate_transformer_forward.12} parent=5 // pred_check_branch
        %282 = sbr.rel (%p280) target = $region40
      $region39: #{translate_transformer_forward.12} parent=5 // pred_region
        // Predicated region
        $region41: #{translate_transformer_forward.12} parent=39 // pred_check
          %p283 = pneg %p36
        $region42: #{translate_transformer_forward.12} parent=39 // pred_check_branch
          %285 = sbr.rel (%p283) target = $region44
        $region43: #{translate_transformer_forward.12} parent=39 // pred_region
          %p286 = scmp.lt.s32.totalorder %s16, 1
          %s287 = scalar_select %p286, %s16, 1
          %s288 = smul.addr %s287, 8
          %s289 = scalar_lea.vmem %s0, %s288
        $region44: #{translate_transformer_forward.12} parent=39 // pred_fallthru
          _
        // Predicated region
        $region45: #{translate_transformer_forward.12} parent=39 // pred_check
          %p290 = pneg %p62
        $region46: #{translate_transformer_forward.12} parent=39 // pred_check_branch
          %292 = sbr.rel (%p290) target = $region48
        $region47: #{translate_transformer_forward.12} parent=39 // pred_region
          %p293 = scmp.lt.s32.totalorder %s16, 1
          %s294 = scalar_select %p293, %s16, 1
          %s295 = scalar_lea.vmem %s1, %s294
        $region48: #{translate_transformer_forward.12} parent=39 // pred_fallthru
          _
      $region40: #{translate_transformer_forward.12} parent=5 // pred_fallthru
        _
      %p296 = scmp.le.s32.totalorder 1, %s16
      %p297 = scmp.lt.s32.totalorder %s16, 3
      %p298 = pnand %p296, %p297
      %p299 = pneg %p298
      // Predicated region
      $region49: #{translate_transformer_forward.12} parent=5 // pred_check
        _
      $region50: #{translate_transformer_forward.12} parent=5 // pred_check_branch
        %301 = sbr.rel (%p298) target = $region52
      $region51: #{translate_transformer_forward.12} parent=5 // pred_region
        %s302 = ssub.s32 %s16, 1
        // Predicated region
        $region53: #{translate_transformer_forward.12} parent=51 // pred_check
          %p303 = pneg %p131
        $region54: #{translate_transformer_forward.12} parent=51 // pred_check_branch
          %305 = sbr.rel (%p303) target = $region56
        $region55: #{translate_transformer_forward.12} parent=51 // pred_region
          %306 = dma.done [#allocation3], 512
        $region56: #{translate_transformer_forward.12} parent=51 // pred_fallthru
          _
        // Predicated region
        $region57: #{translate_transformer_forward.12} parent=51 // pred_check
          %p307 = pneg %p173
        $region58: #{translate_transformer_forward.12} parent=51 // pred_check_branch
          %309 = sbr.rel (%p307) target = $region60
        $region59: #{translate_transformer_forward.12} parent=51 // pred_region
          %310 = dma.done [#allocation5], 16
        $region60: #{translate_transformer_forward.12} parent=51 // pred_fallthru
          _
        // Predicated region
        $region61: #{translate_transformer_forward.12} parent=51 // pred_check
          %p311 = pneg %p194
        $region62: #{translate_transformer_forward.12} parent=51 // pred_check_branch
          %313 = sbr.rel (%p311) target = $region64
        $region63: #{translate_transformer_forward.12} parent=51 // pred_region
          %314 = dma.done [#allocation5], 16
        $region64: #{translate_transformer_forward.12} parent=51 // pred_fallthru
          _
        %p315 = scmp.lt.s32.totalorder %s21, 1
        %s316 = scalar_select %p315, %s21, 1
        %s317 = smul.addr %s316, 8
        %s318 = scalar_lea.vmem %s0, %s317
        %p319 = pneg %p42
        %p320 = pneg %p39
        %p321 = scmp.lt.s32.totalorder %s21, 1
        %s322 = scalar_select %p321, %s21, 1
        %s323 = scalar_lea.vmem %s1, %s322
        %p324 = pneg %p68
        %p325 = pneg %p65
        %p326 = pneg %p89
        %p327 = pneg %p86
        %p328 = pneg %p110
        %p329 = pneg %p107
        %p330 = pneg %p131
        %p331 = pneg %p128
        %p332 = pneg %p152
        %p333 = pneg %p149
        %p334 = pneg %p173
        %p335 = pneg %p170
        %p336 = pneg %p194
        %p337 = pneg %p191
        %p338 = pneg %p220
        %p339 = pneg %p217
        %p340 = scmp.lt.s32.totalorder %s21, 1
        %s341 = scalar_select %p340, %s21, 1
        %s342 = smul.addr %s341, 8
        %s343 = scalar_lea.vmem %s8, %s342
        %p344 = scmp.lt.s32.totalorder %s21, 1
        %s345 = scalar_select %p344, %s21, 1
        %s346 = smul.addr %s345, 8
        %s347 = scalar_lea.vmem %s0, %s346
        %p348 = scmp.lt.s32.totalorder %s21, 1
        %s349 = scalar_select %p348, %s21, 1
        %s350 = scalar_lea.vmem %s1, %s349
        %p351 = scmp.lt.s32.totalorder %s21, 1
        %s352 = scalar_select %p351, %s21, 1
        %s353 = smul.addr %s352, 8
        %s354 = scalar_lea.vmem %s8, %s353
        %v356 = vld [vmem:[%s347] sm:$0xff]
        %v357 = vpack.c.bf16 %v356, %v356
        %v358 = vld [vmem:[%s2] sm:$0xff]
        %v359 = vld [vmem:[%s2 + $0x8] sm:$0xff]
        %v360 = vld [vmem:[%s2 + $0x10] sm:$0xff]
        %v361 = vld [vmem:[%s2 + $0x18] sm:$0xff]
        %v362 = vpack.c.bf16 %v359, %v358
        %v363 = vpack.c.bf16 %v361, %v360
        %v364 = vld [vmem:[%s3] sm:$0x1]
        %v366 = vlaneseq
        %v367 = vshrl.u32 %v366, 7
        %v368 = vsub.s32 0, %v367
        %v369 = vrot.slane %v364, %v368
        %vm371 = vcmask 261120
        %v373 = vsel %vm371, %v357, 0
        %375 = vmatprep.subr.bf16.mxu0 0
        %376 = vmatpush1.bf16.msra.mxu0 %v362
        %377 = vmatprep.subr.bf16.mxu0 0
        %378 = vmatpush1.bf16.msra.mxu0 %v363
        %379 = vmatprep.subr.bf16.mxu0 0
        %380 = vmatpush1.bf16.msra.mxu0 0
        %381 = vmatprep.subr.bf16.mxu0 0
        %382 = vmatpush1.bf16.msra.mxu0 0
        %383 = vmatprep.subr.bf16.mxu0 0
        %384 = vmatpush1.bf16.msra.mxu0 0
        %385 = vmatprep.subr.bf16.mxu0 0
        %386 = vmatpush1.bf16.msra.mxu0 0
        %387 = vmatprep.subr.bf16.mxu0 0
        %388 = vmatpush1.bf16.msra.mxu0 0
        %389 = vmatprep.subr.bf16.mxu0 0
        %390 = vmatpush1.bf16.msra.mxu0 0
        %391 = vmatprep.subr.bf16.mxu0 0
        %392 = vmatpush1.bf16.msra.mxu0 0
        %393 = vmatprep.subr.bf16.mxu0 0
        %394 = vmatpush1.bf16.msra.mxu0 0
        %395 = vmatprep.subr.bf16.mxu0 0
        %396 = vmatpush1.bf16.msra.mxu0 0
        %397 = vmatprep.subr.bf16.mxu0 0
        %398 = vmatpush1.bf16.msra.mxu0 0
        %399 = vmatprep.subr.bf16.mxu0 0
        %400 = vmatpush1.bf16.msra.mxu0 0
        %401 = vmatprep.subr.bf16.mxu0 0
        %402 = vmatpush1.bf16.msra.mxu0 0
        %403 = vmatprep.subr.bf16.mxu0 0
        %404 = vmatpush1.bf16.msra.mxu0 0
        %405 = vmatprep.subr.bf16.mxu0 0
        %406 = vmatpush1.bf16.msra.mxu0 0
        %407 = vmatprep.mubr.bf16.mxu0 0
        %408 = vmatmul.mubr.bf16.gmra.mrb[0].mxu0 %v373
        %v409 = vpop.f32.mrb[0].mxu0
        %v410 = vadd.f32 %v369, %v409
        %v411 = vpop.f32.mrb[0].mxu0
        %v412 = vpop.f32.mrb[0].mxu0
        %v413 = vpop.f32.mrb[0].mxu0
        %414 = vdwg.mxu0
        %v415 = vld [vmem:[%s350] sm:$0x1]
        %v416 = vld [vmem:[#allocation2] sm:$0xff]
        %v417 = vld [vmem:[#allocation2 + $0x8] sm:$0xff]
        %v418 = vld [vmem:[#allocation2 + $0x10] sm:$0xff]
        %v419 = vld [vmem:[#allocation2 + $0x18] sm:$0xff]
        %421 = vrot.lane.b32.xlu0 %v410, 96
        %v422 = vpop.permute.xlu0 %421
        %vm423 = vcmask 64512
        %v424 = vsel %vm423, %v410, 0
        %v426 = vsel %vm423, %v422, 0
        %428 = vmatprep.subr.mxu0 0.0
        %429 = vmatpush1.xpose.msra.mxu0 %v426
        %430 = vmatprep.subr.mxu0 0.0
        %431 = vmatpush1.xpose.msra.mxu0 0.0
        %432 = vmatprep.subr.mxu0 0.0
        %433 = vmatpush1.xpose.msra.mxu0 0.0
        %434 = vmatprep.subr.mxu0 0.0
        %435 = vmatpush1.xpose.msra.mxu0 0.0
        %436 = vmatprep.subr.mxu0 0.0
        %437 = vmatpush1.xpose.msra.mxu0 0.0
        %438 = vmatprep.subr.mxu0 0.0
        %439 = vmatpush1.xpose.msra.mxu0 0.0
        %440 = vmatprep.subr.mxu0 0.0
        %441 = vmatpush1.xpose.msra.mxu0 0.0
        %442 = vmatprep.subr.mxu0 0.0
        %443 = vmatpush1.xpose.msra.mxu0 0.0
        %444 = vmatprep.subr.mxu0 0.0
        %445 = vmatpush1.xpose.msra.mxu0 0.0
        %446 = vmatprep.subr.mxu0 0.0
        %447 = vmatpush1.xpose.msra.mxu0 0.0
        %448 = vmatprep.subr.mxu0 0.0
        %449 = vmatpush1.xpose.msra.mxu0 0.0
        %450 = vmatprep.subr.mxu0 0.0
        %451 = vmatpush1.xpose.msra.mxu0 0.0
        %452 = vmatprep.subr.mxu0 0.0
        %453 = vmatpush1.xpose.msra.mxu0 0.0
        %454 = vmatprep.subr.mxu0 0.0
        %455 = vmatpush1.xpose.msra.mxu0 0.0
        %456 = vmatprep.subr.mxu0 0.0
        %457 = vmatpush1.xpose.msra.mxu0 0.0
        %458 = vmatprep.subr.mxu0 0.0
        %459 = vmatpush1.xpose.msra.mxu0 0.0
        %460 = vmatprep.subr.mxu0 0.0
        %461 = vmatpush1.xpose.msra.mxu0 0.0
        %462 = vmatprep.subr.mxu0 0.0
        %463 = vmatpush1.xpose.msra.mxu0 0.0
        %464 = vmatprep.subr.mxu0 0.0
        %465 = vmatpush1.xpose.msra.mxu0 0.0
        %466 = vmatprep.subr.mxu0 0.0
        %467 = vmatpush1.xpose.msra.mxu0 0.0
        %468 = vmatprep.subr.mxu0 0.0
        %469 = vmatpush1.xpose.msra.mxu0 0.0
        %470 = vmatprep.subr.mxu0 0.0
        %471 = vmatpush1.xpose.msra.mxu0 0.0
        %472 = vmatprep.subr.mxu0 0.0
        %473 = vmatpush1.xpose.msra.mxu0 0.0
        %474 = vmatprep.subr.mxu0 0.0
        %475 = vmatpush1.xpose.msra.mxu0 0.0
        %476 = vmatprep.subr.mxu0 0.0
        %477 = vmatpush1.xpose.msra.mxu0 0.0
        %478 = vmatprep.subr.mxu0 0.0
        %479 = vmatpush1.xpose.msra.mxu0 0.0
        %480 = vmatprep.subr.mxu0 0.0
        %481 = vmatpush1.xpose.msra.mxu0 0.0
        %482 = vmatprep.subr.mxu0 0.0
        %483 = vmatpush1.xpose.msra.mxu0 0.0
        %484 = vmatprep.subr.mxu0 0.0
        %485 = vmatpush1.xpose.msra.mxu0 0.0
        %486 = vmatprep.subr.mxu0 0.0
        %487 = vmatpush1.xpose.msra.mxu0 0.0
        %488 = vmatprep.subr.mxu0 0.0
        %489 = vmatpush1.xpose.msra.mxu0 0.0
        %490 = vmatprep.subr.mxu0 0.0
        %491 = vmatpush1.xpose.msra.mxu0 0.0
        %492 = vmatprep.mubr.f32.mxu0 0.0
        %493 = vmatmul.mubr.f32.gmra.mrb[0].mxu0 %v424
        %v494 = vpop.f32.mrb[0].mxu0
        %v495 = vadd.f32 0.0, %v494
        %v496 = vpop.f32.mrb[0].mxu0
        %497 = vdwg.mxu0
        %v498 = vmul.f32 %v495, 0.35355338
        %v500 = vlaneseq
        %v501 = vshrl.u32 %v500, 7
        %v502 = vsub.s32 0, %v501
        %v503 = vrot.slane %v415, %v502
        %v505 = vadd.f32 %v498, %v503
        %v506 = vsel %vm423, %v505, -inf
        %507 = vmax.xlane.f32.xlu0 %v506
        %v508 = vpop.xlane.xlu0 %507
        %v509 = vsub.f32 %v505, %v508
        %v510 = vmul.f32 %v509, 1.442695
        %v511 = vpow.pop %v510
        %v512 = vsel %vm423, %v511, 0.0
        %513 = vadd.xlane.f32.xlu0 %v512
        %v514 = vpop.xlane.xlu0 %513
        %v515 = vrcp.pop %v514
        %v516 = vmul.f32 %v511, %v515
        %517 = vrot.lane.b32.xlu0 %v410, 64
        %v518 = vpop.permute.xlu0 %517
        %v521 = vsel %vm423, %v516, 0
        %523 = vmatprep.subr.mxu0 0.0
        %524 = vmatpush1.msra.mxu0 %v518
        %525 = vmatprep.subr.mxu0 0.0
        %526 = vmatpush1.msra.mxu0 0.0
        %527 = vmatprep.subr.mxu0 0.0
        %528 = vmatpush1.msra.mxu0 0.0
        %529 = vmatprep.subr.mxu0 0.0
        %530 = vmatpush1.msra.mxu0 0.0
        %531 = vmatprep.subr.mxu0 0.0
        %532 = vmatpush1.msra.mxu0 0.0
        %533 = vmatprep.subr.mxu0 0.0
        %534 = vmatpush1.msra.mxu0 0.0
        %535 = vmatprep.subr.mxu0 0.0
        %536 = vmatpush1.msra.mxu0 0.0
        %537 = vmatprep.subr.mxu0 0.0
        %538 = vmatpush1.msra.mxu0 0.0
        %539 = vmatprep.subr.mxu0 0.0
        %540 = vmatpush1.msra.mxu0 0.0
        %541 = vmatprep.subr.mxu0 0.0
        %542 = vmatpush1.msra.mxu0 0.0
        %543 = vmatprep.subr.mxu0 0.0
        %544 = vmatpush1.msra.mxu0 0.0
        %545 = vmatprep.subr.mxu0 0.0
        %546 = vmatpush1.msra.mxu0 0.0
        %547 = vmatprep.subr.mxu0 0.0
        %548 = vmatpush1.msra.mxu0 0.0
        %549 = vmatprep.subr.mxu0 0.0
        %550 = vmatpush1.msra.mxu0 0.0
        %551 = vmatprep.subr.mxu0 0.0
        %552 = vmatpush1.msra.mxu0 0.0
        %553 = vmatprep.subr.mxu0 0.0
        %554 = vmatpush1.msra.mxu0 0.0
        %555 = vmatprep.subr.mxu0 0.0
        %556 = vmatpush1.msra.mxu0 0.0
        %557 = vmatprep.subr.mxu0 0.0
        %558 = vmatpush1.msra.mxu0 0.0
        %559 = vmatprep.subr.mxu0 0.0
        %560 = vmatpush1.msra.mxu0 0.0
        %561 = vmatprep.subr.mxu0 0.0
        %562 = vmatpush1.msra.mxu0 0.0
        %563 = vmatprep.subr.mxu0 0.0
        %564 = vmatpush1.msra.mxu0 0.0
        %565 = vmatprep.subr.mxu0 0.0
        %566 = vmatpush1.msra.mxu0 0.0
        %567 = vmatprep.subr.mxu0 0.0
        %568 = vmatpush1.msra.mxu0 0.0
        %569 = vmatprep.subr.mxu0 0.0
        %570 = vmatpush1.msra.mxu0 0.0
        %571 = vmatprep.subr.mxu0 0.0
        %572 = vmatpush1.msra.mxu0 0.0
        %573 = vmatprep.subr.mxu0 0.0
        %574 = vmatpush1.msra.mxu0 0.0
        %575 = vmatprep.subr.mxu0 0.0
        %576 = vmatpush1.msra.mxu0 0.0
        %577 = vmatprep.subr.mxu0 0.0
        %578 = vmatpush1.msra.mxu0 0.0
        %579 = vmatprep.subr.mxu0 0.0
        %580 = vmatpush1.msra.mxu0 0.0
        %581 = vmatprep.subr.mxu0 0.0
        %582 = vmatpush1.msra.mxu0 0.0
        %583 = vmatprep.subr.mxu0 0.0
        %584 = vmatpush1.msra.mxu0 0.0
        %585 = vmatprep.subr.mxu0 0.0
        %586 = vmatpush1.msra.mxu0 0.0
        %587 = vmatprep.mubr.f32.mxu0 0.0
        %588 = vmatmul.mubr.f32.gmra.mrb[0].mxu0 %v521
        %v589 = vpop.f32.mrb[0].mxu0
        %v590 = vadd.f32 0.0, %v589
        %v591 = vpop.f32.mrb[0].mxu0
        %592 = vdwg.mxu0
        %v593 = vpack.c.bf16 %v590, %v590
        %v594 = vpack.c.bf16 %v416, %v416
        %595 = vrot.lane.b32.xlu0 %v410, 120
        %v596 = vpop.permute.xlu0 %595
        %597 = vrot.lane.b32.xlu0 %v410, 88
        %v598 = vpop.permute.xlu0 %597
        %v599 = vsel %vm423, %v596, 0
        %v601 = vsel %vm423, %v598, 0
        %603 = vmatprep.subr.mxu0 0.0
        %604 = vmatpush1.xpose.msra.mxu0 %v601
        %605 = vmatprep.subr.mxu0 0.0
        %606 = vmatpush1.xpose.msra.mxu0 0.0
        %607 = vmatprep.subr.mxu0 0.0
        %608 = vmatpush1.xpose.msra.mxu0 0.0
        %609 = vmatprep.subr.mxu0 0.0
        %610 = vmatpush1.xpose.msra.mxu0 0.0
        %611 = vmatprep.subr.mxu0 0.0
        %612 = vmatpush1.xpose.msra.mxu0 0.0
        %613 = vmatprep.subr.mxu0 0.0
        %614 = vmatpush1.xpose.msra.mxu0 0.0
        %615 = vmatprep.subr.mxu0 0.0
        %616 = vmatpush1.xpose.msra.mxu0 0.0
        %617 = vmatprep.subr.mxu0 0.0
        %618 = vmatpush1.xpose.msra.mxu0 0.0
        %619 = vmatprep.subr.mxu0 0.0
        %620 = vmatpush1.xpose.msra.mxu0 0.0
        %621 = vmatprep.subr.mxu0 0.0
        %622 = vmatpush1.xpose.msra.mxu0 0.0
        %623 = vmatprep.subr.mxu0 0.0
        %624 = vmatpush1.xpose.msra.mxu0 0.0
        %625 = vmatprep.subr.mxu0 0.0
        %626 = vmatpush1.xpose.msra.mxu0 0.0
        %627 = vmatprep.subr.mxu0 0.0
        %628 = vmatpush1.xpose.msra.mxu0 0.0
        %629 = vmatprep.subr.mxu0 0.0
        %630 = vmatpush1.xpose.msra.mxu0 0.0
        %631 = vmatprep.subr.mxu0 0.0
        %632 = vmatpush1.xpose.msra.mxu0 0.0
        %633 = vmatprep.subr.mxu0 0.0
        %634 = vmatpush1.xpose.msra.mxu0 0.0
        %635 = vmatprep.subr.mxu0 0.0
        %636 = vmatpush1.xpose.msra.mxu0 0.0
        %637 = vmatprep.subr.mxu0 0.0
        %638 = vmatpush1.xpose.msra.mxu0 0.0
        %639 = vmatprep.subr.mxu0 0.0
        %640 = vmatpush1.xpose.msra.mxu0 0.0
        %641 = vmatprep.subr.mxu0 0.0
        %642 = vmatpush1.xpose.msra.mxu0 0.0
        %643 = vmatprep.subr.mxu0 0.0
        %644 = vmatpush1.xpose.msra.mxu0 0.0
        %645 = vmatprep.subr.mxu0 0.0
        %646 = vmatpush1.xpose.msra.mxu0 0.0
        %647 = vmatprep.subr.mxu0 0.0
        %648 = vmatpush1.xpose.msra.mxu0 0.0
        %649 = vmatprep.subr.mxu0 0.0
        %650 = vmatpush1.xpose.msra.mxu0 0.0
        %651 = vmatprep.subr.mxu0 0.0
        %652 = vmatpush1.xpose.msra.mxu0 0.0
        %653 = vmatprep.subr.mxu0 0.0
        %654 = vmatpush1.xpose.msra.mxu0 0.0
        %655 = vmatprep.subr.mxu0 0.0
        %656 = vmatpush1.xpose.msra.mxu0 0.0
        %657 = vmatprep.subr.mxu0 0.0
        %658 = vmatpush1.xpose.msra.mxu0 0.0
        %659 = vmatprep.subr.mxu0 0.0
        %660 = vmatpush1.xpose.msra.mxu0 0.0
        %661 = vmatprep.subr.mxu0 0.0
        %662 = vmatpush1.xpose.msra.mxu0 0.0
        %663 = vmatprep.subr.mxu0 0.0
        %664 = vmatpush1.xpose.msra.mxu0 0.0
        %665 = vmatprep.subr.mxu0 0.0
        %666 = vmatpush1.xpose.msra.mxu0 0.0
        %667 = vmatprep.mubr.f32.mxu0 0.0
        %668 = vmatmul.mubr.f32.gmra.mrb[0].mxu0 %v599
        %v669 = vpop.f32.mrb[0].mxu0
        %v670 = vadd.f32 0.0, %v669
        %v671 = vpop.f32.mrb[0].mxu0
        %672 = vdwg.mxu0
        %v673 = vmul.f32 %v670, 0.35355338
        %v674 = vadd.f32 %v673, %v503
        %v675 = vsel %vm423, %v674, -inf
        %676 = vmax.xlane.f32.xlu0 %v675
        %v677 = vpop.xlane.xlu0 %676
        %v678 = vsub.f32 %v674, %v677
        %v679 = vmul.f32 %v678, 1.442695
        %v680 = vpow.pop %v679
        %v681 = vsel %vm423, %v680, 0.0
        %682 = vadd.xlane.f32.xlu0 %v681
        %v683 = vpop.xlane.xlu0 %682
        %v684 = vrcp.pop %v683
        %v685 = vmul.f32 %v680, %v684
        %686 = vrot.lane.b32.xlu0 %v410, 56
        %v687 = vpop.permute.xlu0 %686
        %v690 = vsel %vm423, %v685, 0
        %692 = vmatprep.subr.mxu0 0.0
        %693 = vmatpush1.msra.mxu0 %v687
        %694 = vmatprep.subr.mxu0 0.0
        %695 = vmatpush1.msra.mxu0 0.0
        %696 = vmatprep.subr.mxu0 0.0
        %697 = vmatpush1.msra.mxu0 0.0
        %698 = vmatprep.subr.mxu0 0.0
        %699 = vmatpush1.msra.mxu0 0.0
        %700 = vmatprep.subr.mxu0 0.0
        %701 = vmatpush1.msra.mxu0 0.0
        %702 = vmatprep.subr.mxu0 0.0
        %703 = vmatpush1.msra.mxu0 0.0
        %704 = vmatprep.subr.mxu0 0.0
        %705 = vmatpush1.msra.mxu0 0.0
        %706 = vmatprep.subr.mxu0 0.0
        %707 = vmatpush1.msra.mxu0 0.0
        %708 = vmatprep.subr.mxu0 0.0
        %709 = vmatpush1.msra.mxu0 0.0
        %710 = vmatprep.subr.mxu0 0.0
        %711 = vmatpush1.msra.mxu0 0.0
        %712 = vmatprep.subr.mxu0 0.0
        %713 = vmatpush1.msra.mxu0 0.0
        %714 = vmatprep.subr.mxu0 0.0
        %715 = vmatpush1.msra.mxu0 0.0
        %716 = vmatprep.subr.mxu0 0.0
        %717 = vmatpush1.msra.mxu0 0.0
        %718 = vmatprep.subr.mxu0 0.0
        %719 = vmatpush1.msra.mxu0 0.0
        %720 = vmatprep.subr.mxu0 0.0
        %721 = vmatpush1.msra.mxu0 0.0
        %722 = vmatprep.subr.mxu0 0.0
        %723 = vmatpush1.msra.mxu0 0.0
        %724 = vmatprep.subr.mxu0 0.0
        %725 = vmatpush1.msra.mxu0 0.0
        %726 = vmatprep.subr.mxu0 0.0
        %727 = vmatpush1.msra.mxu0 0.0
        %728 = vmatprep.subr.mxu0 0.0
        %729 = vmatpush1.msra.mxu0 0.0
        %730 = vmatprep.subr.mxu0 0.0
        %731 = vmatpush1.msra.mxu0 0.0
        %732 = vmatprep.subr.mxu0 0.0
        %733 = vmatpush1.msra.mxu0 0.0
        %734 = vmatprep.subr.mxu0 0.0
        %735 = vmatpush1.msra.mxu0 0.0
        %736 = vmatprep.subr.mxu0 0.0
        %737 = vmatpush1.msra.mxu0 0.0
        %738 = vmatprep.subr.mxu0 0.0
        %739 = vmatpush1.msra.mxu0 0.0
        %740 = vmatprep.subr.mxu0 0.0
        %741 = vmatpush1.msra.mxu0 0.0
        %742 = vmatprep.subr.mxu0 0.0
        %743 = vmatpush1.msra.mxu0 0.0
        %744 = vmatprep.subr.mxu0 0.0
        %745 = vmatpush1.msra.mxu0 0.0
        %746 = vmatprep.subr.mxu0 0.0
        %747 = vmatpush1.msra.mxu0 0.0
        %748 = vmatprep.subr.mxu0 0.0
        %749 = vmatpush1.msra.mxu0 0.0
        %750 = vmatprep.subr.mxu0 0.0
        %751 = vmatpush1.msra.mxu0 0.0
        %752 = vmatprep.subr.mxu0 0.0
        %753 = vmatpush1.msra.mxu0 0.0
        %754 = vmatprep.subr.mxu0 0.0
        %755 = vmatpush1.msra.mxu0 0.0
        %756 = vmatprep.mubr.f32.mxu0 0.0
        %757 = vmatmul.mubr.f32.gmra.mrb[0].mxu0 %v690
        %v758 = vpop.f32.mrb[0].mxu0
        %v759 = vadd.f32 0.0, %v758
        %v760 = vpop.f32.mrb[0].mxu0
        %761 = vdwg.mxu0
        %v762 = vpack.c.bf16 %v759, %v759
        %v763 = vpack.c.bf16 %v417, %v417
        %v765 = vsel %vm423, %v762, 0
        %vm767 = vcmask 1043456
        %v769 = vsel %vm767, %v763, 0
        %771 = vmatprep.subr.bf16.mxu0 0
        %772 = vmatpush1.bf16.msra.mxu0 %v769
        %773 = vmatprep.subr.bf16.mxu0 0
        %774 = vmatpush1.bf16.msra.mxu0 0
        %775 = vmatprep.subr.bf16.mxu0 0
        %776 = vmatpush1.bf16.msra.mxu0 0
        %777 = vmatprep.subr.bf16.mxu0 0
        %778 = vmatpush1.bf16.msra.mxu0 0
        %779 = vmatprep.subr.bf16.mxu0 0
        %780 = vmatpush1.bf16.msra.mxu0 0
        %781 = vmatprep.subr.bf16.mxu0 0
        %782 = vmatpush1.bf16.msra.mxu0 0
        %783 = vmatprep.subr.bf16.mxu0 0
        %784 = vmatpush1.bf16.msra.mxu0 0
        %785 = vmatprep.subr.bf16.mxu0 0
        %786 = vmatpush1.bf16.msra.mxu0 0
        %787 = vmatprep.subr.bf16.mxu0 0
        %788 = vmatpush1.bf16.msra.mxu0 0
        %789 = vmatprep.subr.bf16.mxu0 0
        %790 = vmatpush1.bf16.msra.mxu0 0
        %791 = vmatprep.subr.bf16.mxu0 0
        %792 = vmatpush1.bf16.msra.mxu0 0
        %793 = vmatprep.subr.bf16.mxu0 0
        %794 = vmatpush1.bf16.msra.mxu0 0
        %795 = vmatprep.subr.bf16.mxu0 0
        %796 = vmatpush1.bf16.msra.mxu0 0
        %797 = vmatprep.subr.bf16.mxu0 0
        %798 = vmatpush1.bf16.msra.mxu0 0
        %799 = vmatprep.subr.bf16.mxu0 0
        %800 = vmatpush1.bf16.msra.mxu0 0
        %801 = vmatprep.subr.bf16.mxu0 0
        %802 = vmatpush1.bf16.msra.mxu0 0
        %803 = vmatprep.mubr.bf16.mxu0 0
        %804 = vmatmul.mubr.bf16.gmra.mrb[0].mxu0 %v765
        %v805 = vpop.f32.mrb[0].mxu0
        %v806 = vadd.f32 0.0, %v805
        %v807 = vpop.f32.mrb[0].mxu0
        %v808 = vpop.f32.mrb[0].mxu0
        %v809 = vpop.f32.mrb[0].mxu0
        %810 = vdwg.mxu0
        %v812 = vsel %vm423, %v593, 0
        %v815 = vsel %vm767, %v594, 0
        %817 = vmatprep.subr.bf16.mxu0 0
        %818 = vmatpush1.bf16.msra.mxu0 %v815
        %819 = vmatprep.subr.bf16.mxu0 0
        %820 = vmatpush1.bf16.msra.mxu0 0
        %821 = vmatprep.subr.bf16.mxu0 0
        %822 = vmatpush1.bf16.msra.mxu0 0
        %823 = vmatprep.subr.bf16.mxu0 0
        %824 = vmatpush1.bf16.msra.mxu0 0
        %825 = vmatprep.subr.bf16.mxu0 0
        %826 = vmatpush1.bf16.msra.mxu0 0
        %827 = vmatprep.subr.bf16.mxu0 0
        %828 = vmatpush1.bf16.msra.mxu0 0
        %829 = vmatprep.subr.bf16.mxu0 0
        %830 = vmatpush1.bf16.msra.mxu0 0
        %831 = vmatprep.subr.bf16.mxu0 0
        %832 = vmatpush1.bf16.msra.mxu0 0
        %833 = vmatprep.subr.bf16.mxu0 0
        %834 = vmatpush1.bf16.msra.mxu0 0
        %835 = vmatprep.subr.bf16.mxu0 0
        %836 = vmatpush1.bf16.msra.mxu0 0
        %837 = vmatprep.subr.bf16.mxu0 0
        %838 = vmatpush1.bf16.msra.mxu0 0
        %839 = vmatprep.subr.bf16.mxu0 0
        %840 = vmatpush1.bf16.msra.mxu0 0
        %841 = vmatprep.subr.bf16.mxu0 0
        %842 = vmatpush1.bf16.msra.mxu0 0
        %843 = vmatprep.subr.bf16.mxu0 0
        %844 = vmatpush1.bf16.msra.mxu0 0
        %845 = vmatprep.subr.bf16.mxu0 0
        %846 = vmatpush1.bf16.msra.mxu0 0
        %847 = vmatprep.subr.bf16.mxu0 0
        %848 = vmatpush1.bf16.msra.mxu0 0
        %849 = vmatprep.mubr.bf16.mxu0 0
        %850 = vmatmul.mubr.bf16.gmra.mrb[0].mxu0 %v812
        %v851 = vpop.f32.mrb[0].mxu0
        %v852 = vadd.f32 %v806, %v851
        %v853 = vpop.f32.mrb[0].mxu0
        %v854 = vpop.f32.mrb[0].mxu0
        %v855 = vpop.f32.mrb[0].mxu0
        %856 = vdwg.mxu0
        %857 = vrot.lane.b32.xlu0 %v410, 112
        %v858 = vpop.permute.xlu0 %857
        %859 = vrot.lane.b32.xlu0 %v410, 80
        %v860 = vpop.permute.xlu0 %859
        %v861 = vsel %vm423, %v858, 0
        %v863 = vsel %vm423, %v860, 0
        %865 = vmatprep.subr.mxu0 0.0
        %866 = vmatpush1.xpose.msra.mxu0 %v863
        %867 = vmatprep.subr.mxu0 0.0
        %868 = vmatpush1.xpose.msra.mxu0 0.0
        %869 = vmatprep.subr.mxu0 0.0
        %870 = vmatpush1.xpose.msra.mxu0 0.0
        %871 = vmatprep.subr.mxu0 0.0
        %872 = vmatpush1.xpose.msra.mxu0 0.0
        %873 = vmatprep.subr.mxu0 0.0
        %874 = vmatpush1.xpose.msra.mxu0 0.0
        %875 = vmatprep.subr.mxu0 0.0
        %876 = vmatpush1.xpose.msra.mxu0 0.0
        %877 = vmatprep.subr.mxu0 0.0
        %878 = vmatpush1.xpose.msra.mxu0 0.0
        %879 = vmatprep.subr.mxu0 0.0
        %880 = vmatpush1.xpose.msra.mxu0 0.0
        %881 = vmatprep.subr.mxu0 0.0
        %882 = vmatpush1.xpose.msra.mxu0 0.0
        %883 = vmatprep.subr.mxu0 0.0
        %884 = vmatpush1.xpose.msra.mxu0 0.0
        %885 = vmatprep.subr.mxu0 0.0
        %886 = vmatpush1.xpose.msra.mxu0 0.0
        %887 = vmatprep.subr.mxu0 0.0
        %888 = vmatpush1.xpose.msra.mxu0 0.0
        %889 = vmatprep.subr.mxu0 0.0
        %890 = vmatpush1.xpose.msra.mxu0 0.0
        %891 = vmatprep.subr.mxu0 0.0
        %892 = vmatpush1.xpose.msra.mxu0 0.0
        %893 = vmatprep.subr.mxu0 0.0
        %894 = vmatpush1.xpose.msra.mxu0 0.0
        %895 = vmatprep.subr.mxu0 0.0
        %896 = vmatpush1.xpose.msra.mxu0 0.0
        %897 = vmatprep.subr.mxu0 0.0
        %898 = vmatpush1.xpose.msra.mxu0 0.0
        %899 = vmatprep.subr.mxu0 0.0
        %900 = vmatpush1.xpose.msra.mxu0 0.0
        %901 = vmatprep.subr.mxu0 0.0
        %902 = vmatpush1.xpose.msra.mxu0 0.0
        %903 = vmatprep.subr.mxu0 0.0
        %904 = vmatpush1.xpose.msra.mxu0 0.0
        %905 = vmatprep.subr.mxu0 0.0
        %906 = vmatpush1.xpose.msra.mxu0 0.0
        %907 = vmatprep.subr.mxu0 0.0
        %908 = vmatpush1.xpose.msra.mxu0 0.0
        %909 = vmatprep.subr.mxu0 0.0
        %910 = vmatpush1.xpose.msra.mxu0 0.0
        %911 = vmatprep.subr.mxu0 0.0
        %912 = vmatpush1.xpose.msra.mxu0 0.0
        %913 = vmatprep.subr.mxu0 0.0
        %914 = vmatpush1.xpose.msra.mxu0 0.0
        %915 = vmatprep.subr.mxu0 0.0
        %916 = vmatpush1.xpose.msra.mxu0 0.0
        %917 = vmatprep.subr.mxu0 0.0
        %918 = vmatpush1.xpose.msra.mxu0 0.0
        %919 = vmatprep.subr.mxu0 0.0
        %920 = vmatpush1.xpose.msra.mxu0 0.0
        %921 = vmatprep.subr.mxu0 0.0
        %922 = vmatpush1.xpose.msra.mxu0 0.0
        %923 = vmatprep.subr.mxu0 0.0
        %924 = vmatpush1.xpose.msra.mxu0 0.0
        %925 = vmatprep.subr.mxu0 0.0
        %926 = vmatpush1.xpose.msra.mxu0 0.0
        %927 = vmatprep.subr.mxu0 0.0
        %928 = vmatpush1.xpose.msra.mxu0 0.0
        %929 = vmatprep.mubr.f32.mxu0 0.0
        %930 = vmatmul.mubr.f32.gmra.mrb[0].mxu0 %v861
        %v931 = vpop.f32.mrb[0].mxu0
        %v932 = vadd.f32 0.0, %v931
        %v933 = vpop.f32.mrb[0].mxu0
        %934 = vdwg.mxu0
        %v935 = vmul.f32 %v932, 0.35355338
        %v936 = vadd.f32 %v935, %v503
        %v937 = vsel %vm423, %v936, -inf
        %938 = vmax.xlane.f32.xlu0 %v937
        %v939 = vpop.xlane.xlu0 %938
        %v940 = vsub.f32 %v936, %v939
        %v941 = vmul.f32 %v940, 1.442695
        %v942 = vpow.pop %v941
        %v943 = vsel %vm423, %v942, 0.0
        %944 = vadd.xlane.f32.xlu0 %v943
        %v945 = vpop.xlane.xlu0 %944
        %v946 = vrcp.pop %v945
        %v947 = vmul.f32 %v942, %v946
        %948 = vrot.lane.b32.xlu0 %v410, 48
        %v949 = vpop.permute.xlu0 %948
        %v952 = vsel %vm423, %v947, 0
        %954 = vmatprep.subr.mxu0 0.0
        %955 = vmatpush1.msra.mxu0 %v949
        %956 = vmatprep.subr.mxu0 0.0
        %957 = vmatpush1.msra.mxu0 0.0
        %958 = vmatprep.subr.mxu0 0.0
        %959 = vmatpush1.msra.mxu0 0.0
        %960 = vmatprep.subr.mxu0 0.0
        %961 = vmatpush1.msra.mxu0 0.0
        %962 = vmatprep.subr.mxu0 0.0
        %963 = vmatpush1.msra.mxu0 0.0
        %964 = vmatprep.subr.mxu0 0.0
        %965 = vmatpush1.msra.mxu0 0.0
        %966 = vmatprep.subr.mxu0 0.0
        %967 = vmatpush1.msra.mxu0 0.0
        %968 = vmatprep.subr.mxu0 0.0
        %969 = vmatpush1.msra.mxu0 0.0
        %970 = vmatprep.subr.mxu0 0.0
        %971 = vmatpush1.msra.mxu0 0.0
        %972 = vmatprep.subr.mxu0 0.0
        %973 = vmatpush1.msra.mxu0 0.0
        %974 = vmatprep.subr.mxu0 0.0
        %975 = vmatpush1.msra.mxu0 0.0
        %976 = vmatprep.subr.mxu0 0.0
        %977 = vmatpush1.msra.mxu0 0.0
        %978 = vmatprep.subr.mxu0 0.0
        %979 = vmatpush1.msra.mxu0 0.0
        %980 = vmatprep.subr.mxu0 0.0
        %981 = vmatpush1.msra.mxu0 0.0
        %982 = vmatprep.subr.mxu0 0.0
        %983 = vmatpush1.msra.mxu0 0.0
        %984 = vmatprep.subr.mxu0 0.0
        %985 = vmatpush1.msra.mxu0 0.0
        %986 = vmatprep.subr.mxu0 0.0
        %987 = vmatpush1.msra.mxu0 0.0
        %988 = vmatprep.subr.mxu0 0.0
        %989 = vmatpush1.msra.mxu0 0.0
        %990 = vmatprep.subr.mxu0 0.0
        %991 = vmatpush1.msra.mxu0 0.0
        %992 = vmatprep.subr.mxu0 0.0
        %993 = vmatpush1.msra.mxu0 0.0
        %994 = vmatprep.subr.mxu0 0.0
        %995 = vmatpush1.msra.mxu0 0.0
        %996 = vmatprep.subr.mxu0 0.0
        %997 = vmatpush1.msra.mxu0 0.0
        %998 = vmatprep.subr.mxu0 0.0
        %999 = vmatpush1.msra.mxu0 0.0
        %1000 = vmatprep.subr.mxu0 0.0
        %1001 = vmatpush1.msra.mxu0 0.0
        %1002 = vmatprep.subr.mxu0 0.0
        %1003 = vmatpush1.msra.mxu0 0.0
        %1004 = vmatprep.subr.mxu0 0.0
        %1005 = vmatpush1.msra.mxu0 0.0
        %1006 = vmatprep.subr.mxu0 0.0
        %1007 = vmatpush1.msra.mxu0 0.0
        %1008 = vmatprep.subr.mxu0 0.0
        %1009 = vmatpush1.msra.mxu0 0.0
        %1010 = vmatprep.subr.mxu0 0.0
        %1011 = vmatpush1.msra.mxu0 0.0
        %1012 = vmatprep.subr.mxu0 0.0
        %1013 = vmatpush1.msra.mxu0 0.0
        %1014 = vmatprep.subr.mxu0 0.0
        %1015 = vmatpush1.msra.mxu0 0.0
        %1016 = vmatprep.subr.mxu0 0.0
        %1017 = vmatpush1.msra.mxu0 0.0
        %1018 = vmatprep.mubr.f32.mxu0 0.0
        %1019 = vmatmul.mubr.f32.gmra.mrb[0].mxu0 %v952
        %v1020 = vpop.f32.mrb[0].mxu0
        %v1021 = vadd.f32 0.0, %v1020
        %v1022 = vpop.f32.mrb[0].mxu0
        %1023 = vdwg.mxu0
        %v1024 = vpack.c.bf16 %v1021, %v1021
        %v1025 = vpack.c.bf16 %v418, %v418
        %v1027 = vsel %vm423, %v1024, 0
        %v1030 = vsel %vm767, %v1025, 0
        %1032 = vmatprep.subr.bf16.mxu0 0
        %1033 = vmatpush1.bf16.msra.mxu0 %v1030
        %1034 = vmatprep.subr.bf16.mxu0 0
        %1035 = vmatpush1.bf16.msra.mxu0 0
        %1036 = vmatprep.subr.bf16.mxu0 0
        %1037 = vmatpush1.bf16.msra.mxu0 0
        %1038 = vmatprep.subr.bf16.mxu0 0
        %1039 = vmatpush1.bf16.msra.mxu0 0
        %1040 = vmatprep.subr.bf16.mxu0 0
        %1041 = vmatpush1.bf16.msra.mxu0 0
        %1042 = vmatprep.subr.bf16.mxu0 0
        %1043 = vmatpush1.bf16.msra.mxu0 0
        %1044 = vmatprep.subr.bf16.mxu0 0
        %1045 = vmatpush1.bf16.msra.mxu0 0
        %1046 = vmatprep.subr.bf16.mxu0 0
        %1047 = vmatpush1.bf16.msra.mxu0 0
        %1048 = vmatprep.subr.bf16.mxu0 0
        %1049 = vmatpush1.bf16.msra.mxu0 0
        %1050 = vmatprep.subr.bf16.mxu0 0
        %1051 = vmatpush1.bf16.msra.mxu0 0
        %1052 = vmatprep.subr.bf16.mxu0 0
        %1053 = vmatpush1.bf16.msra.mxu0 0
        %1054 = vmatprep.subr.bf16.mxu0 0
        %1055 = vmatpush1.bf16.msra.mxu0 0
        %1056 = vmatprep.subr.bf16.mxu0 0
        %1057 = vmatpush1.bf16.msra.mxu0 0
        %1058 = vmatprep.subr.bf16.mxu0 0
        %1059 = vmatpush1.bf16.msra.mxu0 0
        %1060 = vmatprep.subr.bf16.mxu0 0
        %1061 = vmatpush1.bf16.msra.mxu0 0
        %1062 = vmatprep.subr.bf16.mxu0 0
        %1063 = vmatpush1.bf16.msra.mxu0 0
        %1064 = vmatprep.mubr.bf16.mxu0 0
        %1065 = vmatmul.mubr.bf16.gmra.mrb[0].mxu0 %v1027
        %v1066 = vpop.f32.mrb[0].mxu0
        %v1067 = vadd.f32 0.0, %v1066
        %v1068 = vpop.f32.mrb[0].mxu0
        %v1069 = vpop.f32.mrb[0].mxu0
        %v1070 = vpop.f32.mrb[0].mxu0
        %1071 = vdwg.mxu0
        %v1072 = vadd.f32 %v852, %v1067
        %1073 = vrot.lane.b32.xlu0 %v410, 104
        %v1074 = vpop.permute.xlu0 %1073
        %1075 = vrot.lane.b32.xlu0 %v410, 72
        %v1076 = vpop.permute.xlu0 %1075
        %v1077 = vsel %vm423, %v1074, 0
        %v1079 = vsel %vm423, %v1076, 0
        %1081 = vmatprep.subr.mxu0 0.0
        %1082 = vmatpush1.xpose.msra.mxu0 %v1079
        %1083 = vmatprep.subr.mxu0 0.0
        %1084 = vmatpush1.xpose.msra.mxu0 0.0
        %1085 = vmatprep.subr.mxu0 0.0
        %1086 = vmatpush1.xpose.msra.mxu0 0.0
        %1087 = vmatprep.subr.mxu0 0.0
        %1088 = vmatpush1.xpose.msra.mxu0 0.0
        %1089 = vmatprep.subr.mxu0 0.0
        %1090 = vmatpush1.xpose.msra.mxu0 0.0
        %1091 = vmatprep.subr.mxu0 0.0
        %1092 = vmatpush1.xpose.msra.mxu0 0.0
        %1093 = vmatprep.subr.mxu0 0.0
        %1094 = vmatpush1.xpose.msra.mxu0 0.0
        %1095 = vmatprep.subr.mxu0 0.0
        %1096 = vmatpush1.xpose.msra.mxu0 0.0
        %1097 = vmatprep.subr.mxu0 0.0
        %1098 = vmatpush1.xpose.msra.mxu0 0.0
        %1099 = vmatprep.subr.mxu0 0.0
        %1100 = vmatpush1.xpose.msra.mxu0 0.0
        %1101 = vmatprep.subr.mxu0 0.0
        %1102 = vmatpush1.xpose.msra.mxu0 0.0
        %1103 = vmatprep.subr.mxu0 0.0
        %1104 = vmatpush1.xpose.msra.mxu0 0.0
        %1105 = vmatprep.subr.mxu0 0.0
        %1106 = vmatpush1.xpose.msra.mxu0 0.0
        %1107 = vmatprep.subr.mxu0 0.0
        %1108 = vmatpush1.xpose.msra.mxu0 0.0
        %1109 = vmatprep.subr.mxu0 0.0
        %1110 = vmatpush1.xpose.msra.mxu0 0.0
        %1111 = vmatprep.subr.mxu0 0.0
        %1112 = vmatpush1.xpose.msra.mxu0 0.0
        %1113 = vmatprep.subr.mxu0 0.0
        %1114 = vmatpush1.xpose.msra.mxu0 0.0
        %1115 = vmatprep.subr.mxu0 0.0
        %1116 = vmatpush1.xpose.msra.mxu0 0.0
        %1117 = vmatprep.subr.mxu0 0.0
        %1118 = vmatpush1.xpose.msra.mxu0 0.0
        %1119 = vmatprep.subr.mxu0 0.0
        %1120 = vmatpush1.xpose.msra.mxu0 0.0
        %1121 = vmatprep.subr.mxu0 0.0
        %1122 = vmatpush1.xpose.msra.mxu0 0.0
        %1123 = vmatprep.subr.mxu0 0.0
        %1124 = vmatpush1.xpose.msra.mxu0 0.0
        %1125 = vmatprep.subr.mxu0 0.0
        %1126 = vmatpush1.xpose.msra.mxu0 0.0
        %1127 = vmatprep.subr.mxu0 0.0
        %1128 = vmatpush1.xpose.msra.mxu0 0.0
        %1129 = vmatprep.subr.mxu0 0.0
        %1130 = vmatpush1.xpose.msra.mxu0 0.0
        %1131 = vmatprep.subr.mxu0 0.0
        %1132 = vmatpush1.xpose.msra.mxu0 0.0
        %1133 = vmatprep.subr.mxu0 0.0
        %1134 = vmatpush1.xpose.msra.mxu0 0.0
        %1135 = vmatprep.subr.mxu0 0.0
        %1136 = vmatpush1.xpose.msra.mxu0 0.0
        %1137 = vmatprep.subr.mxu0 0.0
        %1138 = vmatpush1.xpose.msra.mxu0 0.0
        %1139 = vmatprep.subr.mxu0 0.0
        %1140 = vmatpush1.xpose.msra.mxu0 0.0
        %1141 = vmatprep.subr.mxu0 0.0
        %1142 = vmatpush1.xpose.msra.mxu0 0.0
        %1143 = vmatprep.subr.mxu0 0.0
        %1144 = vmatpush1.xpose.msra.mxu0 0.0
        %1145 = vmatprep.mubr.f32.mxu0 0.0
        %1146 = vmatmul.mubr.f32.gmra.mrb[0].mxu0 %v1077
        %v1147 = vpop.f32.mrb[0].mxu0
        %v1148 = vadd.f32 0.0, %v1147
        %v1149 = vpop.f32.mrb[0].mxu0
        %1150 = vdwg.mxu0
        %v1151 = vmul.f32 %v1148, 0.35355338
        %v1152 = vadd.f32 %v1151, %v503
        %v1153 = vsel %vm423, %v1152, -inf
        %1154 = vmax.xlane.f32.xlu0 %v1153
        %v1155 = vpop.xlane.xlu0 %1154
        %v1156 = vsub.f32 %v1152, %v1155
        %v1157 = vmul.f32 %v1156, 1.442695
        %v1158 = vpow.pop %v1157
        %v1159 = vsel %vm423, %v1158, 0.0
        %1160 = vadd.xlane.f32.xlu0 %v1159
        %v1161 = vpop.xlane.xlu0 %1160
        %v1162 = vrcp.pop %v1161
        %v1163 = vmul.f32 %v1158, %v1162
        %1164 = vrot.lane.b32.xlu0 %v410, 40
        %v1165 = vpop.permute.xlu0 %1164
        %v1168 = vsel %vm423, %v1163, 0
        %1170 = vmatprep.subr.mxu0 0.0
        %1171 = vmatpush1.msra.mxu0 %v1165
        %1172 = vmatprep.subr.mxu0 0.0
        %1173 = vmatpush1.msra.mxu0 0.0
        %1174 = vmatprep.subr.mxu0 0.0
        %1175 = vmatpush1.msra.mxu0 0.0
        %1176 = vmatprep.subr.mxu0 0.0
        %1177 = vmatpush1.msra.mxu0 0.0
        %1178 = vmatprep.subr.mxu0 0.0
        %1179 = vmatpush1.msra.mxu0 0.0
        %1180 = vmatprep.subr.mxu0 0.0
        %1181 = vmatpush1.msra.mxu0 0.0
        %1182 = vmatprep.subr.mxu0 0.0
        %1183 = vmatpush1.msra.mxu0 0.0
        %1184 = vmatprep.subr.mxu0 0.0
        %1185 = vmatpush1.msra.mxu0 0.0
        %1186 = vmatprep.subr.mxu0 0.0
        %1187 = vmatpush1.msra.mxu0 0.0
        %1188 = vmatprep.subr.mxu0 0.0
        %1189 = vmatpush1.msra.mxu0 0.0
        %1190 = vmatprep.subr.mxu0 0.0
        %1191 = vmatpush1.msra.mxu0 0.0
        %1192 = vmatprep.subr.mxu0 0.0
        %1193 = vmatpush1.msra.mxu0 0.0
        %1194 = vmatprep.subr.mxu0 0.0
        %1195 = vmatpush1.msra.mxu0 0.0
        %1196 = vmatprep.subr.mxu0 0.0
        %1197 = vmatpush1.msra.mxu0 0.0
        %1198 = vmatprep.subr.mxu0 0.0
        %1199 = vmatpush1.msra.mxu0 0.0
        %1200 = vmatprep.subr.mxu0 0.0
        %1201 = vmatpush1.msra.mxu0 0.0
        %1202 = vmatprep.subr.mxu0 0.0
        %1203 = vmatpush1.msra.mxu0 0.0
        %1204 = vmatprep.subr.mxu0 0.0
        %1205 = vmatpush1.msra.mxu0 0.0
        %1206 = vmatprep.subr.mxu0 0.0
        %1207 = vmatpush1.msra.mxu0 0.0
        %1208 = vmatprep.subr.mxu0 0.0
        %1209 = vmatpush1.msra.mxu0 0.0
        %1210 = vmatprep.subr.mxu0 0.0
        %1211 = vmatpush1.msra.mxu0 0.0
        %1212 = vmatprep.subr.mxu0 0.0
        %1213 = vmatpush1.msra.mxu0 0.0
        %1214 = vmatprep.subr.mxu0 0.0
        %1215 = vmatpush1.msra.mxu0 0.0
        %1216 = vmatprep.subr.mxu0 0.0
        %1217 = vmatpush1.msra.mxu0 0.0
        %1218 = vmatprep.subr.mxu0 0.0
        %1219 = vmatpush1.msra.mxu0 0.0
        %1220 = vmatprep.subr.mxu0 0.0
        %1221 = vmatpush1.msra.mxu0 0.0
        %1222 = vmatprep.subr.mxu0 0.0
        %1223 = vmatpush1.msra.mxu0 0.0
        %1224 = vmatprep.subr.mxu0 0.0
        %1225 = vmatpush1.msra.mxu0 0.0
        %1226 = vmatprep.subr.mxu0 0.0
        %1227 = vmatpush1.msra.mxu0 0.0
        %1228 = vmatprep.subr.mxu0 0.0
        %1229 = vmatpush1.msra.mxu0 0.0
        %1230 = vmatprep.subr.mxu0 0.0
        %1231 = vmatpush1.msra.mxu0 0.0
        %1232 = vmatprep.subr.mxu0 0.0
        %1233 = vmatpush1.msra.mxu0 0.0
        %1234 = vmatprep.mubr.f32.mxu0 0.0
        %1235 = vmatmul.mubr.f32.gmra.mrb[0].mxu0 %v1168
        %v1236 = vpop.f32.mrb[0].mxu0
        %v1237 = vadd.f32 0.0, %v1236
        %v1238 = vpop.f32.mrb[0].mxu0
        %1239 = vdwg.mxu0
        %v1240 = vpack.c.bf16 %v1237, %v1237
        %v1241 = vpack.c.bf16 %v419, %v419
        %v1243 = vsel %vm423, %v1240, 0
        %v1246 = vsel %vm767, %v1241, 0
        %1248 = vmatprep.subr.bf16.mxu0 0
        %1249 = vmatpush1.bf16.msra.mxu0 %v1246
        %1250 = vmatprep.subr.bf16.mxu0 0
        %1251 = vmatpush1.bf16.msra.mxu0 0
        %1252 = vmatprep.subr.bf16.mxu0 0
        %1253 = vmatpush1.bf16.msra.mxu0 0
        %1254 = vmatprep.subr.bf16.mxu0 0
        %1255 = vmatpush1.bf16.msra.mxu0 0
        %1256 = vmatprep.subr.bf16.mxu0 0
        %1257 = vmatpush1.bf16.msra.mxu0 0
        %1258 = vmatprep.subr.bf16.mxu0 0
        %1259 = vmatpush1.bf16.msra.mxu0 0
        %1260 = vmatprep.subr.bf16.mxu0 0
        %1261 = vmatpush1.bf16.msra.mxu0 0
        %1262 = vmatprep.subr.bf16.mxu0 0
        %1263 = vmatpush1.bf16.msra.mxu0 0
        %1264 = vmatprep.subr.bf16.mxu0 0
        %1265 = vmatpush1.bf16.msra.mxu0 0
        %1266 = vmatprep.subr.bf16.mxu0 0
        %1267 = vmatpush1.bf16.msra.mxu0 0
        %1268 = vmatprep.subr.bf16.mxu0 0
        %1269 = vmatpush1.bf16.msra.mxu0 0
        %1270 = vmatprep.subr.bf16.mxu0 0
        %1271 = vmatpush1.bf16.msra.mxu0 0
        %1272 = vmatprep.subr.bf16.mxu0 0
        %1273 = vmatpush1.bf16.msra.mxu0 0
        %1274 = vmatprep.subr.bf16.mxu0 0
        %1275 = vmatpush1.bf16.msra.mxu0 0
        %1276 = vmatprep.subr.bf16.mxu0 0
        %1277 = vmatpush1.bf16.msra.mxu0 0
        %1278 = vmatprep.subr.bf16.mxu0 0
        %1279 = vmatpush1.bf16.msra.mxu0 0
        %1280 = vmatprep.mubr.bf16.mxu0 0
        %1281 = vmatmul.mubr.bf16.gmra.mrb[0].mxu0 %v1243
        %v1282 = vpop.f32.mrb[0].mxu0
        %v1283 = vadd.f32 0.0, %v1282
        %v1284 = vpop.f32.mrb[0].mxu0
        %v1285 = vpop.f32.mrb[0].mxu0
        %v1286 = vpop.f32.mrb[0].mxu0
        %1287 = vdwg.mxu0
        %v1288 = vadd.f32 %v1072, %v1283
        %v1289 = vld [vmem:[%s5] sm:$0x1]
        %v1291 = vlaneseq
        %v1292 = vshrl.u32 %v1291, 7
        %v1293 = vsub.s32 0, %v1292
        %v1294 = vrot.slane %v1289, %v1293
        %v1296 = vadd.f32 %v1288, %v1294
        %v1297 = vadd.f32 %v356, %v1296
        %v1298 = vld [vmem:[#allocation4] sm:$0x1]
        %v1299 = vld [vmem:[#allocation6] sm:$0x1]
        %v1300 = vsel %vm371, %v1297, 0.0
        %1301 = vadd.xlane.f32.xlu0 %v1300
        %v1302 = vpop.xlane.xlu0 %1301
        %v1303 = vrcp.pop 32.0
        %v1304 = vmul.f32 %v1302, %v1303
        %v1305 = vsub.f32 %v1297, %v1304
        %v1306 = vmul.f32 %v1305, %v1305
        %v1307 = vsel %vm371, %v1306, 0.0
        %1308 = vadd.xlane.f32.xlu0 %v1307
        %v1309 = vpop.xlane.xlu0 %1308
        %v1310 = vmul.f32 %v1309, %v1303
        %v1311 = vadd.f32 %v1310, 1e-05
        %v1312 = vrsqrt.pop %v1311
        %v1313 = vmul.f32 %v1305, %v1312
        %v1315 = vlaneseq
        %v1316 = vshrl.u32 %v1315, 7
        %v1317 = vsub.s32 0, %v1316
        %v1318 = vrot.slane %v1298, %v1317
        %v1320 = vmul.f32 %v1313, %v1318
        %v1322 = vlaneseq
        %v1323 = vshrl.u32 %v1322, 7
        %v1324 = vsub.s32 0, %v1323
        %v1325 = vrot.slane %v1299, %v1324
        %v1327 = vadd.f32 %v1320, %v1325
        %1328 = vst.msk [vmem:[%s354] sm:$0xff] %vm371, %v1327
        %p1329 = scmp.lt.s32.totalorder %s21, 1
        %s1330 = scalar_select %p1329, %s21, 1
        %s1331 = smul.addr %s1330, 8
        %s1332 = scalar_lea.vmem %s8, %s1331
        // Predicated region
        $region65: #{translate_transformer_forward.12} parent=51 // pred_check
          %p1333 = pneg %p217
        $region66: #{translate_transformer_forward.12} parent=51 // pred_check_branch
          %1335 = sbr.rel (%p1333) target = $region68
        $region67: #{translate_transformer_forward.12} parent=51 // pred_region
          _
        $region68: #{translate_transformer_forward.12} parent=51 // pred_fallthru
          _
      $region52: #{translate_transformer_forward.12} parent=5 // pred_fallthru
        _
      %p1336 = scmp.le.s32.totalorder 2, %s16
      // Predicated region
      $region69: #{translate_transformer_forward.12} parent=5 // pred_check
        %p1337 = pneg %p1336
      $region70: #{translate_transformer_forward.12} parent=5 // pred_check_branch
        %1339 = sbr.rel (%p1337) target = $region72
      $region71: #{translate_transformer_forward.12} parent=5 // pred_region
        %s1340 = ssub.s32 %s16, 2
        // Predicated region
        $region73: #{translate_transformer_forward.12} parent=71 // pred_check
          %p1341 = pneg %p223
        $region74: #{translate_transformer_forward.12} parent=71 // pred_check_branch
          %1343 = sbr.rel (%p1341) target = $region76
        $region75: #{translate_transformer_forward.12} parent=71 // pred_region
          %p1344 = scmp.lt.s32.totalorder %s22, 1
          %s1345 = scalar_select %p1344, %s22, 1
          %s1346 = smul.addr %s1345, 8
          %s1347 = scalar_lea.vmem %s8, %s1346
        $region76: #{translate_transformer_forward.12} parent=71 // pred_fallthru
          _
      $region72: #{translate_transformer_forward.12} parent=5 // pred_fallthru
        _
    $region6: #{translate_transformer_forward.12} parent=1 // loop_footer
      %s20 = sadd.s32 1, %s16
    $region7: #{translate_transformer_forward.12} parent=1 // loop_footer_branch
      %15 = sbr.rel target = $region3
    $region8: #{translate_transformer_forward.12} parent=1 // loop_exit
      _
    %1348 = vsyncpa [#allocation3], 1
    %s1349 = scalar_lea.sflag [#allocation3], 1
    %1350 = vsyncpa %s1349, 1
    %1351 = vsyncpa [#allocation5], 1

// kernel: translate_transformer_forward.16
$region0: #{translate_transformer_forward.16}
  #allocation0 [shape = 'u32[]', space=smem, size = 0x4, offset = 0x4, fixed_abs, tag = 'smem constant byte address 0x4 - core index']
  #allocation1 [shape = 'u32[144,128]{1,0:T(1,128)}', space=vmem, size = 0x12000, scoped, tag = 'internal scratch']
  %s0 = inlined_call_operand.vmem [shape: f32[2,8,32], index: 0, kind: input, shape index: {}]
  %s1 = inlined_call_operand.vmem [shape: f32[1,32], index: 1, kind: input, shape index: {}]
  %s2 = inlined_call_operand.vmem [shape: f32[1,32], index: 2, kind: input, shape index: {}]
  %s3 = inlined_call_operand.vmem [shape: f32[2,8,32], index: 3, kind: output, shape index: {}]
  %s4 = sld [smem:[#allocation0]]
  $region45: #{translate_transformer_forward.16} parent=0
    _
  %s6 = ssub.s32 1, %s4
  %s7 = scalar_select 0, %s6, %s4
  loop: start=0, step=1, limit=4
  $region2: #{translate_transformer_forward.16} parent=0 // loop_pre_header
    _
  $region3: #{translate_transformer_forward.16} parent=0 // loop_header
    %s9 = sphi 0, %s13
    %p10 = scmp.ge.s32.totalorder %s9, 4
    %s19 = sphi 0, %s21
    %s22 = sphi 0, %s19
    %s23 = sphi 0, %s22
    %s39 = sphi 0, %s23
    %s43 = sphi 0, %s43
    %s45 = sphi 0, %s43
    %s46 = sphi 0, %s45
    %s60 = sphi 0, %s46
    %s64 = sphi 0, %s64
    %s66 = sphi 0, %s64
    %s67 = sphi 0, %s66
    %s81 = sphi 0, %s67
    %s87 = sphi 0, %s89
    %s90 = sphi 0, %s87
    %s91 = sphi 0, %s90
    %s107 = sphi 0, %s91
  $region4: #{translate_transformer_forward.16} parent=0 // loop_header_branch
    %12 = sbr.rel (%p10) target = $region8
  $region5: #{translate_transformer_forward.16} parent=0 // loop_body
    %s14 = ssub.s32 %s9, 1
    %s15 = ssub.s32 %s9, 2
    %s16 = sadd.s32 %s9, 1
    %s17 = ssub.s32 %s9, %s16
    %p18 = scmp.eq.s32.totalorder %s17, 0
    %s20 = sadd.s32 %s19, 1
    %s21 = scalar_select %p18, %s19, %s20
    %p24 = pneg %p18
    %p25 = scmp.eq.s32.totalorder %s9, 1
    %p26 = por %p24, %p25
    %p27 = scmp.ne.s32.totalorder %s19, %s22
    %p28 = scmp.eq.s32.totalorder %s9, 0
    %p29 = por %p27, %p28
    %p30 = scmp.ne.s32.totalorder %s19, %s22
    %p31 = scmp.eq.s32.totalorder %s14, 1
    %p32 = por %p30, %p31
    %p33 = scmp.ne.s32.totalorder %s22, %s23
    %p34 = scmp.eq.s32.totalorder %s14, 0
    %p35 = por %p33, %p34
    %p36 = scmp.ne.s32.totalorder %s22, %s23
    %p37 = scmp.eq.s32.totalorder %s15, 1
    %p38 = por %p36, %p37
    %p40 = scmp.ne.s32.totalorder %s23, %s39
    %p41 = scmp.eq.s32.totalorder %s15, 0
    %p42 = por %p40, %p41
    %s44 = sadd.s32 %s43, 1
    %p47 = scmp.eq.s32.totalorder %s9, 1
    %p48 = scmp.ne.s32.totalorder %s43, %s45
    %p49 = scmp.eq.s32.totalorder %s9, 0
    %p50 = por %p48, %p49
    %p51 = scmp.ne.s32.totalorder %s43, %s45
    %p52 = scmp.eq.s32.totalorder %s14, 1
    %p53 = por %p51, %p52
    %p54 = scmp.ne.s32.totalorder %s45, %s46
    %p55 = scmp.eq.s32.totalorder %s14, 0
    %p56 = por %p54, %p55
    %p57 = scmp.ne.s32.totalorder %s45, %s46
    %p58 = scmp.eq.s32.totalorder %s15, 1
    %p59 = por %p57, %p58
    %p61 = scmp.ne.s32.totalorder %s46, %s60
    %p62 = scmp.eq.s32.totalorder %s15, 0
    %p63 = por %p61, %p62
    %s65 = sadd.s32 %s64, 1
    %p68 = scmp.eq.s32.totalorder %s9, 1
    %p69 = scmp.ne.s32.totalorder %s64, %s66
    %p70 = scmp.eq.s32.totalorder %s9, 0
    %p71 = por %p69, %p70
    %p72 = scmp.ne.s32.totalorder %s64, %s66
    %p73 = scmp.eq.s32.totalorder %s14, 1
    %p74 = por %p72, %p73
    %p75 = scmp.ne.s32.totalorder %s66, %s67
    %p76 = scmp.eq.s32.totalorder %s14, 0
    %p77 = por %p75, %p76
    %p78 = scmp.ne.s32.totalorder %s66, %s67
    %p79 = scmp.eq.s32.totalorder %s15, 1
    %p80 = por %p78, %p79
    %p82 = scmp.ne.s32.totalorder %s67, %s81
    %p83 = scmp.eq.s32.totalorder %s15, 0
    %p84 = por %p82, %p83
    %s85 = ssub.s32 %s9, %s16
    %p86 = scmp.eq.s32.totalorder %s85, 0
    %s88 = sadd.s32 %s87, 1
    %s89 = scalar_select %p86, %s87, %s88
    %p92 = pneg %p86
    %p93 = scmp.eq.s32.totalorder %s9, 1
    %p94 = por %p92, %p93
    %p95 = scmp.ne.s32.totalorder %s87, %s90
    %p96 = scmp.eq.s32.totalorder %s9, 0
    %p97 = por %p95, %p96
    %p98 = scmp.ne.s32.totalorder %s87, %s90
    %p99 = scmp.eq.s32.totalorder %s14, 1
    %p100 = por %p98, %p99
    %p101 = scmp.ne.s32.totalorder %s90, %s91
    %p102 = scmp.eq.s32.totalorder %s14, 0
    %p103 = por %p101, %p102
    %p104 = scmp.ne.s32.totalorder %s90, %s91
    %p105 = scmp.eq.s32.totalorder %s15, 1
    %p106 = por %p104, %p105
    %p108 = scmp.ne.s32.totalorder %s91, %s107
    %p109 = scmp.eq.s32.totalorder %s15, 0
    %p110 = por %p108, %p109
    %p111 = scmp.le.s32.totalorder 1, %s9
    %p112 = scmp.lt.s32.totalorder %s9, 3
    %p113 = pnand %p111, %p112
    %p114 = pneg %p113
    // Predicated region
    $region9: #{translate_transformer_forward.16} parent=5 // pred_check
      _
    $region10: #{translate_transformer_forward.16} parent=5 // pred_check_branch
      %116 = sbr.rel (%p113) target = $region12
    $region11: #{translate_transformer_forward.16} parent=5 // pred_region
      %s117 = ssub.s32 %s9, 1
      // Predicated region
      $region13: #{translate_transformer_forward.16} parent=11 // pred_check
        %p118 = pneg %p56
      $region14: #{translate_transformer_forward.16} parent=11 // pred_check_branch
        %120 = sbr.rel (%p118) target = $region16
      $region15: #{translate_transformer_forward.16} parent=11 // pred_region
        _
      $region16: #{translate_transformer_forward.16} parent=11 // pred_fallthru
        _
      // Predicated region
      $region17: #{translate_transformer_forward.16} parent=11 // pred_check
        %p121 = pneg %p77
      $region18: #{translate_transformer_forward.16} parent=11 // pred_check_branch
        %123 = sbr.rel (%p121) target = $region20
      $region19: #{translate_transformer_forward.16} parent=11 // pred_region
        _
      $region20: #{translate_transformer_forward.16} parent=11 // pred_fallthru
        _
    $region12: #{translate_transformer_forward.16} parent=5 // pred_fallthru
      _
    %p124 = scmp.lt.s32.totalorder %s9, 2
    // Predicated region
    $region21: #{translate_transformer_forward.16} parent=5 // pred_check
      %p125 = pneg %p124
    $region22: #{translate_transformer_forward.16} parent=5 // pred_check_branch
      %127 = sbr.rel (%p125) target = $region24
    $region23: #{translate_transformer_forward.16} parent=5 // pred_region
      // Predicated region
      $region25: #{translate_transformer_forward.16} parent=23 // pred_check
        %p128 = pneg %p29
      $region26: #{translate_transformer_forward.16} parent=23 // pred_check_branch
        %130 = sbr.rel (%p128) target = $region28
      $region27: #{translate_transformer_forward.16} parent=23 // pred_region
        %p131 = scmp.lt.s32.totalorder %s9, 1
        %s132 = scalar_select %p131, %s9, 1
        %s133 = smul.addr %s132, 8
        %s134 = scalar_lea.vmem %s0, %s133
      $region28: #{translate_transformer_forward.16} parent=23 // pred_fallthru
        _
    $region24: #{translate_transformer_forward.16} parent=5 // pred_fallthru
      _
    %p135 = scmp.le.s32.totalorder 1, %s9
    %p136 = scmp.lt.s32.totalorder %s9, 3
    %p137 = pnand %p135, %p136
    %p138 = pneg %p137
    // Predicated region
    $region29: #{translate_transformer_forward.16} parent=5 // pred_check
      _
    $region30: #{translate_transformer_forward.16} parent=5 // pred_check_branch
      %140 = sbr.rel (%p137) target = $region32
    $region31: #{translate_transformer_forward.16} parent=5 // pred_region
      %s141 = ssub.s32 %s9, 1
      %p142 = scmp.lt.s32.totalorder %s14, 1
      %s143 = scalar_select %p142, %s14, 1
      %s144 = smul.addr %s143, 8
      %s145 = scalar_lea.vmem %s0, %s144
      %p146 = pneg %p35
      %p147 = pneg %p32
      %p148 = pneg %p56
      %p149 = pneg %p53
      %p150 = pneg %p77
      %p151 = pneg %p74
      %p152 = pneg %p103
      %p153 = pneg %p100
      %p154 = scmp.lt.s32.totalorder %s14, 1
      %s155 = scalar_select %p154, %s14, 1
      %s156 = smul.addr %s155, 8
      %s157 = scalar_lea.vmem %s3, %s156
      %p158 = scmp.lt.s32.totalorder %s14, 1
      %s159 = scalar_select %p158, %s14, 1
      %s160 = smul.addr %s159, 8
      %s161 = scalar_lea.vmem %s0, %s160
      %p162 = scmp.lt.s32.totalorder %s14, 1
      %s163 = scalar_select %p162, %s14, 1
      %s164 = smul.addr %s163, 8
      %s165 = scalar_lea.vmem %s3, %s164
      %v166 = vld [vmem:[%s161] sm:$0xff]
      %v167 = vld [vmem:[%s1] sm:$0x1]
      %v168 = vld [vmem:[%s2] sm:$0x1]
      %vm169 = vcmask 261120
      %v170 = vsel %vm169, %v166, 0.0
      %171 = vadd.xlane.f32.xlu0 %v170
      %v172 = vpop.xlane.xlu0 %171
      %v173 = vrcp.pop 32.0
      %v174 = vmul.f32 %v172, %v173
      %v175 = vsub.f32 %v166, %v174
      %v176 = vmul.f32 %v175, %v175
      %v177 = vsel %vm169, %v176, 0.0
      %178 = vadd.xlane.f32.xlu0 %v177
      %v179 = vpop.xlane.xlu0 %178
      %v180 = vmul.f32 %v179, %v173
      %v181 = vadd.f32 %v180, 1e-05
      %v182 = vrsqrt.pop %v181
      %v183 = vmul.f32 %v175, %v182
      %v185 = vlaneseq
      %v186 = vshrl.u32 %v185, 7
      %v187 = vsub.s32 0, %v186
      %v188 = vrot.slane %v167, %v187
      %v190 = vmul.f32 %v183, %v188
      %v192 = vlaneseq
      %v193 = vshrl.u32 %v192, 7
      %v194 = vsub.s32 0, %v193
      %v195 = vrot.slane %v168, %v194
      %v197 = vadd.f32 %v190, %v195
      %198 = vst.msk [vmem:[%s165] sm:$0xff] %vm169, %v197
      %p199 = scmp.lt.s32.totalorder %s14, 1
      %s200 = scalar_select %p199, %s14, 1
      %s201 = smul.addr %s200, 8
      %s202 = scalar_lea.vmem %s3, %s201
      // Predicated region
      $region33: #{translate_transformer_forward.16} parent=31 // pred_check
        %p203 = pneg %p100
      $region34: #{translate_transformer_forward.16} parent=31 // pred_check_branch
        %205 = sbr.rel (%p203) target = $region36
      $region35: #{translate_transformer_forward.16} parent=31 // pred_region
        _
      $region36: #{translate_transformer_forward.16} parent=31 // pred_fallthru
        _
    $region32: #{translate_transformer_forward.16} parent=5 // pred_fallthru
      _
    %p206 = scmp.le.s32.totalorder 2, %s9
    // Predicated region
    $region37: #{translate_transformer_forward.16} parent=5 // pred_check
      %p207 = pneg %p206
    $region38: #{translate_transformer_forward.16} parent=5 // pred_check_branch
      %209 = sbr.rel (%p207) target = $region40
    $region39: #{translate_transformer_forward.16} parent=5 // pred_region
      %s210 = ssub.s32 %s9, 2
      // Predicated region
      $region41: #{translate_transformer_forward.16} parent=39 // pred_check
        %p211 = pneg %p106
      $region42: #{translate_transformer_forward.16} parent=39 // pred_check_branch
        %213 = sbr.rel (%p211) target = $region44
      $region43: #{translate_transformer_forward.16} parent=39 // pred_region
        %p214 = scmp.lt.s32.totalorder %s15, 1
        %s215 = scalar_select %p214, %s15, 1
        %s216 = smul.addr %s215, 8
        %s217 = scalar_lea.vmem %s3, %s216
      $region44: #{translate_transformer_forward.16} parent=39 // pred_fallthru
        _
    $region40: #{translate_transformer_forward.16} parent=5 // pred_fallthru
      _
  $region6: #{translate_transformer_forward.16} parent=0 // loop_footer
    %s13 = sadd.s32 1, %s9
  $region7: #{translate_transformer_forward.16} parent=0 // loop_footer_branch
    %8 = sbr.rel target = $region3
  $region8: #{translate_transformer_forward.16} parent=0 // loop_exit
    _

// kernel: translate_transformer_forward.13
$region0: #{translate_transformer_forward.13}
  #allocation0 [shape = 'u32[]', space=smem, size = 0x4, offset = 0x4, fixed_abs, tag = 'smem constant byte address 0x4 - core index']
  #allocation1 [shape = 'u32[144,128]{1,0:T(1,128)}', space=vmem, size = 0x12000, scoped, tag = 'internal scratch']
  %s0 = inlined_call_operand.vmem [shape: f32[2,8,32], index: 0, kind: input, shape index: {}]
  %s1 = inlined_call_operand.vmem [shape: f32[32,2048], index: 1, kind: input, shape index: {}]
  %s2 = inlined_call_operand.vmem [shape: f32[1,2048], index: 2, kind: input, shape index: {}]
  %s3 = inlined_call_operand.vmem [shape: f32[2048,32], index: 3, kind: input, shape index: {}]
  %s4 = inlined_call_operand.vmem [shape: f32[1,32], index: 4, kind: input, shape index: {}]
  %s5 = inlined_call_operand.vmem [shape: f32[1,32], index: 5, kind: input, shape index: {}]
  %s6 = inlined_call_operand.vmem [shape: f32[1,32], index: 6, kind: input, shape index: {}]
  %s7 = inlined_call_operand.vmem [shape: f32[2,8,32], index: 7, kind: output, shape index: {}]
  %s8 = sld [smem:[#allocation0]]
  $region61: #{translate_transformer_forward.13} parent=0
    _
  %s10 = ssub.s32 1, %s8
  %s11 = scalar_select 0, %s10, %s8
  loop: start=0, step=1, limit=4
  $region2: #{translate_transformer_forward.13} parent=0 // loop_pre_header
    _
  $region3: #{translate_transformer_forward.13} parent=0 // loop_header
    %s13 = sphi 0, %s17
    %p14 = scmp.ge.s32.totalorder %s13, 4
    %s23 = sphi 0, %s25
    %s26 = sphi 0, %s23
    %s27 = sphi 0, %s26
    %s43 = sphi 0, %s27
    %s47 = sphi 0, %s47
    %s49 = sphi 0, %s47
    %s50 = sphi 0, %s49
    %s64 = sphi 0, %s50
    %s68 = sphi 0, %s68
    %s70 = sphi 0, %s68
    %s71 = sphi 0, %s70
    %s85 = sphi 0, %s71
    %s89 = sphi 0, %s89
    %s91 = sphi 0, %s89
    %s92 = sphi 0, %s91
    %s106 = sphi 0, %s92
    %s110 = sphi 0, %s110
    %s112 = sphi 0, %s110
    %s113 = sphi 0, %s112
    %s127 = sphi 0, %s113
    %s131 = sphi 0, %s131
    %s133 = sphi 0, %s131
    %s134 = sphi 0, %s133
    %s148 = sphi 0, %s134
    %s152 = sphi 0, %s152
    %s154 = sphi 0, %s152
    %s155 = sphi 0, %s154
    %s169 = sphi 0, %s155
    %s175 = sphi 0, %s177
    %s178 = sphi 0, %s175
    %s179 = sphi 0, %s178
    %s195 = sphi 0, %s179
  $region4: #{translate_transformer_forward.13} parent=0 // loop_header_branch
    %16 = sbr.rel (%p14) target = $region8
  $region5: #{translate_transformer_forward.13} parent=0 // loop_body
    %s18 = ssub.s32 %s13, 1
    %s19 = ssub.s32 %s13, 2
    %s20 = sadd.s32 %s13, 1
    %s21 = ssub.s32 %s13, %s20
    %p22 = scmp.eq.s32.totalorder %s21, 0
    %s24 = sadd.s32 %s23, 1
    %s25 = scalar_select %p22, %s23, %s24
    %p28 = pneg %p22
    %p29 = scmp.eq.s32.totalorder %s13, 1
    %p30 = por %p28, %p29
    %p31 = scmp.ne.s32.totalorder %s23, %s26
    %p32 = scmp.eq.s32.totalorder %s13, 0
    %p33 = por %p31, %p32
    %p34 = scmp.ne.s32.totalorder %s23, %s26
    %p35 = scmp.eq.s32.totalorder %s18, 1
    %p36 = por %p34, %p35
    %p37 = scmp.ne.s32.totalorder %s26, %s27
    %p38 = scmp.eq.s32.totalorder %s18, 0
    %p39 = por %p37, %p38
    %p40 = scmp.ne.s32.totalorder %s26, %s27
    %p41 = scmp.eq.s32.totalorder %s19, 1
    %p42 = por %p40, %p41
    %p44 = scmp.ne.s32.totalorder %s27, %s43
    %p45 = scmp.eq.s32.totalorder %s19, 0
    %p46 = por %p44, %p45
    %s48 = sadd.s32 %s47, 1
    %p51 = scmp.eq.s32.totalorder %s13, 1
    %p52 = scmp.ne.s32.totalorder %s47, %s49
    %p53 = scmp.eq.s32.totalorder %s13, 0
    %p54 = por %p52, %p53
    %p55 = scmp.ne.s32.totalorder %s47, %s49
    %p56 = scmp.eq.s32.totalorder %s18, 1
    %p57 = por %p55, %p56
    %p58 = scmp.ne.s32.totalorder %s49, %s50
    %p59 = scmp.eq.s32.totalorder %s18, 0
    %p60 = por %p58, %p59
    %p61 = scmp.ne.s32.totalorder %s49, %s50
    %p62 = scmp.eq.s32.totalorder %s19, 1
    %p63 = por %p61, %p62
    %p65 = scmp.ne.s32.totalorder %s50, %s64
    %p66 = scmp.eq.s32.totalorder %s19, 0
    %p67 = por %p65, %p66
    %s69 = sadd.s32 %s68, 1
    %p72 = scmp.eq.s32.totalorder %s13, 1
    %p73 = scmp.ne.s32.totalorder %s68, %s70
    %p74 = scmp.eq.s32.totalorder %s13, 0
    %p75 = por %p73, %p74
    %p76 = scmp.ne.s32.totalorder %s68, %s70
    %p77 = scmp.eq.s32.totalorder %s18, 1
    %p78 = por %p76, %p77
    %p79 = scmp.ne.s32.totalorder %s70, %s71
    %p80 = scmp.eq.s32.totalorder %s18, 0
    %p81 = por %p79, %p80
    %p82 = scmp.ne.s32.totalorder %s70, %s71
    %p83 = scmp.eq.s32.totalorder %s19, 1
    %p84 = por %p82, %p83
    %p86 = scmp.ne.s32.totalorder %s71, %s85
    %p87 = scmp.eq.s32.totalorder %s19, 0
    %p88 = por %p86, %p87
    %s90 = sadd.s32 %s89, 1
    %p93 = scmp.eq.s32.totalorder %s13, 1
    %p94 = scmp.ne.s32.totalorder %s89, %s91
    %p95 = scmp.eq.s32.totalorder %s13, 0
    %p96 = por %p94, %p95
    %p97 = scmp.ne.s32.totalorder %s89, %s91
    %p98 = scmp.eq.s32.totalorder %s18, 1
    %p99 = por %p97, %p98
    %p100 = scmp.ne.s32.totalorder %s91, %s92
    %p101 = scmp.eq.s32.totalorder %s18, 0
    %p102 = por %p100, %p101
    %p103 = scmp.ne.s32.totalorder %s91, %s92
    %p104 = scmp.eq.s32.totalorder %s19, 1
    %p105 = por %p103, %p104
    %p107 = scmp.ne.s32.totalorder %s92, %s106
    %p108 = scmp.eq.s32.totalorder %s19, 0
    %p109 = por %p107, %p108
    %s111 = sadd.s32 %s110, 1
    %p114 = scmp.eq.s32.totalorder %s13, 1
    %p115 = scmp.ne.s32.totalorder %s110, %s112
    %p116 = scmp.eq.s32.totalorder %s13, 0
    %p117 = por %p115, %p116
    %p118 = scmp.ne.s32.totalorder %s110, %s112
    %p119 = scmp.eq.s32.totalorder %s18, 1
    %p120 = por %p118, %p119
    %p121 = scmp.ne.s32.totalorder %s112, %s113
    %p122 = scmp.eq.s32.totalorder %s18, 0
    %p123 = por %p121, %p122
    %p124 = scmp.ne.s32.totalorder %s112, %s113
    %p125 = scmp.eq.s32.totalorder %s19, 1
    %p126 = por %p124, %p125
    %p128 = scmp.ne.s32.totalorder %s113, %s127
    %p129 = scmp.eq.s32.totalorder %s19, 0
    %p130 = por %p128, %p129
    %s132 = sadd.s32 %s131, 1
    %p135 = scmp.eq.s32.totalorder %s13, 1
    %p136 = scmp.ne.s32.totalorder %s131, %s133
    %p137 = scmp.eq.s32.totalorder %s13, 0
    %p138 = por %p136, %p137
    %p139 = scmp.ne.s32.totalorder %s131, %s133
    %p140 = scmp.eq.s32.totalorder %s18, 1
    %p141 = por %p139, %p140
    %p142 = scmp.ne.s32.totalorder %s133, %s134
    %p143 = scmp.eq.s32.totalorder %s18, 0
    %p144 = por %p142, %p143
    %p145 = scmp.ne.s32.totalorder %s133, %s134
    %p146 = scmp.eq.s32.totalorder %s19, 1
    %p147 = por %p145, %p146
    %p149 = scmp.ne.s32.totalorder %s134, %s148
    %p150 = scmp.eq.s32.totalorder %s19, 0
    %p151 = por %p149, %p150
    %s153 = sadd.s32 %s152, 1
    %p156 = scmp.eq.s32.totalorder %s13, 1
    %p157 = scmp.ne.s32.totalorder %s152, %s154
    %p158 = scmp.eq.s32.totalorder %s13, 0
    %p159 = por %p157, %p158
    %p160 = scmp.ne.s32.totalorder %s152, %s154
    %p161 = scmp.eq.s32.totalorder %s18, 1
    %p162 = por %p160, %p161
    %p163 = scmp.ne.s32.totalorder %s154, %s155
    %p164 = scmp.eq.s32.totalorder %s18, 0
    %p165 = por %p163, %p164
    %p166 = scmp.ne.s32.totalorder %s154, %s155
    %p167 = scmp.eq.s32.totalorder %s19, 1
    %p168 = por %p166, %p167
    %p170 = scmp.ne.s32.totalorder %s155, %s169
    %p171 = scmp.eq.s32.totalorder %s19, 0
    %p172 = por %p170, %p171
    %s173 = ssub.s32 %s13, %s20
    %p174 = scmp.eq.s32.totalorder %s173, 0
    %s176 = sadd.s32 %s175, 1
    %s177 = scalar_select %p174, %s175, %s176
    %p180 = pneg %p174
    %p181 = scmp.eq.s32.totalorder %s13, 1
    %p182 = por %p180, %p181
    %p183 = scmp.ne.s32.totalorder %s175, %s178
    %p184 = scmp.eq.s32.totalorder %s13, 0
    %p185 = por %p183, %p184
    %p186 = scmp.ne.s32.totalorder %s175, %s178
    %p187 = scmp.eq.s32.totalorder %s18, 1
    %p188 = por %p186, %p187
    %p189 = scmp.ne.s32.totalorder %s178, %s179
    %p190 = scmp.eq.s32.totalorder %s18, 0
    %p191 = por %p189, %p190
    %p192 = scmp.ne.s32.totalorder %s178, %s179
    %p193 = scmp.eq.s32.totalorder %s19, 1
    %p194 = por %p192, %p193
    %p196 = scmp.ne.s32.totalorder %s179, %s195
    %p197 = scmp.eq.s32.totalorder %s19, 0
    %p198 = por %p196, %p197
    %p199 = scmp.le.s32.totalorder 1, %s13
    %p200 = scmp.lt.s32.totalorder %s13, 3
    %p201 = pnand %p199, %p200
    %p202 = pneg %p201
    // Predicated region
    $region9: #{translate_transformer_forward.13} parent=5 // pred_check
      _
    $region10: #{translate_transformer_forward.13} parent=5 // pred_check_branch
      %204 = sbr.rel (%p201) target = $region12
    $region11: #{translate_transformer_forward.13} parent=5 // pred_region
      %s205 = ssub.s32 %s13, 1
      // Predicated region
      $region13: #{translate_transformer_forward.13} parent=11 // pred_check
        %p206 = pneg %p60
      $region14: #{translate_transformer_forward.13} parent=11 // pred_check_branch
        %208 = sbr.rel (%p206) target = $region16
      $region15: #{translate_transformer_forward.13} parent=11 // pred_region
        _
      $region16: #{translate_transformer_forward.13} parent=11 // pred_fallthru
        _
      // Predicated region
      $region17: #{translate_transformer_forward.13} parent=11 // pred_check
        %p209 = pneg %p81
      $region18: #{translate_transformer_forward.13} parent=11 // pred_check_branch
        %211 = sbr.rel (%p209) target = $region20
      $region19: #{translate_transformer_forward.13} parent=11 // pred_region
        _
      $region20: #{translate_transformer_forward.13} parent=11 // pred_fallthru
        _
      // Predicated region
      $region21: #{translate_transformer_forward.13} parent=11 // pred_check
        %p212 = pneg %p102
      $region22: #{translate_transformer_forward.13} parent=11 // pred_check_branch
        %214 = sbr.rel (%p212) target = $region24
      $region23: #{translate_transformer_forward.13} parent=11 // pred_region
        _
      $region24: #{translate_transformer_forward.13} parent=11 // pred_fallthru
        _
      // Predicated region
      $region25: #{translate_transformer_forward.13} parent=11 // pred_check
        %p215 = pneg %p123
      $region26: #{translate_transformer_forward.13} parent=11 // pred_check_branch
        %217 = sbr.rel (%p215) target = $region28
      $region27: #{translate_transformer_forward.13} parent=11 // pred_region
        _
      $region28: #{translate_transformer_forward.13} parent=11 // pred_fallthru
        _
      // Predicated region
      $region29: #{translate_transformer_forward.13} parent=11 // pred_check
        %p218 = pneg %p144
      $region30: #{translate_transformer_forward.13} parent=11 // pred_check_branch
        %220 = sbr.rel (%p218) target = $region32
      $region31: #{translate_transformer_forward.13} parent=11 // pred_region
        _
      $region32: #{translate_transformer_forward.13} parent=11 // pred_fallthru
        _
      // Predicated region
      $region33: #{translate_transformer_forward.13} parent=11 // pred_check
        %p221 = pneg %p165
      $region34: #{translate_transformer_forward.13} parent=11 // pred_check_branch
        %223 = sbr.rel (%p221) target = $region36
      $region35: #{translate_transformer_forward.13} parent=11 // pred_region
        _
      $region36: #{translate_transformer_forward.13} parent=11 // pred_fallthru
        _
    $region12: #{translate_transformer_forward.13} parent=5 // pred_fallthru
      _
    %p224 = scmp.lt.s32.totalorder %s13, 2
    // Predicated region
    $region37: #{translate_transformer_forward.13} parent=5 // pred_check
      %p225 = pneg %p224
    $region38: #{translate_transformer_forward.13} parent=5 // pred_check_branch
      %227 = sbr.rel (%p225) target = $region40
    $region39: #{translate_transformer_forward.13} parent=5 // pred_region
      // Predicated region
      $region41: #{translate_transformer_forward.13} parent=39 // pred_check
        %p228 = pneg %p33
      $region42: #{translate_transformer_forward.13} parent=39 // pred_check_branch
        %230 = sbr.rel (%p228) target = $region44
      $region43: #{translate_transformer_forward.13} parent=39 // pred_region
        %p231 = scmp.lt.s32.totalorder %s13, 1
        %s232 = scalar_select %p231, %s13, 1
        %s233 = smul.addr %s232, 8
        %s234 = scalar_lea.vmem %s0, %s233
      $region44: #{translate_transformer_forward.13} parent=39 // pred_fallthru
        _
    $region40: #{translate_transformer_forward.13} parent=5 // pred_fallthru
      _
    %p235 = scmp.le.s32.totalorder 1, %s13
    %p236 = scmp.lt.s32.totalorder %s13, 3
    %p237 = pnand %p235, %p236
    %p238 = pneg %p237
    // Predicated region
    $region45: #{translate_transformer_forward.13} parent=5 // pred_check
      _
    $region46: #{translate_transformer_forward.13} parent=5 // pred_check_branch
      %240 = sbr.rel (%p237) target = $region48
    $region47: #{translate_transformer_forward.13} parent=5 // pred_region
      %s241 = ssub.s32 %s13, 1
      %p242 = scmp.lt.s32.totalorder %s18, 1
      %s243 = scalar_select %p242, %s18, 1
      %s244 = smul.addr %s243, 8
      %s245 = scalar_lea.vmem %s0, %s244
      %p246 = pneg %p39
      %p247 = pneg %p36
      %p248 = pneg %p60
      %p249 = pneg %p57
      %p250 = pneg %p81
      %p251 = pneg %p78
      %p252 = pneg %p102
      %p253 = pneg %p99
      %p254 = pneg %p123
      %p255 = pneg %p120
      %p256 = pneg %p144
      %p257 = pneg %p141
      %p258 = pneg %p165
      %p259 = pneg %p162
      %p260 = pneg %p191
      %p261 = pneg %p188
      %p262 = scmp.lt.s32.totalorder %s18, 1
      %s263 = scalar_select %p262, %s18, 1
      %s264 = smul.addr %s263, 8
      %s265 = scalar_lea.vmem %s7, %s264
      %p266 = scmp.lt.s32.totalorder %s18, 1
      %s267 = scalar_select %p266, %s18, 1
      %s268 = smul.addr %s267, 8
      %s269 = scalar_lea.vmem %s0, %s268
      %p270 = scmp.lt.s32.totalorder %s18, 1
      %s271 = scalar_select %p270, %s18, 1
      %s272 = smul.addr %s271, 8
      %s273 = scalar_lea.vmem %s7, %s272
      %v275 = vld [vmem:[%s269] sm:$0xff]
      %v276 = vpack.c.bf16 %v275, %v275
      %v277 = vld [vmem:[%s1] sm:$0xff]
      %v278 = vld [vmem:[%s1 + $0x8] sm:$0xff]
      %v279 = vld [vmem:[%s1 + $0x10] sm:$0xff]
      %v280 = vld [vmem:[%s1 + $0x18] sm:$0xff]
      %v281 = vld [vmem:[%s1 + $0x20] sm:$0xff]
      %v282 = vld [vmem:[%s1 + $0x28] sm:$0xff]
      %v283 = vld [vmem:[%s1 + $0x30] sm:$0xff]
      %v284 = vld [vmem:[%s1 + $0x38] sm:$0xff]
      %v285 = vld [vmem:[%s1 + $0x40] sm:$0xff]
      %v286 = vld [vmem:[%s1 + $0x48] sm:$0xff]
      %v287 = vld [vmem:[%s1 + $0x50] sm:$0xff]
      %v288 = vld [vmem:[%s1 + $0x58] sm:$0xff]
      %v289 = vld [vmem:[%s1 + $0x60] sm:$0xff]
      %v290 = vld [vmem:[%s1 + $0x68] sm:$0xff]
      %v291 = vld [vmem:[%s1 + $0x70] sm:$0xff]
      %v292 = vld [vmem:[%s1 + $0x78] sm:$0xff]
      %v293 = vld [vmem:[%s1 + $0x80] sm:$0xff]
      %v294 = vld [vmem:[%s1 + $0x88] sm:$0xff]
      %v295 = vld [vmem:[%s1 + $0x90] sm:$0xff]
      %v296 = vld [vmem:[%s1 + $0x98] sm:$0xff]
      %v297 = vld [vmem:[%s1 + $0xa0] sm:$0xff]
      %v298 = vld [vmem:[%s1 + $0xa8] sm:$0xff]
      %v299 = vld [vmem:[%s1 + $0xb0] sm:$0xff]
      %v300 = vld [vmem:[%s1 + $0xb8] sm:$0xff]
      %v301 = vld [vmem:[%s1 + $0xc0] sm:$0xff]
      %v302 = vld [vmem:[%s1 + $0xc8] sm:$0xff]
      %v303 = vld [vmem:[%s1 + $0xd0] sm:$0xff]
      %v304 = vld [vmem:[%s1 + $0xd8] sm:$0xff]
      %v305 = vld [vmem:[%s1 + $0xe0] sm:$0xff]
      %v306 = vld [vmem:[%s1 + $0xe8] sm:$0xff]
      %v307 = vld [vmem:[%s1 + $0xf0] sm:$0xff]
      %v308 = vld [vmem:[%s1 + $0xf8] sm:$0xff]
      %v309 = vld [vmem:[%s1 + $0x100] sm:$0xff]
      %v310 = vld [vmem:[%s1 + $0x108] sm:$0xff]
      %v311 = vld [vmem:[%s1 + $0x110] sm:$0xff]
      %v312 = vld [vmem:[%s1 + $0x118] sm:$0xff]
      %v313 = vld [vmem:[%s1 + $0x120] sm:$0xff]
      %v314 = vld [vmem:[%s1 + $0x128] sm:$0xff]
      %v315 = vld [vmem:[%s1 + $0x130] sm:$0xff]
      %v316 = vld [vmem:[%s1 + $0x138] sm:$0xff]
      %v317 = vld [vmem:[%s1 + $0x140] sm:$0xff]
      %v318 = vld [vmem:[%s1 + $0x148] sm:$0xff]
      %v319 = vld [vmem:[%s1 + $0x150] sm:$0xff]
      %v320 = vld [vmem:[%s1 + $0x158] sm:$0xff]
      %v321 = vld [vmem:[%s1 + $0x160] sm:$0xff]
      %v322 = vld [vmem:[%s1 + $0x168] sm:$0xff]
      %v323 = vld [vmem:[%s1 + $0x170] sm:$0xff]
      %v324 = vld [vmem:[%s1 + $0x178] sm:$0xff]
      %v325 = vld [vmem:[%s1 + $0x180] sm:$0xff]
      %v326 = vld [vmem:[%s1 + $0x188] sm:$0xff]
      %v327 = vld [vmem:[%s1 + $0x190] sm:$0xff]
      %v328 = vld [vmem:[%s1 + $0x198] sm:$0xff]
      %v329 = vld [vmem:[%s1 + $0x1a0] sm:$0xff]
      %v330 = vld [vmem:[%s1 + $0x1a8] sm:$0xff]
      %v331 = vld [vmem:[%s1 + $0x1b0] sm:$0xff]
      %v332 = vld [vmem:[%s1 + $0x1b8] sm:$0xff]
      %v333 = vld [vmem:[%s1 + $0x1c0] sm:$0xff]
      %v334 = vld [vmem:[%s1 + $0x1c8] sm:$0xff]
      %v335 = vld [vmem:[%s1 + $0x1d0] sm:$0xff]
      %v336 = vld [vmem:[%s1 + $0x1d8] sm:$0xff]
      %v337 = vld [vmem:[%s1 + $0x1e0] sm:$0xff]
      %v338 = vld [vmem:[%s1 + $0x1e8] sm:$0xff]
      %v339 = vld [vmem:[%s1 + $0x1f0] sm:$0xff]
      %v340 = vld [vmem:[%s1 + $0x1f8] sm:$0xff]
      %v341 = vpack.c.bf16 %v293, %v277
      %v342 = vpack.c.bf16 %v294, %v278
      %v343 = vpack.c.bf16 %v295, %v279
      %v344 = vpack.c.bf16 %v296, %v280
      %v345 = vpack.c.bf16 %v297, %v281
      %v346 = vpack.c.bf16 %v298, %v282
      %v347 = vpack.c.bf16 %v299, %v283
      %v348 = vpack.c.bf16 %v300, %v284
      %v349 = vpack.c.bf16 %v301, %v285
      %v350 = vpack.c.bf16 %v302, %v286
      %v351 = vpack.c.bf16 %v303, %v287
      %v352 = vpack.c.bf16 %v304, %v288
      %v353 = vpack.c.bf16 %v305, %v289
      %v354 = vpack.c.bf16 %v306, %v290
      %v355 = vpack.c.bf16 %v307, %v291
      %v356 = vpack.c.bf16 %v308, %v292
      %v357 = vpack.c.bf16 %v325, %v309
      %v358 = vpack.c.bf16 %v326, %v310
      %v359 = vpack.c.bf16 %v327, %v311
      %v360 = vpack.c.bf16 %v328, %v312
      %v361 = vpack.c.bf16 %v329, %v313
      %v362 = vpack.c.bf16 %v330, %v314
      %v363 = vpack.c.bf16 %v331, %v315
      %v364 = vpack.c.bf16 %v332, %v316
      %v365 = vpack.c.bf16 %v333, %v317
      %v366 = vpack.c.bf16 %v334, %v318
      %v367 = vpack.c.bf16 %v335, %v319
      %v368 = vpack.c.bf16 %v336, %v320
      %v369 = vpack.c.bf16 %v337, %v321
      %v370 = vpack.c.bf16 %v338, %v322
      %v371 = vpack.c.bf16 %v339, %v323
      %v372 = vpack.c.bf16 %v340, %v324
      %v373 = vld [vmem:[%s2] sm:$0xff]
      %v374 = vld [vmem:[%s2 + $0x8] sm:$0xff]
      %v377 = vlaneseq
      %v378 = vshrl.u32 %v377, 7
      %v379 = vsub.s32 0, %v378
      %v380 = vrot.slane %v373, %v379
      %v381 = vlaneseq
      %v382 = vshrl.u32 %v381, 7
      %v383 = vsub.s32 1, %v382
      %v384 = vrot.slane %v373, %v383
      %v385 = vlaneseq
      %v386 = vshrl.u32 %v385, 7
      %v387 = vsub.s32 2, %v386
      %v388 = vrot.slane %v373, %v387
      %v389 = vlaneseq
      %v390 = vshrl.u32 %v389, 7
      %v391 = vsub.s32 3, %v390
      %v392 = vrot.slane %v373, %v391
      %v393 = vlaneseq
      %v394 = vshrl.u32 %v393, 7
      %v395 = vsub.s32 4, %v394
      %v396 = vrot.slane %v373, %v395
      %v397 = vlaneseq
      %v398 = vshrl.u32 %v397, 7
      %v399 = vsub.s32 5, %v398
      %v400 = vrot.slane %v373, %v399
      %v401 = vlaneseq
      %v402 = vshrl.u32 %v401, 7
      %v403 = vsub.s32 6, %v402
      %v404 = vrot.slane %v373, %v403
      %v405 = vlaneseq
      %v406 = vshrl.u32 %v405, 7
      %v407 = vsub.s32 7, %v406
      %v408 = vrot.slane %v373, %v407
      %v409 = vlaneseq
      %v410 = vshrl.u32 %v409, 7
      %v411 = vsub.s32 0, %v410
      %v412 = vrot.slane %v374, %v411
      %v413 = vlaneseq
      %v414 = vshrl.u32 %v413, 7
      %v415 = vsub.s32 1, %v414
      %v416 = vrot.slane %v374, %v415
      %v417 = vlaneseq
      %v418 = vshrl.u32 %v417, 7
      %v419 = vsub.s32 2, %v418
      %v420 = vrot.slane %v374, %v419
      %v421 = vlaneseq
      %v422 = vshrl.u32 %v421, 7
      %v423 = vsub.s32 3, %v422
      %v424 = vrot.slane %v374, %v423
      %v425 = vlaneseq
      %v426 = vshrl.u32 %v425, 7
      %v427 = vsub.s32 4, %v426
      %v428 = vrot.slane %v374, %v427
      %v429 = vlaneseq
      %v430 = vshrl.u32 %v429, 7
      %v431 = vsub.s32 5, %v430
      %v432 = vrot.slane %v374, %v431
      %v433 = vlaneseq
      %v434 = vshrl.u32 %v433, 7
      %v435 = vsub.s32 6, %v434
      %v436 = vrot.slane %v374, %v435
      %v437 = vlaneseq
      %v438 = vshrl.u32 %v437, 7
      %v439 = vsub.s32 7, %v438
      %v440 = vrot.slane %v374, %v439
      %vm457 = vcmask 261120
      %v459 = vsel %vm457, %v276, 0
      %461 = vmatprep.subr.bf16.mxu0 %v342
      %462 = vmatpush1.bf16.msra.mxu0 %v341
      %463 = vmatprep.subr.bf16.mxu0 %v358
      %464 = vmatpush1.bf16.msra.mxu0 %v357
      %465 = vmatprep.subr.bf16.mxu0 0
      %466 = vmatpush1.bf16.msra.mxu0 0
      %467 = vmatprep.subr.bf16.mxu0 0
      %468 = vmatpush1.bf16.msra.mxu0 0
      %469 = vmatprep.subr.bf16.mxu0 0
      %470 = vmatpush1.bf16.msra.mxu0 0
      %471 = vmatprep.subr.bf16.mxu0 0
      %472 = vmatpush1.bf16.msra.mxu0 0
      %473 = vmatprep.subr.bf16.mxu0 0
      %474 = vmatpush1.bf16.msra.mxu0 0
      %475 = vmatprep.subr.bf16.mxu0 0
      %476 = vmatpush1.bf16.msra.mxu0 0
      %477 = vmatprep.subr.bf16.mxu0 0
      %478 = vmatpush1.bf16.msra.mxu0 0
      %479 = vmatprep.subr.bf16.mxu0 0
      %480 = vmatpush1.bf16.msra.mxu0 0
      %481 = vmatprep.subr.bf16.mxu0 0
      %482 = vmatpush1.bf16.msra.mxu0 0
      %483 = vmatprep.subr.bf16.mxu0 0
      %484 = vmatpush1.bf16.msra.mxu0 0
      %485 = vmatprep.subr.bf16.mxu0 0
      %486 = vmatpush1.bf16.msra.mxu0 0
      %487 = vmatprep.subr.bf16.mxu0 0
      %488 = vmatpush1.bf16.msra.mxu0 0
      %489 = vmatprep.subr.bf16.mxu0 0
      %490 = vmatpush1.bf16.msra.mxu0 0
      %491 = vmatprep.subr.bf16.mxu0 0
      %492 = vmatpush1.bf16.msra.mxu0 0
      %493 = vmatprep.mubr.bf16.mxu0 0
      %494 = vmatmul.mubr.bf16.gmra.mrb[0].mxu0 %v459
      %v495 = vpop.f32.mrb[0].mxu0
      %v496 = vadd.f32 %v380, %v495
      %v497 = vpop.f32.mrb[0].mxu0
      %v498 = vadd.f32 %v384, %v497
      %v499 = vpop.f32.mrb[0].mxu0
      %v500 = vpop.f32.mrb[0].mxu0
      %501 = vdwg.mxu0
      %502 = vmatprep.subr.bf16.mxu0 %v344
      %503 = vmatpush1.bf16.msra.mxu0 %v343
      %504 = vmatprep.subr.bf16.mxu0 %v360
      %505 = vmatpush1.bf16.msra.mxu0 %v359
      %506 = vmatprep.subr.bf16.mxu0 0
      %507 = vmatpush1.bf16.msra.mxu0 0
      %508 = vmatprep.subr.bf16.mxu0 0
      %509 = vmatpush1.bf16.msra.mxu0 0
      %510 = vmatprep.subr.bf16.mxu0 0
      %511 = vmatpush1.bf16.msra.mxu0 0
      %512 = vmatprep.subr.bf16.mxu0 0
      %513 = vmatpush1.bf16.msra.mxu0 0
      %514 = vmatprep.subr.bf16.mxu0 0
      %515 = vmatpush1.bf16.msra.mxu0 0
      %516 = vmatprep.subr.bf16.mxu0 0
      %517 = vmatpush1.bf16.msra.mxu0 0
      %518 = vmatprep.subr.bf16.mxu0 0
      %519 = vmatpush1.bf16.msra.mxu0 0
      %520 = vmatprep.subr.bf16.mxu0 0
      %521 = vmatpush1.bf16.msra.mxu0 0
      %522 = vmatprep.subr.bf16.mxu0 0
      %523 = vmatpush1.bf16.msra.mxu0 0
      %524 = vmatprep.subr.bf16.mxu0 0
      %525 = vmatpush1.bf16.msra.mxu0 0
      %526 = vmatprep.subr.bf16.mxu0 0
      %527 = vmatpush1.bf16.msra.mxu0 0
      %528 = vmatprep.subr.bf16.mxu0 0
      %529 = vmatpush1.bf16.msra.mxu0 0
      %530 = vmatprep.subr.bf16.mxu0 0
      %531 = vmatpush1.bf16.msra.mxu0 0
      %532 = vmatprep.subr.bf16.mxu0 0
      %533 = vmatpush1.bf16.msra.mxu0 0
      %534 = vmatprep.mubr.bf16.mxu0 0
      %535 = vmatmul.mubr.bf16.gmra.mrb[0].mxu0 %v459
      %v536 = vpop.f32.mrb[0].mxu0
      %v537 = vadd.f32 %v388, %v536
      %v538 = vpop.f32.mrb[0].mxu0
      %v539 = vadd.f32 %v392, %v538
      %v540 = vpop.f32.mrb[0].mxu0
      %v541 = vpop.f32.mrb[0].mxu0
      %542 = vdwg.mxu0
      %543 = vmatprep.subr.bf16.mxu0 %v346
      %544 = vmatpush1.bf16.msra.mxu0 %v345
      %545 = vmatprep.subr.bf16.mxu0 %v362
      %546 = vmatpush1.bf16.msra.mxu0 %v361
      %547 = vmatprep.subr.bf16.mxu0 0
      %548 = vmatpush1.bf16.msra.mxu0 0
      %549 = vmatprep.subr.bf16.mxu0 0
      %550 = vmatpush1.bf16.msra.mxu0 0
      %551 = vmatprep.subr.bf16.mxu0 0
      %552 = vmatpush1.bf16.msra.mxu0 0
      %553 = vmatprep.subr.bf16.mxu0 0
      %554 = vmatpush1.bf16.msra.mxu0 0
      %555 = vmatprep.subr.bf16.mxu0 0
      %556 = vmatpush1.bf16.msra.mxu0 0
      %557 = vmatprep.subr.bf16.mxu0 0
      %558 = vmatpush1.bf16.msra.mxu0 0
      %559 = vmatprep.subr.bf16.mxu0 0
      %560 = vmatpush1.bf16.msra.mxu0 0
      %561 = vmatprep.subr.bf16.mxu0 0
      %562 = vmatpush1.bf16.msra.mxu0 0
      %563 = vmatprep.subr.bf16.mxu0 0
      %564 = vmatpush1.bf16.msra.mxu0 0
      %565 = vmatprep.subr.bf16.mxu0 0
      %566 = vmatpush1.bf16.msra.mxu0 0
      %567 = vmatprep.subr.bf16.mxu0 0
      %568 = vmatpush1.bf16.msra.mxu0 0
      %569 = vmatprep.subr.bf16.mxu0 0
      %570 = vmatpush1.bf16.msra.mxu0 0
      %571 = vmatprep.subr.bf16.mxu0 0
      %572 = vmatpush1.bf16.msra.mxu0 0
      %573 = vmatprep.subr.bf16.mxu0 0
      %574 = vmatpush1.bf16.msra.mxu0 0
      %575 = vmatprep.mubr.bf16.mxu0 0
      %576 = vmatmul.mubr.bf16.gmra.mrb[0].mxu0 %v459
      %v577 = vpop.f32.mrb[0].mxu0
      %v578 = vadd.f32 %v396, %v577
      %v579 = vpop.f32.mrb[0].mxu0
      %v580 = vadd.f32 %v400, %v579
      %v581 = vpop.f32.mrb[0].mxu0
      %v582 = vpop.f32.mrb[0].mxu0
      %583 = vdwg.mxu0
      %584 = vmatprep.subr.bf16.mxu0 %v348
      %585 = vmatpush1.bf16.msra.mxu0 %v347
      %586 = vmatprep.subr.bf16.mxu0 %v364
      %587 = vmatpush1.bf16.msra.mxu0 %v363
      %588 = vmatprep.subr.bf16.mxu0 0
      %589 = vmatpush1.bf16.msra.mxu0 0
      %590 = vmatprep.subr.bf16.mxu0 0
      %591 = vmatpush1.bf16.msra.mxu0 0
      %592 = vmatprep.subr.bf16.mxu0 0
      %593 = vmatpush1.bf16.msra.mxu0 0
      %594 = vmatprep.subr.bf16.mxu0 0
      %595 = vmatpush1.bf16.msra.mxu0 0
      %596 = vmatprep.subr.bf16.mxu0 0
      %597 = vmatpush1.bf16.msra.mxu0 0
      %598 = vmatprep.subr.bf16.mxu0 0
      %599 = vmatpush1.bf16.msra.mxu0 0
      %600 = vmatprep.subr.bf16.mxu0 0
      %601 = vmatpush1.bf16.msra.mxu0 0
      %602 = vmatprep.subr.bf16.mxu0 0
      %603 = vmatpush1.bf16.msra.mxu0 0
      %604 = vmatprep.subr.bf16.mxu0 0
      %605 = vmatpush1.bf16.msra.mxu0 0
      %606 = vmatprep.subr.bf16.mxu0 0
      %607 = vmatpush1.bf16.msra.mxu0 0
      %608 = vmatprep.subr.bf16.mxu0 0
      %609 = vmatpush1.bf16.msra.mxu0 0
      %610 = vmatprep.subr.bf16.mxu0 0
      %611 = vmatpush1.bf16.msra.mxu0 0
      %612 = vmatprep.subr.bf16.mxu0 0
      %613 = vmatpush1.bf16.msra.mxu0 0
      %614 = vmatprep.subr.bf16.mxu0 0
      %615 = vmatpush1.bf16.msra.mxu0 0
      %616 = vmatprep.mubr.bf16.mxu0 0
      %617 = vmatmul.mubr.bf16.gmra.mrb[0].mxu0 %v459
      %v618 = vpop.f32.mrb[0].mxu0
      %v619 = vadd.f32 %v404, %v618
      %v620 = vpop.f32.mrb[0].mxu0
      %v621 = vadd.f32 %v408, %v620
      %v622 = vpop.f32.mrb[0].mxu0
      %v623 = vpop.f32.mrb[0].mxu0
      %624 = vdwg.mxu0
      %625 = vmatprep.subr.bf16.mxu0 %v350
      %626 = vmatpush1.bf16.msra.mxu0 %v349
      %627 = vmatprep.subr.bf16.mxu0 %v366
      %628 = vmatpush1.bf16.msra.mxu0 %v365
      %629 = vmatprep.subr.bf16.mxu0 0
      %630 = vmatpush1.bf16.msra.mxu0 0
      %631 = vmatprep.subr.bf16.mxu0 0
      %632 = vmatpush1.bf16.msra.mxu0 0
      %633 = vmatprep.subr.bf16.mxu0 0
      %634 = vmatpush1.bf16.msra.mxu0 0
      %635 = vmatprep.subr.bf16.mxu0 0
      %636 = vmatpush1.bf16.msra.mxu0 0
      %637 = vmatprep.subr.bf16.mxu0 0
      %638 = vmatpush1.bf16.msra.mxu0 0
      %639 = vmatprep.subr.bf16.mxu0 0
      %640 = vmatpush1.bf16.msra.mxu0 0
      %641 = vmatprep.subr.bf16.mxu0 0
      %642 = vmatpush1.bf16.msra.mxu0 0
      %643 = vmatprep.subr.bf16.mxu0 0
      %644 = vmatpush1.bf16.msra.mxu0 0
      %645 = vmatprep.subr.bf16.mxu0 0
      %646 = vmatpush1.bf16.msra.mxu0 0
      %647 = vmatprep.subr.bf16.mxu0 0
      %648 = vmatpush1.bf16.msra.mxu0 0
      %649 = vmatprep.subr.bf16.mxu0 0
      %650 = vmatpush1.bf16.msra.mxu0 0
      %651 = vmatprep.subr.bf16.mxu0 0
      %652 = vmatpush1.bf16.msra.mxu0 0
      %653 = vmatprep.subr.bf16.mxu0 0
      %654 = vmatpush1.bf16.msra.mxu0 0
      %655 = vmatprep.subr.bf16.mxu0 0
      %656 = vmatpush1.bf16.msra.mxu0 0
      %657 = vmatprep.mubr.bf16.mxu0 0
      %658 = vmatmul.mubr.bf16.gmra.mrb[0].mxu0 %v459
      %v659 = vpop.f32.mrb[0].mxu0
      %v660 = vadd.f32 %v412, %v659
      %v661 = vpop.f32.mrb[0].mxu0
      %v662 = vadd.f32 %v416, %v661
      %v663 = vpop.f32.mrb[0].mxu0
      %v664 = vpop.f32.mrb[0].mxu0
      %665 = vdwg.mxu0
      %666 = vmatprep.subr.bf16.mxu0 %v352
      %667 = vmatpush1.bf16.msra.mxu0 %v351
      %668 = vmatprep.subr.bf16.mxu0 %v368
      %669 = vmatpush1.bf16.msra.mxu0 %v367
      %670 = vmatprep.subr.bf16.mxu0 0
      %671 = vmatpush1.bf16.msra.mxu0 0
      %672 = vmatprep.subr.bf16.mxu0 0
      %673 = vmatpush1.bf16.msra.mxu0 0
      %674 = vmatprep.subr.bf16.mxu0 0
      %675 = vmatpush1.bf16.msra.mxu0 0
      %676 = vmatprep.subr.bf16.mxu0 0
      %677 = vmatpush1.bf16.msra.mxu0 0
      %678 = vmatprep.subr.bf16.mxu0 0
      %679 = vmatpush1.bf16.msra.mxu0 0
      %680 = vmatprep.subr.bf16.mxu0 0
      %681 = vmatpush1.bf16.msra.mxu0 0
      %682 = vmatprep.subr.bf16.mxu0 0
      %683 = vmatpush1.bf16.msra.mxu0 0
      %684 = vmatprep.subr.bf16.mxu0 0
      %685 = vmatpush1.bf16.msra.mxu0 0
      %686 = vmatprep.subr.bf16.mxu0 0
      %687 = vmatpush1.bf16.msra.mxu0 0
      %688 = vmatprep.subr.bf16.mxu0 0
      %689 = vmatpush1.bf16.msra.mxu0 0
      %690 = vmatprep.subr.bf16.mxu0 0
      %691 = vmatpush1.bf16.msra.mxu0 0
      %692 = vmatprep.subr.bf16.mxu0 0
      %693 = vmatpush1.bf16.msra.mxu0 0
      %694 = vmatprep.subr.bf16.mxu0 0
      %695 = vmatpush1.bf16.msra.mxu0 0
      %696 = vmatprep.subr.bf16.mxu0 0
      %697 = vmatpush1.bf16.msra.mxu0 0
      %698 = vmatprep.mubr.bf16.mxu0 0
      %699 = vmatmul.mubr.bf16.gmra.mrb[0].mxu0 %v459
      %v700 = vpop.f32.mrb[0].mxu0
      %v701 = vadd.f32 %v420, %v700
      %v702 = vpop.f32.mrb[0].mxu0
      %v703 = vadd.f32 %v424, %v702
      %v704 = vpop.f32.mrb[0].mxu0
      %v705 = vpop.f32.mrb[0].mxu0
      %706 = vdwg.mxu0
      %707 = vmatprep.subr.bf16.mxu0 %v354
      %708 = vmatpush1.bf16.msra.mxu0 %v353
      %709 = vmatprep.subr.bf16.mxu0 %v370
      %710 = vmatpush1.bf16.msra.mxu0 %v369
      %711 = vmatprep.subr.bf16.mxu0 0
      %712 = vmatpush1.bf16.msra.mxu0 0
      %713 = vmatprep.subr.bf16.mxu0 0
      %714 = vmatpush1.bf16.msra.mxu0 0
      %715 = vmatprep.subr.bf16.mxu0 0
      %716 = vmatpush1.bf16.msra.mxu0 0
      %717 = vmatprep.subr.bf16.mxu0 0
      %718 = vmatpush1.bf16.msra.mxu0 0
      %719 = vmatprep.subr.bf16.mxu0 0
      %720 = vmatpush1.bf16.msra.mxu0 0
      %721 = vmatprep.subr.bf16.mxu0 0
      %722 = vmatpush1.bf16.msra.mxu0 0
      %723 = vmatprep.subr.bf16.mxu0 0
      %724 = vmatpush1.bf16.msra.mxu0 0
      %725 = vmatprep.subr.bf16.mxu0 0
      %726 = vmatpush1.bf16.msra.mxu0 0
      %727 = vmatprep.subr.bf16.mxu0 0
      %728 = vmatpush1.bf16.msra.mxu0 0
      %729 = vmatprep.subr.bf16.mxu0 0
      %730 = vmatpush1.bf16.msra.mxu0 0
      %731 = vmatprep.subr.bf16.mxu0 0
      %732 = vmatpush1.bf16.msra.mxu0 0
      %733 = vmatprep.subr.bf16.mxu0 0
      %734 = vmatpush1.bf16.msra.mxu0 0
      %735 = vmatprep.subr.bf16.mxu0 0
      %736 = vmatpush1.bf16.msra.mxu0 0
      %737 = vmatprep.subr.bf16.mxu0 0
      %738 = vmatpush1.bf16.msra.mxu0 0
      %739 = vmatprep.mubr.bf16.mxu0 0
      %740 = vmatmul.mubr.bf16.gmra.mrb[0].mxu0 %v459
      %v741 = vpop.f32.mrb[0].mxu0
      %v742 = vadd.f32 %v428, %v741
      %v743 = vpop.f32.mrb[0].mxu0
      %v744 = vadd.f32 %v432, %v743
      %v745 = vpop.f32.mrb[0].mxu0
      %v746 = vpop.f32.mrb[0].mxu0
      %747 = vdwg.mxu0
      %748 = vmatprep.subr.bf16.mxu0 %v356
      %749 = vmatpush1.bf16.msra.mxu0 %v355
      %750 = vmatprep.subr.bf16.mxu0 %v372
      %751 = vmatpush1.bf16.msra.mxu0 %v371
      %752 = vmatprep.subr.bf16.mxu0 0
      %753 = vmatpush1.bf16.msra.mxu0 0
      %754 = vmatprep.subr.bf16.mxu0 0
      %755 = vmatpush1.bf16.msra.mxu0 0
      %756 = vmatprep.subr.bf16.mxu0 0
      %757 = vmatpush1.bf16.msra.mxu0 0
      %758 = vmatprep.subr.bf16.mxu0 0
      %759 = vmatpush1.bf16.msra.mxu0 0
      %760 = vmatprep.subr.bf16.mxu0 0
      %761 = vmatpush1.bf16.msra.mxu0 0
      %762 = vmatprep.subr.bf16.mxu0 0
      %763 = vmatpush1.bf16.msra.mxu0 0
      %764 = vmatprep.subr.bf16.mxu0 0
      %765 = vmatpush1.bf16.msra.mxu0 0
      %766 = vmatprep.subr.bf16.mxu0 0
      %767 = vmatpush1.bf16.msra.mxu0 0
      %768 = vmatprep.subr.bf16.mxu0 0
      %769 = vmatpush1.bf16.msra.mxu0 0
      %770 = vmatprep.subr.bf16.mxu0 0
      %771 = vmatpush1.bf16.msra.mxu0 0
      %772 = vmatprep.subr.bf16.mxu0 0
      %773 = vmatpush1.bf16.msra.mxu0 0
      %774 = vmatprep.subr.bf16.mxu0 0
      %775 = vmatpush1.bf16.msra.mxu0 0
      %776 = vmatprep.subr.bf16.mxu0 0
      %777 = vmatpush1.bf16.msra.mxu0 0
      %778 = vmatprep.subr.bf16.mxu0 0
      %779 = vmatpush1.bf16.msra.mxu0 0
      %780 = vmatprep.mubr.bf16.mxu0 0
      %781 = vmatmul.mubr.bf16.gmra.mrb[0].mxu0 %v459
      %v782 = vpop.f32.mrb[0].mxu0
      %v783 = vadd.f32 %v436, %v782
      %v784 = vpop.f32.mrb[0].mxu0
      %v785 = vadd.f32 %v440, %v784
      %v786 = vpop.f32.mrb[0].mxu0
      %v787 = vpop.f32.mrb[0].mxu0
      %788 = vdwg.mxu0
      %v789 = vmax.f32 %v496, 0.0
      %v790 = vmax.f32 %v498, 0.0
      %v791 = vmax.f32 %v537, 0.0
      %v792 = vmax.f32 %v539, 0.0
      %v793 = vmax.f32 %v578, 0.0
      %v794 = vmax.f32 %v580, 0.0
      %v795 = vmax.f32 %v619, 0.0
      %v796 = vmax.f32 %v621, 0.0
      %v797 = vmax.f32 %v660, 0.0
      %v798 = vmax.f32 %v662, 0.0
      %v799 = vmax.f32 %v701, 0.0
      %v800 = vmax.f32 %v703, 0.0
      %v801 = vmax.f32 %v742, 0.0
      %v802 = vmax.f32 %v744, 0.0
      %v803 = vmax.f32 %v783, 0.0
      %v804 = vmax.f32 %v785, 0.0
      %v805 = vpack.c.bf16 %v789, %v789
      %v806 = vpack.c.bf16 %v790, %v790
      %v807 = vpack.c.bf16 %v791, %v791
      %v808 = vpack.c.bf16 %v792, %v792
      %v809 = vpack.c.bf16 %v793, %v793
      %v810 = vpack.c.bf16 %v794, %v794
      %v811 = vpack.c.bf16 %v795, %v795
      %v812 = vpack.c.bf16 %v796, %v796
      %v813 = vpack.c.bf16 %v797, %v797
      %v814 = vpack.c.bf16 %v798, %v798
      %v815 = vpack.c.bf16 %v799, %v799
      %v816 = vpack.c.bf16 %v800, %v800
      %v817 = vpack.c.bf16 %v801, %v801
      %v818 = vpack.c.bf16 %v802, %v802
      %v819 = vpack.c.bf16 %v803, %v803
      %v820 = vpack.c.bf16 %v804, %v804
      %v821 = vld [vmem:[%s3] sm:$0xff]
      %v822 = vld [vmem:[%s3 + $0x8] sm:$0xff]
      %v823 = vld [vmem:[%s3 + $0x10] sm:$0xff]
      %v824 = vld [vmem:[%s3 + $0x18] sm:$0xff]
      %v825 = vld [vmem:[%s3 + $0x20] sm:$0xff]
      %v826 = vld [vmem:[%s3 + $0x28] sm:$0xff]
      %v827 = vld [vmem:[%s3 + $0x30] sm:$0xff]
      %v828 = vld [vmem:[%s3 + $0x38] sm:$0xff]
      %v829 = vld [vmem:[%s3 + $0x40] sm:$0xff]
      %v830 = vld [vmem:[%s3 + $0x48] sm:$0xff]
      %v831 = vld [vmem:[%s3 + $0x50] sm:$0xff]
      %v832 = vld [vmem:[%s3 + $0x58] sm:$0xff]
      %v833 = vld [vmem:[%s3 + $0x60] sm:$0xff]
      %v834 = vld [vmem:[%s3 + $0x68] sm:$0xff]
      %v835 = vld [vmem:[%s3 + $0x70] sm:$0xff]
      %v836 = vld [vmem:[%s3 + $0x78] sm:$0xff]
      %v837 = vld [vmem:[%s3 + $0x80] sm:$0xff]
      %v838 = vld [vmem:[%s3 + $0x88] sm:$0xff]
      %v839 = vld [vmem:[%s3 + $0x90] sm:$0xff]
      %v840 = vld [vmem:[%s3 + $0x98] sm:$0xff]
      %v841 = vld [vmem:[%s3 + $0xa0] sm:$0xff]
      %v842 = vld [vmem:[%s3 + $0xa8] sm:$0xff]
      %v843 = vld [vmem:[%s3 + $0xb0] sm:$0xff]
      %v844 = vld [vmem:[%s3 + $0xb8] sm:$0xff]
      %v845 = vld [vmem:[%s3 + $0xc0] sm:$0xff]
      %v846 = vld [vmem:[%s3 + $0xc8] sm:$0xff]
      %v847 = vld [vmem:[%s3 + $0xd0] sm:$0xff]
      %v848 = vld [vmem:[%s3 + $0xd8] sm:$0xff]
      %v849 = vld [vmem:[%s3 + $0xe0] sm:$0xff]
      %v850 = vld [vmem:[%s3 + $0xe8] sm:$0xff]
      %v851 = vld [vmem:[%s3 + $0xf0] sm:$0xff]
      %v852 = vld [vmem:[%s3 + $0xf8] sm:$0xff]
      %v853 = vld [vmem:[%s3 + $0x100] sm:$0xff]
      %v854 = vld [vmem:[%s3 + $0x108] sm:$0xff]
      %v855 = vld [vmem:[%s3 + $0x110] sm:$0xff]
      %v856 = vld [vmem:[%s3 + $0x118] sm:$0xff]
      %v857 = vld [vmem:[%s3 + $0x120] sm:$0xff]
      %v858 = vld [vmem:[%s3 + $0x128] sm:$0xff]
      %v859 = vld [vmem:[%s3 + $0x130] sm:$0xff]
      %v860 = vld [vmem:[%s3 + $0x138] sm:$0xff]
      %v861 = vld [vmem:[%s3 + $0x140] sm:$0xff]
      %v862 = vld [vmem:[%s3 + $0x148] sm:$0xff]
      %v863 = vld [vmem:[%s3 + $0x150] sm:$0xff]
      %v864 = vld [vmem:[%s3 + $0x158] sm:$0xff]
      %v865 = vld [vmem:[%s3 + $0x160] sm:$0xff]
      %v866 = vld [vmem:[%s3 + $0x168] sm:$0xff]
      %v867 = vld [vmem:[%s3 + $0x170] sm:$0xff]
      %v868 = vld [vmem:[%s3 + $0x178] sm:$0xff]
      %v869 = vld [vmem:[%s3 + $0x180] sm:$0xff]
      %v870 = vld [vmem:[%s3 + $0x188] sm:$0xff]
      %v871 = vld [vmem:[%s3 + $0x190] sm:$0xff]
      %v872 = vld [vmem:[%s3 + $0x198] sm:$0xff]
      %v873 = vld [vmem:[%s3 + $0x1a0] sm:$0xff]
      %v874 = vld [vmem:[%s3 + $0x1a8] sm:$0xff]
      %v875 = vld [vmem:[%s3 + $0x1b0] sm:$0xff]
      %v876 = vld [vmem:[%s3 + $0x1b8] sm:$0xff]
      %v877 = vld [vmem:[%s3 + $0x1c0] sm:$0xff]
      %v878 = vld [vmem:[%s3 + $0x1c8] sm:$0xff]
      %v879 = vld [vmem:[%s3 + $0x1d0] sm:$0xff]
      %v880 = vld [vmem:[%s3 + $0x1d8] sm:$0xff]
      %v881 = vld [vmem:[%s3 + $0x1e0] sm:$0xff]
      %v882 = vld [vmem:[%s3 + $0x1e8] sm:$0xff]
      %v883 = vld [vmem:[%s3 + $0x1f0] sm:$0xff]
      %v884 = vld [vmem:[%s3 + $0x1f8] sm:$0xff]
      %v885 = vld [vmem:[%s3 + $0x200] sm:$0xff]
      %v886 = vld [vmem:[%s3 + $0x208] sm:$0xff]
      %v887 = vld [vmem:[%s3 + $0x210] sm:$0xff]
      %v888 = vld [vmem:[%s3 + $0x218] sm:$0xff]
      %v889 = vld [vmem:[%s3 + $0x220] sm:$0xff]
      %v890 = vld [vmem:[%s3 + $0x228] sm:$0xff]
      %v891 = vld [vmem:[%s3 + $0x230] sm:$0xff]
      %v892 = vld [vmem:[%s3 + $0x238] sm:$0xff]
      %v893 = vld [vmem:[%s3 + $0x240] sm:$0xff]
      %v894 = vld [vmem:[%s3 + $0x248] sm:$0xff]
      %v895 = vld [vmem:[%s3 + $0x250] sm:$0xff]
      %v896 = vld [vmem:[%s3 + $0x258] sm:$0xff]
      %v897 = vld [vmem:[%s3 + $0x260] sm:$0xff]
      %v898 = vld [vmem:[%s3 + $0x268] sm:$0xff]
      %v899 = vld [vmem:[%s3 + $0x270] sm:$0xff]
      %v900 = vld [vmem:[%s3 + $0x278] sm:$0xff]
      %v901 = vld [vmem:[%s3 + $0x280] sm:$0xff]
      %v902 = vld [vmem:[%s3 + $0x288] sm:$0xff]
      %v903 = vld [vmem:[%s3 + $0x290] sm:$0xff]
      %v904 = vld [vmem:[%s3 + $0x298] sm:$0xff]
      %v905 = vld [vmem:[%s3 + $0x2a0] sm:$0xff]
      %v906 = vld [vmem:[%s3 + $0x2a8] sm:$0xff]
      %v907 = vld [vmem:[%s3 + $0x2b0] sm:$0xff]
      %v908 = vld [vmem:[%s3 + $0x2b8] sm:$0xff]
      %v909 = vld [vmem:[%s3 + $0x2c0] sm:$0xff]
      %v910 = vld [vmem:[%s3 + $0x2c8] sm:$0xff]
      %v911 = vld [vmem:[%s3 + $0x2d0] sm:$0xff]
      %v912 = vld [vmem:[%s3 + $0x2d8] sm:$0xff]
      %v913 = vld [vmem:[%s3 + $0x2e0] sm:$0xff]
      %v914 = vld [vmem:[%s3 + $0x2e8] sm:$0xff]
      %v915 = vld [vmem:[%s3 + $0x2f0] sm:$0xff]
      %v916 = vld [vmem:[%s3 + $0x2f8] sm:$0xff]
      %v917 = vld [vmem:[%s3 + $0x300] sm:$0xff]
      %v918 = vld [vmem:[%s3 + $0x308] sm:$0xff]
      %v919 = vld [vmem:[%s3 + $0x310] sm:$0xff]
      %v920 = vld [vmem:[%s3 + $0x318] sm:$0xff]
      %v921 = vld [vmem:[%s3 + $0x320] sm:$0xff]
      %v922 = vld [vmem:[%s3 + $0x328] sm:$0xff]
      %v923 = vld [vmem:[%s3 + $0x330] sm:$0xff]
      %v924 = vld [vmem:[%s3 + $0x338] sm:$0xff]
      %v925 = vld [vmem:[%s3 + $0x340] sm:$0xff]
      %v926 = vld [vmem:[%s3 + $0x348] sm:$0xff]
      %v927 = vld [vmem:[%s3 + $0x350] sm:$0xff]
      %v928 = vld [vmem:[%s3 + $0x358] sm:$0xff]
      %v929 = vld [vmem:[%s3 + $0x360] sm:$0xff]
      %v930 = vld [vmem:[%s3 + $0x368] sm:$0xff]
      %v931 = vld [vmem:[%s3 + $0x370] sm:$0xff]
      %v932 = vld [vmem:[%s3 + $0x378] sm:$0xff]
      %v933 = vld [vmem:[%s3 + $0x380] sm:$0xff]
      %v934 = vld [vmem:[%s3 + $0x388] sm:$0xff]
      %v935 = vld [vmem:[%s3 + $0x390] sm:$0xff]
      %v936 = vld [vmem:[%s3 + $0x398] sm:$0xff]
      %v937 = vld [vmem:[%s3 + $0x3a0] sm:$0xff]
      %v938 = vld [vmem:[%s3 + $0x3a8] sm:$0xff]
      %v939 = vld [vmem:[%s3 + $0x3b0] sm:$0xff]
      %v940 = vld [vmem:[%s3 + $0x3b8] sm:$0xff]
      %v941 = vld [vmem:[%s3 + $0x3c0] sm:$0xff]
      %v942 = vld [vmem:[%s3 + $0x3c8] sm:$0xff]
      %v943 = vld [vmem:[%s3 + $0x3d0] sm:$0xff]
      %v944 = vld [vmem:[%s3 + $0x3d8] sm:$0xff]
      %v945 = vld [vmem:[%s3 + $0x3e0] sm:$0xff]
      %v946 = vld [vmem:[%s3 + $0x3e8] sm:$0xff]
      %v947 = vld [vmem:[%s3 + $0x3f0] sm:$0xff]
      %v948 = vld [vmem:[%s3 + $0x3f8] sm:$0xff]
      %v949 = vld [vmem:[%s3 + $0x400] sm:$0xff]
      %v950 = vld [vmem:[%s3 + $0x408] sm:$0xff]
      %v951 = vld [vmem:[%s3 + $0x410] sm:$0xff]
      %v952 = vld [vmem:[%s3 + $0x418] sm:$0xff]
      %v953 = vld [vmem:[%s3 + $0x420] sm:$0xff]
      %v954 = vld [vmem:[%s3 + $0x428] sm:$0xff]
      %v955 = vld [vmem:[%s3 + $0x430] sm:$0xff]
      %v956 = vld [vmem:[%s3 + $0x438] sm:$0xff]
      %v957 = vld [vmem:[%s3 + $0x440] sm:$0xff]
      %v958 = vld [vmem:[%s3 + $0x448] sm:$0xff]
      %v959 = vld [vmem:[%s3 + $0x450] sm:$0xff]
      %v960 = vld [vmem:[%s3 + $0x458] sm:$0xff]
      %v961 = vld [vmem:[%s3 + $0x460] sm:$0xff]
      %v962 = vld [vmem:[%s3 + $0x468] sm:$0xff]
      %v963 = vld [vmem:[%s3 + $0x470] sm:$0xff]
      %v964 = vld [vmem:[%s3 + $0x478] sm:$0xff]
      %v965 = vld [vmem:[%s3 + $0x480] sm:$0xff]
      %v966 = vld [vmem:[%s3 + $0x488] sm:$0xff]
      %v967 = vld [vmem:[%s3 + $0x490] sm:$0xff]
      %v968 = vld [vmem:[%s3 + $0x498] sm:$0xff]
      %v969 = vld [vmem:[%s3 + $0x4a0] sm:$0xff]
      %v970 = vld [vmem:[%s3 + $0x4a8] sm:$0xff]
      %v971 = vld [vmem:[%s3 + $0x4b0] sm:$0xff]
      %v972 = vld [vmem:[%s3 + $0x4b8] sm:$0xff]
      %v973 = vld [vmem:[%s3 + $0x4c0] sm:$0xff]
      %v974 = vld [vmem:[%s3 + $0x4c8] sm:$0xff]
      %v975 = vld [vmem:[%s3 + $0x4d0] sm:$0xff]
      %v976 = vld [vmem:[%s3 + $0x4d8] sm:$0xff]
      %v977 = vld [vmem:[%s3 + $0x4e0] sm:$0xff]
      %v978 = vld [vmem:[%s3 + $0x4e8] sm:$0xff]
      %v979 = vld [vmem:[%s3 + $0x4f0] sm:$0xff]
      %v980 = vld [vmem:[%s3 + $0x4f8] sm:$0xff]
      %v981 = vld [vmem:[%s3 + $0x500] sm:$0xff]
      %v982 = vld [vmem:[%s3 + $0x508] sm:$0xff]
      %v983 = vld [vmem:[%s3 + $0x510] sm:$0xff]
      %v984 = vld [vmem:[%s3 + $0x518] sm:$0xff]
      %v985 = vld [vmem:[%s3 + $0x520] sm:$0xff]
      %v986 = vld [vmem:[%s3 + $0x528] sm:$0xff]
      %v987 = vld [vmem:[%s3 + $0x530] sm:$0xff]
      %v988 = vld [vmem:[%s3 + $0x538] sm:$0xff]
      %v989 = vld [vmem:[%s3 + $0x540] sm:$0xff]
      %v990 = vld [vmem:[%s3 + $0x548] sm:$0xff]
      %v991 = vld [vmem:[%s3 + $0x550] sm:$0xff]
      %v992 = vld [vmem:[%s3 + $0x558] sm:$0xff]
      %v993 = vld [vmem:[%s3 + $0x560] sm:$0xff]
      %v994 = vld [vmem:[%s3 + $0x568] sm:$0xff]
      %v995 = vld [vmem:[%s3 + $0x570] sm:$0xff]
      %v996 = vld [vmem:[%s3 + $0x578] sm:$0xff]
      %v997 = vld [vmem:[%s3 + $0x580] sm:$0xff]
      %v998 = vld [vmem:[%s3 + $0x588] sm:$0xff]
      %v999 = vld [vmem:[%s3 + $0x590] sm:$0xff]
      %v1000 = vld [vmem:[%s3 + $0x598] sm:$0xff]
      %v1001 = vld [vmem:[%s3 + $0x5a0] sm:$0xff]
      %v1002 = vld [vmem:[%s3 + $0x5a8] sm:$0xff]
      %v1003 = vld [vmem:[%s3 + $0x5b0] sm:$0xff]
      %v1004 = vld [vmem:[%s3 + $0x5b8] sm:$0xff]
      %v1005 = vld [vmem:[%s3 + $0x5c0] sm:$0xff]
      %v1006 = vld [vmem:[%s3 + $0x5c8] sm:$0xff]
      %v1007 = vld [vmem:[%s3 + $0x5d0] sm:$0xff]
      %v1008 = vld [vmem:[%s3 + $0x5d8] sm:$0xff]
      %v1009 = vld [vmem:[%s3 + $0x5e0] sm:$0xff]
      %v1010 = vld [vmem:[%s3 + $0x5e8] sm:$0xff]
      %v1011 = vld [vmem:[%s3 + $0x5f0] sm:$0xff]
      %v1012 = vld [vmem:[%s3 + $0x5f8] sm:$0xff]
      %v1013 = vld [vmem:[%s3 + $0x600] sm:$0xff]
      %v1014 = vld [vmem:[%s3 + $0x608] sm:$0xff]
      %v1015 = vld [vmem:[%s3 + $0x610] sm:$0xff]
      %v1016 = vld [vmem:[%s3 + $0x618] sm:$0xff]
      %v1017 = vld [vmem:[%s3 + $0x620] sm:$0xff]
      %v1018 = vld [vmem:[%s3 + $0x628] sm:$0xff]
      %v1019 = vld [vmem:[%s3 + $0x630] sm:$0xff]
      %v1020 = vld [vmem:[%s3 + $0x638] sm:$0xff]
      %v1021 = vld [vmem:[%s3 + $0x640] sm:$0xff]
      %v1022 = vld [vmem:[%s3 + $0x648] sm:$0xff]
      %v1023 = vld [vmem:[%s3 + $0x650] sm:$0xff]
      %v1024 = vld [vmem:[%s3 + $0x658] sm:$0xff]
      %v1025 = vld [vmem:[%s3 + $0x660] sm:$0xff]
      %v1026 = vld [vmem:[%s3 + $0x668] sm:$0xff]
      %v1027 = vld [vmem:[%s3 + $0x670] sm:$0xff]
      %v1028 = vld [vmem:[%s3 + $0x678] sm:$0xff]
      %v1029 = vld [vmem:[%s3 + $0x680] sm:$0xff]
      %v1030 = vld [vmem:[%s3 + $0x688] sm:$0xff]
      %v1031 = vld [vmem:[%s3 + $0x690] sm:$0xff]
      %v1032 = vld [vmem:[%s3 + $0x698] sm:$0xff]
      %v1033 = vld [vmem:[%s3 + $0x6a0] sm:$0xff]
      %v1034 = vld [vmem:[%s3 + $0x6a8] sm:$0xff]
      %v1035 = vld [vmem:[%s3 + $0x6b0] sm:$0xff]
      %v1036 = vld [vmem:[%s3 + $0x6b8] sm:$0xff]
      %v1037 = vld [vmem:[%s3 + $0x6c0] sm:$0xff]
      %v1038 = vld [vmem:[%s3 + $0x6c8] sm:$0xff]
      %v1039 = vld [vmem:[%s3 + $0x6d0] sm:$0xff]
      %v1040 = vld [vmem:[%s3 + $0x6d8] sm:$0xff]
      %v1041 = vld [vmem:[%s3 + $0x6e0] sm:$0xff]
      %v1042 = vld [vmem:[%s3 + $0x6e8] sm:$0xff]
      %v1043 = vld [vmem:[%s3 + $0x6f0] sm:$0xff]
      %v1044 = vld [vmem:[%s3 + $0x6f8] sm:$0xff]
      %v1045 = vld [vmem:[%s3 + $0x700] sm:$0xff]
      %v1046 = vld [vmem:[%s3 + $0x708] sm:$0xff]
      %v1047 = vld [vmem:[%s3 + $0x710] sm:$0xff]
      %v1048 = vld [vmem:[%s3 + $0x718] sm:$0xff]
      %v1049 = vld [vmem:[%s3 + $0x720] sm:$0xff]
      %v1050 = vld [vmem:[%s3 + $0x728] sm:$0xff]
      %v1051 = vld [vmem:[%s3 + $0x730] sm:$0xff]
      %v1052 = vld [vmem:[%s3 + $0x738] sm:$0xff]
      %v1053 = vld [vmem:[%s3 + $0x740] sm:$0xff]
      %v1054 = vld [vmem:[%s3 + $0x748] sm:$0xff]
      %v1055 = vld [vmem:[%s3 + $0x750] sm:$0xff]
      %v1056 = vld [vmem:[%s3 + $0x758] sm:$0xff]
      %v1057 = vld [vmem:[%s3 + $0x760] sm:$0xff]
      %v1058 = vld [vmem:[%s3 + $0x768] sm:$0xff]
      %v1059 = vld [vmem:[%s3 + $0x770] sm:$0xff]
      %v1060 = vld [vmem:[%s3 + $0x778] sm:$0xff]
      %v1061 = vld [vmem:[%s3 + $0x780] sm:$0xff]
      %v1062 = vld [vmem:[%s3 + $0x788] sm:$0xff]
      %v1063 = vld [vmem:[%s3 + $0x790] sm:$0xff]
      %v1064 = vld [vmem:[%s3 + $0x798] sm:$0xff]
      %v1065 = vld [vmem:[%s3 + $0x7a0] sm:$0xff]
      %v1066 = vld [vmem:[%s3 + $0x7a8] sm:$0xff]
      %v1067 = vld [vmem:[%s3 + $0x7b0] sm:$0xff]
      %v1068 = vld [vmem:[%s3 + $0x7b8] sm:$0xff]
      %v1069 = vld [vmem:[%s3 + $0x7c0] sm:$0xff]
      %v1070 = vld [vmem:[%s3 + $0x7c8] sm:$0xff]
      %v1071 = vld [vmem:[%s3 + $0x7d0] sm:$0xff]
      %v1072 = vld [vmem:[%s3 + $0x7d8] sm:$0xff]
      %v1073 = vld [vmem:[%s3 + $0x7e0] sm:$0xff]
      %v1074 = vld [vmem:[%s3 + $0x7e8] sm:$0xff]
      %v1075 = vld [vmem:[%s3 + $0x7f0] sm:$0xff]
      %v1076 = vld [vmem:[%s3 + $0x7f8] sm:$0xff]
      %v1077 = vpack.c.bf16 %v822, %v821
      %v1078 = vpack.c.bf16 %v824, %v823
      %v1079 = vpack.c.bf16 %v826, %v825
      %v1080 = vpack.c.bf16 %v828, %v827
      %v1081 = vpack.c.bf16 %v830, %v829
      %v1082 = vpack.c.bf16 %v832, %v831
      %v1083 = vpack.c.bf16 %v834, %v833
      %v1084 = vpack.c.bf16 %v836, %v835
      %v1085 = vpack.c.bf16 %v838, %v837
      %v1086 = vpack.c.bf16 %v840, %v839
      %v1087 = vpack.c.bf16 %v842, %v841
      %v1088 = vpack.c.bf16 %v844, %v843
      %v1089 = vpack.c.bf16 %v846, %v845
      %v1090 = vpack.c.bf16 %v848, %v847
      %v1091 = vpack.c.bf16 %v850, %v849
      %v1092 = vpack.c.bf16 %v852, %v851
      %v1093 = vpack.c.bf16 %v854, %v853
      %v1094 = vpack.c.bf16 %v856, %v855
      %v1095 = vpack.c.bf16 %v858, %v857
      %v1096 = vpack.c.bf16 %v860, %v859
      %v1097 = vpack.c.bf16 %v862, %v861
      %v1098 = vpack.c.bf16 %v864, %v863
      %v1099 = vpack.c.bf16 %v866, %v865
      %v1100 = vpack.c.bf16 %v868, %v867
      %v1101 = vpack.c.bf16 %v870, %v869
      %v1102 = vpack.c.bf16 %v872, %v871
      %v1103 = vpack.c.bf16 %v874, %v873
      %v1104 = vpack.c.bf16 %v876, %v875
      %v1105 = vpack.c.bf16 %v878, %v877
      %v1106 = vpack.c.bf16 %v880, %v879
      %v1107 = vpack.c.bf16 %v882, %v881
      %v1108 = vpack.c.bf16 %v884, %v883
      %v1109 = vpack.c.bf16 %v886, %v885
      %v1110 = vpack.c.bf16 %v888, %v887
      %v1111 = vpack.c.bf16 %v890, %v889
      %v1112 = vpack.c.bf16 %v892, %v891
      %v1113 = vpack.c.bf16 %v894, %v893
      %v1114 = vpack.c.bf16 %v896, %v895
      %v1115 = vpack.c.bf16 %v898, %v897
      %v1116 = vpack.c.bf16 %v900, %v899
      %v1117 = vpack.c.bf16 %v902, %v901
      %v1118 = vpack.c.bf16 %v904, %v903
      %v1119 = vpack.c.bf16 %v906, %v905
      %v1120 = vpack.c.bf16 %v908, %v907
      %v1121 = vpack.c.bf16 %v910, %v909
      %v1122 = vpack.c.bf16 %v912, %v911
      %v1123 = vpack.c.bf16 %v914, %v913
      %v1124 = vpack.c.bf16 %v916, %v915
      %v1125 = vpack.c.bf16 %v918, %v917
      %v1126 = vpack.c.bf16 %v920, %v919
      %v1127 = vpack.c.bf16 %v922, %v921
      %v1128 = vpack.c.bf16 %v924, %v923
      %v1129 = vpack.c.bf16 %v926, %v925
      %v1130 = vpack.c.bf16 %v928, %v927
      %v1131 = vpack.c.bf16 %v930, %v929
      %v1132 = vpack.c.bf16 %v932, %v931
      %v1133 = vpack.c.bf16 %v934, %v933
      %v1134 = vpack.c.bf16 %v936, %v935
      %v1135 = vpack.c.bf16 %v938, %v937
      %v1136 = vpack.c.bf16 %v940, %v939
      %v1137 = vpack.c.bf16 %v942, %v941
      %v1138 = vpack.c.bf16 %v944, %v943
      %v1139 = vpack.c.bf16 %v946, %v945
      %v1140 = vpack.c.bf16 %v948, %v947
      %v1141 = vpack.c.bf16 %v950, %v949
      %v1142 = vpack.c.bf16 %v952, %v951
      %v1143 = vpack.c.bf16 %v954, %v953
      %v1144 = vpack.c.bf16 %v956, %v955
      %v1145 = vpack.c.bf16 %v958, %v957
      %v1146 = vpack.c.bf16 %v960, %v959
      %v1147 = vpack.c.bf16 %v962, %v961
      %v1148 = vpack.c.bf16 %v964, %v963
      %v1149 = vpack.c.bf16 %v966, %v965
      %v1150 = vpack.c.bf16 %v968, %v967
      %v1151 = vpack.c.bf16 %v970, %v969
      %v1152 = vpack.c.bf16 %v972, %v971
      %v1153 = vpack.c.bf16 %v974, %v973
      %v1154 = vpack.c.bf16 %v976, %v975
      %v1155 = vpack.c.bf16 %v978, %v977
      %v1156 = vpack.c.bf16 %v980, %v979
      %v1157 = vpack.c.bf16 %v982, %v981
      %v1158 = vpack.c.bf16 %v984, %v983
      %v1159 = vpack.c.bf16 %v986, %v985
      %v1160 = vpack.c.bf16 %v988, %v987
      %v1161 = vpack.c.bf16 %v990, %v989
      %v1162 = vpack.c.bf16 %v992, %v991
      %v1163 = vpack.c.bf16 %v994, %v993
      %v1164 = vpack.c.bf16 %v996, %v995
      %v1165 = vpack.c.bf16 %v998, %v997
      %v1166 = vpack.c.bf16 %v1000, %v999
      %v1167 = vpack.c.bf16 %v1002, %v1001
      %v1168 = vpack.c.bf16 %v1004, %v1003
      %v1169 = vpack.c.bf16 %v1006, %v1005
      %v1170 = vpack.c.bf16 %v1008, %v1007
      %v1171 = vpack.c.bf16 %v1010, %v1009
      %v1172 = vpack.c.bf16 %v1012, %v1011
      %v1173 = vpack.c.bf16 %v1014, %v1013
      %v1174 = vpack.c.bf16 %v1016, %v1015
      %v1175 = vpack.c.bf16 %v1018, %v1017
      %v1176 = vpack.c.bf16 %v1020, %v1019
      %v1177 = vpack.c.bf16 %v1022, %v1021
      %v1178 = vpack.c.bf16 %v1024, %v1023
      %v1179 = vpack.c.bf16 %v1026, %v1025
      %v1180 = vpack.c.bf16 %v1028, %v1027
      %v1181 = vpack.c.bf16 %v1030, %v1029
      %v1182 = vpack.c.bf16 %v1032, %v1031
      %v1183 = vpack.c.bf16 %v1034, %v1033
      %v1184 = vpack.c.bf16 %v1036, %v1035
      %v1185 = vpack.c.bf16 %v1038, %v1037
      %v1186 = vpack.c.bf16 %v1040, %v1039
      %v1187 = vpack.c.bf16 %v1042, %v1041
      %v1188 = vpack.c.bf16 %v1044, %v1043
      %v1189 = vpack.c.bf16 %v1046, %v1045
      %v1190 = vpack.c.bf16 %v1048, %v1047
      %v1191 = vpack.c.bf16 %v1050, %v1049
      %v1192 = vpack.c.bf16 %v1052, %v1051
      %v1193 = vpack.c.bf16 %v1054, %v1053
      %v1194 = vpack.c.bf16 %v1056, %v1055
      %v1195 = vpack.c.bf16 %v1058, %v1057
      %v1196 = vpack.c.bf16 %v1060, %v1059
      %v1197 = vpack.c.bf16 %v1062, %v1061
      %v1198 = vpack.c.bf16 %v1064, %v1063
      %v1199 = vpack.c.bf16 %v1066, %v1065
      %v1200 = vpack.c.bf16 %v1068, %v1067
      %v1201 = vpack.c.bf16 %v1070, %v1069
      %v1202 = vpack.c.bf16 %v1072, %v1071
      %v1203 = vpack.c.bf16 %v1074, %v1073
      %v1204 = vpack.c.bf16 %v1076, %v1075
      %v1205 = vld [vmem:[%s4] sm:$0x1]
      %v1207 = vlaneseq
      %v1208 = vshrl.u32 %v1207, 7
      %v1209 = vsub.s32 0, %v1208
      %v1210 = vrot.slane %v1205, %v1209
      %1212 = vmatprep.subr.bf16.mxu0 0
      %1213 = vmatpush1.bf16.msra.mxu0 %v1077
      %1214 = vmatprep.subr.bf16.mxu0 0
      %1215 = vmatpush1.bf16.msra.mxu0 %v1078
      %1216 = vmatprep.subr.bf16.mxu0 0
      %1217 = vmatpush1.bf16.msra.mxu0 %v1079
      %1218 = vmatprep.subr.bf16.mxu0 0
      %1219 = vmatpush1.bf16.msra.mxu0 %v1080
      %1220 = vmatprep.subr.bf16.mxu0 0
      %1221 = vmatpush1.bf16.msra.mxu0 %v1081
      %1222 = vmatprep.subr.bf16.mxu0 0
      %1223 = vmatpush1.bf16.msra.mxu0 %v1082
      %1224 = vmatprep.subr.bf16.mxu0 0
      %1225 = vmatpush1.bf16.msra.mxu0 %v1083
      %1226 = vmatprep.subr.bf16.mxu0 0
      %1227 = vmatpush1.bf16.msra.mxu0 %v1084
      %1228 = vmatprep.subr.bf16.mxu0 0
      %1229 = vmatpush1.bf16.msra.mxu0 %v1085
      %1230 = vmatprep.subr.bf16.mxu0 0
      %1231 = vmatpush1.bf16.msra.mxu0 %v1086
      %1232 = vmatprep.subr.bf16.mxu0 0
      %1233 = vmatpush1.bf16.msra.mxu0 %v1087
      %1234 = vmatprep.subr.bf16.mxu0 0
      %1235 = vmatpush1.bf16.msra.mxu0 %v1088
      %1236 = vmatprep.subr.bf16.mxu0 0
      %1237 = vmatpush1.bf16.msra.mxu0 %v1089
      %1238 = vmatprep.subr.bf16.mxu0 0
      %1239 = vmatpush1.bf16.msra.mxu0 %v1090
      %1240 = vmatprep.subr.bf16.mxu0 0
      %1241 = vmatpush1.bf16.msra.mxu0 %v1091
      %1242 = vmatprep.subr.bf16.mxu0 0
      %1243 = vmatpush1.bf16.msra.mxu0 %v1092
      %1244 = vmatprep.mubr.bf16.mxu0 %v806
      %1245 = vmatmul.mubr.bf16.gmra.mrb[0].mxu0 %v805
      %v1246 = vpop.f32.mrb[0].mxu0
      %v1247 = vadd.f32 %v1210, %v1246
      %v1248 = vpop.f32.mrb[0].mxu0
      %v1249 = vpop.f32.mrb[0].mxu0
      %v1250 = vpop.f32.mrb[0].mxu0
      %1251 = vdwg.mxu0
      %1252 = vmatprep.subr.bf16.mxu0 0
      %1253 = vmatpush1.bf16.msra.mxu0 %v1093
      %1254 = vmatprep.subr.bf16.mxu0 0
      %1255 = vmatpush1.bf16.msra.mxu0 %v1094
      %1256 = vmatprep.subr.bf16.mxu0 0
      %1257 = vmatpush1.bf16.msra.mxu0 %v1095
      %1258 = vmatprep.subr.bf16.mxu0 0
      %1259 = vmatpush1.bf16.msra.mxu0 %v1096
      %1260 = vmatprep.subr.bf16.mxu0 0
      %1261 = vmatpush1.bf16.msra.mxu0 %v1097
      %1262 = vmatprep.subr.bf16.mxu0 0
      %1263 = vmatpush1.bf16.msra.mxu0 %v1098
      %1264 = vmatprep.subr.bf16.mxu0 0
      %1265 = vmatpush1.bf16.msra.mxu0 %v1099
      %1266 = vmatprep.subr.bf16.mxu0 0
      %1267 = vmatpush1.bf16.msra.mxu0 %v1100
      %1268 = vmatprep.subr.bf16.mxu0 0
      %1269 = vmatpush1.bf16.msra.mxu0 %v1101
      %1270 = vmatprep.subr.bf16.mxu0 0
      %1271 = vmatpush1.bf16.msra.mxu0 %v1102
      %1272 = vmatprep.subr.bf16.mxu0 0
      %1273 = vmatpush1.bf16.msra.mxu0 %v1103
      %1274 = vmatprep.subr.bf16.mxu0 0
      %1275 = vmatpush1.bf16.msra.mxu0 %v1104
      %1276 = vmatprep.subr.bf16.mxu0 0
      %1277 = vmatpush1.bf16.msra.mxu0 %v1105
      %1278 = vmatprep.subr.bf16.mxu0 0
      %1279 = vmatpush1.bf16.msra.mxu0 %v1106
      %1280 = vmatprep.subr.bf16.mxu0 0
      %1281 = vmatpush1.bf16.msra.mxu0 %v1107
      %1282 = vmatprep.subr.bf16.mxu0 0
      %1283 = vmatpush1.bf16.msra.mxu0 %v1108
      %1284 = vmatprep.mubr.bf16.mxu0 %v808
      %1285 = vmatmul.mubr.bf16.gmra.mrb[0].mxu0 %v807
      %v1286 = vpop.f32.mrb[0].mxu0
      %v1287 = vadd.f32 %v1247, %v1286
      %v1288 = vpop.f32.mrb[0].mxu0
      %v1289 = vpop.f32.mrb[0].mxu0
      %v1290 = vpop.f32.mrb[0].mxu0
      %1291 = vdwg.mxu0
      %1292 = vmatprep.subr.bf16.mxu0 0
      %1293 = vmatpush1.bf16.msra.mxu0 %v1109
      %1294 = vmatprep.subr.bf16.mxu0 0
      %1295 = vmatpush1.bf16.msra.mxu0 %v1110
      %1296 = vmatprep.subr.bf16.mxu0 0
      %1297 = vmatpush1.bf16.msra.mxu0 %v1111
      %1298 = vmatprep.subr.bf16.mxu0 0
      %1299 = vmatpush1.bf16.msra.mxu0 %v1112
      %1300 = vmatprep.subr.bf16.mxu0 0
      %1301 = vmatpush1.bf16.msra.mxu0 %v1113
      %1302 = vmatprep.subr.bf16.mxu0 0
      %1303 = vmatpush1.bf16.msra.mxu0 %v1114
      %1304 = vmatprep.subr.bf16.mxu0 0
      %1305 = vmatpush1.bf16.msra.mxu0 %v1115
      %1306 = vmatprep.subr.bf16.mxu0 0
      %1307 = vmatpush1.bf16.msra.mxu0 %v1116
      %1308 = vmatprep.subr.bf16.mxu0 0
      %1309 = vmatpush1.bf16.msra.mxu0 %v1117
      %1310 = vmatprep.subr.bf16.mxu0 0
      %1311 = vmatpush1.bf16.msra.mxu0 %v1118
      %1312 = vmatprep.subr.bf16.mxu0 0
      %1313 = vmatpush1.bf16.msra.mxu0 %v1119
      %1314 = vmatprep.subr.bf16.mxu0 0
      %1315 = vmatpush1.bf16.msra.mxu0 %v1120
      %1316 = vmatprep.subr.bf16.mxu0 0
      %1317 = vmatpush1.bf16.msra.mxu0 %v1121
      %1318 = vmatprep.subr.bf16.mxu0 0
      %1319 = vmatpush1.bf16.msra.mxu0 %v1122
      %1320 = vmatprep.subr.bf16.mxu0 0
      %1321 = vmatpush1.bf16.msra.mxu0 %v1123
      %1322 = vmatprep.subr.bf16.mxu0 0
      %1323 = vmatpush1.bf16.msra.mxu0 %v1124
      %1324 = vmatprep.mubr.bf16.mxu0 %v810
      %1325 = vmatmul.mubr.bf16.gmra.mrb[0].mxu0 %v809
      %v1326 = vpop.f32.mrb[0].mxu0
      %v1327 = vadd.f32 %v1287, %v1326
      %v1328 = vpop.f32.mrb[0].mxu0
      %v1329 = vpop.f32.mrb[0].mxu0
      %v1330 = vpop.f32.mrb[0].mxu0
      %1331 = vdwg.mxu0
      %1332 = vmatprep.subr.bf16.mxu0 0
      %1333 = vmatpush1.bf16.msra.mxu0 %v1125
      %1334 = vmatprep.subr.bf16.mxu0 0
      %1335 = vmatpush1.bf16.msra.mxu0 %v1126
      %1336 = vmatprep.subr.bf16.mxu0 0
      %1337 = vmatpush1.bf16.msra.mxu0 %v1127
      %1338 = vmatprep.subr.bf16.mxu0 0
      %1339 = vmatpush1.bf16.msra.mxu0 %v1128
      %1340 = vmatprep.subr.bf16.mxu0 0
      %1341 = vmatpush1.bf16.msra.mxu0 %v1129
      %1342 = vmatprep.subr.bf16.mxu0 0
      %1343 = vmatpush1.bf16.msra.mxu0 %v1130
      %1344 = vmatprep.subr.bf16.mxu0 0
      %1345 = vmatpush1.bf16.msra.mxu0 %v1131
      %1346 = vmatprep.subr.bf16.mxu0 0
      %1347 = vmatpush1.bf16.msra.mxu0 %v1132
      %1348 = vmatprep.subr.bf16.mxu0 0
      %1349 = vmatpush1.bf16.msra.mxu0 %v1133
      %1350 = vmatprep.subr.bf16.mxu0 0
      %1351 = vmatpush1.bf16.msra.mxu0 %v1134
      %1352 = vmatprep.subr.bf16.mxu0 0
      %1353 = vmatpush1.bf16.msra.mxu0 %v1135
      %1354 = vmatprep.subr.bf16.mxu0 0
      %1355 = vmatpush1.bf16.msra.mxu0 %v1136
      %1356 = vmatprep.subr.bf16.mxu0 0
      %1357 = vmatpush1.bf16.msra.mxu0 %v1137
      %1358 = vmatprep.subr.bf16.mxu0 0
      %1359 = vmatpush1.bf16.msra.mxu0 %v1138
      %1360 = vmatprep.subr.bf16.mxu0 0
      %1361 = vmatpush1.bf16.msra.mxu0 %v1139
      %1362 = vmatprep.subr.bf16.mxu0 0
      %1363 = vmatpush1.bf16.msra.mxu0 %v1140
      %1364 = vmatprep.mubr.bf16.mxu0 %v812
      %1365 = vmatmul.mubr.bf16.gmra.mrb[0].mxu0 %v811
      %v1366 = vpop.f32.mrb[0].mxu0
      %v1367 = vadd.f32 %v1327, %v1366
      %v1368 = vpop.f32.mrb[0].mxu0
      %v1369 = vpop.f32.mrb[0].mxu0
      %v1370 = vpop.f32.mrb[0].mxu0
      %1371 = vdwg.mxu0
      %1372 = vmatprep.subr.bf16.mxu0 0
      %1373 = vmatpush1.bf16.msra.mxu0 %v1141
      %1374 = vmatprep.subr.bf16.mxu0 0
      %1375 = vmatpush1.bf16.msra.mxu0 %v1142
      %1376 = vmatprep.subr.bf16.mxu0 0
      %1377 = vmatpush1.bf16.msra.mxu0 %v1143
      %1378 = vmatprep.subr.bf16.mxu0 0
      %1379 = vmatpush1.bf16.msra.mxu0 %v1144
      %1380 = vmatprep.subr.bf16.mxu0 0
      %1381 = vmatpush1.bf16.msra.mxu0 %v1145
      %1382 = vmatprep.subr.bf16.mxu0 0
      %1383 = vmatpush1.bf16.msra.mxu0 %v1146
      %1384 = vmatprep.subr.bf16.mxu0 0
      %1385 = vmatpush1.bf16.msra.mxu0 %v1147
      %1386 = vmatprep.subr.bf16.mxu0 0
      %1387 = vmatpush1.bf16.msra.mxu0 %v1148
      %1388 = vmatprep.subr.bf16.mxu0 0
      %1389 = vmatpush1.bf16.msra.mxu0 %v1149
      %1390 = vmatprep.subr.bf16.mxu0 0
      %1391 = vmatpush1.bf16.msra.mxu0 %v1150
      %1392 = vmatprep.subr.bf16.mxu0 0
      %1393 = vmatpush1.bf16.msra.mxu0 %v1151
      %1394 = vmatprep.subr.bf16.mxu0 0
      %1395 = vmatpush1.bf16.msra.mxu0 %v1152
      %1396 = vmatprep.subr.bf16.mxu0 0
      %1397 = vmatpush1.bf16.msra.mxu0 %v1153
      %1398 = vmatprep.subr.bf16.mxu0 0
      %1399 = vmatpush1.bf16.msra.mxu0 %v1154
      %1400 = vmatprep.subr.bf16.mxu0 0
      %1401 = vmatpush1.bf16.msra.mxu0 %v1155
      %1402 = vmatprep.subr.bf16.mxu0 0
      %1403 = vmatpush1.bf16.msra.mxu0 %v1156
      %1404 = vmatprep.mubr.bf16.mxu0 %v814
      %1405 = vmatmul.mubr.bf16.gmra.mrb[0].mxu0 %v813
      %v1406 = vpop.f32.mrb[0].mxu0
      %v1407 = vadd.f32 %v1367, %v1406
      %v1408 = vpop.f32.mrb[0].mxu0
      %v1409 = vpop.f32.mrb[0].mxu0
      %v1410 = vpop.f32.mrb[0].mxu0
      %1411 = vdwg.mxu0
      %1412 = vmatprep.subr.bf16.mxu0 0
      %1413 = vmatpush1.bf16.msra.mxu0 %v1157
      %1414 = vmatprep.subr.bf16.mxu0 0
      %1415 = vmatpush1.bf16.msra.mxu0 %v1158
      %1416 = vmatprep.subr.bf16.mxu0 0
      %1417 = vmatpush1.bf16.msra.mxu0 %v1159
      %1418 = vmatprep.subr.bf16.mxu0 0
      %1419 = vmatpush1.bf16.msra.mxu0 %v1160
      %1420 = vmatprep.subr.bf16.mxu0 0
      %1421 = vmatpush1.bf16.msra.mxu0 %v1161
      %1422 = vmatprep.subr.bf16.mxu0 0
      %1423 = vmatpush1.bf16.msra.mxu0 %v1162
      %1424 = vmatprep.subr.bf16.mxu0 0
      %1425 = vmatpush1.bf16.msra.mxu0 %v1163
      %1426 = vmatprep.subr.bf16.mxu0 0
      %1427 = vmatpush1.bf16.msra.mxu0 %v1164
      %1428 = vmatprep.subr.bf16.mxu0 0
      %1429 = vmatpush1.bf16.msra.mxu0 %v1165
      %1430 = vmatprep.subr.bf16.mxu0 0
      %1431 = vmatpush1.bf16.msra.mxu0 %v1166
      %1432 = vmatprep.subr.bf16.mxu0 0
      %1433 = vmatpush1.bf16.msra.mxu0 %v1167
      %1434 = vmatprep.subr.bf16.mxu0 0
      %1435 = vmatpush1.bf16.msra.mxu0 %v1168
      %1436 = vmatprep.subr.bf16.mxu0 0
      %1437 = vmatpush1.bf16.msra.mxu0 %v1169
      %1438 = vmatprep.subr.bf16.mxu0 0
      %1439 = vmatpush1.bf16.msra.mxu0 %v1170
      %1440 = vmatprep.subr.bf16.mxu0 0
      %1441 = vmatpush1.bf16.msra.mxu0 %v1171
      %1442 = vmatprep.subr.bf16.mxu0 0
      %1443 = vmatpush1.bf16.msra.mxu0 %v1172
      %1444 = vmatprep.mubr.bf16.mxu0 %v816
      %1445 = vmatmul.mubr.bf16.gmra.mrb[0].mxu0 %v815
      %v1446 = vpop.f32.mrb[0].mxu0
      %v1447 = vadd.f32 %v1407, %v1446
      %v1448 = vpop.f32.mrb[0].mxu0
      %v1449 = vpop.f32.mrb[0].mxu0
      %v1450 = vpop.f32.mrb[0].mxu0
      %1451 = vdwg.mxu0
      %1452 = vmatprep.subr.bf16.mxu0 0
      %1453 = vmatpush1.bf16.msra.mxu0 %v1173
      %1454 = vmatprep.subr.bf16.mxu0 0
      %1455 = vmatpush1.bf16.msra.mxu0 %v1174
      %1456 = vmatprep.subr.bf16.mxu0 0
      %1457 = vmatpush1.bf16.msra.mxu0 %v1175
      %1458 = vmatprep.subr.bf16.mxu0 0
      %1459 = vmatpush1.bf16.msra.mxu0 %v1176
      %1460 = vmatprep.subr.bf16.mxu0 0
      %1461 = vmatpush1.bf16.msra.mxu0 %v1177
      %1462 = vmatprep.subr.bf16.mxu0 0
      %1463 = vmatpush1.bf16.msra.mxu0 %v1178
      %1464 = vmatprep.subr.bf16.mxu0 0
      %1465 = vmatpush1.bf16.msra.mxu0 %v1179
      %1466 = vmatprep.subr.bf16.mxu0 0
      %1467 = vmatpush1.bf16.msra.mxu0 %v1180
      %1468 = vmatprep.subr.bf16.mxu0 0
      %1469 = vmatpush1.bf16.msra.mxu0 %v1181
      %1470 = vmatprep.subr.bf16.mxu0 0
      %1471 = vmatpush1.bf16.msra.mxu0 %v1182
      %1472 = vmatprep.subr.bf16.mxu0 0
      %1473 = vmatpush1.bf16.msra.mxu0 %v1183
      %1474 = vmatprep.subr.bf16.mxu0 0
      %1475 = vmatpush1.bf16.msra.mxu0 %v1184
      %1476 = vmatprep.subr.bf16.mxu0 0
      %1477 = vmatpush1.bf16.msra.mxu0 %v1185
      %1478 = vmatprep.subr.bf16.mxu0 0
      %1479 = vmatpush1.bf16.msra.mxu0 %v1186
      %1480 = vmatprep.subr.bf16.mxu0 0
      %1481 = vmatpush1.bf16.msra.mxu0 %v1187
      %1482 = vmatprep.subr.bf16.mxu0 0
      %1483 = vmatpush1.bf16.msra.mxu0 %v1188
      %1484 = vmatprep.mubr.bf16.mxu0 %v818
      %1485 = vmatmul.mubr.bf16.gmra.mrb[0].mxu0 %v817
      %v1486 = vpop.f32.mrb[0].mxu0
      %v1487 = vadd.f32 %v1447, %v1486
      %v1488 = vpop.f32.mrb[0].mxu0
      %v1489 = vpop.f32.mrb[0].mxu0
      %v1490 = vpop.f32.mrb[0].mxu0
      %1491 = vdwg.mxu0
      %1492 = vmatprep.subr.bf16.mxu0 0
      %1493 = vmatpush1.bf16.msra.mxu0 %v1189
      %1494 = vmatprep.subr.bf16.mxu0 0
      %1495 = vmatpush1.bf16.msra.mxu0 %v1190
      %1496 = vmatprep.subr.bf16.mxu0 0
      %1497 = vmatpush1.bf16.msra.mxu0 %v1191
      %1498 = vmatprep.subr.bf16.mxu0 0
      %1499 = vmatpush1.bf16.msra.mxu0 %v1192
      %1500 = vmatprep.subr.bf16.mxu0 0
      %1501 = vmatpush1.bf16.msra.mxu0 %v1193
      %1502 = vmatprep.subr.bf16.mxu0 0
      %1503 = vmatpush1.bf16.msra.mxu0 %v1194
      %1504 = vmatprep.subr.bf16.mxu0 0
      %1505 = vmatpush1.bf16.msra.mxu0 %v1195
      %1506 = vmatprep.subr.bf16.mxu0 0
      %1507 = vmatpush1.bf16.msra.mxu0 %v1196
      %1508 = vmatprep.subr.bf16.mxu0 0
      %1509 = vmatpush1.bf16.msra.mxu0 %v1197
      %1510 = vmatprep.subr.bf16.mxu0 0
      %1511 = vmatpush1.bf16.msra.mxu0 %v1198
      %1512 = vmatprep.subr.bf16.mxu0 0
      %1513 = vmatpush1.bf16.msra.mxu0 %v1199
      %1514 = vmatprep.subr.bf16.mxu0 0
      %1515 = vmatpush1.bf16.msra.mxu0 %v1200
      %1516 = vmatprep.subr.bf16.mxu0 0
      %1517 = vmatpush1.bf16.msra.mxu0 %v1201
      %1518 = vmatprep.subr.bf16.mxu0 0
      %1519 = vmatpush1.bf16.msra.mxu0 %v1202
      %1520 = vmatprep.subr.bf16.mxu0 0
      %1521 = vmatpush1.bf16.msra.mxu0 %v1203
      %1522 = vmatprep.subr.bf16.mxu0 0
      %1523 = vmatpush1.bf16.msra.mxu0 %v1204
      %1524 = vmatprep.mubr.bf16.mxu0 %v820
      %1525 = vmatmul.mubr.bf16.gmra.mrb[0].mxu0 %v819
      %v1526 = vpop.f32.mrb[0].mxu0
      %v1527 = vadd.f32 %v1487, %v1526
      %v1528 = vpop.f32.mrb[0].mxu0
      %v1529 = vpop.f32.mrb[0].mxu0
      %v1530 = vpop.f32.mrb[0].mxu0
      %1531 = vdwg.mxu0
      %v1532 = vadd.f32 %v275, %v1527
      %v1533 = vld [vmem:[%s5] sm:$0x1]
      %v1534 = vld [vmem:[%s6] sm:$0x1]
      %v1535 = vsel %vm457, %v1532, 0.0
      %1536 = vadd.xlane.f32.xlu0 %v1535
      %v1537 = vpop.xlane.xlu0 %1536
      %v1538 = vrcp.pop 32.0
      %v1539 = vmul.f32 %v1537, %v1538
      %v1540 = vsub.f32 %v1532, %v1539
      %v1541 = vmul.f32 %v1540, %v1540
      %v1542 = vsel %vm457, %v1541, 0.0
      %1543 = vadd.xlane.f32.xlu0 %v1542
      %v1544 = vpop.xlane.xlu0 %1543
      %v1545 = vmul.f32 %v1544, %v1538
      %v1546 = vadd.f32 %v1545, 1e-05
      %v1547 = vrsqrt.pop %v1546
      %v1548 = vmul.f32 %v1540, %v1547
      %v1550 = vlaneseq
      %v1551 = vshrl.u32 %v1550, 7
      %v1552 = vsub.s32 0, %v1551
      %v1553 = vrot.slane %v1533, %v1552
      %v1555 = vmul.f32 %v1548, %v1553
      %v1557 = vlaneseq
      %v1558 = vshrl.u32 %v1557, 7
      %v1559 = vsub.s32 0, %v1558
      %v1560 = vrot.slane %v1534, %v1559
      %v1562 = vadd.f32 %v1555, %v1560
      %1563 = vst.msk [vmem:[%s273] sm:$0xff] %vm457, %v1562
      %p1564 = scmp.lt.s32.totalorder %s18, 1
      %s1565 = scalar_select %p1564, %s18, 1
      %s1566 = smul.addr %s1565, 8
      %s1567 = scalar_lea.vmem %s7, %s1566
      // Predicated region
      $region49: #{translate_transformer_forward.13} parent=47 // pred_check
        %p1568 = pneg %p188
      $region50: #{translate_transformer_forward.13} parent=47 // pred_check_branch
        %1570 = sbr.rel (%p1568) target = $region52
      $region51: #{translate_transformer_forward.13} parent=47 // pred_region
        _
      $region52: #{translate_transformer_forward.13} parent=47 // pred_fallthru
        _
    $region48: #{translate_transformer_forward.13} parent=5 // pred_fallthru
      _
    %p1571 = scmp.le.s32.totalorder 2, %s13
    // Predicated region
    $region53: #{translate_transformer_forward.13} parent=5 // pred_check
      %p1572 = pneg %p1571
    $region54: #{translate_transformer_forward.13} parent=5 // pred_check_branch
      %1574 = sbr.rel (%p1572) target = $region56
    $region55: #{translate_transformer_forward.13} parent=5 // pred_region
      %s1575 = ssub.s32 %s13, 2
      // Predicated region
      $region57: #{translate_transformer_forward.13} parent=55 // pred_check
        %p1576 = pneg %p194
      $region58: #{translate_transformer_forward.13} parent=55 // pred_check_branch
        %1578 = sbr.rel (%p1576) target = $region60
      $region59: #{translate_transformer_forward.13} parent=55 // pred_region
        %p1579 = scmp.lt.s32.totalorder %s19, 1
        %s1580 = scalar_select %p1579, %s19, 1
        %s1581 = smul.addr %s1580, 8
        %s1582 = scalar_lea.vmem %s7, %s1581
      $region60: #{translate_transformer_forward.13} parent=55 // pred_fallthru
        _
    $region56: #{translate_transformer_forward.13} parent=5 // pred_fallthru
      _
  $region6: #{translate_transformer_forward.13} parent=0 // loop_footer
    %s17 = sadd.s32 1, %s13
  $region7: #{translate_transformer_forward.13} parent=0 // loop_footer_branch
    %12 = sbr.rel target = $region3
  $region8: #{translate_transformer_forward.13} parent=0 // loop_exit
    _

// kernel: translate_transformer_forward.23
$region0: #{translate_transformer_forward.23}
  #allocation0 [shape = 'u32[]', space=smem, size = 0x4, offset = 0x4, fixed_abs, tag = 'smem constant byte address 0x4 - core index']
  #allocation1 [shape = 'u32[144,128]{1,0:T(1,128)}', space=vmem, size = 0x12000, scoped, tag = 'internal scratch']
  %s0 = inlined_call_operand.vmem [shape: f32[2,8,32], index: 0, kind: input, shape index: {}]
  %s1 = inlined_call_operand.vmem [shape: f32[1,32], index: 1, kind: input, shape index: {}]
  %s2 = inlined_call_operand.vmem [shape: f32[1,32], index: 2, kind: input, shape index: {}]
  %s3 = inlined_call_operand.vmem [shape: f32[32,128], index: 3, kind: input, shape index: {}]
  %s4 = inlined_call_operand.vmem [shape: f32[1,128], index: 4, kind: input, shape index: {}]
  %s5 = inlined_call_operand.vmem [shape: f32[2,8,128], index: 5, kind: output, shape index: {}]
  %s6 = sld [smem:[#allocation0]]
  $region53: #{translate_transformer_forward.23} parent=0
    _
  %s8 = ssub.s32 1, %s6
  %s9 = scalar_select 0, %s8, %s6
  loop: start=0, step=1, limit=4
  $region2: #{translate_transformer_forward.23} parent=0 // loop_pre_header
    _
  $region3: #{translate_transformer_forward.23} parent=0 // loop_header
    %s11 = sphi 0, %s15
    %p12 = scmp.ge.s32.totalorder %s11, 4
    %s21 = sphi 0, %s23
    %s24 = sphi 0, %s21
    %s25 = sphi 0, %s24
    %s41 = sphi 0, %s25
    %s45 = sphi 0, %s45
    %s47 = sphi 0, %s45
    %s48 = sphi 0, %s47
    %s62 = sphi 0, %s48
    %s66 = sphi 0, %s66
    %s68 = sphi 0, %s66
    %s69 = sphi 0, %s68
    %s83 = sphi 0, %s69
    %s87 = sphi 0, %s87
    %s89 = sphi 0, %s87
    %s90 = sphi 0, %s89
    %s104 = sphi 0, %s90
    %s108 = sphi 0, %s108
    %s110 = sphi 0, %s108
    %s111 = sphi 0, %s110
    %s125 = sphi 0, %s111
    %s131 = sphi 0, %s133
    %s134 = sphi 0, %s131
    %s135 = sphi 0, %s134
    %s151 = sphi 0, %s135
  $region4: #{translate_transformer_forward.23} parent=0 // loop_header_branch
    %14 = sbr.rel (%p12) target = $region8
  $region5: #{translate_transformer_forward.23} parent=0 // loop_body
    %s16 = ssub.s32 %s11, 1
    %s17 = ssub.s32 %s11, 2
    %s18 = sadd.s32 %s11, 1
    %s19 = ssub.s32 %s11, %s18
    %p20 = scmp.eq.s32.totalorder %s19, 0
    %s22 = sadd.s32 %s21, 1
    %s23 = scalar_select %p20, %s21, %s22
    %p26 = pneg %p20
    %p27 = scmp.eq.s32.totalorder %s11, 1
    %p28 = por %p26, %p27
    %p29 = scmp.ne.s32.totalorder %s21, %s24
    %p30 = scmp.eq.s32.totalorder %s11, 0
    %p31 = por %p29, %p30
    %p32 = scmp.ne.s32.totalorder %s21, %s24
    %p33 = scmp.eq.s32.totalorder %s16, 1
    %p34 = por %p32, %p33
    %p35 = scmp.ne.s32.totalorder %s24, %s25
    %p36 = scmp.eq.s32.totalorder %s16, 0
    %p37 = por %p35, %p36
    %p38 = scmp.ne.s32.totalorder %s24, %s25
    %p39 = scmp.eq.s32.totalorder %s17, 1
    %p40 = por %p38, %p39
    %p42 = scmp.ne.s32.totalorder %s25, %s41
    %p43 = scmp.eq.s32.totalorder %s17, 0
    %p44 = por %p42, %p43
    %s46 = sadd.s32 %s45, 1
    %p49 = scmp.eq.s32.totalorder %s11, 1
    %p50 = scmp.ne.s32.totalorder %s45, %s47
    %p51 = scmp.eq.s32.totalorder %s11, 0
    %p52 = por %p50, %p51
    %p53 = scmp.ne.s32.totalorder %s45, %s47
    %p54 = scmp.eq.s32.totalorder %s16, 1
    %p55 = por %p53, %p54
    %p56 = scmp.ne.s32.totalorder %s47, %s48
    %p57 = scmp.eq.s32.totalorder %s16, 0
    %p58 = por %p56, %p57
    %p59 = scmp.ne.s32.totalorder %s47, %s48
    %p60 = scmp.eq.s32.totalorder %s17, 1
    %p61 = por %p59, %p60
    %p63 = scmp.ne.s32.totalorder %s48, %s62
    %p64 = scmp.eq.s32.totalorder %s17, 0
    %p65 = por %p63, %p64
    %s67 = sadd.s32 %s66, 1
    %p70 = scmp.eq.s32.totalorder %s11, 1
    %p71 = scmp.ne.s32.totalorder %s66, %s68
    %p72 = scmp.eq.s32.totalorder %s11, 0
    %p73 = por %p71, %p72
    %p74 = scmp.ne.s32.totalorder %s66, %s68
    %p75 = scmp.eq.s32.totalorder %s16, 1
    %p76 = por %p74, %p75
    %p77 = scmp.ne.s32.totalorder %s68, %s69
    %p78 = scmp.eq.s32.totalorder %s16, 0
    %p79 = por %p77, %p78
    %p80 = scmp.ne.s32.totalorder %s68, %s69
    %p81 = scmp.eq.s32.totalorder %s17, 1
    %p82 = por %p80, %p81
    %p84 = scmp.ne.s32.totalorder %s69, %s83
    %p85 = scmp.eq.s32.totalorder %s17, 0
    %p86 = por %p84, %p85
    %s88 = sadd.s32 %s87, 1
    %p91 = scmp.eq.s32.totalorder %s11, 1
    %p92 = scmp.ne.s32.totalorder %s87, %s89
    %p93 = scmp.eq.s32.totalorder %s11, 0
    %p94 = por %p92, %p93
    %p95 = scmp.ne.s32.totalorder %s87, %s89
    %p96 = scmp.eq.s32.totalorder %s16, 1
    %p97 = por %p95, %p96
    %p98 = scmp.ne.s32.totalorder %s89, %s90
    %p99 = scmp.eq.s32.totalorder %s16, 0
    %p100 = por %p98, %p99
    %p101 = scmp.ne.s32.totalorder %s89, %s90
    %p102 = scmp.eq.s32.totalorder %s17, 1
    %p103 = por %p101, %p102
    %p105 = scmp.ne.s32.totalorder %s90, %s104
    %p106 = scmp.eq.s32.totalorder %s17, 0
    %p107 = por %p105, %p106
    %s109 = sadd.s32 %s108, 1
    %p112 = scmp.eq.s32.totalorder %s11, 1
    %p113 = scmp.ne.s32.totalorder %s108, %s110
    %p114 = scmp.eq.s32.totalorder %s11, 0
    %p115 = por %p113, %p114
    %p116 = scmp.ne.s32.totalorder %s108, %s110
    %p117 = scmp.eq.s32.totalorder %s16, 1
    %p118 = por %p116, %p117
    %p119 = scmp.ne.s32.totalorder %s110, %s111
    %p120 = scmp.eq.s32.totalorder %s16, 0
    %p121 = por %p119, %p120
    %p122 = scmp.ne.s32.totalorder %s110, %s111
    %p123 = scmp.eq.s32.totalorder %s17, 1
    %p124 = por %p122, %p123
    %p126 = scmp.ne.s32.totalorder %s111, %s125
    %p127 = scmp.eq.s32.totalorder %s17, 0
    %p128 = por %p126, %p127
    %s129 = ssub.s32 %s11, %s18
    %p130 = scmp.eq.s32.totalorder %s129, 0
    %s132 = sadd.s32 %s131, 1
    %s133 = scalar_select %p130, %s131, %s132
    %p136 = pneg %p130
    %p137 = scmp.eq.s32.totalorder %s11, 1
    %p138 = por %p136, %p137
    %p139 = scmp.ne.s32.totalorder %s131, %s134
    %p140 = scmp.eq.s32.totalorder %s11, 0
    %p141 = por %p139, %p140
    %p142 = scmp.ne.s32.totalorder %s131, %s134
    %p143 = scmp.eq.s32.totalorder %s16, 1
    %p144 = por %p142, %p143
    %p145 = scmp.ne.s32.totalorder %s134, %s135
    %p146 = scmp.eq.s32.totalorder %s16, 0
    %p147 = por %p145, %p146
    %p148 = scmp.ne.s32.totalorder %s134, %s135
    %p149 = scmp.eq.s32.totalorder %s17, 1
    %p150 = por %p148, %p149
    %p152 = scmp.ne.s32.totalorder %s135, %s151
    %p153 = scmp.eq.s32.totalorder %s17, 0
    %p154 = por %p152, %p153
    %p155 = scmp.le.s32.totalorder 1, %s11
    %p156 = scmp.lt.s32.totalorder %s11, 3
    %p157 = pnand %p155, %p156
    %p158 = pneg %p157
    // Predicated region
    $region9: #{translate_transformer_forward.23} parent=5 // pred_check
      _
    $region10: #{translate_transformer_forward.23} parent=5 // pred_check_branch
      %160 = sbr.rel (%p157) target = $region12
    $region11: #{translate_transformer_forward.23} parent=5 // pred_region
      %s161 = ssub.s32 %s11, 1
      // Predicated region
      $region13: #{translate_transformer_forward.23} parent=11 // pred_check
        %p162 = pneg %p58
      $region14: #{translate_transformer_forward.23} parent=11 // pred_check_branch
        %164 = sbr.rel (%p162) target = $region16
      $region15: #{translate_transformer_forward.23} parent=11 // pred_region
        _
      $region16: #{translate_transformer_forward.23} parent=11 // pred_fallthru
        _
      // Predicated region
      $region17: #{translate_transformer_forward.23} parent=11 // pred_check
        %p165 = pneg %p79
      $region18: #{translate_transformer_forward.23} parent=11 // pred_check_branch
        %167 = sbr.rel (%p165) target = $region20
      $region19: #{translate_transformer_forward.23} parent=11 // pred_region
        _
      $region20: #{translate_transformer_forward.23} parent=11 // pred_fallthru
        _
      // Predicated region
      $region21: #{translate_transformer_forward.23} parent=11 // pred_check
        %p168 = pneg %p100
      $region22: #{translate_transformer_forward.23} parent=11 // pred_check_branch
        %170 = sbr.rel (%p168) target = $region24
      $region23: #{translate_transformer_forward.23} parent=11 // pred_region
        _
      $region24: #{translate_transformer_forward.23} parent=11 // pred_fallthru
        _
      // Predicated region
      $region25: #{translate_transformer_forward.23} parent=11 // pred_check
        %p171 = pneg %p121
      $region26: #{translate_transformer_forward.23} parent=11 // pred_check_branch
        %173 = sbr.rel (%p171) target = $region28
      $region27: #{translate_transformer_forward.23} parent=11 // pred_region
        _
      $region28: #{translate_transformer_forward.23} parent=11 // pred_fallthru
        _
    $region12: #{translate_transformer_forward.23} parent=5 // pred_fallthru
      _
    %p174 = scmp.lt.s32.totalorder %s11, 2
    // Predicated region
    $region29: #{translate_transformer_forward.23} parent=5 // pred_check
      %p175 = pneg %p174
    $region30: #{translate_transformer_forward.23} parent=5 // pred_check_branch
      %177 = sbr.rel (%p175) target = $region32
    $region31: #{translate_transformer_forward.23} parent=5 // pred_region
      // Predicated region
      $region33: #{translate_transformer_forward.23} parent=31 // pred_check
        %p178 = pneg %p31
      $region34: #{translate_transformer_forward.23} parent=31 // pred_check_branch
        %180 = sbr.rel (%p178) target = $region36
      $region35: #{translate_transformer_forward.23} parent=31 // pred_region
        %p181 = scmp.lt.s32.totalorder %s11, 1
        %s182 = scalar_select %p181, %s11, 1
        %s183 = smul.addr %s182, 8
        %s184 = scalar_lea.vmem %s0, %s183
      $region36: #{translate_transformer_forward.23} parent=31 // pred_fallthru
        _
    $region32: #{translate_transformer_forward.23} parent=5 // pred_fallthru
      _
    %p185 = scmp.le.s32.totalorder 1, %s11
    %p186 = scmp.lt.s32.totalorder %s11, 3
    %p187 = pnand %p185, %p186
    %p188 = pneg %p187
    // Predicated region
    $region37: #{translate_transformer_forward.23} parent=5 // pred_check
      _
    $region38: #{translate_transformer_forward.23} parent=5 // pred_check_branch
      %190 = sbr.rel (%p187) target = $region40
    $region39: #{translate_transformer_forward.23} parent=5 // pred_region
      %s191 = ssub.s32 %s11, 1
      %p192 = scmp.lt.s32.totalorder %s16, 1
      %s193 = scalar_select %p192, %s16, 1
      %s194 = smul.addr %s193, 8
      %s195 = scalar_lea.vmem %s0, %s194
      %p196 = pneg %p37
      %p197 = pneg %p34
      %p198 = pneg %p58
      %p199 = pneg %p55
      %p200 = pneg %p79
      %p201 = pneg %p76
      %p202 = pneg %p100
      %p203 = pneg %p97
      %p204 = pneg %p121
      %p205 = pneg %p118
      %p206 = pneg %p147
      %p207 = pneg %p144
      %p208 = scmp.lt.s32.totalorder %s16, 1
      %s209 = scalar_select %p208, %s16, 1
      %s210 = smul.addr %s209, 8
      %s211 = scalar_lea.vmem %s5, %s210
      %p212 = scmp.lt.s32.totalorder %s16, 1
      %s213 = scalar_select %p212, %s16, 1
      %s214 = smul.addr %s213, 8
      %s215 = scalar_lea.vmem %s0, %s214
      %p216 = scmp.lt.s32.totalorder %s16, 1
      %s217 = scalar_select %p216, %s16, 1
      %s218 = smul.addr %s217, 8
      %s219 = scalar_lea.vmem %s5, %s218
      %v221 = vld [vmem:[%s215] sm:$0xff]
      %v222 = vld [vmem:[%s1] sm:$0x1]
      %v223 = vld [vmem:[%s2] sm:$0x1]
      %vm224 = vcmask 261120
      %v225 = vsel %vm224, %v221, 0.0
      %226 = vadd.xlane.f32.xlu0 %v225
      %v227 = vpop.xlane.xlu0 %226
      %v228 = vrcp.pop 32.0
      %v229 = vmul.f32 %v227, %v228
      %v230 = vsub.f32 %v221, %v229
      %v231 = vmul.f32 %v230, %v230
      %v232 = vsel %vm224, %v231, 0.0
      %233 = vadd.xlane.f32.xlu0 %v232
      %v234 = vpop.xlane.xlu0 %233
      %v235 = vmul.f32 %v234, %v228
      %v236 = vadd.f32 %v235, 1e-05
      %v237 = vrsqrt.pop %v236
      %v238 = vmul.f32 %v230, %v237
      %v240 = vlaneseq
      %v241 = vshrl.u32 %v240, 7
      %v242 = vsub.s32 0, %v241
      %v243 = vrot.slane %v222, %v242
      %v245 = vmul.f32 %v238, %v243
      %v247 = vlaneseq
      %v248 = vshrl.u32 %v247, 7
      %v249 = vsub.s32 0, %v248
      %v250 = vrot.slane %v223, %v249
      %v252 = vadd.f32 %v245, %v250
      %v253 = vpack.c.bf16 %v252, %v252
      %v254 = vld [vmem:[%s3] sm:$0xff]
      %v255 = vld [vmem:[%s3 + $0x8] sm:$0xff]
      %v256 = vld [vmem:[%s3 + $0x10] sm:$0xff]
      %v257 = vld [vmem:[%s3 + $0x18] sm:$0xff]
      %v258 = vpack.c.bf16 %v255, %v254
      %v259 = vpack.c.bf16 %v257, %v256
      %v260 = vld [vmem:[%s4] sm:$0x1]
      %v262 = vlaneseq
      %v263 = vshrl.u32 %v262, 7
      %v264 = vsub.s32 0, %v263
      %v265 = vrot.slane %v260, %v264
      %v268 = vsel %vm224, %v253, 0
      %270 = vmatprep.subr.bf16.mxu0 0
      %271 = vmatpush1.bf16.msra.mxu0 %v258
      %272 = vmatprep.subr.bf16.mxu0 0
      %273 = vmatpush1.bf16.msra.mxu0 %v259
      %274 = vmatprep.subr.bf16.mxu0 0
      %275 = vmatpush1.bf16.msra.mxu0 0
      %276 = vmatprep.subr.bf16.mxu0 0
      %277 = vmatpush1.bf16.msra.mxu0 0
      %278 = vmatprep.subr.bf16.mxu0 0
      %279 = vmatpush1.bf16.msra.mxu0 0
      %280 = vmatprep.subr.bf16.mxu0 0
      %281 = vmatpush1.bf16.msra.mxu0 0
      %282 = vmatprep.subr.bf16.mxu0 0
      %283 = vmatpush1.bf16.msra.mxu0 0
      %284 = vmatprep.subr.bf16.mxu0 0
      %285 = vmatpush1.bf16.msra.mxu0 0
      %286 = vmatprep.subr.bf16.mxu0 0
      %287 = vmatpush1.bf16.msra.mxu0 0
      %288 = vmatprep.subr.bf16.mxu0 0
      %289 = vmatpush1.bf16.msra.mxu0 0
      %290 = vmatprep.subr.bf16.mxu0 0
      %291 = vmatpush1.bf16.msra.mxu0 0
      %292 = vmatprep.subr.bf16.mxu0 0
      %293 = vmatpush1.bf16.msra.mxu0 0
      %294 = vmatprep.subr.bf16.mxu0 0
      %295 = vmatpush1.bf16.msra.mxu0 0
      %296 = vmatprep.subr.bf16.mxu0 0
      %297 = vmatpush1.bf16.msra.mxu0 0
      %298 = vmatprep.subr.bf16.mxu0 0
      %299 = vmatpush1.bf16.msra.mxu0 0
      %300 = vmatprep.subr.bf16.mxu0 0
      %301 = vmatpush1.bf16.msra.mxu0 0
      %302 = vmatprep.mubr.bf16.mxu0 0
      %303 = vmatmul.mubr.bf16.gmra.mrb[0].mxu0 %v268
      %v304 = vpop.f32.mrb[0].mxu0
      %v305 = vadd.f32 %v265, %v304
      %v306 = vpop.f32.mrb[0].mxu0
      %v307 = vpop.f32.mrb[0].mxu0
      %v308 = vpop.f32.mrb[0].mxu0
      %309 = vdwg.mxu0
      %310 = vst [vmem:[%s219] sm:$0xff] %v305
      %p311 = scmp.lt.s32.totalorder %s16, 1
      %s312 = scalar_select %p311, %s16, 1
      %s313 = smul.addr %s312, 8
      %s314 = scalar_lea.vmem %s5, %s313
      // Predicated region
      $region41: #{translate_transformer_forward.23} parent=39 // pred_check
        %p315 = pneg %p144
      $region42: #{translate_transformer_forward.23} parent=39 // pred_check_branch
        %317 = sbr.rel (%p315) target = $region44
      $region43: #{translate_transformer_forward.23} parent=39 // pred_region
        _
      $region44: #{translate_transformer_forward.23} parent=39 // pred_fallthru
        _
    $region40: #{translate_transformer_forward.23} parent=5 // pred_fallthru
      _
    %p318 = scmp.le.s32.totalorder 2, %s11
    // Predicated region
    $region45: #{translate_transformer_forward.23} parent=5 // pred_check
      %p319 = pneg %p318
    $region46: #{translate_transformer_forward.23} parent=5 // pred_check_branch
      %321 = sbr.rel (%p319) target = $region48
    $region47: #{translate_transformer_forward.23} parent=5 // pred_region
      %s322 = ssub.s32 %s11, 2
      // Predicated region
      $region49: #{translate_transformer_forward.23} parent=47 // pred_check
        %p323 = pneg %p150
      $region50: #{translate_transformer_forward.23} parent=47 // pred_check_branch
        %325 = sbr.rel (%p323) target = $region52
      $region51: #{translate_transformer_forward.23} parent=47 // pred_region
        %p326 = scmp.lt.s32.totalorder %s17, 1
        %s327 = scalar_select %p326, %s17, 1
        %s328 = smul.addr %s327, 8
        %s329 = scalar_lea.vmem %s5, %s328
      $region52: #{translate_transformer_forward.23} parent=47 // pred_fallthru
        _
    $region48: #{translate_transformer_forward.23} parent=5 // pred_fallthru
      _
  $region6: #{translate_transformer_forward.23} parent=0 // loop_footer
    %s15 = sadd.s32 1, %s11
  $region7: #{translate_transformer_forward.23} parent=0 // loop_footer_branch
    %10 = sbr.rel target = $region3
  $region8: #{translate_transformer_forward.23} parent=0 // loop_exit
    _

// kernel: translate_transformer_forward.17
$region0: #{translate_transformer_forward.17}
  #allocation0 [shape = 'u32[]', space=smem, size = 0x4, offset = 0x4, fixed_abs, tag = 'smem constant byte address 0x4 - core index']
  #allocation1 [shape = 'u32[144,128]{1,0:T(1,128)}', space=vmem, size = 0x12000, scoped, tag = 'internal scratch']
  %s0 = inlined_call_operand.vmem [shape: f32[2,8,32], index: 0, kind: input, shape index: {}]
  %s1 = inlined_call_operand.vmem [shape: f32[32,96], index: 1, kind: input, shape index: {}]
  %s2 = inlined_call_operand.vmem [shape: f32[1,96], index: 2, kind: input, shape index: {}]
  %s3 = inlined_call_operand.vmem [shape: f32[32,32], index: 3, kind: input, shape index: {}]
  %s4 = inlined_call_operand.vmem [shape: f32[1,32], index: 4, kind: input, shape index: {}]
  %s5 = inlined_call_operand.vmem [shape: f32[1,32], index: 5, kind: input, shape index: {}]
  %s6 = inlined_call_operand.vmem [shape: f32[1,32], index: 6, kind: input, shape index: {}]
  %s7 = inlined_call_operand.vmem [shape: f32[2,8,32], index: 7, kind: output, shape index: {}]
  %s8 = sld [smem:[#allocation0]]
  $region61: #{translate_transformer_forward.17} parent=0
    _
  %s10 = ssub.s32 1, %s8
  %s11 = scalar_select 0, %s10, %s8
  loop: start=0, step=1, limit=4
  $region2: #{translate_transformer_forward.17} parent=0 // loop_pre_header
    _
  $region3: #{translate_transformer_forward.17} parent=0 // loop_header
    %s13 = sphi 0, %s17
    %p14 = scmp.ge.s32.totalorder %s13, 4
    %s23 = sphi 0, %s25
    %s26 = sphi 0, %s23
    %s27 = sphi 0, %s26
    %s43 = sphi 0, %s27
    %s47 = sphi 0, %s47
    %s49 = sphi 0, %s47
    %s50 = sphi 0, %s49
    %s64 = sphi 0, %s50
    %s68 = sphi 0, %s68
    %s70 = sphi 0, %s68
    %s71 = sphi 0, %s70
    %s85 = sphi 0, %s71
    %s89 = sphi 0, %s89
    %s91 = sphi 0, %s89
    %s92 = sphi 0, %s91
    %s106 = sphi 0, %s92
    %s110 = sphi 0, %s110
    %s112 = sphi 0, %s110
    %s113 = sphi 0, %s112
    %s127 = sphi 0, %s113
    %s131 = sphi 0, %s131
    %s133 = sphi 0, %s131
    %s134 = sphi 0, %s133
    %s148 = sphi 0, %s134
    %s152 = sphi 0, %s152
    %s154 = sphi 0, %s152
    %s155 = sphi 0, %s154
    %s169 = sphi 0, %s155
    %s175 = sphi 0, %s177
    %s178 = sphi 0, %s175
    %s179 = sphi 0, %s178
    %s195 = sphi 0, %s179
  $region4: #{translate_transformer_forward.17} parent=0 // loop_header_branch
    %16 = sbr.rel (%p14) target = $region8
  $region5: #{translate_transformer_forward.17} parent=0 // loop_body
    %s18 = ssub.s32 %s13, 1
    %s19 = ssub.s32 %s13, 2
    %s20 = sadd.s32 %s13, 1
    %s21 = ssub.s32 %s13, %s20
    %p22 = scmp.eq.s32.totalorder %s21, 0
    %s24 = sadd.s32 %s23, 1
    %s25 = scalar_select %p22, %s23, %s24
    %p28 = pneg %p22
    %p29 = scmp.eq.s32.totalorder %s13, 1
    %p30 = por %p28, %p29
    %p31 = scmp.ne.s32.totalorder %s23, %s26
    %p32 = scmp.eq.s32.totalorder %s13, 0
    %p33 = por %p31, %p32
    %p34 = scmp.ne.s32.totalorder %s23, %s26
    %p35 = scmp.eq.s32.totalorder %s18, 1
    %p36 = por %p34, %p35
    %p37 = scmp.ne.s32.totalorder %s26, %s27
    %p38 = scmp.eq.s32.totalorder %s18, 0
    %p39 = por %p37, %p38
    %p40 = scmp.ne.s32.totalorder %s26, %s27
    %p41 = scmp.eq.s32.totalorder %s19, 1
    %p42 = por %p40, %p41
    %p44 = scmp.ne.s32.totalorder %s27, %s43
    %p45 = scmp.eq.s32.totalorder %s19, 0
    %p46 = por %p44, %p45
    %s48 = sadd.s32 %s47, 1
    %p51 = scmp.eq.s32.totalorder %s13, 1
    %p52 = scmp.ne.s32.totalorder %s47, %s49
    %p53 = scmp.eq.s32.totalorder %s13, 0
    %p54 = por %p52, %p53
    %p55 = scmp.ne.s32.totalorder %s47, %s49
    %p56 = scmp.eq.s32.totalorder %s18, 1
    %p57 = por %p55, %p56
    %p58 = scmp.ne.s32.totalorder %s49, %s50
    %p59 = scmp.eq.s32.totalorder %s18, 0
    %p60 = por %p58, %p59
    %p61 = scmp.ne.s32.totalorder %s49, %s50
    %p62 = scmp.eq.s32.totalorder %s19, 1
    %p63 = por %p61, %p62
    %p65 = scmp.ne.s32.totalorder %s50, %s64
    %p66 = scmp.eq.s32.totalorder %s19, 0
    %p67 = por %p65, %p66
    %s69 = sadd.s32 %s68, 1
    %p72 = scmp.eq.s32.totalorder %s13, 1
    %p73 = scmp.ne.s32.totalorder %s68, %s70
    %p74 = scmp.eq.s32.totalorder %s13, 0
    %p75 = por %p73, %p74
    %p76 = scmp.ne.s32.totalorder %s68, %s70
    %p77 = scmp.eq.s32.totalorder %s18, 1
    %p78 = por %p76, %p77
    %p79 = scmp.ne.s32.totalorder %s70, %s71
    %p80 = scmp.eq.s32.totalorder %s18, 0
    %p81 = por %p79, %p80
    %p82 = scmp.ne.s32.totalorder %s70, %s71
    %p83 = scmp.eq.s32.totalorder %s19, 1
    %p84 = por %p82, %p83
    %p86 = scmp.ne.s32.totalorder %s71, %s85
    %p87 = scmp.eq.s32.totalorder %s19, 0
    %p88 = por %p86, %p87
    %s90 = sadd.s32 %s89, 1
    %p93 = scmp.eq.s32.totalorder %s13, 1
    %p94 = scmp.ne.s32.totalorder %s89, %s91
    %p95 = scmp.eq.s32.totalorder %s13, 0
    %p96 = por %p94, %p95
    %p97 = scmp.ne.s32.totalorder %s89, %s91
    %p98 = scmp.eq.s32.totalorder %s18, 1
    %p99 = por %p97, %p98
    %p100 = scmp.ne.s32.totalorder %s91, %s92
    %p101 = scmp.eq.s32.totalorder %s18, 0
    %p102 = por %p100, %p101
    %p103 = scmp.ne.s32.totalorder %s91, %s92
    %p104 = scmp.eq.s32.totalorder %s19, 1
    %p105 = por %p103, %p104
    %p107 = scmp.ne.s32.totalorder %s92, %s106
    %p108 = scmp.eq.s32.totalorder %s19, 0
    %p109 = por %p107, %p108
    %s111 = sadd.s32 %s110, 1
    %p114 = scmp.eq.s32.totalorder %s13, 1
    %p115 = scmp.ne.s32.totalorder %s110, %s112
    %p116 = scmp.eq.s32.totalorder %s13, 0
    %p117 = por %p115, %p116
    %p118 = scmp.ne.s32.totalorder %s110, %s112
    %p119 = scmp.eq.s32.totalorder %s18, 1
    %p120 = por %p118, %p119
    %p121 = scmp.ne.s32.totalorder %s112, %s113
    %p122 = scmp.eq.s32.totalorder %s18, 0
    %p123 = por %p121, %p122
    %p124 = scmp.ne.s32.totalorder %s112, %s113
    %p125 = scmp.eq.s32.totalorder %s19, 1
    %p126 = por %p124, %p125
    %p128 = scmp.ne.s32.totalorder %s113, %s127
    %p129 = scmp.eq.s32.totalorder %s19, 0
    %p130 = por %p128, %p129
    %s132 = sadd.s32 %s131, 1
    %p135 = scmp.eq.s32.totalorder %s13, 1
    %p136 = scmp.ne.s32.totalorder %s131, %s133
    %p137 = scmp.eq.s32.totalorder %s13, 0
    %p138 = por %p136, %p137
    %p139 = scmp.ne.s32.totalorder %s131, %s133
    %p140 = scmp.eq.s32.totalorder %s18, 1
    %p141 = por %p139, %p140
    %p142 = scmp.ne.s32.totalorder %s133, %s134
    %p143 = scmp.eq.s32.totalorder %s18, 0
    %p144 = por %p142, %p143
    %p145 = scmp.ne.s32.totalorder %s133, %s134
    %p146 = scmp.eq.s32.totalorder %s19, 1
    %p147 = por %p145, %p146
    %p149 = scmp.ne.s32.totalorder %s134, %s148
    %p150 = scmp.eq.s32.totalorder %s19, 0
    %p151 = por %p149, %p150
    %s153 = sadd.s32 %s152, 1
    %p156 = scmp.eq.s32.totalorder %s13, 1
    %p157 = scmp.ne.s32.totalorder %s152, %s154
    %p158 = scmp.eq.s32.totalorder %s13, 0
    %p159 = por %p157, %p158
    %p160 = scmp.ne.s32.totalorder %s152, %s154
    %p161 = scmp.eq.s32.totalorder %s18, 1
    %p162 = por %p160, %p161
    %p163 = scmp.ne.s32.totalorder %s154, %s155
    %p164 = scmp.eq.s32.totalorder %s18, 0
    %p165 = por %p163, %p164
    %p166 = scmp.ne.s32.totalorder %s154, %s155
    %p167 = scmp.eq.s32.totalorder %s19, 1
    %p168 = por %p166, %p167
    %p170 = scmp.ne.s32.totalorder %s155, %s169
    %p171 = scmp.eq.s32.totalorder %s19, 0
    %p172 = por %p170, %p171
    %s173 = ssub.s32 %s13, %s20
    %p174 = scmp.eq.s32.totalorder %s173, 0
    %s176 = sadd.s32 %s175, 1
    %s177 = scalar_select %p174, %s175, %s176
    %p180 = pneg %p174
    %p181 = scmp.eq.s32.totalorder %s13, 1
    %p182 = por %p180, %p181
    %p183 = scmp.ne.s32.totalorder %s175, %s178
    %p184 = scmp.eq.s32.totalorder %s13, 0
    %p185 = por %p183, %p184
    %p186 = scmp.ne.s32.totalorder %s175, %s178
    %p187 = scmp.eq.s32.totalorder %s18, 1
    %p188 = por %p186, %p187
    %p189 = scmp.ne.s32.totalorder %s178, %s179
    %p190 = scmp.eq.s32.totalorder %s18, 0
    %p191 = por %p189, %p190
    %p192 = scmp.ne.s32.totalorder %s178, %s179
    %p193 = scmp.eq.s32.totalorder %s19, 1
    %p194 = por %p192, %p193
    %p196 = scmp.ne.s32.totalorder %s179, %s195
    %p197 = scmp.eq.s32.totalorder %s19, 0
    %p198 = por %p196, %p197
    %p199 = scmp.le.s32.totalorder 1, %s13
    %p200 = scmp.lt.s32.totalorder %s13, 3
    %p201 = pnand %p199, %p200
    %p202 = pneg %p201
    // Predicated region
    $region9: #{translate_transformer_forward.17} parent=5 // pred_check
      _
    $region10: #{translate_transformer_forward.17} parent=5 // pred_check_branch
      %204 = sbr.rel (%p201) target = $region12
    $region11: #{translate_transformer_forward.17} parent=5 // pred_region
      %s205 = ssub.s32 %s13, 1
      // Predicated region
      $region13: #{translate_transformer_forward.17} parent=11 // pred_check
        %p206 = pneg %p60
      $region14: #{translate_transformer_forward.17} parent=11 // pred_check_branch
        %208 = sbr.rel (%p206) target = $region16
      $region15: #{translate_transformer_forward.17} parent=11 // pred_region
        _
      $region16: #{translate_transformer_forward.17} parent=11 // pred_fallthru
        _
      // Predicated region
      $region17: #{translate_transformer_forward.17} parent=11 // pred_check
        %p209 = pneg %p81
      $region18: #{translate_transformer_forward.17} parent=11 // pred_check_branch
        %211 = sbr.rel (%p209) target = $region20
      $region19: #{translate_transformer_forward.17} parent=11 // pred_region
        _
      $region20: #{translate_transformer_forward.17} parent=11 // pred_fallthru
        _
      // Predicated region
      $region21: #{translate_transformer_forward.17} parent=11 // pred_check
        %p212 = pneg %p102
      $region22: #{translate_transformer_forward.17} parent=11 // pred_check_branch
        %214 = sbr.rel (%p212) target = $region24
      $region23: #{translate_transformer_forward.17} parent=11 // pred_region
        _
      $region24: #{translate_transformer_forward.17} parent=11 // pred_fallthru
        _
      // Predicated region
      $region25: #{translate_transformer_forward.17} parent=11 // pred_check
        %p215 = pneg %p123
      $region26: #{translate_transformer_forward.17} parent=11 // pred_check_branch
        %217 = sbr.rel (%p215) target = $region28
      $region27: #{translate_transformer_forward.17} parent=11 // pred_region
        _
      $region28: #{translate_transformer_forward.17} parent=11 // pred_fallthru
        _
      // Predicated region
      $region29: #{translate_transformer_forward.17} parent=11 // pred_check
        %p218 = pneg %p144
      $region30: #{translate_transformer_forward.17} parent=11 // pred_check_branch
        %220 = sbr.rel (%p218) target = $region32
      $region31: #{translate_transformer_forward.17} parent=11 // pred_region
        _
      $region32: #{translate_transformer_forward.17} parent=11 // pred_fallthru
        _
      // Predicated region
      $region33: #{translate_transformer_forward.17} parent=11 // pred_check
        %p221 = pneg %p165
      $region34: #{translate_transformer_forward.17} parent=11 // pred_check_branch
        %223 = sbr.rel (%p221) target = $region36
      $region35: #{translate_transformer_forward.17} parent=11 // pred_region
        _
      $region36: #{translate_transformer_forward.17} parent=11 // pred_fallthru
        _
    $region12: #{translate_transformer_forward.17} parent=5 // pred_fallthru
      _
    %p224 = scmp.lt.s32.totalorder %s13, 2
    // Predicated region
    $region37: #{translate_transformer_forward.17} parent=5 // pred_check
      %p225 = pneg %p224
    $region38: #{translate_transformer_forward.17} parent=5 // pred_check_branch
      %227 = sbr.rel (%p225) target = $region40
    $region39: #{translate_transformer_forward.17} parent=5 // pred_region
      // Predicated region
      $region41: #{translate_transformer_forward.17} parent=39 // pred_check
        %p228 = pneg %p33
      $region42: #{translate_transformer_forward.17} parent=39 // pred_check_branch
        %230 = sbr.rel (%p228) target = $region44
      $region43: #{translate_transformer_forward.17} parent=39 // pred_region
        %p231 = scmp.lt.s32.totalorder %s13, 1
        %s232 = scalar_select %p231, %s13, 1
        %s233 = smul.addr %s232, 8
        %s234 = scalar_lea.vmem %s0, %s233
      $region44: #{translate_transformer_forward.17} parent=39 // pred_fallthru
        _
    $region40: #{translate_transformer_forward.17} parent=5 // pred_fallthru
      _
    %p235 = scmp.le.s32.totalorder 1, %s13
    %p236 = scmp.lt.s32.totalorder %s13, 3
    %p237 = pnand %p235, %p236
    %p238 = pneg %p237
    // Predicated region
    $region45: #{translate_transformer_forward.17} parent=5 // pred_check
      _
    $region46: #{translate_transformer_forward.17} parent=5 // pred_check_branch
      %240 = sbr.rel (%p237) target = $region48
    $region47: #{translate_transformer_forward.17} parent=5 // pred_region
      %s241 = ssub.s32 %s13, 1
      %p242 = scmp.lt.s32.totalorder %s18, 1
      %s243 = scalar_select %p242, %s18, 1
      %s244 = smul.addr %s243, 8
      %s245 = scalar_lea.vmem %s0, %s244
      %p246 = pneg %p39
      %p247 = pneg %p36
      %p248 = pneg %p60
      %p249 = pneg %p57
      %p250 = pneg %p81
      %p251 = pneg %p78
      %p252 = pneg %p102
      %p253 = pneg %p99
      %p254 = pneg %p123
      %p255 = pneg %p120
      %p256 = pneg %p144
      %p257 = pneg %p141
      %p258 = pneg %p165
      %p259 = pneg %p162
      %p260 = pneg %p191
      %p261 = pneg %p188
      %p262 = scmp.lt.s32.totalorder %s18, 1
      %s263 = scalar_select %p262, %s18, 1
      %s264 = smul.addr %s263, 8
      %s265 = scalar_lea.vmem %s7, %s264
      %p266 = scmp.lt.s32.totalorder %s18, 1
      %s267 = scalar_select %p266, %s18, 1
      %s268 = smul.addr %s267, 8
      %s269 = scalar_lea.vmem %s0, %s268
      %p270 = scmp.lt.s32.totalorder %s18, 1
      %s271 = scalar_select %p270, %s18, 1
      %s272 = smul.addr %s271, 8
      %s273 = scalar_lea.vmem %s7, %s272
      %v275 = vld [vmem:[%s269] sm:$0xff]
      %v276 = vpack.c.bf16 %v275, %v275
      %v277 = vld [vmem:[%s1] sm:$0xff]
      %v278 = vld [vmem:[%s1 + $0x8] sm:$0xff]
      %v279 = vld [vmem:[%s1 + $0x10] sm:$0xff]
      %v280 = vld [vmem:[%s1 + $0x18] sm:$0xff]
      %v281 = vpack.c.bf16 %v278, %v277
      %v282 = vpack.c.bf16 %v280, %v279
      %v283 = vld [vmem:[%s2] sm:$0x1]
      %v285 = vlaneseq
      %v286 = vshrl.u32 %v285, 7
      %v287 = vsub.s32 0, %v286
      %v288 = vrot.slane %v283, %v287
      %vm290 = vcmask 261120
      %v292 = vsel %vm290, %v276, 0
      %294 = vmatprep.subr.bf16.mxu0 0
      %295 = vmatpush1.bf16.msra.mxu0 %v281
      %296 = vmatprep.subr.bf16.mxu0 0
      %297 = vmatpush1.bf16.msra.mxu0 %v282
      %298 = vmatprep.subr.bf16.mxu0 0
      %299 = vmatpush1.bf16.msra.mxu0 0
      %300 = vmatprep.subr.bf16.mxu0 0
      %301 = vmatpush1.bf16.msra.mxu0 0
      %302 = vmatprep.subr.bf16.mxu0 0
      %303 = vmatpush1.bf16.msra.mxu0 0
      %304 = vmatprep.subr.bf16.mxu0 0
      %305 = vmatpush1.bf16.msra.mxu0 0
      %306 = vmatprep.subr.bf16.mxu0 0
      %307 = vmatpush1.bf16.msra.mxu0 0
      %308 = vmatprep.subr.bf16.mxu0 0
      %309 = vmatpush1.bf16.msra.mxu0 0
      %310 = vmatprep.subr.bf16.mxu0 0
      %311 = vmatpush1.bf16.msra.mxu0 0
      %312 = vmatprep.subr.bf16.mxu0 0
      %313 = vmatpush1.bf16.msra.mxu0 0
      %314 = vmatprep.subr.bf16.mxu0 0
      %315 = vmatpush1.bf16.msra.mxu0 0
      %316 = vmatprep.subr.bf16.mxu0 0
      %317 = vmatpush1.bf16.msra.mxu0 0
      %318 = vmatprep.subr.bf16.mxu0 0
      %319 = vmatpush1.bf16.msra.mxu0 0
      %320 = vmatprep.subr.bf16.mxu0 0
      %321 = vmatpush1.bf16.msra.mxu0 0
      %322 = vmatprep.subr.bf16.mxu0 0
      %323 = vmatpush1.bf16.msra.mxu0 0
      %324 = vmatprep.subr.bf16.mxu0 0
      %325 = vmatpush1.bf16.msra.mxu0 0
      %326 = vmatprep.mubr.bf16.mxu0 0
      %327 = vmatmul.mubr.bf16.gmra.mrb[0].mxu0 %v292
      %v328 = vpop.f32.mrb[0].mxu0
      %v329 = vadd.f32 %v288, %v328
      %v330 = vpop.f32.mrb[0].mxu0
      %v331 = vpop.f32.mrb[0].mxu0
      %v332 = vpop.f32.mrb[0].mxu0
      %333 = vdwg.mxu0
      %v334 = vlaneseq
      %v335 = vshrl.u32 %v334, 7
      %v336 = vlaneseq
      %v337 = vand.u32 %v336, 127
      %vm338 = vcmp.gt.s32.totalorder %v337, %v335
      %v339 = vsel %vm338, -1e+09, 0.0
      %v340 = vld [vmem:[%s3] sm:$0xff]
      %v341 = vld [vmem:[%s3 + $0x8] sm:$0xff]
      %v342 = vld [vmem:[%s3 + $0x10] sm:$0xff]
      %v343 = vld [vmem:[%s3 + $0x18] sm:$0xff]
      %345 = vrot.lane.b32.xlu0 %v329, 96
      %v346 = vpop.permute.xlu0 %345
      %vm347 = vcmask 64512
      %v348 = vsel %vm347, %v329, 0
      %v350 = vsel %vm347, %v346, 0
      %352 = vmatprep.subr.mxu0 0.0
      %353 = vmatpush1.xpose.msra.mxu0 %v350
      %354 = vmatprep.subr.mxu0 0.0
      %355 = vmatpush1.xpose.msra.mxu0 0.0
      %356 = vmatprep.subr.mxu0 0.0
      %357 = vmatpush1.xpose.msra.mxu0 0.0
      %358 = vmatprep.subr.mxu0 0.0
      %359 = vmatpush1.xpose.msra.mxu0 0.0
      %360 = vmatprep.subr.mxu0 0.0
      %361 = vmatpush1.xpose.msra.mxu0 0.0
      %362 = vmatprep.subr.mxu0 0.0
      %363 = vmatpush1.xpose.msra.mxu0 0.0
      %364 = vmatprep.subr.mxu0 0.0
      %365 = vmatpush1.xpose.msra.mxu0 0.0
      %366 = vmatprep.subr.mxu0 0.0
      %367 = vmatpush1.xpose.msra.mxu0 0.0
      %368 = vmatprep.subr.mxu0 0.0
      %369 = vmatpush1.xpose.msra.mxu0 0.0
      %370 = vmatprep.subr.mxu0 0.0
      %371 = vmatpush1.xpose.msra.mxu0 0.0
      %372 = vmatprep.subr.mxu0 0.0
      %373 = vmatpush1.xpose.msra.mxu0 0.0
      %374 = vmatprep.subr.mxu0 0.0
      %375 = vmatpush1.xpose.msra.mxu0 0.0
      %376 = vmatprep.subr.mxu0 0.0
      %377 = vmatpush1.xpose.msra.mxu0 0.0
      %378 = vmatprep.subr.mxu0 0.0
      %379 = vmatpush1.xpose.msra.mxu0 0.0
      %380 = vmatprep.subr.mxu0 0.0
      %381 = vmatpush1.xpose.msra.mxu0 0.0
      %382 = vmatprep.subr.mxu0 0.0
      %383 = vmatpush1.xpose.msra.mxu0 0.0
      %384 = vmatprep.subr.mxu0 0.0
      %385 = vmatpush1.xpose.msra.mxu0 0.0
      %386 = vmatprep.subr.mxu0 0.0
      %387 = vmatpush1.xpose.msra.mxu0 0.0
      %388 = vmatprep.subr.mxu0 0.0
      %389 = vmatpush1.xpose.msra.mxu0 0.0
      %390 = vmatprep.subr.mxu0 0.0
      %391 = vmatpush1.xpose.msra.mxu0 0.0
      %392 = vmatprep.subr.mxu0 0.0
      %393 = vmatpush1.xpose.msra.mxu0 0.0
      %394 = vmatprep.subr.mxu0 0.0
      %395 = vmatpush1.xpose.msra.mxu0 0.0
      %396 = vmatprep.subr.mxu0 0.0
      %397 = vmatpush1.xpose.msra.mxu0 0.0
      %398 = vmatprep.subr.mxu0 0.0
      %399 = vmatpush1.xpose.msra.mxu0 0.0
      %400 = vmatprep.subr.mxu0 0.0
      %401 = vmatpush1.xpose.msra.mxu0 0.0
      %402 = vmatprep.subr.mxu0 0.0
      %403 = vmatpush1.xpose.msra.mxu0 0.0
      %404 = vmatprep.subr.mxu0 0.0
      %405 = vmatpush1.xpose.msra.mxu0 0.0
      %406 = vmatprep.subr.mxu0 0.0
      %407 = vmatpush1.xpose.msra.mxu0 0.0
      %408 = vmatprep.subr.mxu0 0.0
      %409 = vmatpush1.xpose.msra.mxu0 0.0
      %410 = vmatprep.subr.mxu0 0.0
      %411 = vmatpush1.xpose.msra.mxu0 0.0
      %412 = vmatprep.subr.mxu0 0.0
      %413 = vmatpush1.xpose.msra.mxu0 0.0
      %414 = vmatprep.subr.mxu0 0.0
      %415 = vmatpush1.xpose.msra.mxu0 0.0
      %416 = vmatprep.mubr.f32.mxu0 0.0
      %417 = vmatmul.mubr.f32.gmra.mrb[0].mxu0 %v348
      %v418 = vpop.f32.mrb[0].mxu0
      %v419 = vadd.f32 0.0, %v418
      %v420 = vpop.f32.mrb[0].mxu0
      %421 = vdwg.mxu0
      %v422 = vmul.f32 %v419, 0.35355338
      %v423 = vadd.f32 %v422, %v339
      %v424 = vsel %vm347, %v423, -inf
      %425 = vmax.xlane.f32.xlu0 %v424
      %v426 = vpop.xlane.xlu0 %425
      %v427 = vsub.f32 %v423, %v426
      %v428 = vmul.f32 %v427, 1.442695
      %v429 = vpow.pop %v428
      %v430 = vsel %vm347, %v429, 0.0
      %431 = vadd.xlane.f32.xlu0 %v430
      %v432 = vpop.xlane.xlu0 %431
      %v433 = vrcp.pop %v432
      %v434 = vmul.f32 %v429, %v433
      %435 = vrot.lane.b32.xlu0 %v329, 64
      %v436 = vpop.permute.xlu0 %435
      %v439 = vsel %vm347, %v434, 0
      %441 = vmatprep.subr.mxu0 0.0
      %442 = vmatpush1.msra.mxu0 %v436
      %443 = vmatprep.subr.mxu0 0.0
      %444 = vmatpush1.msra.mxu0 0.0
      %445 = vmatprep.subr.mxu0 0.0
      %446 = vmatpush1.msra.mxu0 0.0
      %447 = vmatprep.subr.mxu0 0.0
      %448 = vmatpush1.msra.mxu0 0.0
      %449 = vmatprep.subr.mxu0 0.0
      %450 = vmatpush1.msra.mxu0 0.0
      %451 = vmatprep.subr.mxu0 0.0
      %452 = vmatpush1.msra.mxu0 0.0
      %453 = vmatprep.subr.mxu0 0.0
      %454 = vmatpush1.msra.mxu0 0.0
      %455 = vmatprep.subr.mxu0 0.0
      %456 = vmatpush1.msra.mxu0 0.0
      %457 = vmatprep.subr.mxu0 0.0
      %458 = vmatpush1.msra.mxu0 0.0
      %459 = vmatprep.subr.mxu0 0.0
      %460 = vmatpush1.msra.mxu0 0.0
      %461 = vmatprep.subr.mxu0 0.0
      %462 = vmatpush1.msra.mxu0 0.0
      %463 = vmatprep.subr.mxu0 0.0
      %464 = vmatpush1.msra.mxu0 0.0
      %465 = vmatprep.subr.mxu0 0.0
      %466 = vmatpush1.msra.mxu0 0.0
      %467 = vmatprep.subr.mxu0 0.0
      %468 = vmatpush1.msra.mxu0 0.0
      %469 = vmatprep.subr.mxu0 0.0
      %470 = vmatpush1.msra.mxu0 0.0
      %471 = vmatprep.subr.mxu0 0.0
      %472 = vmatpush1.msra.mxu0 0.0
      %473 = vmatprep.subr.mxu0 0.0
      %474 = vmatpush1.msra.mxu0 0.0
      %475 = vmatprep.subr.mxu0 0.0
      %476 = vmatpush1.msra.mxu0 0.0
      %477 = vmatprep.subr.mxu0 0.0
      %478 = vmatpush1.msra.mxu0 0.0
      %479 = vmatprep.subr.mxu0 0.0
      %480 = vmatpush1.msra.mxu0 0.0
      %481 = vmatprep.subr.mxu0 0.0
      %482 = vmatpush1.msra.mxu0 0.0
      %483 = vmatprep.subr.mxu0 0.0
      %484 = vmatpush1.msra.mxu0 0.0
      %485 = vmatprep.subr.mxu0 0.0
      %486 = vmatpush1.msra.mxu0 0.0
      %487 = vmatprep.subr.mxu0 0.0
      %488 = vmatpush1.msra.mxu0 0.0
      %489 = vmatprep.subr.mxu0 0.0
      %490 = vmatpush1.msra.mxu0 0.0
      %491 = vmatprep.subr.mxu0 0.0
      %492 = vmatpush1.msra.mxu0 0.0
      %493 = vmatprep.subr.mxu0 0.0
      %494 = vmatpush1.msra.mxu0 0.0
      %495 = vmatprep.subr.mxu0 0.0
      %496 = vmatpush1.msra.mxu0 0.0
      %497 = vmatprep.subr.mxu0 0.0
      %498 = vmatpush1.msra.mxu0 0.0
      %499 = vmatprep.subr.mxu0 0.0
      %500 = vmatpush1.msra.mxu0 0.0
      %501 = vmatprep.subr.mxu0 0.0
      %502 = vmatpush1.msra.mxu0 0.0
      %503 = vmatprep.subr.mxu0 0.0
      %504 = vmatpush1.msra.mxu0 0.0
      %505 = vmatprep.mubr.f32.mxu0 0.0
      %506 = vmatmul.mubr.f32.gmra.mrb[0].mxu0 %v439
      %v507 = vpop.f32.mrb[0].mxu0
      %v508 = vadd.f32 0.0, %v507
      %v509 = vpop.f32.mrb[0].mxu0
      %510 = vdwg.mxu0
      %v511 = vpack.c.bf16 %v508, %v508
      %v512 = vpack.c.bf16 %v340, %v340
      %513 = vrot.lane.b32.xlu0 %v329, 120
      %v514 = vpop.permute.xlu0 %513
      %515 = vrot.lane.b32.xlu0 %v329, 88
      %v516 = vpop.permute.xlu0 %515
      %v517 = vsel %vm347, %v514, 0
      %v519 = vsel %vm347, %v516, 0
      %521 = vmatprep.subr.mxu0 0.0
      %522 = vmatpush1.xpose.msra.mxu0 %v519
      %523 = vmatprep.subr.mxu0 0.0
      %524 = vmatpush1.xpose.msra.mxu0 0.0
      %525 = vmatprep.subr.mxu0 0.0
      %526 = vmatpush1.xpose.msra.mxu0 0.0
      %527 = vmatprep.subr.mxu0 0.0
      %528 = vmatpush1.xpose.msra.mxu0 0.0
      %529 = vmatprep.subr.mxu0 0.0
      %530 = vmatpush1.xpose.msra.mxu0 0.0
      %531 = vmatprep.subr.mxu0 0.0
      %532 = vmatpush1.xpose.msra.mxu0 0.0
      %533 = vmatprep.subr.mxu0 0.0
      %534 = vmatpush1.xpose.msra.mxu0 0.0
      %535 = vmatprep.subr.mxu0 0.0
      %536 = vmatpush1.xpose.msra.mxu0 0.0
      %537 = vmatprep.subr.mxu0 0.0
      %538 = vmatpush1.xpose.msra.mxu0 0.0
      %539 = vmatprep.subr.mxu0 0.0
      %540 = vmatpush1.xpose.msra.mxu0 0.0
      %541 = vmatprep.subr.mxu0 0.0
      %542 = vmatpush1.xpose.msra.mxu0 0.0
      %543 = vmatprep.subr.mxu0 0.0
      %544 = vmatpush1.xpose.msra.mxu0 0.0
      %545 = vmatprep.subr.mxu0 0.0
      %546 = vmatpush1.xpose.msra.mxu0 0.0
      %547 = vmatprep.subr.mxu0 0.0
      %548 = vmatpush1.xpose.msra.mxu0 0.0
      %549 = vmatprep.subr.mxu0 0.0
      %550 = vmatpush1.xpose.msra.mxu0 0.0
      %551 = vmatprep.subr.mxu0 0.0
      %552 = vmatpush1.xpose.msra.mxu0 0.0
      %553 = vmatprep.subr.mxu0 0.0
      %554 = vmatpush1.xpose.msra.mxu0 0.0
      %555 = vmatprep.subr.mxu0 0.0
      %556 = vmatpush1.xpose.msra.mxu0 0.0
      %557 = vmatprep.subr.mxu0 0.0
      %558 = vmatpush1.xpose.msra.mxu0 0.0
      %559 = vmatprep.subr.mxu0 0.0
      %560 = vmatpush1.xpose.msra.mxu0 0.0
      %561 = vmatprep.subr.mxu0 0.0
      %562 = vmatpush1.xpose.msra.mxu0 0.0
      %563 = vmatprep.subr.mxu0 0.0
      %564 = vmatpush1.xpose.msra.mxu0 0.0
      %565 = vmatprep.subr.mxu0 0.0
      %566 = vmatpush1.xpose.msra.mxu0 0.0
      %567 = vmatprep.subr.mxu0 0.0
      %568 = vmatpush1.xpose.msra.mxu0 0.0
      %569 = vmatprep.subr.mxu0 0.0
      %570 = vmatpush1.xpose.msra.mxu0 0.0
      %571 = vmatprep.subr.mxu0 0.0
      %572 = vmatpush1.xpose.msra.mxu0 0.0
      %573 = vmatprep.subr.mxu0 0.0
      %574 = vmatpush1.xpose.msra.mxu0 0.0
      %575 = vmatprep.subr.mxu0 0.0
      %576 = vmatpush1.xpose.msra.mxu0 0.0
      %577 = vmatprep.subr.mxu0 0.0
      %578 = vmatpush1.xpose.msra.mxu0 0.0
      %579 = vmatprep.subr.mxu0 0.0
      %580 = vmatpush1.xpose.msra.mxu0 0.0
      %581 = vmatprep.subr.mxu0 0.0
      %582 = vmatpush1.xpose.msra.mxu0 0.0
      %583 = vmatprep.subr.mxu0 0.0
      %584 = vmatpush1.xpose.msra.mxu0 0.0
      %585 = vmatprep.mubr.f32.mxu0 0.0
      %586 = vmatmul.mubr.f32.gmra.mrb[0].mxu0 %v517
      %v587 = vpop.f32.mrb[0].mxu0
      %v588 = vadd.f32 0.0, %v587
      %v589 = vpop.f32.mrb[0].mxu0
      %590 = vdwg.mxu0
      %v591 = vmul.f32 %v588, 0.35355338
      %v592 = vadd.f32 %v591, %v339
      %v593 = vsel %vm347, %v592, -inf
      %594 = vmax.xlane.f32.xlu0 %v593
      %v595 = vpop.xlane.xlu0 %594
      %v596 = vsub.f32 %v592, %v595
      %v597 = vmul.f32 %v596, 1.442695
      %v598 = vpow.pop %v597
      %v599 = vsel %vm347, %v598, 0.0
      %600 = vadd.xlane.f32.xlu0 %v599
      %v601 = vpop.xlane.xlu0 %600
      %v602 = vrcp.pop %v601
      %v603 = vmul.f32 %v598, %v602
      %604 = vrot.lane.b32.xlu0 %v329, 56
      %v605 = vpop.permute.xlu0 %604
      %v608 = vsel %vm347, %v603, 0
      %610 = vmatprep.subr.mxu0 0.0
      %611 = vmatpush1.msra.mxu0 %v605
      %612 = vmatprep.subr.mxu0 0.0
      %613 = vmatpush1.msra.mxu0 0.0
      %614 = vmatprep.subr.mxu0 0.0
      %615 = vmatpush1.msra.mxu0 0.0
      %616 = vmatprep.subr.mxu0 0.0
      %617 = vmatpush1.msra.mxu0 0.0
      %618 = vmatprep.subr.mxu0 0.0
      %619 = vmatpush1.msra.mxu0 0.0
      %620 = vmatprep.subr.mxu0 0.0
      %621 = vmatpush1.msra.mxu0 0.0
      %622 = vmatprep.subr.mxu0 0.0
      %623 = vmatpush1.msra.mxu0 0.0
      %624 = vmatprep.subr.mxu0 0.0
      %625 = vmatpush1.msra.mxu0 0.0
      %626 = vmatprep.subr.mxu0 0.0
      %627 = vmatpush1.msra.mxu0 0.0
      %628 = vmatprep.subr.mxu0 0.0
      %629 = vmatpush1.msra.mxu0 0.0
      %630 = vmatprep.subr.mxu0 0.0
      %631 = vmatpush1.msra.mxu0 0.0
      %632 = vmatprep.subr.mxu0 0.0
      %633 = vmatpush1.msra.mxu0 0.0
      %634 = vmatprep.subr.mxu0 0.0
      %635 = vmatpush1.msra.mxu0 0.0
      %636 = vmatprep.subr.mxu0 0.0
      %637 = vmatpush1.msra.mxu0 0.0
      %638 = vmatprep.subr.mxu0 0.0
      %639 = vmatpush1.msra.mxu0 0.0
      %640 = vmatprep.subr.mxu0 0.0
      %641 = vmatpush1.msra.mxu0 0.0
      %642 = vmatprep.subr.mxu0 0.0
      %643 = vmatpush1.msra.mxu0 0.0
      %644 = vmatprep.subr.mxu0 0.0
      %645 = vmatpush1.msra.mxu0 0.0
      %646 = vmatprep.subr.mxu0 0.0
      %647 = vmatpush1.msra.mxu0 0.0
      %648 = vmatprep.subr.mxu0 0.0
      %649 = vmatpush1.msra.mxu0 0.0
      %650 = vmatprep.subr.mxu0 0.0
      %651 = vmatpush1.msra.mxu0 0.0
      %652 = vmatprep.subr.mxu0 0.0
      %653 = vmatpush1.msra.mxu0 0.0
      %654 = vmatprep.subr.mxu0 0.0
      %655 = vmatpush1.msra.mxu0 0.0
      %656 = vmatprep.subr.mxu0 0.0
      %657 = vmatpush1.msra.mxu0 0.0
      %658 = vmatprep.subr.mxu0 0.0
      %659 = vmatpush1.msra.mxu0 0.0
      %660 = vmatprep.subr.mxu0 0.0
      %661 = vmatpush1.msra.mxu0 0.0
      %662 = vmatprep.subr.mxu0 0.0
      %663 = vmatpush1.msra.mxu0 0.0
      %664 = vmatprep.subr.mxu0 0.0
      %665 = vmatpush1.msra.mxu0 0.0
      %666 = vmatprep.subr.mxu0 0.0
      %667 = vmatpush1.msra.mxu0 0.0
      %668 = vmatprep.subr.mxu0 0.0
      %669 = vmatpush1.msra.mxu0 0.0
      %670 = vmatprep.subr.mxu0 0.0
      %671 = vmatpush1.msra.mxu0 0.0
      %672 = vmatprep.subr.mxu0 0.0
      %673 = vmatpush1.msra.mxu0 0.0
      %674 = vmatprep.mubr.f32.mxu0 0.0
      %675 = vmatmul.mubr.f32.gmra.mrb[0].mxu0 %v608
      %v676 = vpop.f32.mrb[0].mxu0
      %v677 = vadd.f32 0.0, %v676
      %v678 = vpop.f32.mrb[0].mxu0
      %679 = vdwg.mxu0
      %v680 = vpack.c.bf16 %v677, %v677
      %v681 = vpack.c.bf16 %v341, %v341
      %v683 = vsel %vm347, %v680, 0
      %vm685 = vcmask 1043456
      %v687 = vsel %vm685, %v681, 0
      %689 = vmatprep.subr.bf16.mxu0 0
      %690 = vmatpush1.bf16.msra.mxu0 %v687
      %691 = vmatprep.subr.bf16.mxu0 0
      %692 = vmatpush1.bf16.msra.mxu0 0
      %693 = vmatprep.subr.bf16.mxu0 0
      %694 = vmatpush1.bf16.msra.mxu0 0
      %695 = vmatprep.subr.bf16.mxu0 0
      %696 = vmatpush1.bf16.msra.mxu0 0
      %697 = vmatprep.subr.bf16.mxu0 0
      %698 = vmatpush1.bf16.msra.mxu0 0
      %699 = vmatprep.subr.bf16.mxu0 0
      %700 = vmatpush1.bf16.msra.mxu0 0
      %701 = vmatprep.subr.bf16.mxu0 0
      %702 = vmatpush1.bf16.msra.mxu0 0
      %703 = vmatprep.subr.bf16.mxu0 0
      %704 = vmatpush1.bf16.msra.mxu0 0
      %705 = vmatprep.subr.bf16.mxu0 0
      %706 = vmatpush1.bf16.msra.mxu0 0
      %707 = vmatprep.subr.bf16.mxu0 0
      %708 = vmatpush1.bf16.msra.mxu0 0
      %709 = vmatprep.subr.bf16.mxu0 0
      %710 = vmatpush1.bf16.msra.mxu0 0
      %711 = vmatprep.subr.bf16.mxu0 0
      %712 = vmatpush1.bf16.msra.mxu0 0
      %713 = vmatprep.subr.bf16.mxu0 0
      %714 = vmatpush1.bf16.msra.mxu0 0
      %715 = vmatprep.subr.bf16.mxu0 0
      %716 = vmatpush1.bf16.msra.mxu0 0
      %717 = vmatprep.subr.bf16.mxu0 0
      %718 = vmatpush1.bf16.msra.mxu0 0
      %719 = vmatprep.subr.bf16.mxu0 0
      %720 = vmatpush1.bf16.msra.mxu0 0
      %721 = vmatprep.mubr.bf16.mxu0 0
      %722 = vmatmul.mubr.bf16.gmra.mrb[0].mxu0 %v683
      %v723 = vpop.f32.mrb[0].mxu0
      %v724 = vadd.f32 0.0, %v723
      %v725 = vpop.f32.mrb[0].mxu0
      %v726 = vpop.f32.mrb[0].mxu0
      %v727 = vpop.f32.mrb[0].mxu0
      %728 = vdwg.mxu0
      %v730 = vsel %vm347, %v511, 0
      %v733 = vsel %vm685, %v512, 0
      %735 = vmatprep.subr.bf16.mxu0 0
      %736 = vmatpush1.bf16.msra.mxu0 %v733
      %737 = vmatprep.subr.bf16.mxu0 0
      %738 = vmatpush1.bf16.msra.mxu0 0
      %739 = vmatprep.subr.bf16.mxu0 0
      %740 = vmatpush1.bf16.msra.mxu0 0
      %741 = vmatprep.subr.bf16.mxu0 0
      %742 = vmatpush1.bf16.msra.mxu0 0
      %743 = vmatprep.subr.bf16.mxu0 0
      %744 = vmatpush1.bf16.msra.mxu0 0
      %745 = vmatprep.subr.bf16.mxu0 0
      %746 = vmatpush1.bf16.msra.mxu0 0
      %747 = vmatprep.subr.bf16.mxu0 0
      %748 = vmatpush1.bf16.msra.mxu0 0
      %749 = vmatprep.subr.bf16.mxu0 0
      %750 = vmatpush1.bf16.msra.mxu0 0
      %751 = vmatprep.subr.bf16.mxu0 0
      %752 = vmatpush1.bf16.msra.mxu0 0
      %753 = vmatprep.subr.bf16.mxu0 0
      %754 = vmatpush1.bf16.msra.mxu0 0
      %755 = vmatprep.subr.bf16.mxu0 0
      %756 = vmatpush1.bf16.msra.mxu0 0
      %757 = vmatprep.subr.bf16.mxu0 0
      %758 = vmatpush1.bf16.msra.mxu0 0
      %759 = vmatprep.subr.bf16.mxu0 0
      %760 = vmatpush1.bf16.msra.mxu0 0
      %761 = vmatprep.subr.bf16.mxu0 0
      %762 = vmatpush1.bf16.msra.mxu0 0
      %763 = vmatprep.subr.bf16.mxu0 0
      %764 = vmatpush1.bf16.msra.mxu0 0
      %765 = vmatprep.subr.bf16.mxu0 0
      %766 = vmatpush1.bf16.msra.mxu0 0
      %767 = vmatprep.mubr.bf16.mxu0 0
      %768 = vmatmul.mubr.bf16.gmra.mrb[0].mxu0 %v730
      %v769 = vpop.f32.mrb[0].mxu0
      %v770 = vadd.f32 %v724, %v769
      %v771 = vpop.f32.mrb[0].mxu0
      %v772 = vpop.f32.mrb[0].mxu0
      %v773 = vpop.f32.mrb[0].mxu0
      %774 = vdwg.mxu0
      %775 = vrot.lane.b32.xlu0 %v329, 112
      %v776 = vpop.permute.xlu0 %775
      %777 = vrot.lane.b32.xlu0 %v329, 80
      %v778 = vpop.permute.xlu0 %777
      %v779 = vsel %vm347, %v776, 0
      %v781 = vsel %vm347, %v778, 0
      %783 = vmatprep.subr.mxu0 0.0
      %784 = vmatpush1.xpose.msra.mxu0 %v781
      %785 = vmatprep.subr.mxu0 0.0
      %786 = vmatpush1.xpose.msra.mxu0 0.0
      %787 = vmatprep.subr.mxu0 0.0
      %788 = vmatpush1.xpose.msra.mxu0 0.0
      %789 = vmatprep.subr.mxu0 0.0
      %790 = vmatpush1.xpose.msra.mxu0 0.0
      %791 = vmatprep.subr.mxu0 0.0
      %792 = vmatpush1.xpose.msra.mxu0 0.0
      %793 = vmatprep.subr.mxu0 0.0
      %794 = vmatpush1.xpose.msra.mxu0 0.0
      %795 = vmatprep.subr.mxu0 0.0
      %796 = vmatpush1.xpose.msra.mxu0 0.0
      %797 = vmatprep.subr.mxu0 0.0
      %798 = vmatpush1.xpose.msra.mxu0 0.0
      %799 = vmatprep.subr.mxu0 0.0
      %800 = vmatpush1.xpose.msra.mxu0 0.0
      %801 = vmatprep.subr.mxu0 0.0
      %802 = vmatpush1.xpose.msra.mxu0 0.0
      %803 = vmatprep.subr.mxu0 0.0
      %804 = vmatpush1.xpose.msra.mxu0 0.0
      %805 = vmatprep.subr.mxu0 0.0
      %806 = vmatpush1.xpose.msra.mxu0 0.0
      %807 = vmatprep.subr.mxu0 0.0
      %808 = vmatpush1.xpose.msra.mxu0 0.0
      %809 = vmatprep.subr.mxu0 0.0
      %810 = vmatpush1.xpose.msra.mxu0 0.0
      %811 = vmatprep.subr.mxu0 0.0
      %812 = vmatpush1.xpose.msra.mxu0 0.0
      %813 = vmatprep.subr.mxu0 0.0
      %814 = vmatpush1.xpose.msra.mxu0 0.0
      %815 = vmatprep.subr.mxu0 0.0
      %816 = vmatpush1.xpose.msra.mxu0 0.0
      %817 = vmatprep.subr.mxu0 0.0
      %818 = vmatpush1.xpose.msra.mxu0 0.0
      %819 = vmatprep.subr.mxu0 0.0
      %820 = vmatpush1.xpose.msra.mxu0 0.0
      %821 = vmatprep.subr.mxu0 0.0
      %822 = vmatpush1.xpose.msra.mxu0 0.0
      %823 = vmatprep.subr.mxu0 0.0
      %824 = vmatpush1.xpose.msra.mxu0 0.0
      %825 = vmatprep.subr.mxu0 0.0
      %826 = vmatpush1.xpose.msra.mxu0 0.0
      %827 = vmatprep.subr.mxu0 0.0
      %828 = vmatpush1.xpose.msra.mxu0 0.0
      %829 = vmatprep.subr.mxu0 0.0
      %830 = vmatpush1.xpose.msra.mxu0 0.0
      %831 = vmatprep.subr.mxu0 0.0
      %832 = vmatpush1.xpose.msra.mxu0 0.0
      %833 = vmatprep.subr.mxu0 0.0
      %834 = vmatpush1.xpose.msra.mxu0 0.0
      %835 = vmatprep.subr.mxu0 0.0
      %836 = vmatpush1.xpose.msra.mxu0 0.0
      %837 = vmatprep.subr.mxu0 0.0
      %838 = vmatpush1.xpose.msra.mxu0 0.0
      %839 = vmatprep.subr.mxu0 0.0
      %840 = vmatpush1.xpose.msra.mxu0 0.0
      %841 = vmatprep.subr.mxu0 0.0
      %842 = vmatpush1.xpose.msra.mxu0 0.0
      %843 = vmatprep.subr.mxu0 0.0
      %844 = vmatpush1.xpose.msra.mxu0 0.0
      %845 = vmatprep.subr.mxu0 0.0
      %846 = vmatpush1.xpose.msra.mxu0 0.0
      %847 = vmatprep.mubr.f32.mxu0 0.0
      %848 = vmatmul.mubr.f32.gmra.mrb[0].mxu0 %v779
      %v849 = vpop.f32.mrb[0].mxu0
      %v850 = vadd.f32 0.0, %v849
      %v851 = vpop.f32.mrb[0].mxu0
      %852 = vdwg.mxu0
      %v853 = vmul.f32 %v850, 0.35355338
      %v854 = vadd.f32 %v853, %v339
      %v855 = vsel %vm347, %v854, -inf
      %856 = vmax.xlane.f32.xlu0 %v855
      %v857 = vpop.xlane.xlu0 %856
      %v858 = vsub.f32 %v854, %v857
      %v859 = vmul.f32 %v858, 1.442695
      %v860 = vpow.pop %v859
      %v861 = vsel %vm347, %v860, 0.0
      %862 = vadd.xlane.f32.xlu0 %v861
      %v863 = vpop.xlane.xlu0 %862
      %v864 = vrcp.pop %v863
      %v865 = vmul.f32 %v860, %v864
      %866 = vrot.lane.b32.xlu0 %v329, 48
      %v867 = vpop.permute.xlu0 %866
      %v870 = vsel %vm347, %v865, 0
      %872 = vmatprep.subr.mxu0 0.0
      %873 = vmatpush1.msra.mxu0 %v867
      %874 = vmatprep.subr.mxu0 0.0
      %875 = vmatpush1.msra.mxu0 0.0
      %876 = vmatprep.subr.mxu0 0.0
      %877 = vmatpush1.msra.mxu0 0.0
      %878 = vmatprep.subr.mxu0 0.0
      %879 = vmatpush1.msra.mxu0 0.0
      %880 = vmatprep.subr.mxu0 0.0
      %881 = vmatpush1.msra.mxu0 0.0
      %882 = vmatprep.subr.mxu0 0.0
      %883 = vmatpush1.msra.mxu0 0.0
      %884 = vmatprep.subr.mxu0 0.0
      %885 = vmatpush1.msra.mxu0 0.0
      %886 = vmatprep.subr.mxu0 0.0
      %887 = vmatpush1.msra.mxu0 0.0
      %888 = vmatprep.subr.mxu0 0.0
      %889 = vmatpush1.msra.mxu0 0.0
      %890 = vmatprep.subr.mxu0 0.0
      %891 = vmatpush1.msra.mxu0 0.0
      %892 = vmatprep.subr.mxu0 0.0
      %893 = vmatpush1.msra.mxu0 0.0
      %894 = vmatprep.subr.mxu0 0.0
      %895 = vmatpush1.msra.mxu0 0.0
      %896 = vmatprep.subr.mxu0 0.0
      %897 = vmatpush1.msra.mxu0 0.0
      %898 = vmatprep.subr.mxu0 0.0
      %899 = vmatpush1.msra.mxu0 0.0
      %900 = vmatprep.subr.mxu0 0.0
      %901 = vmatpush1.msra.mxu0 0.0
      %902 = vmatprep.subr.mxu0 0.0
      %903 = vmatpush1.msra.mxu0 0.0
      %904 = vmatprep.subr.mxu0 0.0
      %905 = vmatpush1.msra.mxu0 0.0
      %906 = vmatprep.subr.mxu0 0.0
      %907 = vmatpush1.msra.mxu0 0.0
      %908 = vmatprep.subr.mxu0 0.0
      %909 = vmatpush1.msra.mxu0 0.0
      %910 = vmatprep.subr.mxu0 0.0
      %911 = vmatpush1.msra.mxu0 0.0
      %912 = vmatprep.subr.mxu0 0.0
      %913 = vmatpush1.msra.mxu0 0.0
      %914 = vmatprep.subr.mxu0 0.0
      %915 = vmatpush1.msra.mxu0 0.0
      %916 = vmatprep.subr.mxu0 0.0
      %917 = vmatpush1.msra.mxu0 0.0
      %918 = vmatprep.subr.mxu0 0.0
      %919 = vmatpush1.msra.mxu0 0.0
      %920 = vmatprep.subr.mxu0 0.0
      %921 = vmatpush1.msra.mxu0 0.0
      %922 = vmatprep.subr.mxu0 0.0
      %923 = vmatpush1.msra.mxu0 0.0
      %924 = vmatprep.subr.mxu0 0.0
      %925 = vmatpush1.msra.mxu0 0.0
      %926 = vmatprep.subr.mxu0 0.0
      %927 = vmatpush1.msra.mxu0 0.0
      %928 = vmatprep.subr.mxu0 0.0
      %929 = vmatpush1.msra.mxu0 0.0
      %930 = vmatprep.subr.mxu0 0.0
      %931 = vmatpush1.msra.mxu0 0.0
      %932 = vmatprep.subr.mxu0 0.0
      %933 = vmatpush1.msra.mxu0 0.0
      %934 = vmatprep.subr.mxu0 0.0
      %935 = vmatpush1.msra.mxu0 0.0
      %936 = vmatprep.mubr.f32.mxu0 0.0
      %937 = vmatmul.mubr.f32.gmra.mrb[0].mxu0 %v870
      %v938 = vpop.f32.mrb[0].mxu0
      %v939 = vadd.f32 0.0, %v938
      %v940 = vpop.f32.mrb[0].mxu0
      %941 = vdwg.mxu0
      %v942 = vpack.c.bf16 %v939, %v939
      %v943 = vpack.c.bf16 %v342, %v342
      %v945 = vsel %vm347, %v942, 0
      %v948 = vsel %vm685, %v943, 0
      %950 = vmatprep.subr.bf16.mxu0 0
      %951 = vmatpush1.bf16.msra.mxu0 %v948
      %952 = vmatprep.subr.bf16.mxu0 0
      %953 = vmatpush1.bf16.msra.mxu0 0
      %954 = vmatprep.subr.bf16.mxu0 0
      %955 = vmatpush1.bf16.msra.mxu0 0
      %956 = vmatprep.subr.bf16.mxu0 0
      %957 = vmatpush1.bf16.msra.mxu0 0
      %958 = vmatprep.subr.bf16.mxu0 0
      %959 = vmatpush1.bf16.msra.mxu0 0
      %960 = vmatprep.subr.bf16.mxu0 0
      %961 = vmatpush1.bf16.msra.mxu0 0
      %962 = vmatprep.subr.bf16.mxu0 0
      %963 = vmatpush1.bf16.msra.mxu0 0
      %964 = vmatprep.subr.bf16.mxu0 0
      %965 = vmatpush1.bf16.msra.mxu0 0
      %966 = vmatprep.subr.bf16.mxu0 0
      %967 = vmatpush1.bf16.msra.mxu0 0
      %968 = vmatprep.subr.bf16.mxu0 0
      %969 = vmatpush1.bf16.msra.mxu0 0
      %970 = vmatprep.subr.bf16.mxu0 0
      %971 = vmatpush1.bf16.msra.mxu0 0
      %972 = vmatprep.subr.bf16.mxu0 0
      %973 = vmatpush1.bf16.msra.mxu0 0
      %974 = vmatprep.subr.bf16.mxu0 0
      %975 = vmatpush1.bf16.msra.mxu0 0
      %976 = vmatprep.subr.bf16.mxu0 0
      %977 = vmatpush1.bf16.msra.mxu0 0
      %978 = vmatprep.subr.bf16.mxu0 0
      %979 = vmatpush1.bf16.msra.mxu0 0
      %980 = vmatprep.subr.bf16.mxu0 0
      %981 = vmatpush1.bf16.msra.mxu0 0
      %982 = vmatprep.mubr.bf16.mxu0 0
      %983 = vmatmul.mubr.bf16.gmra.mrb[0].mxu0 %v945
      %v984 = vpop.f32.mrb[0].mxu0
      %v985 = vadd.f32 0.0, %v984
      %v986 = vpop.f32.mrb[0].mxu0
      %v987 = vpop.f32.mrb[0].mxu0
      %v988 = vpop.f32.mrb[0].mxu0
      %989 = vdwg.mxu0
      %v990 = vadd.f32 %v770, %v985
      %991 = vrot.lane.b32.xlu0 %v329, 104
      %v992 = vpop.permute.xlu0 %991
      %993 = vrot.lane.b32.xlu0 %v329, 72
      %v994 = vpop.permute.xlu0 %993
      %v995 = vsel %vm347, %v992, 0
      %v997 = vsel %vm347, %v994, 0
      %999 = vmatprep.subr.mxu0 0.0
      %1000 = vmatpush1.xpose.msra.mxu0 %v997
      %1001 = vmatprep.subr.mxu0 0.0
      %1002 = vmatpush1.xpose.msra.mxu0 0.0
      %1003 = vmatprep.subr.mxu0 0.0
      %1004 = vmatpush1.xpose.msra.mxu0 0.0
      %1005 = vmatprep.subr.mxu0 0.0
      %1006 = vmatpush1.xpose.msra.mxu0 0.0
      %1007 = vmatprep.subr.mxu0 0.0
      %1008 = vmatpush1.xpose.msra.mxu0 0.0
      %1009 = vmatprep.subr.mxu0 0.0
      %1010 = vmatpush1.xpose.msra.mxu0 0.0
      %1011 = vmatprep.subr.mxu0 0.0
      %1012 = vmatpush1.xpose.msra.mxu0 0.0
      %1013 = vmatprep.subr.mxu0 0.0
      %1014 = vmatpush1.xpose.msra.mxu0 0.0
      %1015 = vmatprep.subr.mxu0 0.0
      %1016 = vmatpush1.xpose.msra.mxu0 0.0
      %1017 = vmatprep.subr.mxu0 0.0
      %1018 = vmatpush1.xpose.msra.mxu0 0.0
      %1019 = vmatprep.subr.mxu0 0.0
      %1020 = vmatpush1.xpose.msra.mxu0 0.0
      %1021 = vmatprep.subr.mxu0 0.0
      %1022 = vmatpush1.xpose.msra.mxu0 0.0
      %1023 = vmatprep.subr.mxu0 0.0
      %1024 = vmatpush1.xpose.msra.mxu0 0.0
      %1025 = vmatprep.subr.mxu0 0.0
      %1026 = vmatpush1.xpose.msra.mxu0 0.0
      %1027 = vmatprep.subr.mxu0 0.0
      %1028 = vmatpush1.xpose.msra.mxu0 0.0
      %1029 = vmatprep.subr.mxu0 0.0
      %1030 = vmatpush1.xpose.msra.mxu0 0.0
      %1031 = vmatprep.subr.mxu0 0.0
      %1032 = vmatpush1.xpose.msra.mxu0 0.0
      %1033 = vmatprep.subr.mxu0 0.0
      %1034 = vmatpush1.xpose.msra.mxu0 0.0
      %1035 = vmatprep.subr.mxu0 0.0
      %1036 = vmatpush1.xpose.msra.mxu0 0.0
      %1037 = vmatprep.subr.mxu0 0.0
      %1038 = vmatpush1.xpose.msra.mxu0 0.0
      %1039 = vmatprep.subr.mxu0 0.0
      %1040 = vmatpush1.xpose.msra.mxu0 0.0
      %1041 = vmatprep.subr.mxu0 0.0
      %1042 = vmatpush1.xpose.msra.mxu0 0.0
      %1043 = vmatprep.subr.mxu0 0.0
      %1044 = vmatpush1.xpose.msra.mxu0 0.0
      %1045 = vmatprep.subr.mxu0 0.0
      %1046 = vmatpush1.xpose.msra.mxu0 0.0
      %1047 = vmatprep.subr.mxu0 0.0
      %1048 = vmatpush1.xpose.msra.mxu0 0.0
      %1049 = vmatprep.subr.mxu0 0.0
      %1050 = vmatpush1.xpose.msra.mxu0 0.0
      %1051 = vmatprep.subr.mxu0 0.0
      %1052 = vmatpush1.xpose.msra.mxu0 0.0
      %1053 = vmatprep.subr.mxu0 0.0
      %1054 = vmatpush1.xpose.msra.mxu0 0.0
      %1055 = vmatprep.subr.mxu0 0.0
      %1056 = vmatpush1.xpose.msra.mxu0 0.0
      %1057 = vmatprep.subr.mxu0 0.0
      %1058 = vmatpush1.xpose.msra.mxu0 0.0
      %1059 = vmatprep.subr.mxu0 0.0
      %1060 = vmatpush1.xpose.msra.mxu0 0.0
      %1061 = vmatprep.subr.mxu0 0.0
      %1062 = vmatpush1.xpose.msra.mxu0 0.0
      %1063 = vmatprep.mubr.f32.mxu0 0.0
      %1064 = vmatmul.mubr.f32.gmra.mrb[0].mxu0 %v995
      %v1065 = vpop.f32.mrb[0].mxu0
      %v1066 = vadd.f32 0.0, %v1065
      %v1067 = vpop.f32.mrb[0].mxu0
      %1068 = vdwg.mxu0
      %v1069 = vmul.f32 %v1066, 0.35355338
      %v1070 = vadd.f32 %v1069, %v339
      %v1071 = vsel %vm347, %v1070, -inf
      %1072 = vmax.xlane.f32.xlu0 %v1071
      %v1073 = vpop.xlane.xlu0 %1072
      %v1074 = vsub.f32 %v1070, %v1073
      %v1075 = vmul.f32 %v1074, 1.442695
      %v1076 = vpow.pop %v1075
      %v1077 = vsel %vm347, %v1076, 0.0
      %1078 = vadd.xlane.f32.xlu0 %v1077
      %v1079 = vpop.xlane.xlu0 %1078
      %v1080 = vrcp.pop %v1079
      %v1081 = vmul.f32 %v1076, %v1080
      %1082 = vrot.lane.b32.xlu0 %v329, 40
      %v1083 = vpop.permute.xlu0 %1082
      %v1086 = vsel %vm347, %v1081, 0
      %1088 = vmatprep.subr.mxu0 0.0
      %1089 = vmatpush1.msra.mxu0 %v1083
      %1090 = vmatprep.subr.mxu0 0.0
      %1091 = vmatpush1.msra.mxu0 0.0
      %1092 = vmatprep.subr.mxu0 0.0
      %1093 = vmatpush1.msra.mxu0 0.0
      %1094 = vmatprep.subr.mxu0 0.0
      %1095 = vmatpush1.msra.mxu0 0.0
      %1096 = vmatprep.subr.mxu0 0.0
      %1097 = vmatpush1.msra.mxu0 0.0
      %1098 = vmatprep.subr.mxu0 0.0
      %1099 = vmatpush1.msra.mxu0 0.0
      %1100 = vmatprep.subr.mxu0 0.0
      %1101 = vmatpush1.msra.mxu0 0.0
      %1102 = vmatprep.subr.mxu0 0.0
      %1103 = vmatpush1.msra.mxu0 0.0
      %1104 = vmatprep.subr.mxu0 0.0
      %1105 = vmatpush1.msra.mxu0 0.0
      %1106 = vmatprep.subr.mxu0 0.0
      %1107 = vmatpush1.msra.mxu0 0.0
      %1108 = vmatprep.subr.mxu0 0.0
      %1109 = vmatpush1.msra.mxu0 0.0
      %1110 = vmatprep.subr.mxu0 0.0
      %1111 = vmatpush1.msra.mxu0 0.0
      %1112 = vmatprep.subr.mxu0 0.0
      %1113 = vmatpush1.msra.mxu0 0.0
      %1114 = vmatprep.subr.mxu0 0.0
      %1115 = vmatpush1.msra.mxu0 0.0
      %1116 = vmatprep.subr.mxu0 0.0
      %1117 = vmatpush1.msra.mxu0 0.0
      %1118 = vmatprep.subr.mxu0 0.0
      %1119 = vmatpush1.msra.mxu0 0.0
      %1120 = vmatprep.subr.mxu0 0.0
      %1121 = vmatpush1.msra.mxu0 0.0
      %1122 = vmatprep.subr.mxu0 0.0
      %1123 = vmatpush1.msra.mxu0 0.0
      %1124 = vmatprep.subr.mxu0 0.0
      %1125 = vmatpush1.msra.mxu0 0.0
      %1126 = vmatprep.subr.mxu0 0.0
      %1127 = vmatpush1.msra.mxu0 0.0
      %1128 = vmatprep.subr.mxu0 0.0
      %1129 = vmatpush1.msra.mxu0 0.0
      %1130 = vmatprep.subr.mxu0 0.0
      %1131 = vmatpush1.msra.mxu0 0.0
      %1132 = vmatprep.subr.mxu0 0.0
      %1133 = vmatpush1.msra.mxu0 0.0
      %1134 = vmatprep.subr.mxu0 0.0
      %1135 = vmatpush1.msra.mxu0 0.0
      %1136 = vmatprep.subr.mxu0 0.0
      %1137 = vmatpush1.msra.mxu0 0.0
      %1138 = vmatprep.subr.mxu0 0.0
      %1139 = vmatpush1.msra.mxu0 0.0
      %1140 = vmatprep.subr.mxu0 0.0
      %1141 = vmatpush1.msra.mxu0 0.0
      %1142 = vmatprep.subr.mxu0 0.0
      %1143 = vmatpush1.msra.mxu0 0.0
      %1144 = vmatprep.subr.mxu0 0.0
      %1145 = vmatpush1.msra.mxu0 0.0
      %1146 = vmatprep.subr.mxu0 0.0
      %1147 = vmatpush1.msra.mxu0 0.0
      %1148 = vmatprep.subr.mxu0 0.0
      %1149 = vmatpush1.msra.mxu0 0.0
      %1150 = vmatprep.subr.mxu0 0.0
      %1151 = vmatpush1.msra.mxu0 0.0
      %1152 = vmatprep.mubr.f32.mxu0 0.0
      %1153 = vmatmul.mubr.f32.gmra.mrb[0].mxu0 %v1086
      %v1154 = vpop.f32.mrb[0].mxu0
      %v1155 = vadd.f32 0.0, %v1154
      %v1156 = vpop.f32.mrb[0].mxu0
      %1157 = vdwg.mxu0
      %v1158 = vpack.c.bf16 %v1155, %v1155
      %v1159 = vpack.c.bf16 %v343, %v343
      %v1161 = vsel %vm347, %v1158, 0
      %v1164 = vsel %vm685, %v1159, 0
      %1166 = vmatprep.subr.bf16.mxu0 0
      %1167 = vmatpush1.bf16.msra.mxu0 %v1164
      %1168 = vmatprep.subr.bf16.mxu0 0
      %1169 = vmatpush1.bf16.msra.mxu0 0
      %1170 = vmatprep.subr.bf16.mxu0 0
      %1171 = vmatpush1.bf16.msra.mxu0 0
      %1172 = vmatprep.subr.bf16.mxu0 0
      %1173 = vmatpush1.bf16.msra.mxu0 0
      %1174 = vmatprep.subr.bf16.mxu0 0
      %1175 = vmatpush1.bf16.msra.mxu0 0
      %1176 = vmatprep.subr.bf16.mxu0 0
      %1177 = vmatpush1.bf16.msra.mxu0 0
      %1178 = vmatprep.subr.bf16.mxu0 0
      %1179 = vmatpush1.bf16.msra.mxu0 0
      %1180 = vmatprep.subr.bf16.mxu0 0
      %1181 = vmatpush1.bf16.msra.mxu0 0
      %1182 = vmatprep.subr.bf16.mxu0 0
      %1183 = vmatpush1.bf16.msra.mxu0 0
      %1184 = vmatprep.subr.bf16.mxu0 0
      %1185 = vmatpush1.bf16.msra.mxu0 0
      %1186 = vmatprep.subr.bf16.mxu0 0
      %1187 = vmatpush1.bf16.msra.mxu0 0
      %1188 = vmatprep.subr.bf16.mxu0 0
      %1189 = vmatpush1.bf16.msra.mxu0 0
      %1190 = vmatprep.subr.bf16.mxu0 0
      %1191 = vmatpush1.bf16.msra.mxu0 0
      %1192 = vmatprep.subr.bf16.mxu0 0
      %1193 = vmatpush1.bf16.msra.mxu0 0
      %1194 = vmatprep.subr.bf16.mxu0 0
      %1195 = vmatpush1.bf16.msra.mxu0 0
      %1196 = vmatprep.subr.bf16.mxu0 0
      %1197 = vmatpush1.bf16.msra.mxu0 0
      %1198 = vmatprep.mubr.bf16.mxu0 0
      %1199 = vmatmul.mubr.bf16.gmra.mrb[0].mxu0 %v1161
      %v1200 = vpop.f32.mrb[0].mxu0
      %v1201 = vadd.f32 0.0, %v1200
      %v1202 = vpop.f32.mrb[0].mxu0
      %v1203 = vpop.f32.mrb[0].mxu0
      %v1204 = vpop.f32.mrb[0].mxu0
      %1205 = vdwg.mxu0
      %v1206 = vadd.f32 %v990, %v1201
      %v1207 = vld [vmem:[%s4] sm:$0x1]
      %v1209 = vlaneseq
      %v1210 = vshrl.u32 %v1209, 7
      %v1211 = vsub.s32 0, %v1210
      %v1212 = vrot.slane %v1207, %v1211
      %v1214 = vadd.f32 %v1206, %v1212
      %v1215 = vadd.f32 %v275, %v1214
      %v1216 = vld [vmem:[%s5] sm:$0x1]
      %v1217 = vld [vmem:[%s6] sm:$0x1]
      %v1218 = vsel %vm290, %v1215, 0.0
      %1219 = vadd.xlane.f32.xlu0 %v1218
      %v1220 = vpop.xlane.xlu0 %1219
      %v1221 = vrcp.pop 32.0
      %v1222 = vmul.f32 %v1220, %v1221
      %v1223 = vsub.f32 %v1215, %v1222
      %v1224 = vmul.f32 %v1223, %v1223
      %v1225 = vsel %vm290, %v1224, 0.0
      %1226 = vadd.xlane.f32.xlu0 %v1225
      %v1227 = vpop.xlane.xlu0 %1226
      %v1228 = vmul.f32 %v1227, %v1221
      %v1229 = vadd.f32 %v1228, 1e-05
      %v1230 = vrsqrt.pop %v1229
      %v1231 = vmul.f32 %v1223, %v1230
      %v1233 = vlaneseq
      %v1234 = vshrl.u32 %v1233, 7
      %v1235 = vsub.s32 0, %v1234
      %v1236 = vrot.slane %v1216, %v1235
      %v1238 = vmul.f32 %v1231, %v1236
      %v1240 = vlaneseq
      %v1241 = vshrl.u32 %v1240, 7
      %v1242 = vsub.s32 0, %v1241
      %v1243 = vrot.slane %v1217, %v1242
      %v1245 = vadd.f32 %v1238, %v1243
      %1246 = vst.msk [vmem:[%s273] sm:$0xff] %vm290, %v1245
      %p1247 = scmp.lt.s32.totalorder %s18, 1
      %s1248 = scalar_select %p1247, %s18, 1
      %s1249 = smul.addr %s1248, 8
      %s1250 = scalar_lea.vmem %s7, %s1249
      // Predicated region
      $region49: #{translate_transformer_forward.17} parent=47 // pred_check
        %p1251 = pneg %p188
      $region50: #{translate_transformer_forward.17} parent=47 // pred_check_branch
        %1253 = sbr.rel (%p1251) target = $region52
      $region51: #{translate_transformer_forward.17} parent=47 // pred_region
        _
      $region52: #{translate_transformer_forward.17} parent=47 // pred_fallthru
        _
    $region48: #{translate_transformer_forward.17} parent=5 // pred_fallthru
      _
    %p1254 = scmp.le.s32.totalorder 2, %s13
    // Predicated region
    $region53: #{translate_transformer_forward.17} parent=5 // pred_check
      %p1255 = pneg %p1254
    $region54: #{translate_transformer_forward.17} parent=5 // pred_check_branch
      %1257 = sbr.rel (%p1255) target = $region56
    $region55: #{translate_transformer_forward.17} parent=5 // pred_region
      %s1258 = ssub.s32 %s13, 2
      // Predicated region
      $region57: #{translate_transformer_forward.17} parent=55 // pred_check
        %p1259 = pneg %p194
      $region58: #{translate_transformer_forward.17} parent=55 // pred_check_branch
        %1261 = sbr.rel (%p1259) target = $region60
      $region59: #{translate_transformer_forward.17} parent=55 // pred_region
        %p1262 = scmp.lt.s32.totalorder %s19, 1
        %s1263 = scalar_select %p1262, %s19, 1
        %s1264 = smul.addr %s1263, 8
        %s1265 = scalar_lea.vmem %s7, %s1264
      $region60: #{translate_transformer_forward.17} parent=55 // pred_fallthru
        _
    $region56: #{translate_transformer_forward.17} parent=5 // pred_fallthru
      _
  $region6: #{translate_transformer_forward.17} parent=0 // loop_footer
    %s17 = sadd.s32 1, %s13
  $region7: #{translate_transformer_forward.17} parent=0 // loop_footer_branch
    %12 = sbr.rel target = $region3
  $region8: #{translate_transformer_forward.17} parent=0 // loop_exit
    _

// kernel: translate_transformer_forward.18
$region0: #{translate_transformer_forward.18}
  #allocation0 [shape = 'u32[]', space=smem, size = 0x4, offset = 0x4, fixed_abs, tag = 'smem constant byte address 0x4 - core index']
  #allocation1 [shape = 'u32[144,128]{1,0:T(1,128)}', space=vmem, size = 0x12000, scoped, tag = 'internal scratch']
  %s0 = inlined_call_operand.vmem [shape: f32[2,8,32], index: 0, kind: input, shape index: {}]
  %s1 = inlined_call_operand.vmem [shape: f32[2,8,32], index: 1, kind: input, shape index: {}]
  %s2 = inlined_call_operand.vmem [shape: f32[32,96], index: 2, kind: input, shape index: {}]
  %s3 = inlined_call_operand.vmem [shape: f32[1,96], index: 3, kind: input, shape index: {}]
  %s4 = inlined_call_operand.vmem [shape: f32[32,32], index: 4, kind: input, shape index: {}]
  %s5 = inlined_call_operand.vmem [shape: f32[1,32], index: 5, kind: input, shape index: {}]
  %s6 = inlined_call_operand.vmem [shape: f32[1,32], index: 6, kind: input, shape index: {}]
  %s7 = inlined_call_operand.vmem [shape: f32[1,32], index: 7, kind: input, shape index: {}]
  %s8 = inlined_call_operand.vmem [shape: f32[2,8,32], index: 8, kind: output, shape index: {}]
  %s9 = sld [smem:[#allocation0]]
  $region65: #{translate_transformer_forward.18} parent=0
    _
  %s11 = ssub.s32 1, %s9
  %s12 = scalar_select 0, %s11, %s9
  loop: start=0, step=1, limit=4
  $region2: #{translate_transformer_forward.18} parent=0 // loop_pre_header
    _
  $region3: #{translate_transformer_forward.18} parent=0 // loop_header
    %s14 = sphi 0, %s18
    %p15 = scmp.ge.s32.totalorder %s14, 4
    %s24 = sphi 0, %s26
    %s27 = sphi 0, %s24
    %s28 = sphi 0, %s27
    %s44 = sphi 0, %s28
    %s50 = sphi 0, %s52
    %s53 = sphi 0, %s50
    %s54 = sphi 0, %s53
    %s70 = sphi 0, %s54
    %s74 = sphi 0, %s74
    %s76 = sphi 0, %s74
    %s77 = sphi 0, %s76
    %s91 = sphi 0, %s77
    %s95 = sphi 0, %s95
    %s97 = sphi 0, %s95
    %s98 = sphi 0, %s97
    %s112 = sphi 0, %s98
    %s116 = sphi 0, %s116
    %s118 = sphi 0, %s116
    %s119 = sphi 0, %s118
    %s133 = sphi 0, %s119
    %s137 = sphi 0, %s137
    %s139 = sphi 0, %s137
    %s140 = sphi 0, %s139
    %s154 = sphi 0, %s140
    %s158 = sphi 0, %s158
    %s160 = sphi 0, %s158
    %s161 = sphi 0, %s160
    %s175 = sphi 0, %s161
    %s179 = sphi 0, %s179
    %s181 = sphi 0, %s179
    %s182 = sphi 0, %s181
    %s196 = sphi 0, %s182
    %s202 = sphi 0, %s204
    %s205 = sphi 0, %s202
    %s206 = sphi 0, %s205
    %s222 = sphi 0, %s206
  $region4: #{translate_transformer_forward.18} parent=0 // loop_header_branch
    %17 = sbr.rel (%p15) target = $region8
  $region5: #{translate_transformer_forward.18} parent=0 // loop_body
    %s19 = ssub.s32 %s14, 1
    %s20 = ssub.s32 %s14, 2
    %s21 = sadd.s32 %s14, 1
    %s22 = ssub.s32 %s14, %s21
    %p23 = scmp.eq.s32.totalorder %s22, 0
    %s25 = sadd.s32 %s24, 1
    %s26 = scalar_select %p23, %s24, %s25
    %p29 = pneg %p23
    %p30 = scmp.eq.s32.totalorder %s14, 1
    %p31 = por %p29, %p30
    %p32 = scmp.ne.s32.totalorder %s24, %s27
    %p33 = scmp.eq.s32.totalorder %s14, 0
    %p34 = por %p32, %p33
    %p35 = scmp.ne.s32.totalorder %s24, %s27
    %p36 = scmp.eq.s32.totalorder %s19, 1
    %p37 = por %p35, %p36
    %p38 = scmp.ne.s32.totalorder %s27, %s28
    %p39 = scmp.eq.s32.totalorder %s19, 0
    %p40 = por %p38, %p39
    %p41 = scmp.ne.s32.totalorder %s27, %s28
    %p42 = scmp.eq.s32.totalorder %s20, 1
    %p43 = por %p41, %p42
    %p45 = scmp.ne.s32.totalorder %s28, %s44
    %p46 = scmp.eq.s32.totalorder %s20, 0
    %p47 = por %p45, %p46
    %s48 = ssub.s32 %s14, %s21
    %p49 = scmp.eq.s32.totalorder %s48, 0
    %s51 = sadd.s32 %s50, 1
    %s52 = scalar_select %p49, %s50, %s51
    %p55 = pneg %p49
    %p56 = scmp.eq.s32.totalorder %s14, 1
    %p57 = por %p55, %p56
    %p58 = scmp.ne.s32.totalorder %s50, %s53
    %p59 = scmp.eq.s32.totalorder %s14, 0
    %p60 = por %p58, %p59
    %p61 = scmp.ne.s32.totalorder %s50, %s53
    %p62 = scmp.eq.s32.totalorder %s19, 1
    %p63 = por %p61, %p62
    %p64 = scmp.ne.s32.totalorder %s53, %s54
    %p65 = scmp.eq.s32.totalorder %s19, 0
    %p66 = por %p64, %p65
    %p67 = scmp.ne.s32.totalorder %s53, %s54
    %p68 = scmp.eq.s32.totalorder %s20, 1
    %p69 = por %p67, %p68
    %p71 = scmp.ne.s32.totalorder %s54, %s70
    %p72 = scmp.eq.s32.totalorder %s20, 0
    %p73 = por %p71, %p72
    %s75 = sadd.s32 %s74, 1
    %p78 = scmp.eq.s32.totalorder %s14, 1
    %p79 = scmp.ne.s32.totalorder %s74, %s76
    %p80 = scmp.eq.s32.totalorder %s14, 0
    %p81 = por %p79, %p80
    %p82 = scmp.ne.s32.totalorder %s74, %s76
    %p83 = scmp.eq.s32.totalorder %s19, 1
    %p84 = por %p82, %p83
    %p85 = scmp.ne.s32.totalorder %s76, %s77
    %p86 = scmp.eq.s32.totalorder %s19, 0
    %p87 = por %p85, %p86
    %p88 = scmp.ne.s32.totalorder %s76, %s77
    %p89 = scmp.eq.s32.totalorder %s20, 1
    %p90 = por %p88, %p89
    %p92 = scmp.ne.s32.totalorder %s77, %s91
    %p93 = scmp.eq.s32.totalorder %s20, 0
    %p94 = por %p92, %p93
    %s96 = sadd.s32 %s95, 1
    %p99 = scmp.eq.s32.totalorder %s14, 1
    %p100 = scmp.ne.s32.totalorder %s95, %s97
    %p101 = scmp.eq.s32.totalorder %s14, 0
    %p102 = por %p100, %p101
    %p103 = scmp.ne.s32.totalorder %s95, %s97
    %p104 = scmp.eq.s32.totalorder %s19, 1
    %p105 = por %p103, %p104
    %p106 = scmp.ne.s32.totalorder %s97, %s98
    %p107 = scmp.eq.s32.totalorder %s19, 0
    %p108 = por %p106, %p107
    %p109 = scmp.ne.s32.totalorder %s97, %s98
    %p110 = scmp.eq.s32.totalorder %s20, 1
    %p111 = por %p109, %p110
    %p113 = scmp.ne.s32.totalorder %s98, %s112
    %p114 = scmp.eq.s32.totalorder %s20, 0
    %p115 = por %p113, %p114
    %s117 = sadd.s32 %s116, 1
    %p120 = scmp.eq.s32.totalorder %s14, 1
    %p121 = scmp.ne.s32.totalorder %s116, %s118
    %p122 = scmp.eq.s32.totalorder %s14, 0
    %p123 = por %p121, %p122
    %p124 = scmp.ne.s32.totalorder %s116, %s118
    %p125 = scmp.eq.s32.totalorder %s19, 1
    %p126 = por %p124, %p125
    %p127 = scmp.ne.s32.totalorder %s118, %s119
    %p128 = scmp.eq.s32.totalorder %s19, 0
    %p129 = por %p127, %p128
    %p130 = scmp.ne.s32.totalorder %s118, %s119
    %p131 = scmp.eq.s32.totalorder %s20, 1
    %p132 = por %p130, %p131
    %p134 = scmp.ne.s32.totalorder %s119, %s133
    %p135 = scmp.eq.s32.totalorder %s20, 0
    %p136 = por %p134, %p135
    %s138 = sadd.s32 %s137, 1
    %p141 = scmp.eq.s32.totalorder %s14, 1
    %p142 = scmp.ne.s32.totalorder %s137, %s139
    %p143 = scmp.eq.s32.totalorder %s14, 0
    %p144 = por %p142, %p143
    %p145 = scmp.ne.s32.totalorder %s137, %s139
    %p146 = scmp.eq.s32.totalorder %s19, 1
    %p147 = por %p145, %p146
    %p148 = scmp.ne.s32.totalorder %s139, %s140
    %p149 = scmp.eq.s32.totalorder %s19, 0
    %p150 = por %p148, %p149
    %p151 = scmp.ne.s32.totalorder %s139, %s140
    %p152 = scmp.eq.s32.totalorder %s20, 1
    %p153 = por %p151, %p152
    %p155 = scmp.ne.s32.totalorder %s140, %s154
    %p156 = scmp.eq.s32.totalorder %s20, 0
    %p157 = por %p155, %p156
    %s159 = sadd.s32 %s158, 1
    %p162 = scmp.eq.s32.totalorder %s14, 1
    %p163 = scmp.ne.s32.totalorder %s158, %s160
    %p164 = scmp.eq.s32.totalorder %s14, 0
    %p165 = por %p163, %p164
    %p166 = scmp.ne.s32.totalorder %s158, %s160
    %p167 = scmp.eq.s32.totalorder %s19, 1
    %p168 = por %p166, %p167
    %p169 = scmp.ne.s32.totalorder %s160, %s161
    %p170 = scmp.eq.s32.totalorder %s19, 0
    %p171 = por %p169, %p170
    %p172 = scmp.ne.s32.totalorder %s160, %s161
    %p173 = scmp.eq.s32.totalorder %s20, 1
    %p174 = por %p172, %p173
    %p176 = scmp.ne.s32.totalorder %s161, %s175
    %p177 = scmp.eq.s32.totalorder %s20, 0
    %p178 = por %p176, %p177
    %s180 = sadd.s32 %s179, 1
    %p183 = scmp.eq.s32.totalorder %s14, 1
    %p184 = scmp.ne.s32.totalorder %s179, %s181
    %p185 = scmp.eq.s32.totalorder %s14, 0
    %p186 = por %p184, %p185
    %p187 = scmp.ne.s32.totalorder %s179, %s181
    %p188 = scmp.eq.s32.totalorder %s19, 1
    %p189 = por %p187, %p188
    %p190 = scmp.ne.s32.totalorder %s181, %s182
    %p191 = scmp.eq.s32.totalorder %s19, 0
    %p192 = por %p190, %p191
    %p193 = scmp.ne.s32.totalorder %s181, %s182
    %p194 = scmp.eq.s32.totalorder %s20, 1
    %p195 = por %p193, %p194
    %p197 = scmp.ne.s32.totalorder %s182, %s196
    %p198 = scmp.eq.s32.totalorder %s20, 0
    %p199 = por %p197, %p198
    %s200 = ssub.s32 %s14, %s21
    %p201 = scmp.eq.s32.totalorder %s200, 0
    %s203 = sadd.s32 %s202, 1
    %s204 = scalar_select %p201, %s202, %s203
    %p207 = pneg %p201
    %p208 = scmp.eq.s32.totalorder %s14, 1
    %p209 = por %p207, %p208
    %p210 = scmp.ne.s32.totalorder %s202, %s205
    %p211 = scmp.eq.s32.totalorder %s14, 0
    %p212 = por %p210, %p211
    %p213 = scmp.ne.s32.totalorder %s202, %s205
    %p214 = scmp.eq.s32.totalorder %s19, 1
    %p215 = por %p213, %p214
    %p216 = scmp.ne.s32.totalorder %s205, %s206
    %p217 = scmp.eq.s32.totalorder %s19, 0
    %p218 = por %p216, %p217
    %p219 = scmp.ne.s32.totalorder %s205, %s206
    %p220 = scmp.eq.s32.totalorder %s20, 1
    %p221 = por %p219, %p220
    %p223 = scmp.ne.s32.totalorder %s206, %s222
    %p224 = scmp.eq.s32.totalorder %s20, 0
    %p225 = por %p223, %p224
    %p226 = scmp.le.s32.totalorder 1, %s14
    %p227 = scmp.lt.s32.totalorder %s14, 3
    %p228 = pnand %p226, %p227
    %p229 = pneg %p228
    // Predicated region
    $region9: #{translate_transformer_forward.18} parent=5 // pred_check
      _
    $region10: #{translate_transformer_forward.18} parent=5 // pred_check_branch
      %231 = sbr.rel (%p228) target = $region12
    $region11: #{translate_transformer_forward.18} parent=5 // pred_region
      %s232 = ssub.s32 %s14, 1
      // Predicated region
      $region13: #{translate_transformer_forward.18} parent=11 // pred_check
        %p233 = pneg %p87
      $region14: #{translate_transformer_forward.18} parent=11 // pred_check_branch
        %235 = sbr.rel (%p233) target = $region16
      $region15: #{translate_transformer_forward.18} parent=11 // pred_region
        _
      $region16: #{translate_transformer_forward.18} parent=11 // pred_fallthru
        _
      // Predicated region
      $region17: #{translate_transformer_forward.18} parent=11 // pred_check
        %p236 = pneg %p108
      $region18: #{translate_transformer_forward.18} parent=11 // pred_check_branch
        %238 = sbr.rel (%p236) target = $region20
      $region19: #{translate_transformer_forward.18} parent=11 // pred_region
        _
      $region20: #{translate_transformer_forward.18} parent=11 // pred_fallthru
        _
      // Predicated region
      $region21: #{translate_transformer_forward.18} parent=11 // pred_check
        %p239 = pneg %p129
      $region22: #{translate_transformer_forward.18} parent=11 // pred_check_branch
        %241 = sbr.rel (%p239) target = $region24
      $region23: #{translate_transformer_forward.18} parent=11 // pred_region
        _
      $region24: #{translate_transformer_forward.18} parent=11 // pred_fallthru
        _
      // Predicated region
      $region25: #{translate_transformer_forward.18} parent=11 // pred_check
        %p242 = pneg %p150
      $region26: #{translate_transformer_forward.18} parent=11 // pred_check_branch
        %244 = sbr.rel (%p242) target = $region28
      $region27: #{translate_transformer_forward.18} parent=11 // pred_region
        _
      $region28: #{translate_transformer_forward.18} parent=11 // pred_fallthru
        _
      // Predicated region
      $region29: #{translate_transformer_forward.18} parent=11 // pred_check
        %p245 = pneg %p171
      $region30: #{translate_transformer_forward.18} parent=11 // pred_check_branch
        %247 = sbr.rel (%p245) target = $region32
      $region31: #{translate_transformer_forward.18} parent=11 // pred_region
        _
      $region32: #{translate_transformer_forward.18} parent=11 // pred_fallthru
        _
      // Predicated region
      $region33: #{translate_transformer_forward.18} parent=11 // pred_check
        %p248 = pneg %p192
      $region34: #{translate_transformer_forward.18} parent=11 // pred_check_branch
        %250 = sbr.rel (%p248) target = $region36
      $region35: #{translate_transformer_forward.18} parent=11 // pred_region
        _
      $region36: #{translate_transformer_forward.18} parent=11 // pred_fallthru
        _
    $region12: #{translate_transformer_forward.18} parent=5 // pred_fallthru
      _
    %p251 = scmp.lt.s32.totalorder %s14, 2
    // Predicated region
    $region37: #{translate_transformer_forward.18} parent=5 // pred_check
      %p252 = pneg %p251
    $region38: #{translate_transformer_forward.18} parent=5 // pred_check_branch
      %254 = sbr.rel (%p252) target = $region40
    $region39: #{translate_transformer_forward.18} parent=5 // pred_region
      // Predicated region
      $region41: #{translate_transformer_forward.18} parent=39 // pred_check
        %p255 = pneg %p34
      $region42: #{translate_transformer_forward.18} parent=39 // pred_check_branch
        %257 = sbr.rel (%p255) target = $region44
      $region43: #{translate_transformer_forward.18} parent=39 // pred_region
        %p258 = scmp.lt.s32.totalorder %s14, 1
        %s259 = scalar_select %p258, %s14, 1
        %s260 = smul.addr %s259, 8
        %s261 = scalar_lea.vmem %s0, %s260
      $region44: #{translate_transformer_forward.18} parent=39 // pred_fallthru
        _
      // Predicated region
      $region45: #{translate_transformer_forward.18} parent=39 // pred_check
        %p262 = pneg %p60
      $region46: #{translate_transformer_forward.18} parent=39 // pred_check_branch
        %264 = sbr.rel (%p262) target = $region48
      $region47: #{translate_transformer_forward.18} parent=39 // pred_region
        %p265 = scmp.lt.s32.totalorder %s14, 1
        %s266 = scalar_select %p265, %s14, 1
        %s267 = smul.addr %s266, 8
        %s268 = scalar_lea.vmem %s1, %s267
      $region48: #{translate_transformer_forward.18} parent=39 // pred_fallthru
        _
    $region40: #{translate_transformer_forward.18} parent=5 // pred_fallthru
      _
    %p269 = scmp.le.s32.totalorder 1, %s14
    %p270 = scmp.lt.s32.totalorder %s14, 3
    %p271 = pnand %p269, %p270
    %p272 = pneg %p271
    // Predicated region
    $region49: #{translate_transformer_forward.18} parent=5 // pred_check
      _
    $region50: #{translate_transformer_forward.18} parent=5 // pred_check_branch
      %274 = sbr.rel (%p271) target = $region52
    $region51: #{translate_transformer_forward.18} parent=5 // pred_region
      %s275 = ssub.s32 %s14, 1
      %p276 = scmp.lt.s32.totalorder %s19, 1
      %s277 = scalar_select %p276, %s19, 1
      %s278 = smul.addr %s277, 8
      %s279 = scalar_lea.vmem %s0, %s278
      %p280 = pneg %p40
      %p281 = pneg %p37
      %p282 = scmp.lt.s32.totalorder %s19, 1
      %s283 = scalar_select %p282, %s19, 1
      %s284 = smul.addr %s283, 8
      %s285 = scalar_lea.vmem %s1, %s284
      %p286 = pneg %p66
      %p287 = pneg %p63
      %p288 = pneg %p87
      %p289 = pneg %p84
      %p290 = pneg %p108
      %p291 = pneg %p105
      %p292 = pneg %p129
      %p293 = pneg %p126
      %p294 = pneg %p150
      %p295 = pneg %p147
      %p296 = pneg %p171
      %p297 = pneg %p168
      %p298 = pneg %p192
      %p299 = pneg %p189
      %p300 = pneg %p218
      %p301 = pneg %p215
      %p302 = scmp.lt.s32.totalorder %s19, 1
      %s303 = scalar_select %p302, %s19, 1
      %s304 = smul.addr %s303, 8
      %s305 = scalar_lea.vmem %s8, %s304
      %p306 = scmp.lt.s32.totalorder %s19, 1
      %s307 = scalar_select %p306, %s19, 1
      %s308 = smul.addr %s307, 8
      %s309 = scalar_lea.vmem %s0, %s308
      %p310 = scmp.lt.s32.totalorder %s19, 1
      %s311 = scalar_select %p310, %s19, 1
      %s312 = smul.addr %s311, 8
      %s313 = scalar_lea.vmem %s1, %s312
      %p314 = scmp.lt.s32.totalorder %s19, 1
      %s315 = scalar_select %p314, %s19, 1
      %s316 = smul.addr %s315, 8
      %s317 = scalar_lea.vmem %s8, %s316
      %v319 = vld [vmem:[%s309] sm:$0xff]
      %v320 = vld [vmem:[%s313] sm:$0xff]
      %v321 = vld [vmem:[%s2] sm:$0xff]
      %v322 = vld [vmem:[%s2 + $0x8] sm:$0xff]
      %v323 = vld [vmem:[%s2 + $0x10] sm:$0xff]
      %v324 = vld [vmem:[%s2 + $0x18] sm:$0xff]
      %v325 = vld [vmem:[%s3] sm:$0x1]
      %v326 = vpack.c.bf16 %v319, %v319
      %v327 = vpack.c.bf16 %v322, %v321
      %v328 = vpack.c.bf16 %v324, %v323
      %v330 = vlaneseq
      %v331 = vshrl.u32 %v330, 7
      %v332 = vsub.s32 0, %v331
      %v333 = vrot.slane %v325, %v332
      %vm335 = vcmask 261120
      %v337 = vsel %vm335, %v326, 0
      %339 = vmatprep.subr.bf16.mxu0 0
      %340 = vmatpush1.bf16.msra.mxu0 %v327
      %341 = vmatprep.subr.bf16.mxu0 0
      %342 = vmatpush1.bf16.msra.mxu0 %v328
      %343 = vmatprep.subr.bf16.mxu0 0
      %344 = vmatpush1.bf16.msra.mxu0 0
      %345 = vmatprep.subr.bf16.mxu0 0
      %346 = vmatpush1.bf16.msra.mxu0 0
      %347 = vmatprep.subr.bf16.mxu0 0
      %348 = vmatpush1.bf16.msra.mxu0 0
      %349 = vmatprep.subr.bf16.mxu0 0
      %350 = vmatpush1.bf16.msra.mxu0 0
      %351 = vmatprep.subr.bf16.mxu0 0
      %352 = vmatpush1.bf16.msra.mxu0 0
      %353 = vmatprep.subr.bf16.mxu0 0
      %354 = vmatpush1.bf16.msra.mxu0 0
      %355 = vmatprep.subr.bf16.mxu0 0
      %356 = vmatpush1.bf16.msra.mxu0 0
      %357 = vmatprep.subr.bf16.mxu0 0
      %358 = vmatpush1.bf16.msra.mxu0 0
      %359 = vmatprep.subr.bf16.mxu0 0
      %360 = vmatpush1.bf16.msra.mxu0 0
      %361 = vmatprep.subr.bf16.mxu0 0
      %362 = vmatpush1.bf16.msra.mxu0 0
      %363 = vmatprep.subr.bf16.mxu0 0
      %364 = vmatpush1.bf16.msra.mxu0 0
      %365 = vmatprep.subr.bf16.mxu0 0
      %366 = vmatpush1.bf16.msra.mxu0 0
      %367 = vmatprep.subr.bf16.mxu0 0
      %368 = vmatpush1.bf16.msra.mxu0 0
      %369 = vmatprep.subr.bf16.mxu0 0
      %370 = vmatpush1.bf16.msra.mxu0 0
      %371 = vmatprep.mubr.bf16.mxu0 0
      %372 = vmatmul.mubr.bf16.gmra.mrb[0].mxu0 %v337
      %v373 = vpop.f32.mrb[0].mxu0
      %v374 = vadd.f32 %v333, %v373
      %v375 = vpop.f32.mrb[0].mxu0
      %v376 = vpop.f32.mrb[0].mxu0
      %v377 = vpop.f32.mrb[0].mxu0
      %378 = vdwg.mxu0
      %v379 = vpack.c.bf16 %v320, %v320
      %382 = vrot.lane.b32.xlu0 %v327, 96
      %v383 = vpop.permute.xlu0 %382
      %384 = vrot.lane.b32.xlu0 %v328, 96
      %v385 = vpop.permute.xlu0 %384
      %388 = vrot.lane.b32.xlu0 %v333, 96
      %v389 = vpop.permute.xlu0 %388
      %v392 = vsel %vm335, %v379, 0
      %394 = vmatprep.subr.bf16.mxu0 0
      %395 = vmatpush1.bf16.msra.mxu0 %v383
      %396 = vmatprep.subr.bf16.mxu0 0
      %397 = vmatpush1.bf16.msra.mxu0 %v385
      %398 = vmatprep.subr.bf16.mxu0 0
      %399 = vmatpush1.bf16.msra.mxu0 0
      %400 = vmatprep.subr.bf16.mxu0 0
      %401 = vmatpush1.bf16.msra.mxu0 0
      %402 = vmatprep.subr.bf16.mxu0 0
      %403 = vmatpush1.bf16.msra.mxu0 0
      %404 = vmatprep.subr.bf16.mxu0 0
      %405 = vmatpush1.bf16.msra.mxu0 0
      %406 = vmatprep.subr.bf16.mxu0 0
      %407 = vmatpush1.bf16.msra.mxu0 0
      %408 = vmatprep.subr.bf16.mxu0 0
      %409 = vmatpush1.bf16.msra.mxu0 0
      %410 = vmatprep.subr.bf16.mxu0 0
      %411 = vmatpush1.bf16.msra.mxu0 0
      %412 = vmatprep.subr.bf16.mxu0 0
      %413 = vmatpush1.bf16.msra.mxu0 0
      %414 = vmatprep.subr.bf16.mxu0 0
      %415 = vmatpush1.bf16.msra.mxu0 0
      %416 = vmatprep.subr.bf16.mxu0 0
      %417 = vmatpush1.bf16.msra.mxu0 0
      %418 = vmatprep.subr.bf16.mxu0 0
      %419 = vmatpush1.bf16.msra.mxu0 0
      %420 = vmatprep.subr.bf16.mxu0 0
      %421 = vmatpush1.bf16.msra.mxu0 0
      %422 = vmatprep.subr.bf16.mxu0 0
      %423 = vmatpush1.bf16.msra.mxu0 0
      %424 = vmatprep.subr.bf16.mxu0 0
      %425 = vmatpush1.bf16.msra.mxu0 0
      %426 = vmatprep.mubr.bf16.mxu0 0
      %427 = vmatmul.mubr.bf16.gmra.mrb[0].mxu0 %v392
      %v428 = vpop.f32.mrb[0].mxu0
      %v429 = vadd.f32 %v389, %v428
      %v430 = vpop.f32.mrb[0].mxu0
      %v431 = vpop.f32.mrb[0].mxu0
      %v432 = vpop.f32.mrb[0].mxu0
      %433 = vdwg.mxu0
      %v434 = vld [vmem:[%s4] sm:$0xff]
      %v435 = vld [vmem:[%s4 + $0x8] sm:$0xff]
      %v436 = vld [vmem:[%s4 + $0x10] sm:$0xff]
      %v437 = vld [vmem:[%s4 + $0x18] sm:$0xff]
      %vm438 = vcmask 64512
      %v440 = vsel %vm438, %v374, 0
      %v443 = vsel %vm438, %v429, 0
      %445 = vmatprep.subr.mxu0 0.0
      %446 = vmatpush1.xpose.msra.mxu0 %v443
      %447 = vmatprep.subr.mxu0 0.0
      %448 = vmatpush1.xpose.msra.mxu0 0.0
      %449 = vmatprep.subr.mxu0 0.0
      %450 = vmatpush1.xpose.msra.mxu0 0.0
      %451 = vmatprep.subr.mxu0 0.0
      %452 = vmatpush1.xpose.msra.mxu0 0.0
      %453 = vmatprep.subr.mxu0 0.0
      %454 = vmatpush1.xpose.msra.mxu0 0.0
      %455 = vmatprep.subr.mxu0 0.0
      %456 = vmatpush1.xpose.msra.mxu0 0.0
      %457 = vmatprep.subr.mxu0 0.0
      %458 = vmatpush1.xpose.msra.mxu0 0.0
      %459 = vmatprep.subr.mxu0 0.0
      %460 = vmatpush1.xpose.msra.mxu0 0.0
      %461 = vmatprep.subr.mxu0 0.0
      %462 = vmatpush1.xpose.msra.mxu0 0.0
      %463 = vmatprep.subr.mxu0 0.0
      %464 = vmatpush1.xpose.msra.mxu0 0.0
      %465 = vmatprep.subr.mxu0 0.0
      %466 = vmatpush1.xpose.msra.mxu0 0.0
      %467 = vmatprep.subr.mxu0 0.0
      %468 = vmatpush1.xpose.msra.mxu0 0.0
      %469 = vmatprep.subr.mxu0 0.0
      %470 = vmatpush1.xpose.msra.mxu0 0.0
      %471 = vmatprep.subr.mxu0 0.0
      %472 = vmatpush1.xpose.msra.mxu0 0.0
      %473 = vmatprep.subr.mxu0 0.0
      %474 = vmatpush1.xpose.msra.mxu0 0.0
      %475 = vmatprep.subr.mxu0 0.0
      %476 = vmatpush1.xpose.msra.mxu0 0.0
      %477 = vmatprep.subr.mxu0 0.0
      %478 = vmatpush1.xpose.msra.mxu0 0.0
      %479 = vmatprep.subr.mxu0 0.0
      %480 = vmatpush1.xpose.msra.mxu0 0.0
      %481 = vmatprep.subr.mxu0 0.0
      %482 = vmatpush1.xpose.msra.mxu0 0.0
      %483 = vmatprep.subr.mxu0 0.0
      %484 = vmatpush1.xpose.msra.mxu0 0.0
      %485 = vmatprep.subr.mxu0 0.0
      %486 = vmatpush1.xpose.msra.mxu0 0.0
      %487 = vmatprep.subr.mxu0 0.0
      %488 = vmatpush1.xpose.msra.mxu0 0.0
      %489 = vmatprep.subr.mxu0 0.0
      %490 = vmatpush1.xpose.msra.mxu0 0.0
      %491 = vmatprep.subr.mxu0 0.0
      %492 = vmatpush1.xpose.msra.mxu0 0.0
      %493 = vmatprep.subr.mxu0 0.0
      %494 = vmatpush1.xpose.msra.mxu0 0.0
      %495 = vmatprep.subr.mxu0 0.0
      %496 = vmatpush1.xpose.msra.mxu0 0.0
      %497 = vmatprep.subr.mxu0 0.0
      %498 = vmatpush1.xpose.msra.mxu0 0.0
      %499 = vmatprep.subr.mxu0 0.0
      %500 = vmatpush1.xpose.msra.mxu0 0.0
      %501 = vmatprep.subr.mxu0 0.0
      %502 = vmatpush1.xpose.msra.mxu0 0.0
      %503 = vmatprep.subr.mxu0 0.0
      %504 = vmatpush1.xpose.msra.mxu0 0.0
      %505 = vmatprep.subr.mxu0 0.0
      %506 = vmatpush1.xpose.msra.mxu0 0.0
      %507 = vmatprep.subr.mxu0 0.0
      %508 = vmatpush1.xpose.msra.mxu0 0.0
      %509 = vmatprep.mubr.f32.mxu0 0.0
      %510 = vmatmul.mubr.f32.gmra.mrb[0].mxu0 %v440
      %v511 = vpop.f32.mrb[0].mxu0
      %v512 = vadd.f32 0.0, %v511
      %v513 = vpop.f32.mrb[0].mxu0
      %514 = vdwg.mxu0
      %v515 = vmul.f32 %v512, 0.35355338
      %v516 = vsel %vm438, %v515, -inf
      %517 = vmax.xlane.f32.xlu0 %v516
      %v518 = vpop.xlane.xlu0 %517
      %v519 = vsub.f32 %v515, %v518
      %v520 = vmul.f32 %v519, 1.442695
      %v521 = vpow.pop %v520
      %v522 = vsel %vm438, %v521, 0.0
      %523 = vadd.xlane.f32.xlu0 %v522
      %v524 = vpop.xlane.xlu0 %523
      %v525 = vrcp.pop %v524
      %v526 = vmul.f32 %v521, %v525
      %527 = vrot.lane.b32.xlu0 %v429, 96
      %v528 = vpop.permute.xlu0 %527
      %v531 = vsel %vm438, %v526, 0
      %533 = vmatprep.subr.mxu0 0.0
      %534 = vmatpush1.msra.mxu0 %v528
      %535 = vmatprep.subr.mxu0 0.0
      %536 = vmatpush1.msra.mxu0 0.0
      %537 = vmatprep.subr.mxu0 0.0
      %538 = vmatpush1.msra.mxu0 0.0
      %539 = vmatprep.subr.mxu0 0.0
      %540 = vmatpush1.msra.mxu0 0.0
      %541 = vmatprep.subr.mxu0 0.0
      %542 = vmatpush1.msra.mxu0 0.0
      %543 = vmatprep.subr.mxu0 0.0
      %544 = vmatpush1.msra.mxu0 0.0
      %545 = vmatprep.subr.mxu0 0.0
      %546 = vmatpush1.msra.mxu0 0.0
      %547 = vmatprep.subr.mxu0 0.0
      %548 = vmatpush1.msra.mxu0 0.0
      %549 = vmatprep.subr.mxu0 0.0
      %550 = vmatpush1.msra.mxu0 0.0
      %551 = vmatprep.subr.mxu0 0.0
      %552 = vmatpush1.msra.mxu0 0.0
      %553 = vmatprep.subr.mxu0 0.0
      %554 = vmatpush1.msra.mxu0 0.0
      %555 = vmatprep.subr.mxu0 0.0
      %556 = vmatpush1.msra.mxu0 0.0
      %557 = vmatprep.subr.mxu0 0.0
      %558 = vmatpush1.msra.mxu0 0.0
      %559 = vmatprep.subr.mxu0 0.0
      %560 = vmatpush1.msra.mxu0 0.0
      %561 = vmatprep.subr.mxu0 0.0
      %562 = vmatpush1.msra.mxu0 0.0
      %563 = vmatprep.subr.mxu0 0.0
      %564 = vmatpush1.msra.mxu0 0.0
      %565 = vmatprep.subr.mxu0 0.0
      %566 = vmatpush1.msra.mxu0 0.0
      %567 = vmatprep.subr.mxu0 0.0
      %568 = vmatpush1.msra.mxu0 0.0
      %569 = vmatprep.subr.mxu0 0.0
      %570 = vmatpush1.msra.mxu0 0.0
      %571 = vmatprep.subr.mxu0 0.0
      %572 = vmatpush1.msra.mxu0 0.0
      %573 = vmatprep.subr.mxu0 0.0
      %574 = vmatpush1.msra.mxu0 0.0
      %575 = vmatprep.subr.mxu0 0.0
      %576 = vmatpush1.msra.mxu0 0.0
      %577 = vmatprep.subr.mxu0 0.0
      %578 = vmatpush1.msra.mxu0 0.0
      %579 = vmatprep.subr.mxu0 0.0
      %580 = vmatpush1.msra.mxu0 0.0
      %581 = vmatprep.subr.mxu0 0.0
      %582 = vmatpush1.msra.mxu0 0.0
      %583 = vmatprep.subr.mxu0 0.0
      %584 = vmatpush1.msra.mxu0 0.0
      %585 = vmatprep.subr.mxu0 0.0
      %586 = vmatpush1.msra.mxu0 0.0
      %587 = vmatprep.subr.mxu0 0.0
      %588 = vmatpush1.msra.mxu0 0.0
      %589 = vmatprep.subr.mxu0 0.0
      %590 = vmatpush1.msra.mxu0 0.0
      %591 = vmatprep.subr.mxu0 0.0
      %592 = vmatpush1.msra.mxu0 0.0
      %593 = vmatprep.subr.mxu0 0.0
      %594 = vmatpush1.msra.mxu0 0.0
      %595 = vmatprep.subr.mxu0 0.0
      %596 = vmatpush1.msra.mxu0 0.0
      %597 = vmatprep.mubr.f32.mxu0 0.0
      %598 = vmatmul.mubr.f32.gmra.mrb[0].mxu0 %v531
      %v599 = vpop.f32.mrb[0].mxu0
      %v600 = vadd.f32 0.0, %v599
      %v601 = vpop.f32.mrb[0].mxu0
      %602 = vdwg.mxu0
      %v603 = vpack.c.bf16 %v600, %v600
      %v604 = vpack.c.bf16 %v434, %v434
      %605 = vrot.lane.b32.xlu0 %v374, 120
      %v606 = vpop.permute.xlu0 %605
      %607 = vrot.lane.b32.xlu0 %v429, 120
      %v608 = vpop.permute.xlu0 %607
      %v609 = vsel %vm438, %v606, 0
      %v611 = vsel %vm438, %v608, 0
      %613 = vmatprep.subr.mxu0 0.0
      %614 = vmatpush1.xpose.msra.mxu0 %v611
      %615 = vmatprep.subr.mxu0 0.0
      %616 = vmatpush1.xpose.msra.mxu0 0.0
      %617 = vmatprep.subr.mxu0 0.0
      %618 = vmatpush1.xpose.msra.mxu0 0.0
      %619 = vmatprep.subr.mxu0 0.0
      %620 = vmatpush1.xpose.msra.mxu0 0.0
      %621 = vmatprep.subr.mxu0 0.0
      %622 = vmatpush1.xpose.msra.mxu0 0.0
      %623 = vmatprep.subr.mxu0 0.0
      %624 = vmatpush1.xpose.msra.mxu0 0.0
      %625 = vmatprep.subr.mxu0 0.0
      %626 = vmatpush1.xpose.msra.mxu0 0.0
      %627 = vmatprep.subr.mxu0 0.0
      %628 = vmatpush1.xpose.msra.mxu0 0.0
      %629 = vmatprep.subr.mxu0 0.0
      %630 = vmatpush1.xpose.msra.mxu0 0.0
      %631 = vmatprep.subr.mxu0 0.0
      %632 = vmatpush1.xpose.msra.mxu0 0.0
      %633 = vmatprep.subr.mxu0 0.0
      %634 = vmatpush1.xpose.msra.mxu0 0.0
      %635 = vmatprep.subr.mxu0 0.0
      %636 = vmatpush1.xpose.msra.mxu0 0.0
      %637 = vmatprep.subr.mxu0 0.0
      %638 = vmatpush1.xpose.msra.mxu0 0.0
      %639 = vmatprep.subr.mxu0 0.0
      %640 = vmatpush1.xpose.msra.mxu0 0.0
      %641 = vmatprep.subr.mxu0 0.0
      %642 = vmatpush1.xpose.msra.mxu0 0.0
      %643 = vmatprep.subr.mxu0 0.0
      %644 = vmatpush1.xpose.msra.mxu0 0.0
      %645 = vmatprep.subr.mxu0 0.0
      %646 = vmatpush1.xpose.msra.mxu0 0.0
      %647 = vmatprep.subr.mxu0 0.0
      %648 = vmatpush1.xpose.msra.mxu0 0.0
      %649 = vmatprep.subr.mxu0 0.0
      %650 = vmatpush1.xpose.msra.mxu0 0.0
      %651 = vmatprep.subr.mxu0 0.0
      %652 = vmatpush1.xpose.msra.mxu0 0.0
      %653 = vmatprep.subr.mxu0 0.0
      %654 = vmatpush1.xpose.msra.mxu0 0.0
      %655 = vmatprep.subr.mxu0 0.0
      %656 = vmatpush1.xpose.msra.mxu0 0.0
      %657 = vmatprep.subr.mxu0 0.0
      %658 = vmatpush1.xpose.msra.mxu0 0.0
      %659 = vmatprep.subr.mxu0 0.0
      %660 = vmatpush1.xpose.msra.mxu0 0.0
      %661 = vmatprep.subr.mxu0 0.0
      %662 = vmatpush1.xpose.msra.mxu0 0.0
      %663 = vmatprep.subr.mxu0 0.0
      %664 = vmatpush1.xpose.msra.mxu0 0.0
      %665 = vmatprep.subr.mxu0 0.0
      %666 = vmatpush1.xpose.msra.mxu0 0.0
      %667 = vmatprep.subr.mxu0 0.0
      %668 = vmatpush1.xpose.msra.mxu0 0.0
      %669 = vmatprep.subr.mxu0 0.0
      %670 = vmatpush1.xpose.msra.mxu0 0.0
      %671 = vmatprep.subr.mxu0 0.0
      %672 = vmatpush1.xpose.msra.mxu0 0.0
      %673 = vmatprep.subr.mxu0 0.0
      %674 = vmatpush1.xpose.msra.mxu0 0.0
      %675 = vmatprep.subr.mxu0 0.0
      %676 = vmatpush1.xpose.msra.mxu0 0.0
      %677 = vmatprep.mubr.f32.mxu0 0.0
      %678 = vmatmul.mubr.f32.gmra.mrb[0].mxu0 %v609
      %v679 = vpop.f32.mrb[0].mxu0
      %v680 = vadd.f32 0.0, %v679
      %v681 = vpop.f32.mrb[0].mxu0
      %682 = vdwg.mxu0
      %v683 = vmul.f32 %v680, 0.35355338
      %v684 = vsel %vm438, %v683, -inf
      %685 = vmax.xlane.f32.xlu0 %v684
      %v686 = vpop.xlane.xlu0 %685
      %v687 = vsub.f32 %v683, %v686
      %v688 = vmul.f32 %v687, 1.442695
      %v689 = vpow.pop %v688
      %v690 = vsel %vm438, %v689, 0.0
      %691 = vadd.xlane.f32.xlu0 %v690
      %v692 = vpop.xlane.xlu0 %691
      %v693 = vrcp.pop %v692
      %v694 = vmul.f32 %v689, %v693
      %695 = vrot.lane.b32.xlu0 %v429, 88
      %v696 = vpop.permute.xlu0 %695
      %v699 = vsel %vm438, %v694, 0
      %701 = vmatprep.subr.mxu0 0.0
      %702 = vmatpush1.msra.mxu0 %v696
      %703 = vmatprep.subr.mxu0 0.0
      %704 = vmatpush1.msra.mxu0 0.0
      %705 = vmatprep.subr.mxu0 0.0
      %706 = vmatpush1.msra.mxu0 0.0
      %707 = vmatprep.subr.mxu0 0.0
      %708 = vmatpush1.msra.mxu0 0.0
      %709 = vmatprep.subr.mxu0 0.0
      %710 = vmatpush1.msra.mxu0 0.0
      %711 = vmatprep.subr.mxu0 0.0
      %712 = vmatpush1.msra.mxu0 0.0
      %713 = vmatprep.subr.mxu0 0.0
      %714 = vmatpush1.msra.mxu0 0.0
      %715 = vmatprep.subr.mxu0 0.0
      %716 = vmatpush1.msra.mxu0 0.0
      %717 = vmatprep.subr.mxu0 0.0
      %718 = vmatpush1.msra.mxu0 0.0
      %719 = vmatprep.subr.mxu0 0.0
      %720 = vmatpush1.msra.mxu0 0.0
      %721 = vmatprep.subr.mxu0 0.0
      %722 = vmatpush1.msra.mxu0 0.0
      %723 = vmatprep.subr.mxu0 0.0
      %724 = vmatpush1.msra.mxu0 0.0
      %725 = vmatprep.subr.mxu0 0.0
      %726 = vmatpush1.msra.mxu0 0.0
      %727 = vmatprep.subr.mxu0 0.0
      %728 = vmatpush1.msra.mxu0 0.0
      %729 = vmatprep.subr.mxu0 0.0
      %730 = vmatpush1.msra.mxu0 0.0
      %731 = vmatprep.subr.mxu0 0.0
      %732 = vmatpush1.msra.mxu0 0.0
      %733 = vmatprep.subr.mxu0 0.0
      %734 = vmatpush1.msra.mxu0 0.0
      %735 = vmatprep.subr.mxu0 0.0
      %736 = vmatpush1.msra.mxu0 0.0
      %737 = vmatprep.subr.mxu0 0.0
      %738 = vmatpush1.msra.mxu0 0.0
      %739 = vmatprep.subr.mxu0 0.0
      %740 = vmatpush1.msra.mxu0 0.0
      %741 = vmatprep.subr.mxu0 0.0
      %742 = vmatpush1.msra.mxu0 0.0
      %743 = vmatprep.subr.mxu0 0.0
      %744 = vmatpush1.msra.mxu0 0.0
      %745 = vmatprep.subr.mxu0 0.0
      %746 = vmatpush1.msra.mxu0 0.0
      %747 = vmatprep.subr.mxu0 0.0
      %748 = vmatpush1.msra.mxu0 0.0
      %749 = vmatprep.subr.mxu0 0.0
      %750 = vmatpush1.msra.mxu0 0.0
      %751 = vmatprep.subr.mxu0 0.0
      %752 = vmatpush1.msra.mxu0 0.0
      %753 = vmatprep.subr.mxu0 0.0
      %754 = vmatpush1.msra.mxu0 0.0
      %755 = vmatprep.subr.mxu0 0.0
      %756 = vmatpush1.msra.mxu0 0.0
      %757 = vmatprep.subr.mxu0 0.0
      %758 = vmatpush1.msra.mxu0 0.0
      %759 = vmatprep.subr.mxu0 0.0
      %760 = vmatpush1.msra.mxu0 0.0
      %761 = vmatprep.subr.mxu0 0.0
      %762 = vmatpush1.msra.mxu0 0.0
      %763 = vmatprep.subr.mxu0 0.0
      %764 = vmatpush1.msra.mxu0 0.0
      %765 = vmatprep.mubr.f32.mxu0 0.0
      %766 = vmatmul.mubr.f32.gmra.mrb[0].mxu0 %v699
      %v767 = vpop.f32.mrb[0].mxu0
      %v768 = vadd.f32 0.0, %v767
      %v769 = vpop.f32.mrb[0].mxu0
      %770 = vdwg.mxu0
      %v771 = vpack.c.bf16 %v768, %v768
      %v772 = vpack.c.bf16 %v435, %v435
      %v774 = vsel %vm438, %v771, 0
      %vm776 = vcmask 1043456
      %v778 = vsel %vm776, %v772, 0
      %780 = vmatprep.subr.bf16.mxu0 0
      %781 = vmatpush1.bf16.msra.mxu0 %v778
      %782 = vmatprep.subr.bf16.mxu0 0
      %783 = vmatpush1.bf16.msra.mxu0 0
      %784 = vmatprep.subr.bf16.mxu0 0
      %785 = vmatpush1.bf16.msra.mxu0 0
      %786 = vmatprep.subr.bf16.mxu0 0
      %787 = vmatpush1.bf16.msra.mxu0 0
      %788 = vmatprep.subr.bf16.mxu0 0
      %789 = vmatpush1.bf16.msra.mxu0 0
      %790 = vmatprep.subr.bf16.mxu0 0
      %791 = vmatpush1.bf16.msra.mxu0 0
      %792 = vmatprep.subr.bf16.mxu0 0
      %793 = vmatpush1.bf16.msra.mxu0 0
      %794 = vmatprep.subr.bf16.mxu0 0
      %795 = vmatpush1.bf16.msra.mxu0 0
      %796 = vmatprep.subr.bf16.mxu0 0
      %797 = vmatpush1.bf16.msra.mxu0 0
      %798 = vmatprep.subr.bf16.mxu0 0
      %799 = vmatpush1.bf16.msra.mxu0 0
      %800 = vmatprep.subr.bf16.mxu0 0
      %801 = vmatpush1.bf16.msra.mxu0 0
      %802 = vmatprep.subr.bf16.mxu0 0
      %803 = vmatpush1.bf16.msra.mxu0 0
      %804 = vmatprep.subr.bf16.mxu0 0
      %805 = vmatpush1.bf16.msra.mxu0 0
      %806 = vmatprep.subr.bf16.mxu0 0
      %807 = vmatpush1.bf16.msra.mxu0 0
      %808 = vmatprep.subr.bf16.mxu0 0
      %809 = vmatpush1.bf16.msra.mxu0 0
      %810 = vmatprep.subr.bf16.mxu0 0
      %811 = vmatpush1.bf16.msra.mxu0 0
      %812 = vmatprep.mubr.bf16.mxu0 0
      %813 = vmatmul.mubr.bf16.gmra.mrb[0].mxu0 %v774
      %v814 = vpop.f32.mrb[0].mxu0
      %v815 = vadd.f32 0.0, %v814
      %v816 = vpop.f32.mrb[0].mxu0
      %v817 = vpop.f32.mrb[0].mxu0
      %v818 = vpop.f32.mrb[0].mxu0
      %819 = vdwg.mxu0
      %v821 = vsel %vm438, %v603, 0
      %v824 = vsel %vm776, %v604, 0
      %826 = vmatprep.subr.bf16.mxu0 0
      %827 = vmatpush1.bf16.msra.mxu0 %v824
      %828 = vmatprep.subr.bf16.mxu0 0
      %829 = vmatpush1.bf16.msra.mxu0 0
      %830 = vmatprep.subr.bf16.mxu0 0
      %831 = vmatpush1.bf16.msra.mxu0 0
      %832 = vmatprep.subr.bf16.mxu0 0
      %833 = vmatpush1.bf16.msra.mxu0 0
      %834 = vmatprep.subr.bf16.mxu0 0
      %835 = vmatpush1.bf16.msra.mxu0 0
      %836 = vmatprep.subr.bf16.mxu0 0
      %837 = vmatpush1.bf16.msra.mxu0 0
      %838 = vmatprep.subr.bf16.mxu0 0
      %839 = vmatpush1.bf16.msra.mxu0 0
      %840 = vmatprep.subr.bf16.mxu0 0
      %841 = vmatpush1.bf16.msra.mxu0 0
      %842 = vmatprep.subr.bf16.mxu0 0
      %843 = vmatpush1.bf16.msra.mxu0 0
      %844 = vmatprep.subr.bf16.mxu0 0
      %845 = vmatpush1.bf16.msra.mxu0 0
      %846 = vmatprep.subr.bf16.mxu0 0
      %847 = vmatpush1.bf16.msra.mxu0 0
      %848 = vmatprep.subr.bf16.mxu0 0
      %849 = vmatpush1.bf16.msra.mxu0 0
      %850 = vmatprep.subr.bf16.mxu0 0
      %851 = vmatpush1.bf16.msra.mxu0 0
      %852 = vmatprep.subr.bf16.mxu0 0
      %853 = vmatpush1.bf16.msra.mxu0 0
      %854 = vmatprep.subr.bf16.mxu0 0
      %855 = vmatpush1.bf16.msra.mxu0 0
      %856 = vmatprep.subr.bf16.mxu0 0
      %857 = vmatpush1.bf16.msra.mxu0 0
      %858 = vmatprep.mubr.bf16.mxu0 0
      %859 = vmatmul.mubr.bf16.gmra.mrb[0].mxu0 %v821
      %v860 = vpop.f32.mrb[0].mxu0
      %v861 = vadd.f32 %v815, %v860
      %v862 = vpop.f32.mrb[0].mxu0
      %v863 = vpop.f32.mrb[0].mxu0
      %v864 = vpop.f32.mrb[0].mxu0
      %865 = vdwg.mxu0
      %866 = vrot.lane.b32.xlu0 %v374, 112
      %v867 = vpop.permute.xlu0 %866
      %868 = vrot.lane.b32.xlu0 %v429, 112
      %v869 = vpop.permute.xlu0 %868
      %v870 = vsel %vm438, %v867, 0
      %v872 = vsel %vm438, %v869, 0
      %874 = vmatprep.subr.mxu0 0.0
      %875 = vmatpush1.xpose.msra.mxu0 %v872
      %876 = vmatprep.subr.mxu0 0.0
      %877 = vmatpush1.xpose.msra.mxu0 0.0
      %878 = vmatprep.subr.mxu0 0.0
      %879 = vmatpush1.xpose.msra.mxu0 0.0
      %880 = vmatprep.subr.mxu0 0.0
      %881 = vmatpush1.xpose.msra.mxu0 0.0
      %882 = vmatprep.subr.mxu0 0.0
      %883 = vmatpush1.xpose.msra.mxu0 0.0
      %884 = vmatprep.subr.mxu0 0.0
      %885 = vmatpush1.xpose.msra.mxu0 0.0
      %886 = vmatprep.subr.mxu0 0.0
      %887 = vmatpush1.xpose.msra.mxu0 0.0
      %888 = vmatprep.subr.mxu0 0.0
      %889 = vmatpush1.xpose.msra.mxu0 0.0
      %890 = vmatprep.subr.mxu0 0.0
      %891 = vmatpush1.xpose.msra.mxu0 0.0
      %892 = vmatprep.subr.mxu0 0.0
      %893 = vmatpush1.xpose.msra.mxu0 0.0
      %894 = vmatprep.subr.mxu0 0.0
      %895 = vmatpush1.xpose.msra.mxu0 0.0
      %896 = vmatprep.subr.mxu0 0.0
      %897 = vmatpush1.xpose.msra.mxu0 0.0
      %898 = vmatprep.subr.mxu0 0.0
      %899 = vmatpush1.xpose.msra.mxu0 0.0
      %900 = vmatprep.subr.mxu0 0.0
      %901 = vmatpush1.xpose.msra.mxu0 0.0
      %902 = vmatprep.subr.mxu0 0.0
      %903 = vmatpush1.xpose.msra.mxu0 0.0
      %904 = vmatprep.subr.mxu0 0.0
      %905 = vmatpush1.xpose.msra.mxu0 0.0
      %906 = vmatprep.subr.mxu0 0.0
      %907 = vmatpush1.xpose.msra.mxu0 0.0
      %908 = vmatprep.subr.mxu0 0.0
      %909 = vmatpush1.xpose.msra.mxu0 0.0
      %910 = vmatprep.subr.mxu0 0.0
      %911 = vmatpush1.xpose.msra.mxu0 0.0
      %912 = vmatprep.subr.mxu0 0.0
      %913 = vmatpush1.xpose.msra.mxu0 0.0
      %914 = vmatprep.subr.mxu0 0.0
      %915 = vmatpush1.xpose.msra.mxu0 0.0
      %916 = vmatprep.subr.mxu0 0.0
      %917 = vmatpush1.xpose.msra.mxu0 0.0
      %918 = vmatprep.subr.mxu0 0.0
      %919 = vmatpush1.xpose.msra.mxu0 0.0
      %920 = vmatprep.subr.mxu0 0.0
      %921 = vmatpush1.xpose.msra.mxu0 0.0
      %922 = vmatprep.subr.mxu0 0.0
      %923 = vmatpush1.xpose.msra.mxu0 0.0
      %924 = vmatprep.subr.mxu0 0.0
      %925 = vmatpush1.xpose.msra.mxu0 0.0
      %926 = vmatprep.subr.mxu0 0.0
      %927 = vmatpush1.xpose.msra.mxu0 0.0
      %928 = vmatprep.subr.mxu0 0.0
      %929 = vmatpush1.xpose.msra.mxu0 0.0
      %930 = vmatprep.subr.mxu0 0.0
      %931 = vmatpush1.xpose.msra.mxu0 0.0
      %932 = vmatprep.subr.mxu0 0.0
      %933 = vmatpush1.xpose.msra.mxu0 0.0
      %934 = vmatprep.subr.mxu0 0.0
      %935 = vmatpush1.xpose.msra.mxu0 0.0
      %936 = vmatprep.subr.mxu0 0.0
      %937 = vmatpush1.xpose.msra.mxu0 0.0
      %938 = vmatprep.mubr.f32.mxu0 0.0
      %939 = vmatmul.mubr.f32.gmra.mrb[0].mxu0 %v870
      %v940 = vpop.f32.mrb[0].mxu0
      %v941 = vadd.f32 0.0, %v940
      %v942 = vpop.f32.mrb[0].mxu0
      %943 = vdwg.mxu0
      %v944 = vmul.f32 %v941, 0.35355338
      %v945 = vsel %vm438, %v944, -inf
      %946 = vmax.xlane.f32.xlu0 %v945
      %v947 = vpop.xlane.xlu0 %946
      %v948 = vsub.f32 %v944, %v947
      %v949 = vmul.f32 %v948, 1.442695
      %v950 = vpow.pop %v949
      %v951 = vsel %vm438, %v950, 0.0
      %952 = vadd.xlane.f32.xlu0 %v951
      %v953 = vpop.xlane.xlu0 %952
      %v954 = vrcp.pop %v953
      %v955 = vmul.f32 %v950, %v954
      %956 = vrot.lane.b32.xlu0 %v429, 80
      %v957 = vpop.permute.xlu0 %956
      %v960 = vsel %vm438, %v955, 0
      %962 = vmatprep.subr.mxu0 0.0
      %963 = vmatpush1.msra.mxu0 %v957
      %964 = vmatprep.subr.mxu0 0.0
      %965 = vmatpush1.msra.mxu0 0.0
      %966 = vmatprep.subr.mxu0 0.0
      %967 = vmatpush1.msra.mxu0 0.0
      %968 = vmatprep.subr.mxu0 0.0
      %969 = vmatpush1.msra.mxu0 0.0
      %970 = vmatprep.subr.mxu0 0.0
      %971 = vmatpush1.msra.mxu0 0.0
      %972 = vmatprep.subr.mxu0 0.0
      %973 = vmatpush1.msra.mxu0 0.0
      %974 = vmatprep.subr.mxu0 0.0
      %975 = vmatpush1.msra.mxu0 0.0
      %976 = vmatprep.subr.mxu0 0.0
      %977 = vmatpush1.msra.mxu0 0.0
      %978 = vmatprep.subr.mxu0 0.0
      %979 = vmatpush1.msra.mxu0 0.0
      %980 = vmatprep.subr.mxu0 0.0
      %981 = vmatpush1.msra.mxu0 0.0
      %982 = vmatprep.subr.mxu0 0.0
      %983 = vmatpush1.msra.mxu0 0.0
      %984 = vmatprep.subr.mxu0 0.0
      %985 = vmatpush1.msra.mxu0 0.0
      %986 = vmatprep.subr.mxu0 0.0
      %987 = vmatpush1.msra.mxu0 0.0
      %988 = vmatprep.subr.mxu0 0.0
      %989 = vmatpush1.msra.mxu0 0.0
      %990 = vmatprep.subr.mxu0 0.0
      %991 = vmatpush1.msra.mxu0 0.0
      %992 = vmatprep.subr.mxu0 0.0
      %993 = vmatpush1.msra.mxu0 0.0
      %994 = vmatprep.subr.mxu0 0.0
      %995 = vmatpush1.msra.mxu0 0.0
      %996 = vmatprep.subr.mxu0 0.0
      %997 = vmatpush1.msra.mxu0 0.0
      %998 = vmatprep.subr.mxu0 0.0
      %999 = vmatpush1.msra.mxu0 0.0
      %1000 = vmatprep.subr.mxu0 0.0
      %1001 = vmatpush1.msra.mxu0 0.0
      %1002 = vmatprep.subr.mxu0 0.0
      %1003 = vmatpush1.msra.mxu0 0.0
      %1004 = vmatprep.subr.mxu0 0.0
      %1005 = vmatpush1.msra.mxu0 0.0
      %1006 = vmatprep.subr.mxu0 0.0
      %1007 = vmatpush1.msra.mxu0 0.0
      %1008 = vmatprep.subr.mxu0 0.0
      %1009 = vmatpush1.msra.mxu0 0.0
      %1010 = vmatprep.subr.mxu0 0.0
      %1011 = vmatpush1.msra.mxu0 0.0
      %1012 = vmatprep.subr.mxu0 0.0
      %1013 = vmatpush1.msra.mxu0 0.0
      %1014 = vmatprep.subr.mxu0 0.0
      %1015 = vmatpush1.msra.mxu0 0.0
      %1016 = vmatprep.subr.mxu0 0.0
      %1017 = vmatpush1.msra.mxu0 0.0
      %1018 = vmatprep.subr.mxu0 0.0
      %1019 = vmatpush1.msra.mxu0 0.0
      %1020 = vmatprep.subr.mxu0 0.0
      %1021 = vmatpush1.msra.mxu0 0.0
      %1022 = vmatprep.subr.mxu0 0.0
      %1023 = vmatpush1.msra.mxu0 0.0
      %1024 = vmatprep.subr.mxu0 0.0
      %1025 = vmatpush1.msra.mxu0 0.0
      %1026 = vmatprep.mubr.f32.mxu0 0.0
      %1027 = vmatmul.mubr.f32.gmra.mrb[0].mxu0 %v960
      %v1028 = vpop.f32.mrb[0].mxu0
      %v1029 = vadd.f32 0.0, %v1028
      %v1030 = vpop.f32.mrb[0].mxu0
      %1031 = vdwg.mxu0
      %v1032 = vpack.c.bf16 %v1029, %v1029
      %v1033 = vpack.c.bf16 %v436, %v436
      %v1035 = vsel %vm438, %v1032, 0
      %v1038 = vsel %vm776, %v1033, 0
      %1040 = vmatprep.subr.bf16.mxu0 0
      %1041 = vmatpush1.bf16.msra.mxu0 %v1038
      %1042 = vmatprep.subr.bf16.mxu0 0
      %1043 = vmatpush1.bf16.msra.mxu0 0
      %1044 = vmatprep.subr.bf16.mxu0 0
      %1045 = vmatpush1.bf16.msra.mxu0 0
      %1046 = vmatprep.subr.bf16.mxu0 0
      %1047 = vmatpush1.bf16.msra.mxu0 0
      %1048 = vmatprep.subr.bf16.mxu0 0
      %1049 = vmatpush1.bf16.msra.mxu0 0
      %1050 = vmatprep.subr.bf16.mxu0 0
      %1051 = vmatpush1.bf16.msra.mxu0 0
      %1052 = vmatprep.subr.bf16.mxu0 0
      %1053 = vmatpush1.bf16.msra.mxu0 0
      %1054 = vmatprep.subr.bf16.mxu0 0
      %1055 = vmatpush1.bf16.msra.mxu0 0
      %1056 = vmatprep.subr.bf16.mxu0 0
      %1057 = vmatpush1.bf16.msra.mxu0 0
      %1058 = vmatprep.subr.bf16.mxu0 0
      %1059 = vmatpush1.bf16.msra.mxu0 0
      %1060 = vmatprep.subr.bf16.mxu0 0
      %1061 = vmatpush1.bf16.msra.mxu0 0
      %1062 = vmatprep.subr.bf16.mxu0 0
      %1063 = vmatpush1.bf16.msra.mxu0 0
      %1064 = vmatprep.subr.bf16.mxu0 0
      %1065 = vmatpush1.bf16.msra.mxu0 0
      %1066 = vmatprep.subr.bf16.mxu0 0
      %1067 = vmatpush1.bf16.msra.mxu0 0
      %1068 = vmatprep.subr.bf16.mxu0 0
      %1069 = vmatpush1.bf16.msra.mxu0 0
      %1070 = vmatprep.subr.bf16.mxu0 0
      %1071 = vmatpush1.bf16.msra.mxu0 0
      %1072 = vmatprep.mubr.bf16.mxu0 0
      %1073 = vmatmul.mubr.bf16.gmra.mrb[0].mxu0 %v1035
      %v1074 = vpop.f32.mrb[0].mxu0
      %v1075 = vadd.f32 0.0, %v1074
      %v1076 = vpop.f32.mrb[0].mxu0
      %v1077 = vpop.f32.mrb[0].mxu0
      %v1078 = vpop.f32.mrb[0].mxu0
      %1079 = vdwg.mxu0
      %v1080 = vadd.f32 %v861, %v1075
      %1081 = vrot.lane.b32.xlu0 %v374, 104
      %v1082 = vpop.permute.xlu0 %1081
      %1083 = vrot.lane.b32.xlu0 %v429, 104
      %v1084 = vpop.permute.xlu0 %1083
      %v1085 = vsel %vm438, %v1082, 0
      %v1087 = vsel %vm438, %v1084, 0
      %1089 = vmatprep.subr.mxu0 0.0
      %1090 = vmatpush1.xpose.msra.mxu0 %v1087
      %1091 = vmatprep.subr.mxu0 0.0
      %1092 = vmatpush1.xpose.msra.mxu0 0.0
      %1093 = vmatprep.subr.mxu0 0.0
      %1094 = vmatpush1.xpose.msra.mxu0 0.0
      %1095 = vmatprep.subr.mxu0 0.0
      %1096 = vmatpush1.xpose.msra.mxu0 0.0
      %1097 = vmatprep.subr.mxu0 0.0
      %1098 = vmatpush1.xpose.msra.mxu0 0.0
      %1099 = vmatprep.subr.mxu0 0.0
      %1100 = vmatpush1.xpose.msra.mxu0 0.0
      %1101 = vmatprep.subr.mxu0 0.0
      %1102 = vmatpush1.xpose.msra.mxu0 0.0
      %1103 = vmatprep.subr.mxu0 0.0
      %1104 = vmatpush1.xpose.msra.mxu0 0.0
      %1105 = vmatprep.subr.mxu0 0.0
      %1106 = vmatpush1.xpose.msra.mxu0 0.0
      %1107 = vmatprep.subr.mxu0 0.0
      %1108 = vmatpush1.xpose.msra.mxu0 0.0
      %1109 = vmatprep.subr.mxu0 0.0
      %1110 = vmatpush1.xpose.msra.mxu0 0.0
      %1111 = vmatprep.subr.mxu0 0.0
      %1112 = vmatpush1.xpose.msra.mxu0 0.0
      %1113 = vmatprep.subr.mxu0 0.0
      %1114 = vmatpush1.xpose.msra.mxu0 0.0
      %1115 = vmatprep.subr.mxu0 0.0
      %1116 = vmatpush1.xpose.msra.mxu0 0.0
      %1117 = vmatprep.subr.mxu0 0.0
      %1118 = vmatpush1.xpose.msra.mxu0 0.0
      %1119 = vmatprep.subr.mxu0 0.0
      %1120 = vmatpush1.xpose.msra.mxu0 0.0
      %1121 = vmatprep.subr.mxu0 0.0
      %1122 = vmatpush1.xpose.msra.mxu0 0.0
      %1123 = vmatprep.subr.mxu0 0.0
      %1124 = vmatpush1.xpose.msra.mxu0 0.0
      %1125 = vmatprep.subr.mxu0 0.0
      %1126 = vmatpush1.xpose.msra.mxu0 0.0
      %1127 = vmatprep.subr.mxu0 0.0
      %1128 = vmatpush1.xpose.msra.mxu0 0.0
      %1129 = vmatprep.subr.mxu0 0.0
      %1130 = vmatpush1.xpose.msra.mxu0 0.0
      %1131 = vmatprep.subr.mxu0 0.0
      %1132 = vmatpush1.xpose.msra.mxu0 0.0
      %1133 = vmatprep.subr.mxu0 0.0
      %1134 = vmatpush1.xpose.msra.mxu0 0.0
      %1135 = vmatprep.subr.mxu0 0.0
      %1136 = vmatpush1.xpose.msra.mxu0 0.0
      %1137 = vmatprep.subr.mxu0 0.0
      %1138 = vmatpush1.xpose.msra.mxu0 0.0
      %1139 = vmatprep.subr.mxu0 0.0
      %1140 = vmatpush1.xpose.msra.mxu0 0.0
      %1141 = vmatprep.subr.mxu0 0.0
      %1142 = vmatpush1.xpose.msra.mxu0 0.0
      %1143 = vmatprep.subr.mxu0 0.0
      %1144 = vmatpush1.xpose.msra.mxu0 0.0
      %1145 = vmatprep.subr.mxu0 0.0
      %1146 = vmatpush1.xpose.msra.mxu0 0.0
      %1147 = vmatprep.subr.mxu0 0.0
      %1148 = vmatpush1.xpose.msra.mxu0 0.0
      %1149 = vmatprep.subr.mxu0 0.0
      %1150 = vmatpush1.xpose.msra.mxu0 0.0
      %1151 = vmatprep.subr.mxu0 0.0
      %1152 = vmatpush1.xpose.msra.mxu0 0.0
      %1153 = vmatprep.mubr.f32.mxu0 0.0
      %1154 = vmatmul.mubr.f32.gmra.mrb[0].mxu0 %v1085
      %v1155 = vpop.f32.mrb[0].mxu0
      %v1156 = vadd.f32 0.0, %v1155
      %v1157 = vpop.f32.mrb[0].mxu0
      %1158 = vdwg.mxu0
      %v1159 = vmul.f32 %v1156, 0.35355338
      %v1160 = vsel %vm438, %v1159, -inf
      %1161 = vmax.xlane.f32.xlu0 %v1160
      %v1162 = vpop.xlane.xlu0 %1161
      %v1163 = vsub.f32 %v1159, %v1162
      %v1164 = vmul.f32 %v1163, 1.442695
      %v1165 = vpow.pop %v1164
      %v1166 = vsel %vm438, %v1165, 0.0
      %1167 = vadd.xlane.f32.xlu0 %v1166
      %v1168 = vpop.xlane.xlu0 %1167
      %v1169 = vrcp.pop %v1168
      %v1170 = vmul.f32 %v1165, %v1169
      %1171 = vrot.lane.b32.xlu0 %v429, 72
      %v1172 = vpop.permute.xlu0 %1171
      %v1175 = vsel %vm438, %v1170, 0
      %1177 = vmatprep.subr.mxu0 0.0
      %1178 = vmatpush1.msra.mxu0 %v1172
      %1179 = vmatprep.subr.mxu0 0.0
      %1180 = vmatpush1.msra.mxu0 0.0
      %1181 = vmatprep.subr.mxu0 0.0
      %1182 = vmatpush1.msra.mxu0 0.0
      %1183 = vmatprep.subr.mxu0 0.0
      %1184 = vmatpush1.msra.mxu0 0.0
      %1185 = vmatprep.subr.mxu0 0.0
      %1186 = vmatpush1.msra.mxu0 0.0
      %1187 = vmatprep.subr.mxu0 0.0
      %1188 = vmatpush1.msra.mxu0 0.0
      %1189 = vmatprep.subr.mxu0 0.0
      %1190 = vmatpush1.msra.mxu0 0.0
      %1191 = vmatprep.subr.mxu0 0.0
      %1192 = vmatpush1.msra.mxu0 0.0
      %1193 = vmatprep.subr.mxu0 0.0
      %1194 = vmatpush1.msra.mxu0 0.0
      %1195 = vmatprep.subr.mxu0 0.0
      %1196 = vmatpush1.msra.mxu0 0.0
      %1197 = vmatprep.subr.mxu0 0.0
      %1198 = vmatpush1.msra.mxu0 0.0
      %1199 = vmatprep.subr.mxu0 0.0
      %1200 = vmatpush1.msra.mxu0 0.0
      %1201 = vmatprep.subr.mxu0 0.0
      %1202 = vmatpush1.msra.mxu0 0.0
      %1203 = vmatprep.subr.mxu0 0.0
      %1204 = vmatpush1.msra.mxu0 0.0
      %1205 = vmatprep.subr.mxu0 0.0
      %1206 = vmatpush1.msra.mxu0 0.0
      %1207 = vmatprep.subr.mxu0 0.0
      %1208 = vmatpush1.msra.mxu0 0.0
      %1209 = vmatprep.subr.mxu0 0.0
      %1210 = vmatpush1.msra.mxu0 0.0
      %1211 = vmatprep.subr.mxu0 0.0
      %1212 = vmatpush1.msra.mxu0 0.0
      %1213 = vmatprep.subr.mxu0 0.0
      %1214 = vmatpush1.msra.mxu0 0.0
      %1215 = vmatprep.subr.mxu0 0.0
      %1216 = vmatpush1.msra.mxu0 0.0
      %1217 = vmatprep.subr.mxu0 0.0
      %1218 = vmatpush1.msra.mxu0 0.0
      %1219 = vmatprep.subr.mxu0 0.0
      %1220 = vmatpush1.msra.mxu0 0.0
      %1221 = vmatprep.subr.mxu0 0.0
      %1222 = vmatpush1.msra.mxu0 0.0
      %1223 = vmatprep.subr.mxu0 0.0
      %1224 = vmatpush1.msra.mxu0 0.0
      %1225 = vmatprep.subr.mxu0 0.0
      %1226 = vmatpush1.msra.mxu0 0.0
      %1227 = vmatprep.subr.mxu0 0.0
      %1228 = vmatpush1.msra.mxu0 0.0
      %1229 = vmatprep.subr.mxu0 0.0
      %1230 = vmatpush1.msra.mxu0 0.0
      %1231 = vmatprep.subr.mxu0 0.0
      %1232 = vmatpush1.msra.mxu0 0.0
      %1233 = vmatprep.subr.mxu0 0.0
      %1234 = vmatpush1.msra.mxu0 0.0
      %1235 = vmatprep.subr.mxu0 0.0
      %1236 = vmatpush1.msra.mxu0 0.0
      %1237 = vmatprep.subr.mxu0 0.0
      %1238 = vmatpush1.msra.mxu0 0.0
      %1239 = vmatprep.subr.mxu0 0.0
      %1240 = vmatpush1.msra.mxu0 0.0
      %1241 = vmatprep.mubr.f32.mxu0 0.0
      %1242 = vmatmul.mubr.f32.gmra.mrb[0].mxu0 %v1175
      %v1243 = vpop.f32.mrb[0].mxu0
      %v1244 = vadd.f32 0.0, %v1243
      %v1245 = vpop.f32.mrb[0].mxu0
      %1246 = vdwg.mxu0
      %v1247 = vpack.c.bf16 %v1244, %v1244
      %v1248 = vpack.c.bf16 %v437, %v437
      %v1250 = vsel %vm438, %v1247, 0
      %v1253 = vsel %vm776, %v1248, 0
      %1255 = vmatprep.subr.bf16.mxu0 0
      %1256 = vmatpush1.bf16.msra.mxu0 %v1253
      %1257 = vmatprep.subr.bf16.mxu0 0
      %1258 = vmatpush1.bf16.msra.mxu0 0
      %1259 = vmatprep.subr.bf16.mxu0 0
      %1260 = vmatpush1.bf16.msra.mxu0 0
      %1261 = vmatprep.subr.bf16.mxu0 0
      %1262 = vmatpush1.bf16.msra.mxu0 0
      %1263 = vmatprep.subr.bf16.mxu0 0
      %1264 = vmatpush1.bf16.msra.mxu0 0
      %1265 = vmatprep.subr.bf16.mxu0 0
      %1266 = vmatpush1.bf16.msra.mxu0 0
      %1267 = vmatprep.subr.bf16.mxu0 0
      %1268 = vmatpush1.bf16.msra.mxu0 0
      %1269 = vmatprep.subr.bf16.mxu0 0
      %1270 = vmatpush1.bf16.msra.mxu0 0
      %1271 = vmatprep.subr.bf16.mxu0 0
      %1272 = vmatpush1.bf16.msra.mxu0 0
      %1273 = vmatprep.subr.bf16.mxu0 0
      %1274 = vmatpush1.bf16.msra.mxu0 0
      %1275 = vmatprep.subr.bf16.mxu0 0
      %1276 = vmatpush1.bf16.msra.mxu0 0
      %1277 = vmatprep.subr.bf16.mxu0 0
      %1278 = vmatpush1.bf16.msra.mxu0 0
      %1279 = vmatprep.subr.bf16.mxu0 0
      %1280 = vmatpush1.bf16.msra.mxu0 0
      %1281 = vmatprep.subr.bf16.mxu0 0
      %1282 = vmatpush1.bf16.msra.mxu0 0
      %1283 = vmatprep.subr.bf16.mxu0 0
      %1284 = vmatpush1.bf16.msra.mxu0 0
      %1285 = vmatprep.subr.bf16.mxu0 0
      %1286 = vmatpush1.bf16.msra.mxu0 0
      %1287 = vmatprep.mubr.bf16.mxu0 0
      %1288 = vmatmul.mubr.bf16.gmra.mrb[0].mxu0 %v1250
      %v1289 = vpop.f32.mrb[0].mxu0
      %v1290 = vadd.f32 0.0, %v1289
      %v1291 = vpop.f32.mrb[0].mxu0
      %v1292 = vpop.f32.mrb[0].mxu0
      %v1293 = vpop.f32.mrb[0].mxu0
      %1294 = vdwg.mxu0
      %v1295 = vadd.f32 %v1080, %v1290
      %v1296 = vld [vmem:[%s5] sm:$0x1]
      %v1298 = vlaneseq
      %v1299 = vshrl.u32 %v1298, 7
      %v1300 = vsub.s32 0, %v1299
      %v1301 = vrot.slane %v1296, %v1300
      %v1303 = vadd.f32 %v1295, %v1301
      %v1304 = vadd.f32 %v319, %v1303
      %v1305 = vld [vmem:[%s6] sm:$0x1]
      %v1306 = vld [vmem:[%s7] sm:$0x1]
      %v1307 = vsel %vm335, %v1304, 0.0
      %1308 = vadd.xlane.f32.xlu0 %v1307
      %v1309 = vpop.xlane.xlu0 %1308
      %v1310 = vrcp.pop 32.0
      %v1311 = vmul.f32 %v1309, %v1310
      %v1312 = vsub.f32 %v1304, %v1311
      %v1313 = vmul.f32 %v1312, %v1312
      %v1314 = vsel %vm335, %v1313, 0.0
      %1315 = vadd.xlane.f32.xlu0 %v1314
      %v1316 = vpop.xlane.xlu0 %1315
      %v1317 = vmul.f32 %v1316, %v1310
      %v1318 = vadd.f32 %v1317, 1e-05
      %v1319 = vrsqrt.pop %v1318
      %v1320 = vmul.f32 %v1312, %v1319
      %v1322 = vlaneseq
      %v1323 = vshrl.u32 %v1322, 7
      %v1324 = vsub.s32 0, %v1323
      %v1325 = vrot.slane %v1305, %v1324
      %v1327 = vmul.f32 %v1320, %v1325
      %v1329 = vlaneseq
      %v1330 = vshrl.u32 %v1329, 7
      %v1331 = vsub.s32 0, %v1330
      %v1332 = vrot.slane %v1306, %v1331
      %v1334 = vadd.f32 %v1327, %v1332
      %1335 = vst.msk [vmem:[%s317] sm:$0xff] %vm335, %v1334
      %p1336 = scmp.lt.s32.totalorder %s19, 1
      %s1337 = scalar_select %p1336, %s19, 1
      %s1338 = smul.addr %s1337, 8
      %s1339 = scalar_lea.vmem %s8, %s1338
      // Predicated region
      $region53: #{translate_transformer_forward.18} parent=51 // pred_check
        %p1340 = pneg %p215
      $region54: #{translate_transformer_forward.18} parent=51 // pred_check_branch
        %1342 = sbr.rel (%p1340) target = $region56
      $region55: #{translate_transformer_forward.18} parent=51 // pred_region
        _
      $region56: #{translate_transformer_forward.18} parent=51 // pred_fallthru
        _
    $region52: #{translate_transformer_forward.18} parent=5 // pred_fallthru
      _
    %p1343 = scmp.le.s32.totalorder 2, %s14
    // Predicated region
    $region57: #{translate_transformer_forward.18} parent=5 // pred_check
      %p1344 = pneg %p1343
    $region58: #{translate_transformer_forward.18} parent=5 // pred_check_branch
      %1346 = sbr.rel (%p1344) target = $region60
    $region59: #{translate_transformer_forward.18} parent=5 // pred_region
      %s1347 = ssub.s32 %s14, 2
      // Predicated region
      $region61: #{translate_transformer_forward.18} parent=59 // pred_check
        %p1348 = pneg %p221
      $region62: #{translate_transformer_forward.18} parent=59 // pred_check_branch
        %1350 = sbr.rel (%p1348) target = $region64
      $region63: #{translate_transformer_forward.18} parent=59 // pred_region
        %p1351 = scmp.lt.s32.totalorder %s20, 1
        %s1352 = scalar_select %p1351, %s20, 1
        %s1353 = smul.addr %s1352, 8
        %s1354 = scalar_lea.vmem %s8, %s1353
      $region64: #{translate_transformer_forward.18} parent=59 // pred_fallthru
        _
    $region60: #{translate_transformer_forward.18} parent=5 // pred_fallthru
      _
  $region6: #{translate_transformer_forward.18} parent=0 // loop_footer
    %s18 = sadd.s32 1, %s14
  $region7: #{translate_transformer_forward.18} parent=0 // loop_footer_branch
    %13 = sbr.rel target = $region3
  $region8: #{translate_transformer_forward.18} parent=0 // loop_exit
    _

</llo_original>
